<compile_context>
chip_gen: v7x
topology: tpu7x:2x2x1
jax: 0.10.0
libtpu: 0.0.40
codegen_flags: <defaults>
</compile_context>

<pallas_src>
import jax
import jax.numpy as jnp
from jax import lax
from jax.experimental import pallas as pl
from jax.experimental.pallas import tpu as pltpu

MATMUL_DTYPE = jnp.bfloat16            # MXU-native on v5e / v6e / v7x
LANE = 128                             # lane width  -> pad H (and E) to multiple
SUBLANE = 8                            # f32 sublane -> pad B to multiple
VMEM_LIMIT_BYTES = 48 * 1024 * 1024    # fits v7x (64 MiB phys) and v5e/v6e (128 MiB)
CHUNK_VMEM_BUDGET = 24 * 1024 * 1024   # per-layer activation budget for auto Tc


def _round_up(x, m):
    return (x + m - 1) // m * m


# ----------------------------------------------------------------------------
# Kernel body: one direction of one LSTM layer per grid step, chunked over time.
# ----------------------------------------------------------------------------
def _make_lstm_layer_kernel(Tc, Bp, Hp, want_y, unroll):
    def kernel(x_ref, wih_ref, whh_ref, b_ref, out_ref, zx_ref, h_ref, c_ref):
        d = pl.program_id(0)           # direction: 0 = forward, 1 = backward
        ci = pl.program_id(1)          # time chunk (arbitrary / sequential axis)
        nc = pl.num_programs(1)

        @pl.when(ci == 0)
        def _init():
            h_ref[...] = jnp.zeros_like(h_ref)
            c_ref[...] = jnp.zeros_like(c_ref)

        # Hoisted, batched input projection: one MXU matmul per (direction, chunk)
        # with M = Tc*Bp rows; bias folded in once (no per-step broadcast).
        x2d = x_ref[...].reshape(Tc * Bp, -1)                       # bf16
        zx = jnp.dot(x2d, wih_ref[0],
                     preferred_element_type=jnp.float32) + b_ref[0]
        zx_ref[...] = zx.reshape(Tc, Bp, 4 * Hp)

        whh = whh_ref[0]               # [Hp, 4Hp] bf16, VMEM-resident

        def step(i, carry):
            h, c = carry
            # forward (d==0): row = i ; backward (d==1): row = Tc-1-i.  The chunk
            # itself is already block-reversed via the index_map.
            row = i + d * (Tc - 1 - 2 * i)
            z = zx_ref[row] + jnp.dot(h.astype(whh.dtype), whh,
                                      preferred_element_type=jnp.float32)
            sg = jax.nn.sigmoid(z[:, : 3 * Hp])         # gates (i, f, o)
            g = jnp.tanh(z[:, 3 * Hp:])                 # gate g
            c_new = sg[:, Hp:2 * Hp] * c + sg[:, :Hp] * g
            h_new = sg[:, 2 * Hp:3 * Hp] * jnp.tanh(c_new)
            if want_y:
                out_ref[row] = h_new.astype(out_ref.dtype)
            return h_new, c_new

        h, c = lax.fori_loop(0, Tc, step, (h_ref[...], c_ref[...]), unroll=unroll)
        h_ref[...] = h
        c_ref[...] = c

        if not want_y:
            # Last layer: emit this direction's final hidden state h_n
            # (== torch hidden[-2]/hidden[-1]); FC head runs in XLA glue.
            @pl.when(ci == nc - 1)
            def _final():
                out_ref[...] = h.astype(out_ref.dtype)

    return kernel


# ----------------------------------------------------------------------------
# Time-chunk selection against a VMEM budget.
# ----------------------------------------------------------------------------
def _pick_time_chunk(T, Bp, Din_p, Hp, time_chunk):
    if time_chunk is not None and T % time_chunk == 0:
        return time_chunk
    for tc in range(T, 0, -1):
        if T % tc:
            continue
        need = (2 * tc * Bp * Din_p * 2        # x chunk, double-buffered bf16
                + tc * Bp * 4 * Hp * 4         # zx scratch, f32
                + 2 * tc * Bp * Hp * 2)        # y chunk, double-buffered bf16
        if need <= CHUNK_VMEM_BUDGET:
            return tc
    return 1


# ----------------------------------------------------------------------------
# One fused (bi)LSTM layer: single pallas_call, both directions via the grid.
# ----------------------------------------------------------------------------
def lstm_layer(x, layer_p, *, is_last, time_chunk, single_buffer_weights):
    T, Bp, Din_p = x.shape
    num_dirs, _, fourHp = layer_p["w_ih"].shape
    Hp = fourHp // 4

    Tc = _pick_time_chunk(T, Bp, Din_p, Hp, time_chunk)
    nc = T // Tc
    unroll = max(1, min(8, Tc))

    def t_block(d, ci):
        # forward (d==0): chunk ci ; backward (d==1): chunk nc-1-ci
        return ci + d * (nc - 1 - 2 * ci)

    def w_spec(shape):
        idx = lambda d, ci: (d,) + (0,) * (len(shape) - 1)
        if single_buffer_weights:
            # Weights only change with the direction index -> single-buffer them.
            return pl.BlockSpec(shape, idx, pipeline_mode=pl.Buffered(1))
        return pl.BlockSpec(shape, idx)

    in_specs = [
        pl.BlockSpec((Tc, Bp, Din_p), lambda d, ci: (t_block(d, ci), 0, 0)),
        w_spec((1, Din_p, fourHp)),    # W_ih  (bf16)
        w_spec((1, Hp, fourHp)),       # W_hh  (bf16)
        w_spec((1, 1, fourHp)),        # bias  (f32)
    ]

    if is_last:
        out_shape = jax.ShapeDtypeStruct((Bp, num_dirs * Hp), jnp.float32)
        out_specs = pl.BlockSpec((Bp, Hp), lambda d, ci: (0, d))
    else:
        out_shape = jax.ShapeDtypeStruct((T, Bp, num_dirs * Hp), MATMUL_DTYPE)
        out_specs = pl.BlockSpec((Tc, Bp, Hp),
                                 lambda d, ci: (t_block(d, ci), 0, d))

    kernel = _make_lstm_layer_kernel(Tc, Bp, Hp, want_y=not is_last, unroll=unroll)

    return pl.pallas_call(
        kernel,
        out_shape=out_shape,
        grid_spec=pltpu.PrefetchScalarGridSpec(
            num_scalar_prefetch=0,
            grid=(num_dirs, nc),
            in_specs=in_specs,
            out_specs=out_specs,
            scratch_shapes=[
                pltpu.VMEM((Tc, Bp, fourHp), jnp.float32),  # zx (hoisted proj)
                pltpu.VMEM((Bp, Hp), jnp.float32),          # h state
                pltpu.VMEM((Bp, Hp), jnp.float32),          # c state
            ],
        ),
        compiler_params=pltpu.CompilerParams(
            dimension_semantics=("parallel", "arbitrary"),
            vmem_limit_bytes=VMEM_LIMIT_BYTES,
        ),
    )(x, layer_p["w_ih"], layer_p["w_hh"], layer_p["bias"])


# ----------------------------------------------------------------------------
# Full model forward (eval mode: dropout = identity)
# ----------------------------------------------------------------------------
def lstm_classifier_forward(text, params, time_chunk=None,
                            single_buffer_weights=True):
    B, _ = text.shape
    Bp = _round_up(B, SUBLANE)
    ids = jnp.pad(text.astype(jnp.int32), ((0, Bp - B), (0, 0)))
    ids_tm = jnp.transpose(ids)                                  # [T, Bp]
    x = jnp.take(params["embedding"], ids_tm, axis=0)            # [T, Bp, Ep] bf16

    n_layers = len(params["layers"])
    for li, lp in enumerate(params["layers"]):
        x = lstm_layer(x, lp, is_last=(li == n_layers - 1),
                       time_chunk=time_chunk,
                       single_buffer_weights=single_buffer_weights)

    hidden = x                                                   # [Bp, D*Hp] f32
    logits = jnp.dot(hidden, params["fc_w"],
                     precision=lax.Precision.HIGHEST,
                     preferred_element_type=jnp.float32) + params["fc_b"]
    return logits[:B]


# ----------------------------------------------------------------------------
# Parameter init (PyTorch layout) and packing (padded / reordered / bf16)
# ----------------------------------------------------------------------------
def init_raw_params(key, vocab_size, embedding_dim, hidden_dim, output_dim,
                    n_layers, bidirectional):
    num_dirs = 2 if bidirectional else 1
    k = 1.0 / float(hidden_dim) ** 0.5
    keys = iter(jax.random.split(key, 1 + 4 * n_layers * num_dirs + 2))
    raw = {
        "embedding": jax.random.normal(next(keys), (vocab_size, embedding_dim),
                                       jnp.float32),
        "lstm": [],
    }
    for layer in range(n_layers):
        in_dim = embedding_dim if layer == 0 else hidden_dim * num_dirs
        dirs = []
        for _ in range(num_dirs):
            dirs.append(dict(
                w_ih=jax.random.uniform(next(keys), (4 * hidden_dim, in_dim),
                                        jnp.float32, -k, k),
                w_hh=jax.random.uniform(next(keys), (4 * hidden_dim, hidden_dim),
                                        jnp.float32, -k, k),
                b_ih=jax.random.uniform(next(keys), (4 * hidden_dim,),
                                        jnp.float32, -k, k),
                b_hh=jax.random.uniform(next(keys), (4 * hidden_dim,),
                                        jnp.float32, -k, k)))
        raw["lstm"].append(dirs)
    fc_in = hidden_dim * num_dirs
    raw["fc_w"] = jax.random.uniform(next(keys), (output_dim, fc_in),
                                     jnp.float32, -k, k)
    raw["fc_b"] = jax.random.uniform(next(keys), (output_dim,),
                                     jnp.float32, -k, k)
    return raw


def _reorder_pad_gates(m, H, Hp):
    """[4H, X] torch gate order (i,f,g,o) -> [4Hp, X] order (i,f,o,g), zero-padded."""
    i, f, g, o = jnp.split(m, 4, axis=0)
    pad = lambda blk: jnp.pad(blk, ((0, Hp - H), (0, 0)))
    return jnp.concatenate([pad(i), pad(f), pad(o), pad(g)], axis=0)


def pack_params(raw, matmul_dtype=MATMUL_DTYPE):
    E = raw["embedding"].shape[1]
    num_dirs = len(raw["lstm"][0])
    H = raw["lstm"][0][0]["w_hh"].shape[1]
    Hp = _round_up(H, LANE)
    Ep = _round_up(E, LANE)
    O = raw["fc_w"].shape[0]

    packed = {"embedding": jnp.pad(raw["embedding"],
                                   ((0, 0), (0, Ep - E))).astype(matmul_dtype)}

    layers = []
    for li, dirs in enumerate(raw["lstm"]):
        din_p = Ep if li == 0 else num_dirs * Hp
        wih_l, whh_l, b_l = [], [], []
        for p in dirs:
            wih_t = _reorder_pad_gates(p["w_ih"], H, Hp).T          # [Din_raw, 4Hp]
            wih = jnp.zeros((din_p, 4 * Hp), jnp.float32)
            if li == 0:
                wih = wih.at[:E].set(wih_t)
            else:
                for dd in range(num_dirs):
                    wih = wih.at[dd * Hp: dd * Hp + H].set(
                        wih_t[dd * H:(dd + 1) * H])
            whh_t = _reorder_pad_gates(p["w_hh"], H, Hp).T          # [H, 4Hp]
            whh = jnp.zeros((Hp, 4 * Hp), jnp.float32).at[:H].set(whh_t)
            bias = _reorder_pad_gates((p["b_ih"] + p["b_hh"]).reshape(4 * H, 1),
                                      H, Hp).reshape(1, 4 * Hp)
            wih_l.append(wih); whh_l.append(whh); b_l.append(bias)
        layers.append(dict(
            w_ih=jnp.stack(wih_l).astype(matmul_dtype),   # [D, Din_p, 4Hp]
            w_hh=jnp.stack(whh_l).astype(matmul_dtype),   # [D, Hp,   4Hp]
            bias=jnp.stack(b_l).astype(jnp.float32)))     # [D, 1,    4Hp]
    packed["layers"] = layers

    fc_w = jnp.zeros((num_dirs * Hp, O), jnp.float32)
    fcw_t = raw["fc_w"].T                                          # [D*H, O]
    for d in range(num_dirs):
        fc_w = fc_w.at[d * Hp: d * Hp + H].set(fcw_t[d * H:(d + 1) * H])
    packed["fc_w"] = fc_w
    packed["fc_b"] = raw["fc_b"].reshape(1, O)
    return packed


# ----------------------------------------------------------------------------
# Pure-JAX reference with PyTorch semantics (f32, original unpacked weights)
# ----------------------------------------------------------------------------
def _reference_forward(text, raw):
    hi = lambda a, b: jnp.dot(a, b, precision=lax.Precision.HIGHEST)
    x = jnp.take(raw["embedding"], text.astype(jnp.int32), axis=0)  # [B, T, E]
    x = jnp.transpose(x, (1, 0, 2))                                 # [T, B, E]
    T, B, _ = x.shape
    finals = []
    for dirs in raw["lstm"]:
        H = dirs[0]["w_hh"].shape[1]
        ys, finals = [], []
        for d, p in enumerate(dirs):
            w_ih, w_hh = p["w_ih"].T, p["w_hh"].T
            b = (p["b_ih"] + p["b_hh"])[None]
            h = jnp.zeros((B, H), jnp.float32)
            c = jnp.zeros((B, H), jnp.float32)
            y = [None] * T
            order = range(T) if d == 0 else range(T - 1, -1, -1)
            for t in order:
                z = hi(x[t], w_ih) + hi(h, w_hh) + b
                i_g = jax.nn.sigmoid(z[:, :H])
                f_g = jax.nn.sigmoid(z[:, H:2 * H])
                g_g = jnp.tanh(z[:, 2 * H:3 * H])
                o_g = jax.nn.sigmoid(z[:, 3 * H:])
                c = f_g * c + i_g * g_g
                h = o_g * jnp.tanh(c)
                y[t] = h
            ys.append(jnp.stack(y, axis=0))
            finals.append(h)
        x = jnp.concatenate(ys, axis=-1) if len(dirs) == 2 else ys[0]
    hidden = jnp.concatenate(finals, axis=-1) if len(finals) == 2 else finals[0]
    return hi(hidden, raw["fc_w"].T) + raw["fc_b"][None]


# ----------------------------------------------------------------------------
if __name__ == "__main__":
    vocab_size, embedding_dim, hidden_dim = 32, 16, 32
    output_dim, n_layers, bidirectional = 4, 2, True
    batch, seq, time_chunk = 2, 8, 4

    key = jax.random.PRNGKey(0)
    k_param, k_text = jax.random.split(key)
    raw = init_raw_params(k_param, vocab_size, embedding_dim, hidden_dim,
                          output_dim, n_layers, bidirectional)
    params = pack_params(raw)
    text = jax.random.randint(k_text, (batch, seq), 0, vocab_size, jnp.int32)

    fwd = jax.jit(lstm_classifier_forward,
                  static_argnames=("time_chunk", "single_buffer_weights"))
    try:
        logits = fwd(text, params, time_chunk=time_chunk,
                     single_buffer_weights=True)
        jax.block_until_ready(logits)
    except Exception:
        # Fallback if this JAX build rejects pipeline_mode=pl.Buffered(1):
        # retry with default double-buffered weight operands.
        logits = fwd(text, params, time_chunk=time_chunk,
                     single_buffer_weights=False)
        jax.block_until_ready(logits)

    assert logits.shape == (batch, output_dim)
    ref = _reference_forward(text, raw)
    err = float(jnp.max(jnp.abs(logits - ref)))
    assert err < 5e-2, f"mismatch vs reference: max abs err {err}"
    print("KERNEL_OK")
</pallas_src>

<mosaic_0001>
module attributes {stable_mosaic.version = 11 : i64} {
  func.func @kernel(%arg0: i32, %arg1: i32, %arg2: memref<4x8x128xbf16, #tpu.memory_space<vmem>>, %arg3: memref<1x128x512xbf16, #tpu.memory_space<vmem>>, %arg4: memref<1x128x512xbf16, #tpu.memory_space<vmem>>, %arg5: memref<1x1x512xf32, #tpu.memory_space<vmem>>, %arg6: memref<4x8x128xbf16, #tpu.memory_space<vmem>>, %arg7: memref<4x8x512xf32, #tpu.memory_space<vmem>>, %arg8: memref<8x128xf32, #tpu.memory_space<vmem>>, %arg9: memref<8x128xf32, #tpu.memory_space<vmem>>) attributes {dimension_semantics = [#tpu.dimension_semantics<parallel>, #tpu.dimension_semantics<arbitrary>], iteration_bounds = array<i64: 2, 2>, scalar_prefetch = 0 : i64, scratch_operands = 3 : i64, tpu.core_type = #tpu.core_type<tc>, window_params = [{transform_indices = @transform_0, window_bounds = array<i64: 4, 8, 128>}, {pipeline_mode = #tpu.pipeline_mode<synchronous>, transform_indices = @transform_1, window_bounds = array<i64: 1, 128, 512>}, {pipeline_mode = #tpu.pipeline_mode<synchronous>, transform_indices = @transform_2, window_bounds = array<i64: 1, 128, 512>}, {pipeline_mode = #tpu.pipeline_mode<synchronous>, transform_indices = @transform_3, window_bounds = array<i64: 1, 1, 512>}, {transform_indices = @transform_4, window_bounds = array<i64: 4, 8, 128>}]} {
    %c0_i32 = arith.constant 0 : i32
    %0 = arith.cmpi eq, %arg1, %c0_i32 : i32
    %1 = arith.extui %0 : i1 to i32
    %c0_i32_0 = arith.constant 0 : i32
    %2 = arith.cmpi ne, %1, %c0_i32_0 : i32
    scf.if %2 {
      %cst_56 = arith.constant 0.000000e+00 : f32
      %144 = vector.broadcast %cst_56 : f32 to vector<8x128xf32>
      %c0_57 = arith.constant 0 : index
      %c0_58 = arith.constant 0 : index
      %145 = vector.load %arg8[%c0_57, %c0_58] : memref<8x128xf32, #tpu.memory_space<vmem>>, vector<8x128xf32>
      tpu.vector_store %arg8[%c0_57, %c0_58], %144 {strides = array<i32>} : memref<8x128xf32, #tpu.memory_space<vmem>>, vector<8x128xf32>,
      %cst_59 = arith.constant 0.000000e+00 : f32
      %146 = vector.broadcast %cst_59 : f32 to vector<8x128xf32>
      %c0_60 = arith.constant 0 : index
      %c0_61 = arith.constant 0 : index
      %147 = vector.load %arg9[%c0_60, %c0_61] : memref<8x128xf32, #tpu.memory_space<vmem>>, vector<8x128xf32>
      tpu.vector_store %arg9[%c0_60, %c0_61], %146 {strides = array<i32>} : memref<8x128xf32, #tpu.memory_space<vmem>>, vector<8x128xf32>,
    } else {
    }
    %c0 = arith.constant 0 : index
    %c0_1 = arith.constant 0 : index
    %c0_2 = arith.constant 0 : index
    %3 = vector.load %arg2[%c0, %c0_1, %c0_2] : memref<4x8x128xbf16, #tpu.memory_space<vmem>>, vector<4x8x128xbf16>
    %4 = vector.shape_cast %3 : vector<4x8x128xbf16> to vector<32x128xbf16>
    %c0_3 = arith.constant 0 : index
    %c0_4 = arith.constant 0 : index
    %c0_5 = arith.constant 0 : index
    %5 = vector.load %arg3[%c0_3, %c0_4, %c0_5] : memref<1x128x512xbf16, #tpu.memory_space<vmem>>, vector<1x128x512xbf16>
    %6 = vector.shape_cast %5 : vector<1x128x512xbf16> to vector<128x512xbf16>
    %cst = arith.constant dense<0.000000e+00> : vector<32x512xf32>
    %7 = tpu.matmul %4, %6, %cst {dimension_numbers = #tpu.dot_dimension_numbers<[1], [0], [0], [1], [0, 0, 1, 1], [], []>} : vector<32x128xbf16>, vector<128x512xbf16>, vector<32x512xf32> -> vector<32x512xf32>
    %c0_6 = arith.constant 0 : index
    %c0_7 = arith.constant 0 : index
    %c0_8 = arith.constant 0 : index
    %8 = vector.load %arg5[%c0_6, %c0_7, %c0_8] : memref<1x1x512xf32, #tpu.memory_space<vmem>>, vector<1x1x512xf32>
    %9 = vector.shape_cast %8 : vector<1x1x512xf32> to vector<1x512xf32>
    %10 = vector.broadcast %9 : vector<1x512xf32> to vector<32x512xf32>
    %11 = arith.addf %7, %10 : vector<32x512xf32>
    %12 = vector.shape_cast %11 : vector<32x512xf32> to vector<4x8x512xf32>
    %c0_9 = arith.constant 0 : index
    %c0_10 = arith.constant 0 : index
    %c0_11 = arith.constant 0 : index
    %13 = vector.load %arg7[%c0_9, %c0_10, %c0_11] : memref<4x8x512xf32, #tpu.memory_space<vmem>>, vector<4x8x512xf32>
    tpu.vector_store %arg7[%c0_9, %c0_10, %c0_11], %12 {strides = array<i32>} : memref<4x8x512xf32, #tpu.memory_space<vmem>>, vector<4x8x512xf32>,
    %c0_12 = arith.constant 0 : index
    %c0_13 = arith.constant 0 : index
    %c0_14 = arith.constant 0 : index
    %14 = vector.load %arg4[%c0_12, %c0_13, %c0_14] : memref<1x128x512xbf16, #tpu.memory_space<vmem>>, vector<1x128x512xbf16>
    %15 = vector.shape_cast %14 : vector<1x128x512xbf16> to vector<128x512xbf16>
    %c0_15 = arith.constant 0 : index
    %c0_16 = arith.constant 0 : index
    %16 = vector.load %arg8[%c0_15, %c0_16] : memref<8x128xf32, #tpu.memory_space<vmem>>, vector<8x128xf32>
    %c0_17 = arith.constant 0 : index
    %c0_18 = arith.constant 0 : index
    %17 = vector.load %arg9[%c0_17, %c0_18] : memref<8x128xf32, #tpu.memory_space<vmem>>, vector<8x128xf32>
    %c0_i32_19 = arith.constant 0 : i32
    %c2_i32 = arith.constant 2 : i32
    %18 = arith.muli %c2_i32, %c0_i32_19 : i32
    %c3_i32 = arith.constant 3 : i32
    %19 = arith.subi %c3_i32, %18 : i32
    %20 = arith.muli %arg0, %19 : i32
    %21 = arith.addi %c0_i32_19, %20 : i32
    %22 = arith.index_cast %21 : i32 to index
    %c0_20 = arith.constant 0 : index
    %c0_21 = arith.constant 0 : index
    %23 = vector.load %arg7[%22, %c0_20, %c0_21] : memref<4x8x512xf32, #tpu.memory_space<vmem>>, vector<1x8x512xf32>
    %24 = vector.shape_cast %23 : vector<1x8x512xf32> to vector<8x512xf32>
    %25 = arith.truncf %16 : vector<8x128xf32> to vector<8x128xbf16>
    %cst_22 = arith.constant dense<0.000000e+00> : vector<8x512xf32>
    %26 = tpu.matmul %25, %15, %cst_22 {dimension_numbers = #tpu.dot_dimension_numbers<[1], [0], [0], [1], [0, 0, 1, 1], [], []>} : vector<8x128xbf16>, vector<128x512xbf16>, vector<8x512xf32> -> vector<8x512xf32>
    %27 = arith.addf %24, %26 : vector<8x512xf32>
    %28 = vector.extract_strided_slice %27 {offsets = [0, 0], sizes = [8, 384], strides = [1, 1]} : vector<8x512xf32> to vector<8x384xf32>
    %29 = arith.negf %28 : vector<8x384xf32>
    %30 = math.exp %29 : vector<8x384xf32>
    %cst_23 = arith.constant 1.000000e+00 : f32
    %31 = vector.broadcast %cst_23 : f32 to vector<8x384xf32>
    %32 = arith.addf %31, %30 : vector<8x384xf32>
    %33 = arith.divf %31, %32 : vector<8x384xf32>
    %34 = vector.extract_strided_slice %27 {offsets = [0, 384], sizes = [8, 128], strides = [1, 1]} : vector<8x512xf32> to vector<8x128xf32>
    %35 = math.tanh %34 : vector<8x128xf32>
    %36 = vector.extract_strided_slice %33 {offsets = [0, 128], sizes = [8, 128], strides = [1, 1]} : vector<8x384xf32> to vector<8x128xf32>
    %37 = arith.mulf %36, %17 : vector<8x128xf32>
    %38 = vector.extract_strided_slice %33 {offsets = [0, 0], sizes = [8, 128], strides = [1, 1]} : vector<8x384xf32> to vector<8x128xf32>
    %39 = arith.mulf %38, %35 : vector<8x128xf32>
    %40 = arith.addf %37, %39 : vector<8x128xf32>
    %41 = vector.extract_strided_slice %33 {offsets = [0, 256], sizes = [8, 128], strides = [1, 1]} : vector<8x384xf32> to vector<8x128xf32>
    %42 = math.tanh %40 : vector<8x128xf32>
    %43 = arith.mulf %41, %42 : vector<8x128xf32>
    %44 = arith.truncf %43 : vector<8x128xf32> to vector<8x128xbf16>
    %45 = arith.index_cast %21 : i32 to index
    %c0_24 = arith.constant 0 : index
    %c0_25 = arith.constant 0 : index
    %46 = vector.load %arg6[%45, %c0_24, %c0_25] : memref<4x8x128xbf16, #tpu.memory_space<vmem>>, vector<1x8x128xbf16>
    %47 = vector.shape_cast %46 : vector<1x8x128xbf16> to vector<8x128xbf16>
    %48 = vector.shape_cast %44 : vector<8x128xbf16> to vector<1x8x128xbf16>
    tpu.vector_store %arg6[%45, %c0_24, %c0_25], %48 {strides = array<i32>} : memref<4x8x128xbf16, #tpu.memory_space<vmem>>, vector<1x8x128xbf16>,
    %c1_i32 = arith.constant 1 : i32
    %c2_i32_26 = arith.constant 2 : i32
    %49 = arith.muli %c2_i32_26, %c1_i32 : i32
    %c3_i32_27 = arith.constant 3 : i32
    %50 = arith.subi %c3_i32_27, %49 : i32
    %51 = arith.muli %arg0, %50 : i32
    %52 = arith.addi %c1_i32, %51 : i32
    %53 = arith.index_cast %52 : i32 to index
    %c0_28 = arith.constant 0 : index
    %c0_29 = arith.constant 0 : index
    %54 = vector.load %arg7[%53, %c0_28, %c0_29] : memref<4x8x512xf32, #tpu.memory_space<vmem>>, vector<1x8x512xf32>
    %55 = vector.shape_cast %54 : vector<1x8x512xf32> to vector<8x512xf32>
    %56 = arith.truncf %43 : vector<8x128xf32> to vector<8x128xbf16>
    %cst_30 = arith.constant dense<0.000000e+00> : vector<8x512xf32>
    %57 = tpu.matmul %56, %15, %cst_30 {dimension_numbers = #tpu.dot_dimension_numbers<[1], [0], [0], [1], [0, 0, 1, 1], [], []>} : vector<8x128xbf16>, vector<128x512xbf16>, vector<8x512xf32> -> vector<8x512xf32>
    %58 = arith.addf %55, %57 : vector<8x512xf32>
    %59 = vector.extract_strided_slice %58 {offsets = [0, 0], sizes = [8, 384], strides = [1, 1]} : vector<8x512xf32> to vector<8x384xf32>
    %60 = arith.negf %59 : vector<8x384xf32>
    %61 = math.exp %60 : vector<8x384xf32>
    %cst_31 = arith.constant 1.000000e+00 : f32
    %62 = vector.broadcast %cst_31 : f32 to vector<8x384xf32>
    %63 = arith.addf %62, %61 : vector<8x384xf32>
    %64 = arith.divf %62, %63 : vector<8x384xf32>
    %65 = vector.extract_strided_slice %58 {offsets = [0, 384], sizes = [8, 128], strides = [1, 1]} : vector<8x512xf32> to vector<8x128xf32>
    %66 = math.tanh %65 : vector<8x128xf32>
    %67 = vector.extract_strided_slice %64 {offsets = [0, 128], sizes = [8, 128], strides = [1, 1]} : vector<8x384xf32> to vector<8x128xf32>
    %68 = arith.mulf %67, %40 : vector<8x128xf32>
    %69 = vector.extract_strided_slice %64 {offsets = [0, 0], sizes = [8, 128], strides = [1, 1]} : vector<8x384xf32> to vector<8x128xf32>
    %70 = arith.mulf %69, %66 : vector<8x128xf32>
    %71 = arith.addf %68, %70 : vector<8x128xf32>
    %72 = vector.extract_strided_slice %64 {offsets = [0, 256], sizes = [8, 128], strides = [1, 1]} : vector<8x384xf32> to vector<8x128xf32>
    %73 = math.tanh %71 : vector<8x128xf32>
    %74 = arith.mulf %72, %73 : vector<8x128xf32>
    %75 = arith.truncf %74 : vector<8x128xf32> to vector<8x128xbf16>
    %76 = arith.index_cast %52 : i32 to index
    %c0_32 = arith.constant 0 : index
    %c0_33 = arith.constant 0 : index
    %77 = vector.load %arg6[%76, %c0_32, %c0_33] : memref<4x8x128xbf16, #tpu.memory_space<vmem>>, vector<1x8x128xbf16>
    %78 = vector.shape_cast %77 : vector<1x8x128xbf16> to vector<8x128xbf16>
    %79 = vector.shape_cast %75 : vector<8x128xbf16> to vector<1x8x128xbf16>
    tpu.vector_store %arg6[%76, %c0_32, %c0_33], %79 {strides = array<i32>} : memref<4x8x128xbf16, #tpu.memory_space<vmem>>, vector<1x8x128xbf16>,
    %c2_i32_34 = arith.constant 2 : i32
    %c2_i32_35 = arith.constant 2 : i32
    %80 = arith.muli %c2_i32_35, %c2_i32_34 : i32
    %c3_i32_36 = arith.constant 3 : i32
    %81 = arith.subi %c3_i32_36, %80 : i32
    %82 = arith.muli %arg0, %81 : i32
    %83 = arith.addi %c2_i32_34, %82 : i32
    %84 = arith.index_cast %83 : i32 to index
    %c0_37 = arith.constant 0 : index
    %c0_38 = arith.constant 0 : index
    %85 = vector.load %arg7[%84, %c0_37, %c0_38] : memref<4x8x512xf32, #tpu.memory_space<vmem>>, vector<1x8x512xf32>
    %86 = vector.shape_cast %85 : vector<1x8x512xf32> to vector<8x512xf32>
    %87 = arith.truncf %74 : vector<8x128xf32> to vector<8x128xbf16>
    %cst_39 = arith.constant dense<0.000000e+00> : vector<8x512xf32>
    %88 = tpu.matmul %87, %15, %cst_39 {dimension_numbers = #tpu.dot_dimension_numbers<[1], [0], [0], [1], [0, 0, 1, 1], [], []>} : vector<8x128xbf16>, vector<128x512xbf16>, vector<8x512xf32> -> vector<8x512xf32>
    %89 = arith.addf %86, %88 : vector<8x512xf32>
    %90 = vector.extract_strided_slice %89 {offsets = [0, 0], sizes = [8, 384], strides = [1, 1]} : vector<8x512xf32> to vector<8x384xf32>
    %91 = arith.negf %90 : vector<8x384xf32>
    %92 = math.exp %91 : vector<8x384xf32>
    %cst_40 = arith.constant 1.000000e+00 : f32
    %93 = vector.broadcast %cst_40 : f32 to vector<8x384xf32>
    %94 = arith.addf %93, %92 : vector<8x384xf32>
    %95 = arith.divf %93, %94 : vector<8x384xf32>
    %96 = vector.extract_strided_slice %89 {offsets = [0, 384], sizes = [8, 128], strides = [1, 1]} : vector<8x512xf32> to vector<8x128xf32>
    %97 = math.tanh %96 : vector<8x128xf32>
    %98 = vector.extract_strided_slice %95 {offsets = [0, 128], sizes = [8, 128], strides = [1, 1]} : vector<8x384xf32> to vector<8x128xf32>
    %99 = arith.mulf %98, %71 : vector<8x128xf32>
    %100 = vector.extract_strided_slice %95 {offsets = [0, 0], sizes = [8, 128], strides = [1, 1]} : vector<8x384xf32> to vector<8x128xf32>
    %101 = arith.mulf %100, %97 : vector<8x128xf32>
    %102 = arith.addf %99, %101 : vector<8x128xf32>
    %103 = vector.extract_strided_slice %95 {offsets = [0, 256], sizes = [8, 128], strides = [1, 1]} : vector<8x384xf32> to vector<8x128xf32>
    %104 = math.tanh %102 : vector<8x128xf32>
    %105 = arith.mulf %103, %104 : vector<8x128xf32>
    %106 = arith.truncf %105 : vector<8x128xf32> to vector<8x128xbf16>
    %107 = arith.index_cast %83 : i32 to index
    %c0_41 = arith.constant 0 : index
    %c0_42 = arith.constant 0 : index
    %108 = vector.load %arg6[%107, %c0_41, %c0_42] : memref<4x8x128xbf16, #tpu.memory_space<vmem>>, vector<1x8x128xbf16>
    %109 = vector.shape_cast %108 : vector<1x8x128xbf16> to vector<8x128xbf16>
    %110 = vector.shape_cast %106 : vector<8x128xbf16> to vector<1x8x128xbf16>
    tpu.vector_store %arg6[%107, %c0_41, %c0_42], %110 {strides = array<i32>} : memref<4x8x128xbf16, #tpu.memory_space<vmem>>, vector<1x8x128xbf16>,
    %c3_i32_43 = arith.constant 3 : i32
    %c2_i32_44 = arith.constant 2 : i32
    %111 = arith.muli %c2_i32_44, %c3_i32_43 : i32
    %c3_i32_45 = arith.constant 3 : i32
    %112 = arith.subi %c3_i32_45, %111 : i32
    %113 = arith.muli %arg0, %112 : i32
    %114 = arith.addi %c3_i32_43, %113 : i32
    %115 = arith.index_cast %114 : i32 to index
    %c0_46 = arith.constant 0 : index
    %c0_47 = arith.constant 0 : index
    %116 = vector.load %arg7[%115, %c0_46, %c0_47] : memref<4x8x512xf32, #tpu.memory_space<vmem>>, vector<1x8x512xf32>
    %117 = vector.shape_cast %116 : vector<1x8x512xf32> to vector<8x512xf32>
    %118 = arith.truncf %105 : vector<8x128xf32> to vector<8x128xbf16>
    %cst_48 = arith.constant dense<0.000000e+00> : vector<8x512xf32>
    %119 = tpu.matmul %118, %15, %cst_48 {dimension_numbers = #tpu.dot_dimension_numbers<[1], [0], [0], [1], [0, 0, 1, 1], [], []>} : vector<8x128xbf16>, vector<128x512xbf16>, vector<8x512xf32> -> vector<8x512xf32>
    %120 = arith.addf %117, %119 : vector<8x512xf32>
    %121 = vector.extract_strided_slice %120 {offsets = [0, 0], sizes = [8, 384], strides = [1, 1]} : vector<8x512xf32> to vector<8x384xf32>
    %122 = arith.negf %121 : vector<8x384xf32>
    %123 = math.exp %122 : vector<8x384xf32>
    %cst_49 = arith.constant 1.000000e+00 : f32
    %124 = vector.broadcast %cst_49 : f32 to vector<8x384xf32>
    %125 = arith.addf %124, %123 : vector<8x384xf32>
    %126 = arith.divf %124, %125 : vector<8x384xf32>
    %127 = vector.extract_strided_slice %120 {offsets = [0, 384], sizes = [8, 128], strides = [1, 1]} : vector<8x512xf32> to vector<8x128xf32>
    %128 = math.tanh %127 : vector<8x128xf32>
    %129 = vector.extract_strided_slice %126 {offsets = [0, 128], sizes = [8, 128], strides = [1, 1]} : vector<8x384xf32> to vector<8x128xf32>
    %130 = arith.mulf %129, %102 : vector<8x128xf32>
    %131 = vector.extract_strided_slice %126 {offsets = [0, 0], sizes = [8, 128], strides = [1, 1]} : vector<8x384xf32> to vector<8x128xf32>
    %132 = arith.mulf %131, %128 : vector<8x128xf32>
    %133 = arith.addf %130, %132 : vector<8x128xf32>
    %134 = vector.extract_strided_slice %126 {offsets = [0, 256], sizes = [8, 128], strides = [1, 1]} : vector<8x384xf32> to vector<8x128xf32>
    %135 = math.tanh %133 : vector<8x128xf32>
    %136 = arith.mulf %134, %135 : vector<8x128xf32>
    %137 = arith.truncf %136 : vector<8x128xf32> to vector<8x128xbf16>
    %138 = arith.index_cast %114 : i32 to index
    %c0_50 = arith.constant 0 : index
    %c0_51 = arith.constant 0 : index
    %139 = vector.load %arg6[%138, %c0_50, %c0_51] : memref<4x8x128xbf16, #tpu.memory_space<vmem>>, vector<1x8x128xbf16>
    %140 = vector.shape_cast %139 : vector<1x8x128xbf16> to vector<8x128xbf16>
    %141 = vector.shape_cast %137 : vector<8x128xbf16> to vector<1x8x128xbf16>
    tpu.vector_store %arg6[%138, %c0_50, %c0_51], %141 {strides = array<i32>} : memref<4x8x128xbf16, #tpu.memory_space<vmem>>, vector<1x8x128xbf16>,
    %c4_i32 = arith.constant 4 : i32
    %c0_52 = arith.constant 0 : index
    %c0_53 = arith.constant 0 : index
    %142 = vector.load %arg8[%c0_52, %c0_53] : memref<8x128xf32, #tpu.memory_space<vmem>>, vector<8x128xf32>
    tpu.vector_store %arg8[%c0_52, %c0_53], %136 {strides = array<i32>} : memref<8x128xf32, #tpu.memory_space<vmem>>, vector<8x128xf32>,
    %c0_54 = arith.constant 0 : index
    %c0_55 = arith.constant 0 : index
    %143 = vector.load %arg9[%c0_54, %c0_55] : memref<8x128xf32, #tpu.memory_space<vmem>>, vector<8x128xf32>
    tpu.vector_store %arg9[%c0_54, %c0_55], %133 {strides = array<i32>} : memref<8x128xf32, #tpu.memory_space<vmem>>, vector<8x128xf32>,
    return
  }
  func.func @transform_0(%arg0: i32, %arg1: i32) -> (i32, i32, i32) {
    %c2_i32 = arith.constant 2 : i32
    %0 = arith.muli %c2_i32, %arg1 : i32
    %c1_i32 = arith.constant 1 : i32
    %1 = arith.subi %c1_i32, %0 : i32
    %2 = arith.muli %arg0, %1 : i32
    %3 = arith.addi %arg1, %2 : i32
    %c0_i32 = arith.constant 0 : i32
    %c0_i32_0 = arith.constant 0 : i32
    %c0_i32_1 = arith.constant 0 : i32
    return %3, %c0_i32, %c0_i32_0 : i32, i32, i32
  }
  func.func @transform_1(%arg0: i32, %arg1: i32) -> (i32, i32, i32) {
    %c0_i32 = arith.constant 0 : i32
    %c0_i32_0 = arith.constant 0 : i32
    %c0_i32_1 = arith.constant 0 : i32
    return %arg0, %c0_i32, %c0_i32_0 : i32, i32, i32
  }
  func.func @transform_2(%arg0: i32, %arg1: i32) -> (i32, i32, i32) {
    %c0_i32 = arith.constant 0 : i32
    %c0_i32_0 = arith.constant 0 : i32
    %c0_i32_1 = arith.constant 0 : i32
    return %arg0, %c0_i32, %c0_i32_0 : i32, i32, i32
  }
  func.func @transform_3(%arg0: i32, %arg1: i32) -> (i32, i32, i32) {
    %c0_i32 = arith.constant 0 : i32
    %c0_i32_0 = arith.constant 0 : i32
    %c0_i32_1 = arith.constant 0 : i32
    return %arg0, %c0_i32, %c0_i32_0 : i32, i32, i32
  }
  func.func @transform_4(%arg0: i32, %arg1: i32) -> (i32, i32, i32) {
    %c2_i32 = arith.constant 2 : i32
    %0 = arith.muli %c2_i32, %arg1 : i32
    %c1_i32 = arith.constant 1 : i32
    %1 = arith.subi %c1_i32, %0 : i32
    %2 = arith.muli %arg0, %1 : i32
    %3 = arith.addi %arg1, %2 : i32
    %c0_i32 = arith.constant 0 : i32
    %c0_i32_0 = arith.constant 0 : i32
    return %3, %c0_i32, %arg0 : i32, i32, i32
  }
}

module attributes {stable_mosaic.version = 11 : i64} {
  func.func @kernel(%arg0: i32, %arg1: i32, %arg2: memref<4x8x256xbf16, #tpu.memory_space<vmem>>, %arg3: memref<1x256x512xbf16, #tpu.memory_space<vmem>>, %arg4: memref<1x128x512xbf16, #tpu.memory_space<vmem>>, %arg5: memref<1x1x512xf32, #tpu.memory_space<vmem>>, %arg6: memref<8x128xf32, #tpu.memory_space<vmem>>, %arg7: memref<4x8x512xf32, #tpu.memory_space<vmem>>, %arg8: memref<8x128xf32, #tpu.memory_space<vmem>>, %arg9: memref<8x128xf32, #tpu.memory_space<vmem>>) attributes {dimension_semantics = [#tpu.dimension_semantics<parallel>, #tpu.dimension_semantics<arbitrary>], iteration_bounds = array<i64: 2, 2>, scalar_prefetch = 0 : i64, scratch_operands = 3 : i64, tpu.core_type = #tpu.core_type<tc>, window_params = [{transform_indices = @transform_0, window_bounds = array<i64: 4, 8, 256>}, {pipeline_mode = #tpu.pipeline_mode<synchronous>, transform_indices = @transform_1, window_bounds = array<i64: 1, 256, 512>}, {pipeline_mode = #tpu.pipeline_mode<synchronous>, transform_indices = @transform_2, window_bounds = array<i64: 1, 128, 512>}, {pipeline_mode = #tpu.pipeline_mode<synchronous>, transform_indices = @transform_3, window_bounds = array<i64: 1, 1, 512>}, {transform_indices = @transform_4, window_bounds = array<i64: 8, 128>}]} {
    %c0_i32 = arith.constant 0 : i32
    %0 = arith.cmpi eq, %arg1, %c0_i32 : i32
    %1 = arith.extui %0 : i1 to i32
    %c0_i32_0 = arith.constant 0 : i32
    %2 = arith.cmpi ne, %1, %c0_i32_0 : i32
    scf.if %2 {
      %cst_50 = arith.constant 0.000000e+00 : f32
      %127 = vector.broadcast %cst_50 : f32 to vector<8x128xf32>
      %c0_51 = arith.constant 0 : index
      %c0_52 = arith.constant 0 : index
      %128 = vector.load %arg8[%c0_51, %c0_52] : memref<8x128xf32, #tpu.memory_space<vmem>>, vector<8x128xf32>
      tpu.vector_store %arg8[%c0_51, %c0_52], %127 {strides = array<i32>} : memref<8x128xf32, #tpu.memory_space<vmem>>, vector<8x128xf32>,
      %cst_53 = arith.constant 0.000000e+00 : f32
      %129 = vector.broadcast %cst_53 : f32 to vector<8x128xf32>
      %c0_54 = arith.constant 0 : index
      %c0_55 = arith.constant 0 : index
      %130 = vector.load %arg9[%c0_54, %c0_55] : memref<8x128xf32, #tpu.memory_space<vmem>>, vector<8x128xf32>
      tpu.vector_store %arg9[%c0_54, %c0_55], %129 {strides = array<i32>} : memref<8x128xf32, #tpu.memory_space<vmem>>, vector<8x128xf32>,
    } else {
    }
    %c0 = arith.constant 0 : index
    %c0_1 = arith.constant 0 : index
    %c0_2 = arith.constant 0 : index
    %3 = vector.load %arg2[%c0, %c0_1, %c0_2] : memref<4x8x256xbf16, #tpu.memory_space<vmem>>, vector<4x8x256xbf16>
    %4 = vector.shape_cast %3 : vector<4x8x256xbf16> to vector<32x256xbf16>
    %c0_3 = arith.constant 0 : index
    %c0_4 = arith.constant 0 : index
    %c0_5 = arith.constant 0 : index
    %5 = vector.load %arg3[%c0_3, %c0_4, %c0_5] : memref<1x256x512xbf16, #tpu.memory_space<vmem>>, vector<1x256x512xbf16>
    %6 = vector.shape_cast %5 : vector<1x256x512xbf16> to vector<256x512xbf16>
    %cst = arith.constant dense<0.000000e+00> : vector<32x512xf32>
    %7 = tpu.matmul %4, %6, %cst {dimension_numbers = #tpu.dot_dimension_numbers<[1], [0], [0], [1], [0, 0, 1, 1], [], []>} : vector<32x256xbf16>, vector<256x512xbf16>, vector<32x512xf32> -> vector<32x512xf32>
    %c0_6 = arith.constant 0 : index
    %c0_7 = arith.constant 0 : index
    %c0_8 = arith.constant 0 : index
    %8 = vector.load %arg5[%c0_6, %c0_7, %c0_8] : memref<1x1x512xf32, #tpu.memory_space<vmem>>, vector<1x1x512xf32>
    %9 = vector.shape_cast %8 : vector<1x1x512xf32> to vector<1x512xf32>
    %10 = vector.broadcast %9 : vector<1x512xf32> to vector<32x512xf32>
    %11 = arith.addf %7, %10 : vector<32x512xf32>
    %12 = vector.shape_cast %11 : vector<32x512xf32> to vector<4x8x512xf32>
    %c0_9 = arith.constant 0 : index
    %c0_10 = arith.constant 0 : index
    %c0_11 = arith.constant 0 : index
    %13 = vector.load %arg7[%c0_9, %c0_10, %c0_11] : memref<4x8x512xf32, #tpu.memory_space<vmem>>, vector<4x8x512xf32>
    tpu.vector_store %arg7[%c0_9, %c0_10, %c0_11], %12 {strides = array<i32>} : memref<4x8x512xf32, #tpu.memory_space<vmem>>, vector<4x8x512xf32>,
    %c0_12 = arith.constant 0 : index
    %c0_13 = arith.constant 0 : index
    %c0_14 = arith.constant 0 : index
    %14 = vector.load %arg4[%c0_12, %c0_13, %c0_14] : memref<1x128x512xbf16, #tpu.memory_space<vmem>>, vector<1x128x512xbf16>
    %15 = vector.shape_cast %14 : vector<1x128x512xbf16> to vector<128x512xbf16>
    %c0_15 = arith.constant 0 : index
    %c0_16 = arith.constant 0 : index
    %16 = vector.load %arg8[%c0_15, %c0_16] : memref<8x128xf32, #tpu.memory_space<vmem>>, vector<8x128xf32>
    %c0_17 = arith.constant 0 : index
    %c0_18 = arith.constant 0 : index
    %17 = vector.load %arg9[%c0_17, %c0_18] : memref<8x128xf32, #tpu.memory_space<vmem>>, vector<8x128xf32>
    %c0_i32_19 = arith.constant 0 : i32
    %c2_i32 = arith.constant 2 : i32
    %18 = arith.muli %c2_i32, %c0_i32_19 : i32
    %c3_i32 = arith.constant 3 : i32
    %19 = arith.subi %c3_i32, %18 : i32
    %20 = arith.muli %arg0, %19 : i32
    %21 = arith.addi %c0_i32_19, %20 : i32
    %22 = arith.index_cast %21 : i32 to index
    %c0_20 = arith.constant 0 : index
    %c0_21 = arith.constant 0 : index
    %23 = vector.load %arg7[%22, %c0_20, %c0_21] : memref<4x8x512xf32, #tpu.memory_space<vmem>>, vector<1x8x512xf32>
    %24 = vector.shape_cast %23 : vector<1x8x512xf32> to vector<8x512xf32>
    %25 = arith.truncf %16 : vector<8x128xf32> to vector<8x128xbf16>
    %cst_22 = arith.constant dense<0.000000e+00> : vector<8x512xf32>
    %26 = tpu.matmul %25, %15, %cst_22 {dimension_numbers = #tpu.dot_dimension_numbers<[1], [0], [0], [1], [0, 0, 1, 1], [], []>} : vector<8x128xbf16>, vector<128x512xbf16>, vector<8x512xf32> -> vector<8x512xf32>
    %27 = arith.addf %24, %26 : vector<8x512xf32>
    %28 = vector.extract_strided_slice %27 {offsets = [0, 0], sizes = [8, 384], strides = [1, 1]} : vector<8x512xf32> to vector<8x384xf32>
    %29 = arith.negf %28 : vector<8x384xf32>
    %30 = math.exp %29 : vector<8x384xf32>
    %cst_23 = arith.constant 1.000000e+00 : f32
    %31 = vector.broadcast %cst_23 : f32 to vector<8x384xf32>
    %32 = arith.addf %31, %30 : vector<8x384xf32>
    %33 = arith.divf %31, %32 : vector<8x384xf32>
    %34 = vector.extract_strided_slice %27 {offsets = [0, 384], sizes = [8, 128], strides = [1, 1]} : vector<8x512xf32> to vector<8x128xf32>
    %35 = math.tanh %34 : vector<8x128xf32>
    %36 = vector.extract_strided_slice %33 {offsets = [0, 128], sizes = [8, 128], strides = [1, 1]} : vector<8x384xf32> to vector<8x128xf32>
    %37 = arith.mulf %36, %17 : vector<8x128xf32>
    %38 = vector.extract_strided_slice %33 {offsets = [0, 0], sizes = [8, 128], strides = [1, 1]} : vector<8x384xf32> to vector<8x128xf32>
    %39 = arith.mulf %38, %35 : vector<8x128xf32>
    %40 = arith.addf %37, %39 : vector<8x128xf32>
    %41 = vector.extract_strided_slice %33 {offsets = [0, 256], sizes = [8, 128], strides = [1, 1]} : vector<8x384xf32> to vector<8x128xf32>
    %42 = math.tanh %40 : vector<8x128xf32>
    %43 = arith.mulf %41, %42 : vector<8x128xf32>
    %c1_i32 = arith.constant 1 : i32
    %c2_i32_24 = arith.constant 2 : i32
    %44 = arith.muli %c2_i32_24, %c1_i32 : i32
    %c3_i32_25 = arith.constant 3 : i32
    %45 = arith.subi %c3_i32_25, %44 : i32
    %46 = arith.muli %arg0, %45 : i32
    %47 = arith.addi %c1_i32, %46 : i32
    %48 = arith.index_cast %47 : i32 to index
    %c0_26 = arith.constant 0 : index
    %c0_27 = arith.constant 0 : index
    %49 = vector.load %arg7[%48, %c0_26, %c0_27] : memref<4x8x512xf32, #tpu.memory_space<vmem>>, vector<1x8x512xf32>
    %50 = vector.shape_cast %49 : vector<1x8x512xf32> to vector<8x512xf32>
    %51 = arith.truncf %43 : vector<8x128xf32> to vector<8x128xbf16>
    %cst_28 = arith.constant dense<0.000000e+00> : vector<8x512xf32>
    %52 = tpu.matmul %51, %15, %cst_28 {dimension_numbers = #tpu.dot_dimension_numbers<[1], [0], [0], [1], [0, 0, 1, 1], [], []>} : vector<8x128xbf16>, vector<128x512xbf16>, vector<8x512xf32> -> vector<8x512xf32>
    %53 = arith.addf %50, %52 : vector<8x512xf32>
    %54 = vector.extract_strided_slice %53 {offsets = [0, 0], sizes = [8, 384], strides = [1, 1]} : vector<8x512xf32> to vector<8x384xf32>
    %55 = arith.negf %54 : vector<8x384xf32>
    %56 = math.exp %55 : vector<8x384xf32>
    %cst_29 = arith.constant 1.000000e+00 : f32
    %57 = vector.broadcast %cst_29 : f32 to vector<8x384xf32>
    %58 = arith.addf %57, %56 : vector<8x384xf32>
    %59 = arith.divf %57, %58 : vector<8x384xf32>
    %60 = vector.extract_strided_slice %53 {offsets = [0, 384], sizes = [8, 128], strides = [1, 1]} : vector<8x512xf32> to vector<8x128xf32>
    %61 = math.tanh %60 : vector<8x128xf32>
    %62 = vector.extract_strided_slice %59 {offsets = [0, 128], sizes = [8, 128], strides = [1, 1]} : vector<8x384xf32> to vector<8x128xf32>
    %63 = arith.mulf %62, %40 : vector<8x128xf32>
    %64 = vector.extract_strided_slice %59 {offsets = [0, 0], sizes = [8, 128], strides = [1, 1]} : vector<8x384xf32> to vector<8x128xf32>
    %65 = arith.mulf %64, %61 : vector<8x128xf32>
    %66 = arith.addf %63, %65 : vector<8x128xf32>
    %67 = vector.extract_strided_slice %59 {offsets = [0, 256], sizes = [8, 128], strides = [1, 1]} : vector<8x384xf32> to vector<8x128xf32>
    %68 = math.tanh %66 : vector<8x128xf32>
    %69 = arith.mulf %67, %68 : vector<8x128xf32>
    %c2_i32_30 = arith.constant 2 : i32
    %c2_i32_31 = arith.constant 2 : i32
    %70 = arith.muli %c2_i32_31, %c2_i32_30 : i32
    %c3_i32_32 = arith.constant 3 : i32
    %71 = arith.subi %c3_i32_32, %70 : i32
    %72 = arith.muli %arg0, %71 : i32
    %73 = arith.addi %c2_i32_30, %72 : i32
    %74 = arith.index_cast %73 : i32 to index
    %c0_33 = arith.constant 0 : index
    %c0_34 = arith.constant 0 : index
    %75 = vector.load %arg7[%74, %c0_33, %c0_34] : memref<4x8x512xf32, #tpu.memory_space<vmem>>, vector<1x8x512xf32>
    %76 = vector.shape_cast %75 : vector<1x8x512xf32> to vector<8x512xf32>
    %77 = arith.truncf %69 : vector<8x128xf32> to vector<8x128xbf16>
    %cst_35 = arith.constant dense<0.000000e+00> : vector<8x512xf32>
    %78 = tpu.matmul %77, %15, %cst_35 {dimension_numbers = #tpu.dot_dimension_numbers<[1], [0], [0], [1], [0, 0, 1, 1], [], []>} : vector<8x128xbf16>, vector<128x512xbf16>, vector<8x512xf32> -> vector<8x512xf32>
    %79 = arith.addf %76, %78 : vector<8x512xf32>
    %80 = vector.extract_strided_slice %79 {offsets = [0, 0], sizes = [8, 384], strides = [1, 1]} : vector<8x512xf32> to vector<8x384xf32>
    %81 = arith.negf %80 : vector<8x384xf32>
    %82 = math.exp %81 : vector<8x384xf32>
    %cst_36 = arith.constant 1.000000e+00 : f32
    %83 = vector.broadcast %cst_36 : f32 to vector<8x384xf32>
    %84 = arith.addf %83, %82 : vector<8x384xf32>
    %85 = arith.divf %83, %84 : vector<8x384xf32>
    %86 = vector.extract_strided_slice %79 {offsets = [0, 384], sizes = [8, 128], strides = [1, 1]} : vector<8x512xf32> to vector<8x128xf32>
    %87 = math.tanh %86 : vector<8x128xf32>
    %88 = vector.extract_strided_slice %85 {offsets = [0, 128], sizes = [8, 128], strides = [1, 1]} : vector<8x384xf32> to vector<8x128xf32>
    %89 = arith.mulf %88, %66 : vector<8x128xf32>
    %90 = vector.extract_strided_slice %85 {offsets = [0, 0], sizes = [8, 128], strides = [1, 1]} : vector<8x384xf32> to vector<8x128xf32>
    %91 = arith.mulf %90, %87 : vector<8x128xf32>
    %92 = arith.addf %89, %91 : vector<8x128xf32>
    %93 = vector.extract_strided_slice %85 {offsets = [0, 256], sizes = [8, 128], strides = [1, 1]} : vector<8x384xf32> to vector<8x128xf32>
    %94 = math.tanh %92 : vector<8x128xf32>
    %95 = arith.mulf %93, %94 : vector<8x128xf32>
    %c3_i32_37 = arith.constant 3 : i32
    %c2_i32_38 = arith.constant 2 : i32
    %96 = arith.muli %c2_i32_38, %c3_i32_37 : i32
    %c3_i32_39 = arith.constant 3 : i32
    %97 = arith.subi %c3_i32_39, %96 : i32
    %98 = arith.muli %arg0, %97 : i32
    %99 = arith.addi %c3_i32_37, %98 : i32
    %100 = arith.index_cast %99 : i32 to index
    %c0_40 = arith.constant 0 : index
    %c0_41 = arith.constant 0 : index
    %101 = vector.load %arg7[%100, %c0_40, %c0_41] : memref<4x8x512xf32, #tpu.memory_space<vmem>>, vector<1x8x512xf32>
    %102 = vector.shape_cast %101 : vector<1x8x512xf32> to vector<8x512xf32>
    %103 = arith.truncf %95 : vector<8x128xf32> to vector<8x128xbf16>
    %cst_42 = arith.constant dense<0.000000e+00> : vector<8x512xf32>
    %104 = tpu.matmul %103, %15, %cst_42 {dimension_numbers = #tpu.dot_dimension_numbers<[1], [0], [0], [1], [0, 0, 1, 1], [], []>} : vector<8x128xbf16>, vector<128x512xbf16>, vector<8x512xf32> -> vector<8x512xf32>
    %105 = arith.addf %102, %104 : vector<8x512xf32>
    %106 = vector.extract_strided_slice %105 {offsets = [0, 0], sizes = [8, 384], strides = [1, 1]} : vector<8x512xf32> to vector<8x384xf32>
    %107 = arith.negf %106 : vector<8x384xf32>
    %108 = math.exp %107 : vector<8x384xf32>
    %cst_43 = arith.constant 1.000000e+00 : f32
    %109 = vector.broadcast %cst_43 : f32 to vector<8x384xf32>
    %110 = arith.addf %109, %108 : vector<8x384xf32>
    %111 = arith.divf %109, %110 : vector<8x384xf32>
    %112 = vector.extract_strided_slice %105 {offsets = [0, 384], sizes = [8, 128], strides = [1, 1]} : vector<8x512xf32> to vector<8x128xf32>
    %113 = math.tanh %112 : vector<8x128xf32>
    %114 = vector.extract_strided_slice %111 {offsets = [0, 128], sizes = [8, 128], strides = [1, 1]} : vector<8x384xf32> to vector<8x128xf32>
    %115 = arith.mulf %114, %92 : vector<8x128xf32>
    %116 = vector.extract_strided_slice %111 {offsets = [0, 0], sizes = [8, 128], strides = [1, 1]} : vector<8x384xf32> to vector<8x128xf32>
    %117 = arith.mulf %116, %113 : vector<8x128xf32>
    %118 = arith.addf %115, %117 : vector<8x128xf32>
    %119 = vector.extract_strided_slice %111 {offsets = [0, 256], sizes = [8, 128], strides = [1, 1]} : vector<8x384xf32> to vector<8x128xf32>
    %120 = math.tanh %118 : vector<8x128xf32>
    %121 = arith.mulf %119, %120 : vector<8x128xf32>
    %c4_i32 = arith.constant 4 : i32
    %c0_44 = arith.constant 0 : index
    %c0_45 = arith.constant 0 : index
    %122 = vector.load %arg8[%c0_44, %c0_45] : memref<8x128xf32, #tpu.memory_space<vmem>>, vector<8x128xf32>
    tpu.vector_store %arg8[%c0_44, %c0_45], %121 {strides = array<i32>} : memref<8x128xf32, #tpu.memory_space<vmem>>, vector<8x128xf32>,
    %c0_46 = arith.constant 0 : index
    %c0_47 = arith.constant 0 : index
    %123 = vector.load %arg9[%c0_46, %c0_47] : memref<8x128xf32, #tpu.memory_space<vmem>>, vector<8x128xf32>
    tpu.vector_store %arg9[%c0_46, %c0_47], %118 {strides = array<i32>} : memref<8x128xf32, #tpu.memory_space<vmem>>, vector<8x128xf32>,
    %c1_i32_48 = arith.constant 1 : i32
    %124 = arith.cmpi eq, %arg1, %c1_i32_48 : i32
    %125 = arith.extui %124 : i1 to i32
    %c0_i32_49 = arith.constant 0 : i32
    %126 = arith.cmpi ne, %125, %c0_i32_49 : i32
    scf.if %126 {
      %c0_50 = arith.constant 0 : index
      %c0_51 = arith.constant 0 : index
      %127 = vector.load %arg6[%c0_50, %c0_51] : memref<8x128xf32, #tpu.memory_space<vmem>>, vector<8x128xf32>
      tpu.vector_store %arg6[%c0_50, %c0_51], %121 {strides = array<i32>} : memref<8x128xf32, #tpu.memory_space<vmem>>, vector<8x128xf32>,
    } else {
    }
    return
  }
  func.func @transform_0(%arg0: i32, %arg1: i32) -> (i32, i32, i32) {
    %c2_i32 = arith.constant 2 : i32
    %0 = arith.muli %c2_i32, %arg1 : i32
    %c1_i32 = arith.constant 1 : i32
    %1 = arith.subi %c1_i32, %0 : i32
    %2 = arith.muli %arg0, %1 : i32
    %3 = arith.addi %arg1, %2 : i32
    %c0_i32 = arith.constant 0 : i32
    %c0_i32_0 = arith.constant 0 : i32
    %c0_i32_1 = arith.constant 0 : i32
    return %3, %c0_i32, %c0_i32_0 : i32, i32, i32
  }
  func.func @transform_1(%arg0: i32, %arg1: i32) -> (i32, i32, i32) {
    %c0_i32 = arith.constant 0 : i32
    %c0_i32_0 = arith.constant 0 : i32
    %c0_i32_1 = arith.constant 0 : i32
    return %arg0, %c0_i32, %c0_i32_0 : i32, i32, i32
  }
  func.func @transform_2(%arg0: i32, %arg1: i32) -> (i32, i32, i32) {
    %c0_i32 = arith.constant 0 : i32
    %c0_i32_0 = arith.constant 0 : i32
    %c0_i32_1 = arith.constant 0 : i32
    return %arg0, %c0_i32, %c0_i32_0 : i32, i32, i32
  }
  func.func @transform_3(%arg0: i32, %arg1: i32) -> (i32, i32, i32) {
    %c0_i32 = arith.constant 0 : i32
    %c0_i32_0 = arith.constant 0 : i32
    %c0_i32_1 = arith.constant 0 : i32
    return %arg0, %c0_i32, %c0_i32_0 : i32, i32, i32
  }
  func.func @transform_4(%arg0: i32, %arg1: i32) -> (i32, i32) {
    %c0_i32 = arith.constant 0 : i32
    %c0_i32_0 = arith.constant 0 : i32
    return %c0_i32, %arg0 : i32, i32
  }
}

module attributes {stable_mosaic.version = 11 : i64} {
  func.func @kernel(%arg0: i32, %arg1: i32, %arg2: memref<4x8x128xbf16, #tpu.memory_space<vmem>>, %arg3: memref<1x128x512xbf16, #tpu.memory_space<vmem>>, %arg4: memref<1x128x512xbf16, #tpu.memory_space<vmem>>, %arg5: memref<1x1x512xf32, #tpu.memory_space<vmem>>, %arg6: memref<4x8x128xbf16, #tpu.memory_space<vmem>>, %arg7: memref<4x8x512xf32, #tpu.memory_space<vmem>>, %arg8: memref<8x128xf32, #tpu.memory_space<vmem>>, %arg9: memref<8x128xf32, #tpu.memory_space<vmem>>) attributes {dimension_semantics = [#tpu.dimension_semantics<parallel>, #tpu.dimension_semantics<arbitrary>], iteration_bounds = array<i64: 2, 2>, scalar_prefetch = 0 : i64, scratch_operands = 3 : i64, tpu.core_type = #tpu.core_type<tc>, window_params = [{transform_indices = @transform_0, window_bounds = array<i64: 4, 8, 128>}, {transform_indices = @transform_1, window_bounds = array<i64: 1, 128, 512>}, {transform_indices = @transform_2, window_bounds = array<i64: 1, 128, 512>}, {transform_indices = @transform_3, window_bounds = array<i64: 1, 1, 512>}, {transform_indices = @transform_4, window_bounds = array<i64: 4, 8, 128>}]} {
    %c0_i32 = arith.constant 0 : i32
    %0 = arith.cmpi eq, %arg1, %c0_i32 : i32
    %1 = arith.extui %0 : i1 to i32
    %c0_i32_0 = arith.constant 0 : i32
    %2 = arith.cmpi ne, %1, %c0_i32_0 : i32
    scf.if %2 {
      %cst_56 = arith.constant 0.000000e+00 : f32
      %144 = vector.broadcast %cst_56 : f32 to vector<8x128xf32>
      %c0_57 = arith.constant 0 : index
      %c0_58 = arith.constant 0 : index
      %145 = vector.load %arg8[%c0_57, %c0_58] : memref<8x128xf32, #tpu.memory_space<vmem>>, vector<8x128xf32>
      tpu.vector_store %arg8[%c0_57, %c0_58], %144 {strides = array<i32>} : memref<8x128xf32, #tpu.memory_space<vmem>>, vector<8x128xf32>,
      %cst_59 = arith.constant 0.000000e+00 : f32
      %146 = vector.broadcast %cst_59 : f32 to vector<8x128xf32>
      %c0_60 = arith.constant 0 : index
      %c0_61 = arith.constant 0 : index
      %147 = vector.load %arg9[%c0_60, %c0_61] : memref<8x128xf32, #tpu.memory_space<vmem>>, vector<8x128xf32>
      tpu.vector_store %arg9[%c0_60, %c0_61], %146 {strides = array<i32>} : memref<8x128xf32, #tpu.memory_space<vmem>>, vector<8x128xf32>,
    } else {
    }
    %c0 = arith.constant 0 : index
    %c0_1 = arith.constant 0 : index
    %c0_2 = arith.constant 0 : index
    %3 = vector.load %arg2[%c0, %c0_1, %c0_2] : memref<4x8x128xbf16, #tpu.memory_space<vmem>>, vector<4x8x128xbf16>
    %4 = vector.shape_cast %3 : vector<4x8x128xbf16> to vector<32x128xbf16>
    %c0_3 = arith.constant 0 : index
    %c0_4 = arith.constant 0 : index
    %c0_5 = arith.constant 0 : index
    %5 = vector.load %arg3[%c0_3, %c0_4, %c0_5] : memref<1x128x512xbf16, #tpu.memory_space<vmem>>, vector<1x128x512xbf16>
    %6 = vector.shape_cast %5 : vector<1x128x512xbf16> to vector<128x512xbf16>
    %cst = arith.constant dense<0.000000e+00> : vector<32x512xf32>
    %7 = tpu.matmul %4, %6, %cst {dimension_numbers = #tpu.dot_dimension_numbers<[1], [0], [0], [1], [0, 0, 1, 1], [], []>} : vector<32x128xbf16>, vector<128x512xbf16>, vector<32x512xf32> -> vector<32x512xf32>
    %c0_6 = arith.constant 0 : index
    %c0_7 = arith.constant 0 : index
    %c0_8 = arith.constant 0 : index
    %8 = vector.load %arg5[%c0_6, %c0_7, %c0_8] : memref<1x1x512xf32, #tpu.memory_space<vmem>>, vector<1x1x512xf32>
    %9 = vector.shape_cast %8 : vector<1x1x512xf32> to vector<1x512xf32>
    %10 = vector.broadcast %9 : vector<1x512xf32> to vector<32x512xf32>
    %11 = arith.addf %7, %10 : vector<32x512xf32>
    %12 = vector.shape_cast %11 : vector<32x512xf32> to vector<4x8x512xf32>
    %c0_9 = arith.constant 0 : index
    %c0_10 = arith.constant 0 : index
    %c0_11 = arith.constant 0 : index
    %13 = vector.load %arg7[%c0_9, %c0_10, %c0_11] : memref<4x8x512xf32, #tpu.memory_space<vmem>>, vector<4x8x512xf32>
    tpu.vector_store %arg7[%c0_9, %c0_10, %c0_11], %12 {strides = array<i32>} : memref<4x8x512xf32, #tpu.memory_space<vmem>>, vector<4x8x512xf32>,
    %c0_12 = arith.constant 0 : index
    %c0_13 = arith.constant 0 : index
    %c0_14 = arith.constant 0 : index
    %14 = vector.load %arg4[%c0_12, %c0_13, %c0_14] : memref<1x128x512xbf16, #tpu.memory_space<vmem>>, vector<1x128x512xbf16>
    %15 = vector.shape_cast %14 : vector<1x128x512xbf16> to vector<128x512xbf16>
    %c0_15 = arith.constant 0 : index
    %c0_16 = arith.constant 0 : index
    %16 = vector.load %arg8[%c0_15, %c0_16] : memref<8x128xf32, #tpu.memory_space<vmem>>, vector<8x128xf32>
    %c0_17 = arith.constant 0 : index
    %c0_18 = arith.constant 0 : index
    %17 = vector.load %arg9[%c0_17, %c0_18] : memref<8x128xf32, #tpu.memory_space<vmem>>, vector<8x128xf32>
    %c0_i32_19 = arith.constant 0 : i32
    %c2_i32 = arith.constant 2 : i32
    %18 = arith.muli %c2_i32, %c0_i32_19 : i32
    %c3_i32 = arith.constant 3 : i32
    %19 = arith.subi %c3_i32, %18 : i32
    %20 = arith.muli %arg0, %19 : i32
    %21 = arith.addi %c0_i32_19, %20 : i32
    %22 = arith.index_cast %21 : i32 to index
    %c0_20 = arith.constant 0 : index
    %c0_21 = arith.constant 0 : index
    %23 = vector.load %arg7[%22, %c0_20, %c0_21] : memref<4x8x512xf32, #tpu.memory_space<vmem>>, vector<1x8x512xf32>
    %24 = vector.shape_cast %23 : vector<1x8x512xf32> to vector<8x512xf32>
    %25 = arith.truncf %16 : vector<8x128xf32> to vector<8x128xbf16>
    %cst_22 = arith.constant dense<0.000000e+00> : vector<8x512xf32>
    %26 = tpu.matmul %25, %15, %cst_22 {dimension_numbers = #tpu.dot_dimension_numbers<[1], [0], [0], [1], [0, 0, 1, 1], [], []>} : vector<8x128xbf16>, vector<128x512xbf16>, vector<8x512xf32> -> vector<8x512xf32>
    %27 = arith.addf %24, %26 : vector<8x512xf32>
    %28 = vector.extract_strided_slice %27 {offsets = [0, 0], sizes = [8, 384], strides = [1, 1]} : vector<8x512xf32> to vector<8x384xf32>
    %29 = arith.negf %28 : vector<8x384xf32>
    %30 = math.exp %29 : vector<8x384xf32>
    %cst_23 = arith.constant 1.000000e+00 : f32
    %31 = vector.broadcast %cst_23 : f32 to vector<8x384xf32>
    %32 = arith.addf %31, %30 : vector<8x384xf32>
    %33 = arith.divf %31, %32 : vector<8x384xf32>
    %34 = vector.extract_strided_slice %27 {offsets = [0, 384], sizes = [8, 128], strides = [1, 1]} : vector<8x512xf32> to vector<8x128xf32>
    %35 = math.tanh %34 : vector<8x128xf32>
    %36 = vector.extract_strided_slice %33 {offsets = [0, 128], sizes = [8, 128], strides = [1, 1]} : vector<8x384xf32> to vector<8x128xf32>
    %37 = arith.mulf %36, %17 : vector<8x128xf32>
    %38 = vector.extract_strided_slice %33 {offsets = [0, 0], sizes = [8, 128], strides = [1, 1]} : vector<8x384xf32> to vector<8x128xf32>
    %39 = arith.mulf %38, %35 : vector<8x128xf32>
    %40 = arith.addf %37, %39 : vector<8x128xf32>
    %41 = vector.extract_strided_slice %33 {offsets = [0, 256], sizes = [8, 128], strides = [1, 1]} : vector<8x384xf32> to vector<8x128xf32>
    %42 = math.tanh %40 : vector<8x128xf32>
    %43 = arith.mulf %41, %42 : vector<8x128xf32>
    %44 = arith.truncf %43 : vector<8x128xf32> to vector<8x128xbf16>
    %45 = arith.index_cast %21 : i32 to index
    %c0_24 = arith.constant 0 : index
    %c0_25 = arith.constant 0 : index
    %46 = vector.load %arg6[%45, %c0_24, %c0_25] : memref<4x8x128xbf16, #tpu.memory_space<vmem>>, vector<1x8x128xbf16>
    %47 = vector.shape_cast %46 : vector<1x8x128xbf16> to vector<8x128xbf16>
    %48 = vector.shape_cast %44 : vector<8x128xbf16> to vector<1x8x128xbf16>
    tpu.vector_store %arg6[%45, %c0_24, %c0_25], %48 {strides = array<i32>} : memref<4x8x128xbf16, #tpu.memory_space<vmem>>, vector<1x8x128xbf16>,
    %c1_i32 = arith.constant 1 : i32
    %c2_i32_26 = arith.constant 2 : i32
    %49 = arith.muli %c2_i32_26, %c1_i32 : i32
    %c3_i32_27 = arith.constant 3 : i32
    %50 = arith.subi %c3_i32_27, %49 : i32
    %51 = arith.muli %arg0, %50 : i32
    %52 = arith.addi %c1_i32, %51 : i32
    %53 = arith.index_cast %52 : i32 to index
    %c0_28 = arith.constant 0 : index
    %c0_29 = arith.constant 0 : index
    %54 = vector.load %arg7[%53, %c0_28, %c0_29] : memref<4x8x512xf32, #tpu.memory_space<vmem>>, vector<1x8x512xf32>
    %55 = vector.shape_cast %54 : vector<1x8x512xf32> to vector<8x512xf32>
    %56 = arith.truncf %43 : vector<8x128xf32> to vector<8x128xbf16>
    %cst_30 = arith.constant dense<0.000000e+00> : vector<8x512xf32>
    %57 = tpu.matmul %56, %15, %cst_30 {dimension_numbers = #tpu.dot_dimension_numbers<[1], [0], [0], [1], [0, 0, 1, 1], [], []>} : vector<8x128xbf16>, vector<128x512xbf16>, vector<8x512xf32> -> vector<8x512xf32>
    %58 = arith.addf %55, %57 : vector<8x512xf32>
    %59 = vector.extract_strided_slice %58 {offsets = [0, 0], sizes = [8, 384], strides = [1, 1]} : vector<8x512xf32> to vector<8x384xf32>
    %60 = arith.negf %59 : vector<8x384xf32>
    %61 = math.exp %60 : vector<8x384xf32>
    %cst_31 = arith.constant 1.000000e+00 : f32
    %62 = vector.broadcast %cst_31 : f32 to vector<8x384xf32>
    %63 = arith.addf %62, %61 : vector<8x384xf32>
    %64 = arith.divf %62, %63 : vector<8x384xf32>
    %65 = vector.extract_strided_slice %58 {offsets = [0, 384], sizes = [8, 128], strides = [1, 1]} : vector<8x512xf32> to vector<8x128xf32>
    %66 = math.tanh %65 : vector<8x128xf32>
    %67 = vector.extract_strided_slice %64 {offsets = [0, 128], sizes = [8, 128], strides = [1, 1]} : vector<8x384xf32> to vector<8x128xf32>
    %68 = arith.mulf %67, %40 : vector<8x128xf32>
    %69 = vector.extract_strided_slice %64 {offsets = [0, 0], sizes = [8, 128], strides = [1, 1]} : vector<8x384xf32> to vector<8x128xf32>
    %70 = arith.mulf %69, %66 : vector<8x128xf32>
    %71 = arith.addf %68, %70 : vector<8x128xf32>
    %72 = vector.extract_strided_slice %64 {offsets = [0, 256], sizes = [8, 128], strides = [1, 1]} : vector<8x384xf32> to vector<8x128xf32>
    %73 = math.tanh %71 : vector<8x128xf32>
    %74 = arith.mulf %72, %73 : vector<8x128xf32>
    %75 = arith.truncf %74 : vector<8x128xf32> to vector<8x128xbf16>
    %76 = arith.index_cast %52 : i32 to index
    %c0_32 = arith.constant 0 : index
    %c0_33 = arith.constant 0 : index
    %77 = vector.load %arg6[%76, %c0_32, %c0_33] : memref<4x8x128xbf16, #tpu.memory_space<vmem>>, vector<1x8x128xbf16>
    %78 = vector.shape_cast %77 : vector<1x8x128xbf16> to vector<8x128xbf16>
    %79 = vector.shape_cast %75 : vector<8x128xbf16> to vector<1x8x128xbf16>
    tpu.vector_store %arg6[%76, %c0_32, %c0_33], %79 {strides = array<i32>} : memref<4x8x128xbf16, #tpu.memory_space<vmem>>, vector<1x8x128xbf16>,
    %c2_i32_34 = arith.constant 2 : i32
    %c2_i32_35 = arith.constant 2 : i32
    %80 = arith.muli %c2_i32_35, %c2_i32_34 : i32
    %c3_i32_36 = arith.constant 3 : i32
    %81 = arith.subi %c3_i32_36, %80 : i32
    %82 = arith.muli %arg0, %81 : i32
    %83 = arith.addi %c2_i32_34, %82 : i32
    %84 = arith.index_cast %83 : i32 to index
    %c0_37 = arith.constant 0 : index
    %c0_38 = arith.constant 0 : index
    %85 = vector.load %arg7[%84, %c0_37, %c0_38] : memref<4x8x512xf32, #tpu.memory_space<vmem>>, vector<1x8x512xf32>
    %86 = vector.shape_cast %85 : vector<1x8x512xf32> to vector<8x512xf32>
    %87 = arith.truncf %74 : vector<8x128xf32> to vector<8x128xbf16>
    %cst_39 = arith.constant dense<0.000000e+00> : vector<8x512xf32>
    %88 = tpu.matmul %87, %15, %cst_39 {dimension_numbers = #tpu.dot_dimension_numbers<[1], [0], [0], [1], [0, 0, 1, 1], [], []>} : vector<8x128xbf16>, vector<128x512xbf16>, vector<8x512xf32> -> vector<8x512xf32>
    %89 = arith.addf %86, %88 : vector<8x512xf32>
    %90 = vector.extract_strided_slice %89 {offsets = [0, 0], sizes = [8, 384], strides = [1, 1]} : vector<8x512xf32> to vector<8x384xf32>
    %91 = arith.negf %90 : vector<8x384xf32>
    %92 = math.exp %91 : vector<8x384xf32>
    %cst_40 = arith.constant 1.000000e+00 : f32
    %93 = vector.broadcast %cst_40 : f32 to vector<8x384xf32>
    %94 = arith.addf %93, %92 : vector<8x384xf32>
    %95 = arith.divf %93, %94 : vector<8x384xf32>
    %96 = vector.extract_strided_slice %89 {offsets = [0, 384], sizes = [8, 128], strides = [1, 1]} : vector<8x512xf32> to vector<8x128xf32>
    %97 = math.tanh %96 : vector<8x128xf32>
    %98 = vector.extract_strided_slice %95 {offsets = [0, 128], sizes = [8, 128], strides = [1, 1]} : vector<8x384xf32> to vector<8x128xf32>
    %99 = arith.mulf %98, %71 : vector<8x128xf32>
    %100 = vector.extract_strided_slice %95 {offsets = [0, 0], sizes = [8, 128], strides = [1, 1]} : vector<8x384xf32> to vector<8x128xf32>
    %101 = arith.mulf %100, %97 : vector<8x128xf32>
    %102 = arith.addf %99, %101 : vector<8x128xf32>
    %103 = vector.extract_strided_slice %95 {offsets = [0, 256], sizes = [8, 128], strides = [1, 1]} : vector<8x384xf32> to vector<8x128xf32>
    %104 = math.tanh %102 : vector<8x128xf32>
    %105 = arith.mulf %103, %104 : vector<8x128xf32>
    %106 = arith.truncf %105 : vector<8x128xf32> to vector<8x128xbf16>
    %107 = arith.index_cast %83 : i32 to index
    %c0_41 = arith.constant 0 : index
    %c0_42 = arith.constant 0 : index
    %108 = vector.load %arg6[%107, %c0_41, %c0_42] : memref<4x8x128xbf16, #tpu.memory_space<vmem>>, vector<1x8x128xbf16>
    %109 = vector.shape_cast %108 : vector<1x8x128xbf16> to vector<8x128xbf16>
    %110 = vector.shape_cast %106 : vector<8x128xbf16> to vector<1x8x128xbf16>
    tpu.vector_store %arg6[%107, %c0_41, %c0_42], %110 {strides = array<i32>} : memref<4x8x128xbf16, #tpu.memory_space<vmem>>, vector<1x8x128xbf16>,
    %c3_i32_43 = arith.constant 3 : i32
    %c2_i32_44 = arith.constant 2 : i32
    %111 = arith.muli %c2_i32_44, %c3_i32_43 : i32
    %c3_i32_45 = arith.constant 3 : i32
    %112 = arith.subi %c3_i32_45, %111 : i32
    %113 = arith.muli %arg0, %112 : i32
    %114 = arith.addi %c3_i32_43, %113 : i32
    %115 = arith.index_cast %114 : i32 to index
    %c0_46 = arith.constant 0 : index
    %c0_47 = arith.constant 0 : index
    %116 = vector.load %arg7[%115, %c0_46, %c0_47] : memref<4x8x512xf32, #tpu.memory_space<vmem>>, vector<1x8x512xf32>
    %117 = vector.shape_cast %116 : vector<1x8x512xf32> to vector<8x512xf32>
    %118 = arith.truncf %105 : vector<8x128xf32> to vector<8x128xbf16>
    %cst_48 = arith.constant dense<0.000000e+00> : vector<8x512xf32>
    %119 = tpu.matmul %118, %15, %cst_48 {dimension_numbers = #tpu.dot_dimension_numbers<[1], [0], [0], [1], [0, 0, 1, 1], [], []>} : vector<8x128xbf16>, vector<128x512xbf16>, vector<8x512xf32> -> vector<8x512xf32>
    %120 = arith.addf %117, %119 : vector<8x512xf32>
    %121 = vector.extract_strided_slice %120 {offsets = [0, 0], sizes = [8, 384], strides = [1, 1]} : vector<8x512xf32> to vector<8x384xf32>
    %122 = arith.negf %121 : vector<8x384xf32>
    %123 = math.exp %122 : vector<8x384xf32>
    %cst_49 = arith.constant 1.000000e+00 : f32
    %124 = vector.broadcast %cst_49 : f32 to vector<8x384xf32>
    %125 = arith.addf %124, %123 : vector<8x384xf32>
    %126 = arith.divf %124, %125 : vector<8x384xf32>
    %127 = vector.extract_strided_slice %120 {offsets = [0, 384], sizes = [8, 128], strides = [1, 1]} : vector<8x512xf32> to vector<8x128xf32>
    %128 = math.tanh %127 : vector<8x128xf32>
    %129 = vector.extract_strided_slice %126 {offsets = [0, 128], sizes = [8, 128], strides = [1, 1]} : vector<8x384xf32> to vector<8x128xf32>
    %130 = arith.mulf %129, %102 : vector<8x128xf32>
    %131 = vector.extract_strided_slice %126 {offsets = [0, 0], sizes = [8, 128], strides = [1, 1]} : vector<8x384xf32> to vector<8x128xf32>
    %132 = arith.mulf %131, %128 : vector<8x128xf32>
    %133 = arith.addf %130, %132 : vector<8x128xf32>
    %134 = vector.extract_strided_slice %126 {offsets = [0, 256], sizes = [8, 128], strides = [1, 1]} : vector<8x384xf32> to vector<8x128xf32>
    %135 = math.tanh %133 : vector<8x128xf32>
    %136 = arith.mulf %134, %135 : vector<8x128xf32>
    %137 = arith.truncf %136 : vector<8x128xf32> to vector<8x128xbf16>
    %138 = arith.index_cast %114 : i32 to index
    %c0_50 = arith.constant 0 : index
    %c0_51 = arith.constant 0 : index
    %139 = vector.load %arg6[%138, %c0_50, %c0_51] : memref<4x8x128xbf16, #tpu.memory_space<vmem>>, vector<1x8x128xbf16>
    %140 = vector.shape_cast %139 : vector<1x8x128xbf16> to vector<8x128xbf16>
    %141 = vector.shape_cast %137 : vector<8x128xbf16> to vector<1x8x128xbf16>
    tpu.vector_store %arg6[%138, %c0_50, %c0_51], %141 {strides = array<i32>} : memref<4x8x128xbf16, #tpu.memory_space<vmem>>, vector<1x8x128xbf16>,
    %c4_i32 = arith.constant 4 : i32
    %c0_52 = arith.constant 0 : index
    %c0_53 = arith.constant 0 : index
    %142 = vector.load %arg8[%c0_52, %c0_53] : memref<8x128xf32, #tpu.memory_space<vmem>>, vector<8x128xf32>
    tpu.vector_store %arg8[%c0_52, %c0_53], %136 {strides = array<i32>} : memref<8x128xf32, #tpu.memory_space<vmem>>, vector<8x128xf32>,
    %c0_54 = arith.constant 0 : index
    %c0_55 = arith.constant 0 : index
    %143 = vector.load %arg9[%c0_54, %c0_55] : memref<8x128xf32, #tpu.memory_space<vmem>>, vector<8x128xf32>
    tpu.vector_store %arg9[%c0_54, %c0_55], %133 {strides = array<i32>} : memref<8x128xf32, #tpu.memory_space<vmem>>, vector<8x128xf32>,
    return
  }
  func.func @transform_0(%arg0: i32, %arg1: i32) -> (i32, i32, i32) {
    %c2_i32 = arith.constant 2 : i32
    %0 = arith.muli %c2_i32, %arg1 : i32
    %c1_i32 = arith.constant 1 : i32
    %1 = arith.subi %c1_i32, %0 : i32
    %2 = arith.muli %arg0, %1 : i32
    %3 = arith.addi %arg1, %2 : i32
    %c0_i32 = arith.constant 0 : i32
    %c0_i32_0 = arith.constant 0 : i32
    %c0_i32_1 = arith.constant 0 : i32
    return %3, %c0_i32, %c0_i32_0 : i32, i32, i32
  }
  func.func @transform_1(%arg0: i32, %arg1: i32) -> (i32, i32, i32) {
    %c0_i32 = arith.constant 0 : i32
    %c0_i32_0 = arith.constant 0 : i32
    %c0_i32_1 = arith.constant 0 : i32
    return %arg0, %c0_i32, %c0_i32_0 : i32, i32, i32
  }
  func.func @transform_2(%arg0: i32, %arg1: i32) -> (i32, i32, i32) {
    %c0_i32 = arith.constant 0 : i32
    %c0_i32_0 = arith.constant 0 : i32
    %c0_i32_1 = arith.constant 0 : i32
    return %arg0, %c0_i32, %c0_i32_0 : i32, i32, i32
  }
  func.func @transform_3(%arg0: i32, %arg1: i32) -> (i32, i32, i32) {
    %c0_i32 = arith.constant 0 : i32
    %c0_i32_0 = arith.constant 0 : i32
    %c0_i32_1 = arith.constant 0 : i32
    return %arg0, %c0_i32, %c0_i32_0 : i32, i32, i32
  }
  func.func @transform_4(%arg0: i32, %arg1: i32) -> (i32, i32, i32) {
    %c2_i32 = arith.constant 2 : i32
    %0 = arith.muli %c2_i32, %arg1 : i32
    %c1_i32 = arith.constant 1 : i32
    %1 = arith.subi %c1_i32, %0 : i32
    %2 = arith.muli %arg0, %1 : i32
    %3 = arith.addi %arg1, %2 : i32
    %c0_i32 = arith.constant 0 : i32
    %c0_i32_0 = arith.constant 0 : i32
    return %3, %c0_i32, %arg0 : i32, i32, i32
  }
}

module attributes {stable_mosaic.version = 11 : i64} {
  func.func @kernel(%arg0: i32, %arg1: i32, %arg2: memref<4x8x256xbf16, #tpu.memory_space<vmem>>, %arg3: memref<1x256x512xbf16, #tpu.memory_space<vmem>>, %arg4: memref<1x128x512xbf16, #tpu.memory_space<vmem>>, %arg5: memref<1x1x512xf32, #tpu.memory_space<vmem>>, %arg6: memref<8x128xf32, #tpu.memory_space<vmem>>, %arg7: memref<4x8x512xf32, #tpu.memory_space<vmem>>, %arg8: memref<8x128xf32, #tpu.memory_space<vmem>>, %arg9: memref<8x128xf32, #tpu.memory_space<vmem>>) attributes {dimension_semantics = [#tpu.dimension_semantics<parallel>, #tpu.dimension_semantics<arbitrary>], iteration_bounds = array<i64: 2, 2>, scalar_prefetch = 0 : i64, scratch_operands = 3 : i64, tpu.core_type = #tpu.core_type<tc>, window_params = [{transform_indices = @transform_0, window_bounds = array<i64: 4, 8, 256>}, {transform_indices = @transform_1, window_bounds = array<i64: 1, 256, 512>}, {transform_indices = @transform_2, window_bounds = array<i64: 1, 128, 512>}, {transform_indices = @transform_3, window_bounds = array<i64: 1, 1, 512>}, {transform_indices = @transform_4, window_bounds = array<i64: 8, 128>}]} {
    %c0_i32 = arith.constant 0 : i32
    %0 = arith.cmpi eq, %arg1, %c0_i32 : i32
    %1 = arith.extui %0 : i1 to i32
    %c0_i32_0 = arith.constant 0 : i32
    %2 = arith.cmpi ne, %1, %c0_i32_0 : i32
    scf.if %2 {
      %cst_50 = arith.constant 0.000000e+00 : f32
      %127 = vector.broadcast %cst_50 : f32 to vector<8x128xf32>
      %c0_51 = arith.constant 0 : index
      %c0_52 = arith.constant 0 : index
      %128 = vector.load %arg8[%c0_51, %c0_52] : memref<8x128xf32, #tpu.memory_space<vmem>>, vector<8x128xf32>
      tpu.vector_store %arg8[%c0_51, %c0_52], %127 {strides = array<i32>} : memref<8x128xf32, #tpu.memory_space<vmem>>, vector<8x128xf32>,
      %cst_53 = arith.constant 0.000000e+00 : f32
      %129 = vector.broadcast %cst_53 : f32 to vector<8x128xf32>
      %c0_54 = arith.constant 0 : index
      %c0_55 = arith.constant 0 : index
      %130 = vector.load %arg9[%c0_54, %c0_55] : memref<8x128xf32, #tpu.memory_space<vmem>>, vector<8x128xf32>
      tpu.vector_store %arg9[%c0_54, %c0_55], %129 {strides = array<i32>} : memref<8x128xf32, #tpu.memory_space<vmem>>, vector<8x128xf32>,
    } else {
    }
    %c0 = arith.constant 0 : index
    %c0_1 = arith.constant 0 : index
    %c0_2 = arith.constant 0 : index
    %3 = vector.load %arg2[%c0, %c0_1, %c0_2] : memref<4x8x256xbf16, #tpu.memory_space<vmem>>, vector<4x8x256xbf16>
    %4 = vector.shape_cast %3 : vector<4x8x256xbf16> to vector<32x256xbf16>
    %c0_3 = arith.constant 0 : index
    %c0_4 = arith.constant 0 : index
    %c0_5 = arith.constant 0 : index
    %5 = vector.load %arg3[%c0_3, %c0_4, %c0_5] : memref<1x256x512xbf16, #tpu.memory_space<vmem>>, vector<1x256x512xbf16>
    %6 = vector.shape_cast %5 : vector<1x256x512xbf16> to vector<256x512xbf16>
    %cst = arith.constant dense<0.000000e+00> : vector<32x512xf32>
    %7 = tpu.matmul %4, %6, %cst {dimension_numbers = #tpu.dot_dimension_numbers<[1], [0], [0], [1], [0, 0, 1, 1], [], []>} : vector<32x256xbf16>, vector<256x512xbf16>, vector<32x512xf32> -> vector<32x512xf32>
    %c0_6 = arith.constant 0 : index
    %c0_7 = arith.constant 0 : index
    %c0_8 = arith.constant 0 : index
    %8 = vector.load %arg5[%c0_6, %c0_7, %c0_8] : memref<1x1x512xf32, #tpu.memory_space<vmem>>, vector<1x1x512xf32>
    %9 = vector.shape_cast %8 : vector<1x1x512xf32> to vector<1x512xf32>
    %10 = vector.broadcast %9 : vector<1x512xf32> to vector<32x512xf32>
    %11 = arith.addf %7, %10 : vector<32x512xf32>
    %12 = vector.shape_cast %11 : vector<32x512xf32> to vector<4x8x512xf32>
    %c0_9 = arith.constant 0 : index
    %c0_10 = arith.constant 0 : index
    %c0_11 = arith.constant 0 : index
    %13 = vector.load %arg7[%c0_9, %c0_10, %c0_11] : memref<4x8x512xf32, #tpu.memory_space<vmem>>, vector<4x8x512xf32>
    tpu.vector_store %arg7[%c0_9, %c0_10, %c0_11], %12 {strides = array<i32>} : memref<4x8x512xf32, #tpu.memory_space<vmem>>, vector<4x8x512xf32>,
    %c0_12 = arith.constant 0 : index
    %c0_13 = arith.constant 0 : index
    %c0_14 = arith.constant 0 : index
    %14 = vector.load %arg4[%c0_12, %c0_13, %c0_14] : memref<1x128x512xbf16, #tpu.memory_space<vmem>>, vector<1x128x512xbf16>
    %15 = vector.shape_cast %14 : vector<1x128x512xbf16> to vector<128x512xbf16>
    %c0_15 = arith.constant 0 : index
    %c0_16 = arith.constant 0 : index
    %16 = vector.load %arg8[%c0_15, %c0_16] : memref<8x128xf32, #tpu.memory_space<vmem>>, vector<8x128xf32>
    %c0_17 = arith.constant 0 : index
    %c0_18 = arith.constant 0 : index
    %17 = vector.load %arg9[%c0_17, %c0_18] : memref<8x128xf32, #tpu.memory_space<vmem>>, vector<8x128xf32>
    %c0_i32_19 = arith.constant 0 : i32
    %c2_i32 = arith.constant 2 : i32
    %18 = arith.muli %c2_i32, %c0_i32_19 : i32
    %c3_i32 = arith.constant 3 : i32
    %19 = arith.subi %c3_i32, %18 : i32
    %20 = arith.muli %arg0, %19 : i32
    %21 = arith.addi %c0_i32_19, %20 : i32
    %22 = arith.index_cast %21 : i32 to index
    %c0_20 = arith.constant 0 : index
    %c0_21 = arith.constant 0 : index
    %23 = vector.load %arg7[%22, %c0_20, %c0_21] : memref<4x8x512xf32, #tpu.memory_space<vmem>>, vector<1x8x512xf32>
    %24 = vector.shape_cast %23 : vector<1x8x512xf32> to vector<8x512xf32>
    %25 = arith.truncf %16 : vector<8x128xf32> to vector<8x128xbf16>
    %cst_22 = arith.constant dense<0.000000e+00> : vector<8x512xf32>
    %26 = tpu.matmul %25, %15, %cst_22 {dimension_numbers = #tpu.dot_dimension_numbers<[1], [0], [0], [1], [0, 0, 1, 1], [], []>} : vector<8x128xbf16>, vector<128x512xbf16>, vector<8x512xf32> -> vector<8x512xf32>
    %27 = arith.addf %24, %26 : vector<8x512xf32>
    %28 = vector.extract_strided_slice %27 {offsets = [0, 0], sizes = [8, 384], strides = [1, 1]} : vector<8x512xf32> to vector<8x384xf32>
    %29 = arith.negf %28 : vector<8x384xf32>
    %30 = math.exp %29 : vector<8x384xf32>
    %cst_23 = arith.constant 1.000000e+00 : f32
    %31 = vector.broadcast %cst_23 : f32 to vector<8x384xf32>
    %32 = arith.addf %31, %30 : vector<8x384xf32>
    %33 = arith.divf %31, %32 : vector<8x384xf32>
    %34 = vector.extract_strided_slice %27 {offsets = [0, 384], sizes = [8, 128], strides = [1, 1]} : vector<8x512xf32> to vector<8x128xf32>
    %35 = math.tanh %34 : vector<8x128xf32>
    %36 = vector.extract_strided_slice %33 {offsets = [0, 128], sizes = [8, 128], strides = [1, 1]} : vector<8x384xf32> to vector<8x128xf32>
    %37 = arith.mulf %36, %17 : vector<8x128xf32>
    %38 = vector.extract_strided_slice %33 {offsets = [0, 0], sizes = [8, 128], strides = [1, 1]} : vector<8x384xf32> to vector<8x128xf32>
    %39 = arith.mulf %38, %35 : vector<8x128xf32>
    %40 = arith.addf %37, %39 : vector<8x128xf32>
    %41 = vector.extract_strided_slice %33 {offsets = [0, 256], sizes = [8, 128], strides = [1, 1]} : vector<8x384xf32> to vector<8x128xf32>
    %42 = math.tanh %40 : vector<8x128xf32>
    %43 = arith.mulf %41, %42 : vector<8x128xf32>
    %c1_i32 = arith.constant 1 : i32
    %c2_i32_24 = arith.constant 2 : i32
    %44 = arith.muli %c2_i32_24, %c1_i32 : i32
    %c3_i32_25 = arith.constant 3 : i32
    %45 = arith.subi %c3_i32_25, %44 : i32
    %46 = arith.muli %arg0, %45 : i32
    %47 = arith.addi %c1_i32, %46 : i32
    %48 = arith.index_cast %47 : i32 to index
    %c0_26 = arith.constant 0 : index
    %c0_27 = arith.constant 0 : index
    %49 = vector.load %arg7[%48, %c0_26, %c0_27] : memref<4x8x512xf32, #tpu.memory_space<vmem>>, vector<1x8x512xf32>
    %50 = vector.shape_cast %49 : vector<1x8x512xf32> to vector<8x512xf32>
    %51 = arith.truncf %43 : vector<8x128xf32> to vector<8x128xbf16>
    %cst_28 = arith.constant dense<0.000000e+00> : vector<8x512xf32>
    %52 = tpu.matmul %51, %15, %cst_28 {dimension_numbers = #tpu.dot_dimension_numbers<[1], [0], [0], [1], [0, 0, 1, 1], [], []>} : vector<8x128xbf16>, vector<128x512xbf16>, vector<8x512xf32> -> vector<8x512xf32>
    %53 = arith.addf %50, %52 : vector<8x512xf32>
    %54 = vector.extract_strided_slice %53 {offsets = [0, 0], sizes = [8, 384], strides = [1, 1]} : vector<8x512xf32> to vector<8x384xf32>
    %55 = arith.negf %54 : vector<8x384xf32>
    %56 = math.exp %55 : vector<8x384xf32>
    %cst_29 = arith.constant 1.000000e+00 : f32
    %57 = vector.broadcast %cst_29 : f32 to vector<8x384xf32>
    %58 = arith.addf %57, %56 : vector<8x384xf32>
    %59 = arith.divf %57, %58 : vector<8x384xf32>
    %60 = vector.extract_strided_slice %53 {offsets = [0, 384], sizes = [8, 128], strides = [1, 1]} : vector<8x512xf32> to vector<8x128xf32>
    %61 = math.tanh %60 : vector<8x128xf32>
    %62 = vector.extract_strided_slice %59 {offsets = [0, 128], sizes = [8, 128], strides = [1, 1]} : vector<8x384xf32> to vector<8x128xf32>
    %63 = arith.mulf %62, %40 : vector<8x128xf32>
    %64 = vector.extract_strided_slice %59 {offsets = [0, 0], sizes = [8, 128], strides = [1, 1]} : vector<8x384xf32> to vector<8x128xf32>
    %65 = arith.mulf %64, %61 : vector<8x128xf32>
    %66 = arith.addf %63, %65 : vector<8x128xf32>
    %67 = vector.extract_strided_slice %59 {offsets = [0, 256], sizes = [8, 128], strides = [1, 1]} : vector<8x384xf32> to vector<8x128xf32>
    %68 = math.tanh %66 : vector<8x128xf32>
    %69 = arith.mulf %67, %68 : vector<8x128xf32>
    %c2_i32_30 = arith.constant 2 : i32
    %c2_i32_31 = arith.constant 2 : i32
    %70 = arith.muli %c2_i32_31, %c2_i32_30 : i32
    %c3_i32_32 = arith.constant 3 : i32
    %71 = arith.subi %c3_i32_32, %70 : i32
    %72 = arith.muli %arg0, %71 : i32
    %73 = arith.addi %c2_i32_30, %72 : i32
    %74 = arith.index_cast %73 : i32 to index
    %c0_33 = arith.constant 0 : index
    %c0_34 = arith.constant 0 : index
    %75 = vector.load %arg7[%74, %c0_33, %c0_34] : memref<4x8x512xf32, #tpu.memory_space<vmem>>, vector<1x8x512xf32>
    %76 = vector.shape_cast %75 : vector<1x8x512xf32> to vector<8x512xf32>
    %77 = arith.truncf %69 : vector<8x128xf32> to vector<8x128xbf16>
    %cst_35 = arith.constant dense<0.000000e+00> : vector<8x512xf32>
    %78 = tpu.matmul %77, %15, %cst_35 {dimension_numbers = #tpu.dot_dimension_numbers<[1], [0], [0], [1], [0, 0, 1, 1], [], []>} : vector<8x128xbf16>, vector<128x512xbf16>, vector<8x512xf32> -> vector<8x512xf32>
    %79 = arith.addf %76, %78 : vector<8x512xf32>
    %80 = vector.extract_strided_slice %79 {offsets = [0, 0], sizes = [8, 384], strides = [1, 1]} : vector<8x512xf32> to vector<8x384xf32>
    %81 = arith.negf %80 : vector<8x384xf32>
    %82 = math.exp %81 : vector<8x384xf32>
    %cst_36 = arith.constant 1.000000e+00 : f32
    %83 = vector.broadcast %cst_36 : f32 to vector<8x384xf32>
    %84 = arith.addf %83, %82 : vector<8x384xf32>
    %85 = arith.divf %83, %84 : vector<8x384xf32>
    %86 = vector.extract_strided_slice %79 {offsets = [0, 384], sizes = [8, 128], strides = [1, 1]} : vector<8x512xf32> to vector<8x128xf32>
    %87 = math.tanh %86 : vector<8x128xf32>
    %88 = vector.extract_strided_slice %85 {offsets = [0, 128], sizes = [8, 128], strides = [1, 1]} : vector<8x384xf32> to vector<8x128xf32>
    %89 = arith.mulf %88, %66 : vector<8x128xf32>
    %90 = vector.extract_strided_slice %85 {offsets = [0, 0], sizes = [8, 128], strides = [1, 1]} : vector<8x384xf32> to vector<8x128xf32>
    %91 = arith.mulf %90, %87 : vector<8x128xf32>
    %92 = arith.addf %89, %91 : vector<8x128xf32>
    %93 = vector.extract_strided_slice %85 {offsets = [0, 256], sizes = [8, 128], strides = [1, 1]} : vector<8x384xf32> to vector<8x128xf32>
    %94 = math.tanh %92 : vector<8x128xf32>
    %95 = arith.mulf %93, %94 : vector<8x128xf32>
    %c3_i32_37 = arith.constant 3 : i32
    %c2_i32_38 = arith.constant 2 : i32
    %96 = arith.muli %c2_i32_38, %c3_i32_37 : i32
    %c3_i32_39 = arith.constant 3 : i32
    %97 = arith.subi %c3_i32_39, %96 : i32
    %98 = arith.muli %arg0, %97 : i32
    %99 = arith.addi %c3_i32_37, %98 : i32
    %100 = arith.index_cast %99 : i32 to index
    %c0_40 = arith.constant 0 : index
    %c0_41 = arith.constant 0 : index
    %101 = vector.load %arg7[%100, %c0_40, %c0_41] : memref<4x8x512xf32, #tpu.memory_space<vmem>>, vector<1x8x512xf32>
    %102 = vector.shape_cast %101 : vector<1x8x512xf32> to vector<8x512xf32>
    %103 = arith.truncf %95 : vector<8x128xf32> to vector<8x128xbf16>
    %cst_42 = arith.constant dense<0.000000e+00> : vector<8x512xf32>
    %104 = tpu.matmul %103, %15, %cst_42 {dimension_numbers = #tpu.dot_dimension_numbers<[1], [0], [0], [1], [0, 0, 1, 1], [], []>} : vector<8x128xbf16>, vector<128x512xbf16>, vector<8x512xf32> -> vector<8x512xf32>
    %105 = arith.addf %102, %104 : vector<8x512xf32>
    %106 = vector.extract_strided_slice %105 {offsets = [0, 0], sizes = [8, 384], strides = [1, 1]} : vector<8x512xf32> to vector<8x384xf32>
    %107 = arith.negf %106 : vector<8x384xf32>
    %108 = math.exp %107 : vector<8x384xf32>
    %cst_43 = arith.constant 1.000000e+00 : f32
    %109 = vector.broadcast %cst_43 : f32 to vector<8x384xf32>
    %110 = arith.addf %109, %108 : vector<8x384xf32>
    %111 = arith.divf %109, %110 : vector<8x384xf32>
    %112 = vector.extract_strided_slice %105 {offsets = [0, 384], sizes = [8, 128], strides = [1, 1]} : vector<8x512xf32> to vector<8x128xf32>
    %113 = math.tanh %112 : vector<8x128xf32>
    %114 = vector.extract_strided_slice %111 {offsets = [0, 128], sizes = [8, 128], strides = [1, 1]} : vector<8x384xf32> to vector<8x128xf32>
    %115 = arith.mulf %114, %92 : vector<8x128xf32>
    %116 = vector.extract_strided_slice %111 {offsets = [0, 0], sizes = [8, 128], strides = [1, 1]} : vector<8x384xf32> to vector<8x128xf32>
    %117 = arith.mulf %116, %113 : vector<8x128xf32>
    %118 = arith.addf %115, %117 : vector<8x128xf32>
    %119 = vector.extract_strided_slice %111 {offsets = [0, 256], sizes = [8, 128], strides = [1, 1]} : vector<8x384xf32> to vector<8x128xf32>
    %120 = math.tanh %118 : vector<8x128xf32>
    %121 = arith.mulf %119, %120 : vector<8x128xf32>
    %c4_i32 = arith.constant 4 : i32
    %c0_44 = arith.constant 0 : index
    %c0_45 = arith.constant 0 : index
    %122 = vector.load %arg8[%c0_44, %c0_45] : memref<8x128xf32, #tpu.memory_space<vmem>>, vector<8x128xf32>
    tpu.vector_store %arg8[%c0_44, %c0_45], %121 {strides = array<i32>} : memref<8x128xf32, #tpu.memory_space<vmem>>, vector<8x128xf32>,
    %c0_46 = arith.constant 0 : index
    %c0_47 = arith.constant 0 : index
    %123 = vector.load %arg9[%c0_46, %c0_47] : memref<8x128xf32, #tpu.memory_space<vmem>>, vector<8x128xf32>
    tpu.vector_store %arg9[%c0_46, %c0_47], %118 {strides = array<i32>} : memref<8x128xf32, #tpu.memory_space<vmem>>, vector<8x128xf32>,
    %c1_i32_48 = arith.constant 1 : i32
    %124 = arith.cmpi eq, %arg1, %c1_i32_48 : i32
    %125 = arith.extui %124 : i1 to i32
    %c0_i32_49 = arith.constant 0 : i32
    %126 = arith.cmpi ne, %125, %c0_i32_49 : i32
    scf.if %126 {
      %c0_50 = arith.constant 0 : index
      %c0_51 = arith.constant 0 : index
      %127 = vector.load %arg6[%c0_50, %c0_51] : memref<8x128xf32, #tpu.memory_space<vmem>>, vector<8x128xf32>
      tpu.vector_store %arg6[%c0_50, %c0_51], %121 {strides = array<i32>} : memref<8x128xf32, #tpu.memory_space<vmem>>, vector<8x128xf32>,
    } else {
    }
    return
  }
  func.func @transform_0(%arg0: i32, %arg1: i32) -> (i32, i32, i32) {
    %c2_i32 = arith.constant 2 : i32
    %0 = arith.muli %c2_i32, %arg1 : i32
    %c1_i32 = arith.constant 1 : i32
    %1 = arith.subi %c1_i32, %0 : i32
    %2 = arith.muli %arg0, %1 : i32
    %3 = arith.addi %arg1, %2 : i32
    %c0_i32 = arith.constant 0 : i32
    %c0_i32_0 = arith.constant 0 : i32
    %c0_i32_1 = arith.constant 0 : i32
    return %3, %c0_i32, %c0_i32_0 : i32, i32, i32
  }
  func.func @transform_1(%arg0: i32, %arg1: i32) -> (i32, i32, i32) {
    %c0_i32 = arith.constant 0 : i32
    %c0_i32_0 = arith.constant 0 : i32
    %c0_i32_1 = arith.constant 0 : i32
    return %arg0, %c0_i32, %c0_i32_0 : i32, i32, i32
  }
  func.func @transform_2(%arg0: i32, %arg1: i32) -> (i32, i32, i32) {
    %c0_i32 = arith.constant 0 : i32
    %c0_i32_0 = arith.constant 0 : i32
    %c0_i32_1 = arith.constant 0 : i32
    return %arg0, %c0_i32, %c0_i32_0 : i32, i32, i32
  }
  func.func @transform_3(%arg0: i32, %arg1: i32) -> (i32, i32, i32) {
    %c0_i32 = arith.constant 0 : i32
    %c0_i32_0 = arith.constant 0 : i32
    %c0_i32_1 = arith.constant 0 : i32
    return %arg0, %c0_i32, %c0_i32_0 : i32, i32, i32
  }
  func.func @transform_4(%arg0: i32, %arg1: i32) -> (i32, i32) {
    %c0_i32 = arith.constant 0 : i32
    %c0_i32_0 = arith.constant 0 : i32
    return %c0_i32, %arg0 : i32, i32
  }
}

</mosaic_0001>

<llo_original>
// kernel: lstm_classifier_forward.2
$region0: #{lstm_classifier_forward.2}
  #allocation0 [shape = 'u32[]', space=smem, size = 0x4, offset = 0x4, fixed_abs, tag = 'smem constant byte address 0x4 - core index']
  #allocation1 [shape = 'u32[144,128]{1,0:T(1,128)}', space=vmem, size = 0x12000, scoped, tag = 'internal scratch']
  #allocation2 [shape = 'f32[4,8,512]{2,1,0:T(8,128)}', space=vmem, size = 0x10000, scoped, tag = 'scratch operand']
  #allocation3 [shape = 'f32[8,128]{1,0:T(8,128)}', space=vmem, size = 0x1000, scoped, tag = 'scratch operand']
  #allocation4 [shape = 'f32[8,128]{1,0:T(8,128)}', space=vmem, size = 0x1000, scoped, tag = 'scratch operand']
  %s0 = inlined_call_operand.vmem [shape: bf16[8,8,128], index: 0, kind: input, shape index: {}]
  %s1 = inlined_call_operand.hbm [shape: bf16[2,128,512], index: 1, kind: input, shape index: {}]
  %s2 = inlined_call_operand.hbm [shape: bf16[2,128,512], index: 2, kind: input, shape index: {}]
  %s3 = inlined_call_operand.hbm [shape: f32[2,1,512], index: 3, kind: input, shape index: {}]
  %s4 = inlined_call_operand.vmem [shape: bf16[8,8,256], index: 4, kind: output, shape index: {}]
  %s5 = sld [smem:[#allocation0]]
  $region102: #{lstm_classifier_forward.2} parent=0
    _
  %s7 = ssub.s32 1, %s5
  %s8 = scalar_select 0, %s7, %s5
  $region1: #{lstm_classifier_forward.2} parent=0
    #allocation5 [shape = 'u8[131072]{0}', space=vmem, size = 0x20000, scoped, tag = 'input window, operand 1, single buffered']
    #allocation6 [shape = 's32[2]{0}', space=sflag, size = 0x8, scoped, tag = 'scoped memory for lstm_classifier_forward.2']
    #allocation7 [shape = 'u8[131072]{0}', space=vmem, size = 0x20000, scoped, tag = 'input window, operand 2, single buffered']
    #allocation8 [shape = 's32[1]{0}', space=sflag, size = 0x4, scoped, tag = 'scoped memory for lstm_classifier_forward.2']
    #allocation9 [shape = 'u8[2048]{0}', space=vmem, size = 0x800, scoped, tag = 'input window, operand 3, single buffered']
    #allocation10 [shape = 'u8[16384]{0}', space=vmem, size = 0x4000, scoped, tag = 'output window, operand 0']
    %9 = vsyncpa [#allocation6], 0
    %10 = vsyncpa [#allocation8], 0
    loop: start=0, step=1, limit=6
    $region2: #{lstm_classifier_forward.2} parent=1 // loop_pre_header
      _
    $region3: #{lstm_classifier_forward.2} parent=1 // loop_header
      %s12 = sphi 0, %s16
      %p13 = scmp.ge.s32.totalorder %s12, 6
      %s19 = sphi 0, %s31
      %s20 = sphi 0, %s27
      %s21 = sphi 0, %s19
      %s22 = sphi 0, %s20
      %s23 = sphi 0, %s21
      %s24 = sphi 0, %s22
      %s42 = sphi 0, %s44
      %s45 = sphi 0, %s42
      %s46 = sphi 0, %s45
      %s62 = sphi 0, %s46
      %s68 = sphi 0, %s70
      %s71 = sphi 0, %s68
      %s72 = sphi 0, %s71
      %s88 = sphi 0, %s72
      %s94 = sphi 0, %s96
      %s97 = sphi 0, %s94
      %s98 = sphi 0, %s97
      %s114 = sphi 0, %s98
      %s120 = sphi 0, %s122
      %s123 = sphi 0, %s120
      %s124 = sphi 0, %s123
      %s140 = sphi 0, %s124
      %s156 = sphi 0, %s158
      %s159 = sphi 0, %s156
      %s160 = sphi 0, %s159
      %s176 = sphi 0, %s160
    $region4: #{lstm_classifier_forward.2} parent=1 // loop_header_branch
      %15 = sbr.rel (%p13) target = $region8
    $region5: #{lstm_classifier_forward.2} parent=1 // loop_body
      %s17 = ssub.s32 %s12, 1
      %s18 = ssub.s32 %s12, 2
      %s25 = sadd.s32 1, %s20
      %p26 = scmp.ge.s32.totalorder %s25, 2
      %s27 = scalar_select %p26, 0, %s25
      %s28 = sadd.s32 1, %s19
      %s29 = scalar_select %p26, %s28, %s19
      %p30 = scmp.ge.s32.totalorder %s29, 2
      %s31 = scalar_select %p30, 0, %s29
      %s32 = smul.u32 %s20, 2
      %s33 = ssub.s32 1, %s32
      %s34 = smul.u32 %s19, %s33
      %s35 = sadd.s32 %s20, %s34
      %s36 = smul.u32 %s27, 2
      %s37 = ssub.s32 1, %s36
      %s38 = smul.u32 %s31, %s37
      %s39 = sadd.s32 %s27, %s38
      %s40 = ssub.s32 %s35, %s39
      %p41 = scmp.eq.s32.totalorder %s40, 0
      %s43 = sadd.s32 %s42, 1
      %s44 = scalar_select %p41, %s42, %s43
      %p47 = pneg %p41
      %p48 = scmp.eq.s32.totalorder %s12, 3
      %p49 = por %p47, %p48
      %p50 = scmp.ne.s32.totalorder %s42, %s45
      %p51 = scmp.eq.s32.totalorder %s12, 0
      %p52 = por %p50, %p51
      %p53 = scmp.ne.s32.totalorder %s42, %s45
      %p54 = scmp.eq.s32.totalorder %s17, 3
      %p55 = por %p53, %p54
      %p56 = scmp.ne.s32.totalorder %s45, %s46
      %p57 = scmp.eq.s32.totalorder %s17, 0
      %p58 = por %p56, %p57
      %p59 = scmp.ne.s32.totalorder %s45, %s46
      %p60 = scmp.eq.s32.totalorder %s18, 3
      %p61 = por %p59, %p60
      %p63 = scmp.ne.s32.totalorder %s46, %s62
      %p64 = scmp.eq.s32.totalorder %s18, 0
      %p65 = por %p63, %p64
      %s66 = ssub.s32 %s19, %s31
      %p67 = scmp.eq.s32.totalorder %s66, 0
      %s69 = sadd.s32 %s68, 1
      %s70 = scalar_select %p67, %s68, %s69
      %p73 = pneg %p67
      %p74 = scmp.eq.s32.totalorder %s12, 3
      %p75 = por %p73, %p74
      %p76 = scmp.ne.s32.totalorder %s68, %s71
      %p77 = scmp.eq.s32.totalorder %s12, 0
      %p78 = por %p76, %p77
      %p79 = scmp.ne.s32.totalorder %s68, %s71
      %p80 = scmp.eq.s32.totalorder %s17, 3
      %p81 = por %p79, %p80
      %p82 = scmp.ne.s32.totalorder %s71, %s72
      %p83 = scmp.eq.s32.totalorder %s17, 0
      %p84 = por %p82, %p83
      %p85 = scmp.ne.s32.totalorder %s71, %s72
      %p86 = scmp.eq.s32.totalorder %s18, 3
      %p87 = por %p85, %p86
      %p89 = scmp.ne.s32.totalorder %s72, %s88
      %p90 = scmp.eq.s32.totalorder %s18, 0
      %p91 = por %p89, %p90
      %s92 = ssub.s32 %s19, %s31
      %p93 = scmp.eq.s32.totalorder %s92, 0
      %s95 = sadd.s32 %s94, 1
      %s96 = scalar_select %p93, %s94, %s95
      %p99 = pneg %p93
      %p100 = scmp.eq.s32.totalorder %s12, 3
      %p101 = por %p99, %p100
      %p102 = scmp.ne.s32.totalorder %s94, %s97
      %p103 = scmp.eq.s32.totalorder %s12, 0
      %p104 = por %p102, %p103
      %p105 = scmp.ne.s32.totalorder %s94, %s97
      %p106 = scmp.eq.s32.totalorder %s17, 3
      %p107 = por %p105, %p106
      %p108 = scmp.ne.s32.totalorder %s97, %s98
      %p109 = scmp.eq.s32.totalorder %s17, 0
      %p110 = por %p108, %p109
      %p111 = scmp.ne.s32.totalorder %s97, %s98
      %p112 = scmp.eq.s32.totalorder %s18, 3
      %p113 = por %p111, %p112
      %p115 = scmp.ne.s32.totalorder %s98, %s114
      %p116 = scmp.eq.s32.totalorder %s18, 0
      %p117 = por %p115, %p116
      %s118 = ssub.s32 %s19, %s31
      %p119 = scmp.eq.s32.totalorder %s118, 0
      %s121 = sadd.s32 %s120, 1
      %s122 = scalar_select %p119, %s120, %s121
      %p125 = pneg %p119
      %p126 = scmp.eq.s32.totalorder %s12, 3
      %p127 = por %p125, %p126
      %p128 = scmp.ne.s32.totalorder %s120, %s123
      %p129 = scmp.eq.s32.totalorder %s12, 0
      %p130 = por %p128, %p129
      %p131 = scmp.ne.s32.totalorder %s120, %s123
      %p132 = scmp.eq.s32.totalorder %s17, 3
      %p133 = por %p131, %p132
      %p134 = scmp.ne.s32.totalorder %s123, %s124
      %p135 = scmp.eq.s32.totalorder %s17, 0
      %p136 = por %p134, %p135
      %p137 = scmp.ne.s32.totalorder %s123, %s124
      %p138 = scmp.eq.s32.totalorder %s18, 3
      %p139 = por %p137, %p138
      %p141 = scmp.ne.s32.totalorder %s124, %s140
      %p142 = scmp.eq.s32.totalorder %s18, 0
      %p143 = por %p141, %p142
      %s144 = smul.u32 %s20, 2
      %s145 = ssub.s32 1, %s144
      %s146 = smul.u32 %s19, %s145
      %s147 = sadd.s32 %s20, %s146
      %s148 = smul.u32 %s27, 2
      %s149 = ssub.s32 1, %s148
      %s150 = smul.u32 %s31, %s149
      %s151 = sadd.s32 %s27, %s150
      %s152 = ssub.s32 %s147, %s151
      %s153 = ssub.s32 %s19, %s31
      %s154 = sor.u32 %s152, %s153
      %p155 = scmp.eq.s32.totalorder %s154, 0
      %s157 = sadd.s32 %s156, 1
      %s158 = scalar_select %p155, %s156, %s157
      %p161 = pneg %p155
      %p162 = scmp.eq.s32.totalorder %s12, 3
      %p163 = por %p161, %p162
      %p164 = scmp.ne.s32.totalorder %s156, %s159
      %p165 = scmp.eq.s32.totalorder %s12, 0
      %p166 = por %p164, %p165
      %p167 = scmp.ne.s32.totalorder %s156, %s159
      %p168 = scmp.eq.s32.totalorder %s17, 3
      %p169 = por %p167, %p168
      %p170 = scmp.ne.s32.totalorder %s159, %s160
      %p171 = scmp.eq.s32.totalorder %s17, 0
      %p172 = por %p170, %p171
      %p173 = scmp.ne.s32.totalorder %s159, %s160
      %p174 = scmp.eq.s32.totalorder %s18, 3
      %p175 = por %p173, %p174
      %p177 = scmp.ne.s32.totalorder %s160, %s176
      %p178 = scmp.eq.s32.totalorder %s18, 0
      %p179 = por %p177, %p178
      %p180 = scmp.le.s32.totalorder 1, %s12
      %p181 = scmp.lt.s32.totalorder %s12, 5
      %p182 = pnand %p180, %p181
      %p183 = pneg %p182
      // Predicated region
      $region9: #{lstm_classifier_forward.2} parent=5 // pred_check
        _
      $region10: #{lstm_classifier_forward.2} parent=5 // pred_check_branch
        %185 = sbr.rel (%p182) target = $region12
      $region11: #{lstm_classifier_forward.2} parent=5 // pred_region
        %s186 = ssub.s32 %s12, 1
        // Predicated region
        $region13: #{lstm_classifier_forward.2} parent=11 // pred_check
          %p187 = pneg %p84
        $region14: #{lstm_classifier_forward.2} parent=11 // pred_check_branch
          %189 = sbr.rel (%p187) target = $region16
        $region15: #{lstm_classifier_forward.2} parent=11 // pred_region
          %s191 = ssub.s32 4096, 4096
          %192 = vsyncadd [#allocation6], %s191
          %s193 = smul.addr %s21, 64
          %s194 = smul.addr %s193, 64
          %s195 = scalar_lea.hbm %s1, %s194
          %s196 = sshll.u32 [#allocation5], 4
          %s197 = int_to_ptr.vmem [resolvable:$true] %s196
          %202 = dma.hbm_to_vmem [thread:$0]  %s195, 4096, %s197, [#allocation6], 256, 256, 16
        $region16: #{lstm_classifier_forward.2} parent=11 // pred_fallthru
          _
        // Predicated region
        $region17: #{lstm_classifier_forward.2} parent=11 // pred_check
          %p203 = pneg %p110
        $region18: #{lstm_classifier_forward.2} parent=11 // pred_check_branch
          %205 = sbr.rel (%p203) target = $region20
        $region19: #{lstm_classifier_forward.2} parent=11 // pred_region
          %s207 = ssub.s32 4096, 4096
          %208 = vsyncadd [#allocation8], %s207
          %s209 = smul.addr %s21, 64
          %s210 = smul.addr %s209, 64
          %s211 = scalar_lea.hbm %s2, %s210
          %s212 = sshll.u32 [#allocation7], 4
          %s213 = int_to_ptr.vmem [resolvable:$true] %s212
          %218 = dma.hbm_to_vmem [thread:$0]  %s211, 4096, %s213, [#allocation8], 256, 256, 16
        $region20: #{lstm_classifier_forward.2} parent=11 // pred_fallthru
          _
        // Predicated region
        $region21: #{lstm_classifier_forward.2} parent=11 // pred_check
          %p219 = pneg %p136
        $region22: #{lstm_classifier_forward.2} parent=11 // pred_check_branch
          %221 = sbr.rel (%p219) target = $region24
        $region23: #{lstm_classifier_forward.2} parent=11 // pred_region
          %s223 = ssub.s32 64, 64
          %224 = vsyncadd [#allocation8], %s223
          %s225 = smul.addr %s21, 4
          %s226 = smul.addr %s225, 16
          %s227 = scalar_lea.hbm %s3, %s226
          %s229 = sshll.u32 [#allocation9], 4
          %s230 = int_to_ptr.vmem [resolvable:$true] %s229
          %232 = dma.hbm_to_vmem [thread:$0]  %s227, 64, %s230, [#allocation8]
        $region24: #{lstm_classifier_forward.2} parent=11 // pred_fallthru
          _
      $region12: #{lstm_classifier_forward.2} parent=5 // pred_fallthru
        _
      %p233 = scmp.lt.s32.totalorder %s12, 4
      // Predicated region
      $region25: #{lstm_classifier_forward.2} parent=5 // pred_check
        %p234 = pneg %p233
      $region26: #{lstm_classifier_forward.2} parent=5 // pred_check_branch
        %236 = sbr.rel (%p234) target = $region28
      $region27: #{lstm_classifier_forward.2} parent=5 // pred_region
        // Predicated region
        $region29: #{lstm_classifier_forward.2} parent=27 // pred_check
          %p237 = pneg %p52
        $region30: #{lstm_classifier_forward.2} parent=27 // pred_check_branch
          %239 = sbr.rel (%p237) target = $region32
        $region31: #{lstm_classifier_forward.2} parent=27 // pred_region
          %s240 = smul.u32 %s20, 2
          %s241 = ssub.s32 1, %s240
          %s242 = smul.u32 %s19, %s241
          %s243 = sadd.s32 %s20, %s242
          %s244 = smul.u32 4, %s243
          %p245 = scmp.lt.s32.totalorder %s244, 7
          %s246 = scalar_select %p245, %s244, 7
          %s247 = smul.addr %s246, 4
          %s248 = scalar_lea.vmem %s0, %s247
          %s249 = smul.u32 %s20, 2
          %s250 = ssub.s32 1, %s249
          %s251 = smul.u32 %s19, %s250
          %s252 = sadd.s32 %s20, %s251
          %s253 = smul.u32 4, %s252
        $region32: #{lstm_classifier_forward.2} parent=27 // pred_fallthru
          _
      $region28: #{lstm_classifier_forward.2} parent=5 // pred_fallthru
        _
      %p254 = scmp.le.s32.totalorder 1, %s12
      %p255 = scmp.lt.s32.totalorder %s12, 5
      %p256 = pnand %p254, %p255
      %p257 = pneg %p256
      // Predicated region
      $region33: #{lstm_classifier_forward.2} parent=5 // pred_check
        _
      $region34: #{lstm_classifier_forward.2} parent=5 // pred_check_branch
        %259 = sbr.rel (%p256) target = $region36
      $region35: #{lstm_classifier_forward.2} parent=5 // pred_region
        %s260 = ssub.s32 %s12, 1
        // Predicated region
        $region37: #{lstm_classifier_forward.2} parent=35 // pred_check
          %p261 = pneg %p84
        $region38: #{lstm_classifier_forward.2} parent=35 // pred_check_branch
          %263 = sbr.rel (%p261) target = $region40
        $region39: #{lstm_classifier_forward.2} parent=35 // pred_region
          %264 = dma.done [#allocation6], 4096
        $region40: #{lstm_classifier_forward.2} parent=35 // pred_fallthru
          _
        // Predicated region
        $region41: #{lstm_classifier_forward.2} parent=35 // pred_check
          %p265 = pneg %p110
        $region42: #{lstm_classifier_forward.2} parent=35 // pred_check_branch
          %267 = sbr.rel (%p265) target = $region44
        $region43: #{lstm_classifier_forward.2} parent=35 // pred_region
          %268 = dma.done [#allocation8], 4096
        $region44: #{lstm_classifier_forward.2} parent=35 // pred_fallthru
          _
        // Predicated region
        $region45: #{lstm_classifier_forward.2} parent=35 // pred_check
          %p269 = pneg %p136
        $region46: #{lstm_classifier_forward.2} parent=35 // pred_check_branch
          %271 = sbr.rel (%p269) target = $region48
        $region47: #{lstm_classifier_forward.2} parent=35 // pred_region
          %272 = dma.done [#allocation8], 64
        $region48: #{lstm_classifier_forward.2} parent=35 // pred_fallthru
          _
        %s273 = smul.u32 %s22, 2
        %s274 = ssub.s32 1, %s273
        %s275 = smul.u32 %s21, %s274
        %s276 = sadd.s32 %s22, %s275
        %s277 = smul.u32 4, %s276
        %p278 = scmp.lt.s32.totalorder %s277, 7
        %s279 = scalar_select %p278, %s277, 7
        %s280 = smul.addr %s279, 4
        %s281 = scalar_lea.vmem %s0, %s280
        %p282 = pneg %p58
        %p283 = pneg %p55
        %p284 = pneg %p84
        %p285 = pneg %p81
        %p286 = pneg %p110
        %p287 = pneg %p107
        %p288 = pneg %p136
        %p289 = pneg %p133
        %p290 = pneg %p172
        %p291 = pneg %p169
        %s292 = sand.u32 %s159, 1
        %s293 = sand.u32 %s159, 1
        %s294 = smul.addr %s293, 16
        %s295 = scalar_lea.vmem [#allocation10], %s294
        %s296 = smul.u32 %s22, 2
        %s297 = ssub.s32 1, %s296
        %s298 = smul.u32 %s21, %s297
        %s299 = sadd.s32 %s22, %s298
        %s300 = smul.u32 4, %s299
        %p301 = scmp.lt.s32.totalorder %s300, 7
        %s302 = scalar_select %p301, %s300, 7
        %s303 = smul.addr %s302, 4
        %s304 = scalar_lea.vmem %s0, %s303
        %s305 = smul.u32 %s22, 2
        %s306 = ssub.s32 1, %s305
        %s307 = smul.u32 %s21, %s306
        %s308 = sadd.s32 %s22, %s307
        %s309 = smul.u32 4, %s308
        %s310 = smul.u32 %s22, 2
        %s311 = ssub.s32 1, %s310
        %s312 = smul.u32 %s21, %s311
        %s313 = sadd.s32 %s22, %s312
        %s314 = smul.u32 4, %s313
        %p316 = scmp.eq.s32.totalorder %s22, 0
        // Predicated region
        $region49: #{lstm_classifier_forward.2} parent=35 // pred_check
          %p317 = pneg %p316
        $region50: #{lstm_classifier_forward.2} parent=35 // pred_check_branch
          %319 = sbr.rel (%p317) target = $region52
        $region51: #{lstm_classifier_forward.2} parent=35 // pred_region
          %320 = vst [vmem:[#allocation3] sm:$0xff] 0.0
          %321 = vst [vmem:[#allocation4] sm:$0xff] 0.0
        $region52: #{lstm_classifier_forward.2} parent=35 // pred_fallthru
          _
        %v322 = vld [vmem:[%s304] sm:$0xf]
        %v323 = vld [vmem:[%s304 + $0x4] sm:$0xf]
        %v324 = vld [vmem:[%s304 + $0x8] sm:$0xf]
        %v325 = vld [vmem:[%s304 + $0xc] sm:$0xf]
        %v326 = vld [vmem:[#allocation5] sm:$0xff]
        %v327 = vld [vmem:[#allocation5 + $0x8] sm:$0xff]
        %v328 = vld [vmem:[#allocation5 + $0x10] sm:$0xff]
        %v329 = vld [vmem:[#allocation5 + $0x18] sm:$0xff]
        %v330 = vld [vmem:[#allocation5 + $0x20] sm:$0xff]
        %v331 = vld [vmem:[#allocation5 + $0x28] sm:$0xff]
        %v332 = vld [vmem:[#allocation5 + $0x30] sm:$0xff]
        %v333 = vld [vmem:[#allocation5 + $0x38] sm:$0xff]
        %v334 = vld [vmem:[#allocation5 + $0x40] sm:$0xff]
        %v335 = vld [vmem:[#allocation5 + $0x48] sm:$0xff]
        %v336 = vld [vmem:[#allocation5 + $0x50] sm:$0xff]
        %v337 = vld [vmem:[#allocation5 + $0x58] sm:$0xff]
        %v338 = vld [vmem:[#allocation5 + $0x60] sm:$0xff]
        %v339 = vld [vmem:[#allocation5 + $0x68] sm:$0xff]
        %v340 = vld [vmem:[#allocation5 + $0x70] sm:$0xff]
        %v341 = vld [vmem:[#allocation5 + $0x78] sm:$0xff]
        %v342 = vld [vmem:[#allocation5 + $0x80] sm:$0xff]
        %v343 = vld [vmem:[#allocation5 + $0x88] sm:$0xff]
        %v344 = vld [vmem:[#allocation5 + $0x90] sm:$0xff]
        %v345 = vld [vmem:[#allocation5 + $0x98] sm:$0xff]
        %v346 = vld [vmem:[#allocation5 + $0xa0] sm:$0xff]
        %v347 = vld [vmem:[#allocation5 + $0xa8] sm:$0xff]
        %v348 = vld [vmem:[#allocation5 + $0xb0] sm:$0xff]
        %v349 = vld [vmem:[#allocation5 + $0xb8] sm:$0xff]
        %v350 = vld [vmem:[#allocation5 + $0xc0] sm:$0xff]
        %v351 = vld [vmem:[#allocation5 + $0xc8] sm:$0xff]
        %v352 = vld [vmem:[#allocation5 + $0xd0] sm:$0xff]
        %v353 = vld [vmem:[#allocation5 + $0xd8] sm:$0xff]
        %v354 = vld [vmem:[#allocation5 + $0xe0] sm:$0xff]
        %v355 = vld [vmem:[#allocation5 + $0xe8] sm:$0xff]
        %v356 = vld [vmem:[#allocation5 + $0xf0] sm:$0xff]
        %v357 = vld [vmem:[#allocation5 + $0xf8] sm:$0xff]
        %v358 = vld [vmem:[#allocation9] sm:$0xf]
        %v360 = vlaneseq
        %v361 = vshrl.u32 %v360, 7
        %v362 = vsub.s32 0, %v361
        %v363 = vrot.slane %v358, %v362
        %v364 = vlaneseq
        %v365 = vshrl.u32 %v364, 7
        %v366 = vsub.s32 1, %v365
        %v367 = vrot.slane %v358, %v366
        %v368 = vlaneseq
        %v369 = vshrl.u32 %v368, 7
        %v370 = vsub.s32 2, %v369
        %v371 = vrot.slane %v358, %v370
        %v372 = vlaneseq
        %v373 = vshrl.u32 %v372, 7
        %v374 = vsub.s32 3, %v373
        %v375 = vrot.slane %v358, %v374
        %v384 = vunpack.c.l.b16 %v322
        %v385 = vunpack.c.l.b16 %v323
        %v386 = vunpack.c.l.b16 %v324
        %v387 = vunpack.c.l.b16 %v325
        %v388 = vpack.c.b16 %v385, %v384
        %v389 = vpack.c.b16 %v387, %v386
        %v424 = vunpack.c.l.b16 %v326
        %v425 = vunpack.c.h.b16 %v326
        %v426 = vunpack.c.l.b16 %v327
        %v427 = vunpack.c.h.b16 %v327
        %v428 = vunpack.c.l.b16 %v328
        %v429 = vunpack.c.h.b16 %v328
        %v430 = vunpack.c.l.b16 %v329
        %v431 = vunpack.c.h.b16 %v329
        %v432 = vunpack.c.l.b16 %v330
        %v433 = vunpack.c.h.b16 %v330
        %v434 = vunpack.c.l.b16 %v331
        %v435 = vunpack.c.h.b16 %v331
        %v436 = vunpack.c.l.b16 %v332
        %v437 = vunpack.c.h.b16 %v332
        %v438 = vunpack.c.l.b16 %v333
        %v439 = vunpack.c.h.b16 %v333
        %v440 = vunpack.c.l.b16 %v334
        %v441 = vunpack.c.h.b16 %v334
        %v442 = vunpack.c.l.b16 %v335
        %v443 = vunpack.c.h.b16 %v335
        %v444 = vunpack.c.l.b16 %v336
        %v445 = vunpack.c.h.b16 %v336
        %v446 = vunpack.c.l.b16 %v337
        %v447 = vunpack.c.h.b16 %v337
        %v448 = vunpack.c.l.b16 %v338
        %v449 = vunpack.c.h.b16 %v338
        %v450 = vunpack.c.l.b16 %v339
        %v451 = vunpack.c.h.b16 %v339
        %v452 = vunpack.c.l.b16 %v340
        %v453 = vunpack.c.h.b16 %v340
        %v454 = vunpack.c.l.b16 %v341
        %v455 = vunpack.c.h.b16 %v341
        %v456 = vunpack.c.l.b16 %v342
        %v457 = vunpack.c.h.b16 %v342
        %v458 = vunpack.c.l.b16 %v343
        %v459 = vunpack.c.h.b16 %v343
        %v460 = vunpack.c.l.b16 %v344
        %v461 = vunpack.c.h.b16 %v344
        %v462 = vunpack.c.l.b16 %v345
        %v463 = vunpack.c.h.b16 %v345
        %v464 = vunpack.c.l.b16 %v346
        %v465 = vunpack.c.h.b16 %v346
        %v466 = vunpack.c.l.b16 %v347
        %v467 = vunpack.c.h.b16 %v347
        %v468 = vunpack.c.l.b16 %v348
        %v469 = vunpack.c.h.b16 %v348
        %v470 = vunpack.c.l.b16 %v349
        %v471 = vunpack.c.h.b16 %v349
        %v472 = vunpack.c.l.b16 %v350
        %v473 = vunpack.c.h.b16 %v350
        %v474 = vunpack.c.l.b16 %v351
        %v475 = vunpack.c.h.b16 %v351
        %v476 = vunpack.c.l.b16 %v352
        %v477 = vunpack.c.h.b16 %v352
        %v478 = vunpack.c.l.b16 %v353
        %v479 = vunpack.c.h.b16 %v353
        %v480 = vunpack.c.l.b16 %v354
        %v481 = vunpack.c.h.b16 %v354
        %v482 = vunpack.c.l.b16 %v355
        %v483 = vunpack.c.h.b16 %v355
        %v484 = vunpack.c.l.b16 %v356
        %v485 = vunpack.c.h.b16 %v356
        %v486 = vunpack.c.l.b16 %v357
        %v487 = vunpack.c.h.b16 %v357
        %v488 = vpack.c.b16 %v428, %v424
        %v489 = vpack.c.b16 %v429, %v425
        %v490 = vpack.c.b16 %v430, %v426
        %v491 = vpack.c.b16 %v431, %v427
        %v492 = vpack.c.b16 %v436, %v432
        %v493 = vpack.c.b16 %v437, %v433
        %v494 = vpack.c.b16 %v438, %v434
        %v495 = vpack.c.b16 %v439, %v435
        %v496 = vpack.c.b16 %v444, %v440
        %v497 = vpack.c.b16 %v445, %v441
        %v498 = vpack.c.b16 %v446, %v442
        %v499 = vpack.c.b16 %v447, %v443
        %v500 = vpack.c.b16 %v452, %v448
        %v501 = vpack.c.b16 %v453, %v449
        %v502 = vpack.c.b16 %v454, %v450
        %v503 = vpack.c.b16 %v455, %v451
        %v504 = vpack.c.b16 %v460, %v456
        %v505 = vpack.c.b16 %v461, %v457
        %v506 = vpack.c.b16 %v462, %v458
        %v507 = vpack.c.b16 %v463, %v459
        %v508 = vpack.c.b16 %v468, %v464
        %v509 = vpack.c.b16 %v469, %v465
        %v510 = vpack.c.b16 %v470, %v466
        %v511 = vpack.c.b16 %v471, %v467
        %v512 = vpack.c.b16 %v476, %v472
        %v513 = vpack.c.b16 %v477, %v473
        %v514 = vpack.c.b16 %v478, %v474
        %v515 = vpack.c.b16 %v479, %v475
        %v516 = vpack.c.b16 %v484, %v480
        %v517 = vpack.c.b16 %v485, %v481
        %v518 = vpack.c.b16 %v486, %v482
        %v519 = vpack.c.b16 %v487, %v483
        %552 = vmatprep.subr.bf16.mxu0 %v489
        %553 = vmatpush1.bf16.msra.mxu0 %v488
        %554 = vmatprep.subr.bf16.mxu0 %v493
        %555 = vmatpush1.bf16.msra.mxu0 %v492
        %556 = vmatprep.subr.bf16.mxu0 %v497
        %557 = vmatpush1.bf16.msra.mxu0 %v496
        %558 = vmatprep.subr.bf16.mxu0 %v501
        %559 = vmatpush1.bf16.msra.mxu0 %v500
        %560 = vmatprep.subr.bf16.mxu0 %v505
        %561 = vmatpush1.bf16.msra.mxu0 %v504
        %562 = vmatprep.subr.bf16.mxu0 %v509
        %563 = vmatpush1.bf16.msra.mxu0 %v508
        %564 = vmatprep.subr.bf16.mxu0 %v513
        %565 = vmatpush1.bf16.msra.mxu0 %v512
        %566 = vmatprep.subr.bf16.mxu0 %v517
        %567 = vmatpush1.bf16.msra.mxu0 %v516
        %568 = vmatprep.subr.bf16.mxu0 0
        %569 = vmatpush1.bf16.msra.mxu0 0
        %570 = vmatprep.subr.bf16.mxu0 0
        %571 = vmatpush1.bf16.msra.mxu0 0
        %572 = vmatprep.subr.bf16.mxu0 0
        %573 = vmatpush1.bf16.msra.mxu0 0
        %574 = vmatprep.subr.bf16.mxu0 0
        %575 = vmatpush1.bf16.msra.mxu0 0
        %576 = vmatprep.subr.bf16.mxu0 0
        %577 = vmatpush1.bf16.msra.mxu0 0
        %578 = vmatprep.subr.bf16.mxu0 0
        %579 = vmatpush1.bf16.msra.mxu0 0
        %580 = vmatprep.subr.bf16.mxu0 0
        %581 = vmatpush1.bf16.msra.mxu0 0
        %582 = vmatprep.subr.bf16.mxu0 0
        %583 = vmatpush1.bf16.msra.mxu0 0
        %584 = vmatprep.mubr.bf16.mxu0 0
        %585 = vmatmul.mubr.bf16.gmra.mrb[0].mxu0 %v388
        %v586 = vpop.f32.mrb[0].mxu0
        %v587 = vadd.f32 %v363, %v586
        %v588 = vpop.f32.mrb[0].mxu0
        %v589 = vadd.f32 %v367, %v588
        %v590 = vpop.f32.mrb[0].mxu0
        %v591 = vadd.f32 %v363, %v590
        %v592 = vpop.f32.mrb[0].mxu0
        %v593 = vadd.f32 %v367, %v592
        %594 = vmatprep.mubr.bf16.mxu0 0
        %595 = vmatmul.mubr.bf16.gmra.mrb[0].mxu0 %v389
        %v596 = vpop.f32.mrb[0].mxu0
        %v597 = vadd.f32 %v363, %v596
        %v598 = vpop.f32.mrb[0].mxu0
        %v599 = vadd.f32 %v367, %v598
        %v600 = vpop.f32.mrb[0].mxu0
        %v601 = vadd.f32 %v363, %v600
        %v602 = vpop.f32.mrb[0].mxu0
        %v603 = vadd.f32 %v367, %v602
        %604 = vdwg.mxu0
        %605 = vmatprep.subr.bf16.mxu0 %v491
        %606 = vmatpush1.bf16.msra.mxu0 %v490
        %607 = vmatprep.subr.bf16.mxu0 %v495
        %608 = vmatpush1.bf16.msra.mxu0 %v494
        %609 = vmatprep.subr.bf16.mxu0 %v499
        %610 = vmatpush1.bf16.msra.mxu0 %v498
        %611 = vmatprep.subr.bf16.mxu0 %v503
        %612 = vmatpush1.bf16.msra.mxu0 %v502
        %613 = vmatprep.subr.bf16.mxu0 %v507
        %614 = vmatpush1.bf16.msra.mxu0 %v506
        %615 = vmatprep.subr.bf16.mxu0 %v511
        %616 = vmatpush1.bf16.msra.mxu0 %v510
        %617 = vmatprep.subr.bf16.mxu0 %v515
        %618 = vmatpush1.bf16.msra.mxu0 %v514
        %619 = vmatprep.subr.bf16.mxu0 %v519
        %620 = vmatpush1.bf16.msra.mxu0 %v518
        %621 = vmatprep.subr.bf16.mxu0 0
        %622 = vmatpush1.bf16.msra.mxu0 0
        %623 = vmatprep.subr.bf16.mxu0 0
        %624 = vmatpush1.bf16.msra.mxu0 0
        %625 = vmatprep.subr.bf16.mxu0 0
        %626 = vmatpush1.bf16.msra.mxu0 0
        %627 = vmatprep.subr.bf16.mxu0 0
        %628 = vmatpush1.bf16.msra.mxu0 0
        %629 = vmatprep.subr.bf16.mxu0 0
        %630 = vmatpush1.bf16.msra.mxu0 0
        %631 = vmatprep.subr.bf16.mxu0 0
        %632 = vmatpush1.bf16.msra.mxu0 0
        %633 = vmatprep.subr.bf16.mxu0 0
        %634 = vmatpush1.bf16.msra.mxu0 0
        %635 = vmatprep.subr.bf16.mxu0 0
        %636 = vmatpush1.bf16.msra.mxu0 0
        %637 = vmatprep.mubr.bf16.mxu0 0
        %638 = vmatmul.mubr.bf16.gmra.mrb[0].mxu0 %v388
        %v639 = vpop.f32.mrb[0].mxu0
        %v640 = vadd.f32 %v371, %v639
        %v641 = vpop.f32.mrb[0].mxu0
        %v642 = vadd.f32 %v375, %v641
        %v643 = vpop.f32.mrb[0].mxu0
        %v644 = vadd.f32 %v371, %v643
        %v645 = vpop.f32.mrb[0].mxu0
        %v646 = vadd.f32 %v375, %v645
        %647 = vmatprep.mubr.bf16.mxu0 0
        %648 = vmatmul.mubr.bf16.gmra.mrb[0].mxu0 %v389
        %v649 = vpop.f32.mrb[0].mxu0
        %v650 = vadd.f32 %v371, %v649
        %v651 = vpop.f32.mrb[0].mxu0
        %v652 = vadd.f32 %v375, %v651
        %v653 = vpop.f32.mrb[0].mxu0
        %v654 = vadd.f32 %v371, %v653
        %v655 = vpop.f32.mrb[0].mxu0
        %v656 = vadd.f32 %v375, %v655
        %657 = vdwg.mxu0
        %658 = vst [vmem:[#allocation2] sm:$0xff] %v587
        %659 = vst [vmem:[#allocation2 + $0x8] sm:$0xff] %v589
        %660 = vst [vmem:[#allocation2 + $0x10] sm:$0xff] %v640
        %661 = vst [vmem:[#allocation2 + $0x18] sm:$0xff] %v642
        %662 = vst [vmem:[#allocation2 + $0x20] sm:$0xff] %v591
        %663 = vst [vmem:[#allocation2 + $0x28] sm:$0xff] %v593
        %664 = vst [vmem:[#allocation2 + $0x30] sm:$0xff] %v644
        %665 = vst [vmem:[#allocation2 + $0x38] sm:$0xff] %v646
        %666 = vst [vmem:[#allocation2 + $0x40] sm:$0xff] %v597
        %667 = vst [vmem:[#allocation2 + $0x48] sm:$0xff] %v599
        %668 = vst [vmem:[#allocation2 + $0x50] sm:$0xff] %v650
        %669 = vst [vmem:[#allocation2 + $0x58] sm:$0xff] %v652
        %670 = vst [vmem:[#allocation2 + $0x60] sm:$0xff] %v601
        %671 = vst [vmem:[#allocation2 + $0x68] sm:$0xff] %v603
        %672 = vst [vmem:[#allocation2 + $0x70] sm:$0xff] %v654
        %673 = vst [vmem:[#allocation2 + $0x78] sm:$0xff] %v656
        %v674 = vld [vmem:[#allocation7] sm:$0xff]
        %v675 = vld [vmem:[#allocation7 + $0x8] sm:$0xff]
        %v676 = vld [vmem:[#allocation7 + $0x10] sm:$0xff]
        %v677 = vld [vmem:[#allocation7 + $0x18] sm:$0xff]
        %v678 = vld [vmem:[#allocation7 + $0x20] sm:$0xff]
        %v679 = vld [vmem:[#allocation7 + $0x28] sm:$0xff]
        %v680 = vld [vmem:[#allocation7 + $0x30] sm:$0xff]
        %v681 = vld [vmem:[#allocation7 + $0x38] sm:$0xff]
        %v682 = vld [vmem:[#allocation7 + $0x40] sm:$0xff]
        %v683 = vld [vmem:[#allocation7 + $0x48] sm:$0xff]
        %v684 = vld [vmem:[#allocation7 + $0x50] sm:$0xff]
        %v685 = vld [vmem:[#allocation7 + $0x58] sm:$0xff]
        %v686 = vld [vmem:[#allocation7 + $0x60] sm:$0xff]
        %v687 = vld [vmem:[#allocation7 + $0x68] sm:$0xff]
        %v688 = vld [vmem:[#allocation7 + $0x70] sm:$0xff]
        %v689 = vld [vmem:[#allocation7 + $0x78] sm:$0xff]
        %v690 = vld [vmem:[#allocation7 + $0x80] sm:$0xff]
        %v691 = vld [vmem:[#allocation7 + $0x88] sm:$0xff]
        %v692 = vld [vmem:[#allocation7 + $0x90] sm:$0xff]
        %v693 = vld [vmem:[#allocation7 + $0x98] sm:$0xff]
        %v694 = vld [vmem:[#allocation7 + $0xa0] sm:$0xff]
        %v695 = vld [vmem:[#allocation7 + $0xa8] sm:$0xff]
        %v696 = vld [vmem:[#allocation7 + $0xb0] sm:$0xff]
        %v697 = vld [vmem:[#allocation7 + $0xb8] sm:$0xff]
        %v698 = vld [vmem:[#allocation7 + $0xc0] sm:$0xff]
        %v699 = vld [vmem:[#allocation7 + $0xc8] sm:$0xff]
        %v700 = vld [vmem:[#allocation7 + $0xd0] sm:$0xff]
        %v701 = vld [vmem:[#allocation7 + $0xd8] sm:$0xff]
        %v702 = vld [vmem:[#allocation7 + $0xe0] sm:$0xff]
        %v703 = vld [vmem:[#allocation7 + $0xe8] sm:$0xff]
        %v704 = vld [vmem:[#allocation7 + $0xf0] sm:$0xff]
        %v705 = vld [vmem:[#allocation7 + $0xf8] sm:$0xff]
        %v706 = vld [vmem:[#allocation3] sm:$0xff]
        %v707 = vld [vmem:[#allocation4] sm:$0xff]
        %s708 = smul.u32 %s21, 3
        %s709 = smul.u32 %s708, 4
        %s710 = smul.addr %s709, 8
        %s711 = scalar_lea.vmem [#allocation2], %s710
        %v712 = vld [vmem:[%s711] sm:$0xff]
        %v713 = vld [vmem:[%s711 + $0x8] sm:$0xff]
        %v714 = vld [vmem:[%s711 + $0x10] sm:$0xff]
        %v715 = vld [vmem:[%s711 + $0x18] sm:$0xff]
        %v716 = vpack.c.bf16 %v706, %v706
        %v749 = vunpack.c.l.b16 %v674
        %v750 = vunpack.c.h.b16 %v674
        %v751 = vunpack.c.l.b16 %v675
        %v752 = vunpack.c.h.b16 %v675
        %v753 = vunpack.c.l.b16 %v676
        %v754 = vunpack.c.h.b16 %v676
        %v755 = vunpack.c.l.b16 %v677
        %v756 = vunpack.c.h.b16 %v677
        %v757 = vunpack.c.l.b16 %v678
        %v758 = vunpack.c.h.b16 %v678
        %v759 = vunpack.c.l.b16 %v679
        %v760 = vunpack.c.h.b16 %v679
        %v761 = vunpack.c.l.b16 %v680
        %v762 = vunpack.c.h.b16 %v680
        %v763 = vunpack.c.l.b16 %v681
        %v764 = vunpack.c.h.b16 %v681
        %v765 = vunpack.c.l.b16 %v682
        %v766 = vunpack.c.h.b16 %v682
        %v767 = vunpack.c.l.b16 %v683
        %v768 = vunpack.c.h.b16 %v683
        %v769 = vunpack.c.l.b16 %v684
        %v770 = vunpack.c.h.b16 %v684
        %v771 = vunpack.c.l.b16 %v685
        %v772 = vunpack.c.h.b16 %v685
        %v773 = vunpack.c.l.b16 %v686
        %v774 = vunpack.c.h.b16 %v686
        %v775 = vunpack.c.l.b16 %v687
        %v776 = vunpack.c.h.b16 %v687
        %v777 = vunpack.c.l.b16 %v688
        %v778 = vunpack.c.h.b16 %v688
        %v779 = vunpack.c.l.b16 %v689
        %v780 = vunpack.c.h.b16 %v689
        %v781 = vunpack.c.l.b16 %v690
        %v782 = vunpack.c.h.b16 %v690
        %v783 = vunpack.c.l.b16 %v691
        %v784 = vunpack.c.h.b16 %v691
        %v785 = vunpack.c.l.b16 %v692
        %v786 = vunpack.c.h.b16 %v692
        %v787 = vunpack.c.l.b16 %v693
        %v788 = vunpack.c.h.b16 %v693
        %v789 = vunpack.c.l.b16 %v694
        %v790 = vunpack.c.h.b16 %v694
        %v791 = vunpack.c.l.b16 %v695
        %v792 = vunpack.c.h.b16 %v695
        %v793 = vunpack.c.l.b16 %v696
        %v794 = vunpack.c.h.b16 %v696
        %v795 = vunpack.c.l.b16 %v697
        %v796 = vunpack.c.h.b16 %v697
        %v797 = vunpack.c.l.b16 %v698
        %v798 = vunpack.c.h.b16 %v698
        %v799 = vunpack.c.l.b16 %v699
        %v800 = vunpack.c.h.b16 %v699
        %v801 = vunpack.c.l.b16 %v700
        %v802 = vunpack.c.h.b16 %v700
        %v803 = vunpack.c.l.b16 %v701
        %v804 = vunpack.c.h.b16 %v701
        %v805 = vunpack.c.l.b16 %v702
        %v806 = vunpack.c.h.b16 %v702
        %v807 = vunpack.c.l.b16 %v703
        %v808 = vunpack.c.h.b16 %v703
        %v809 = vunpack.c.l.b16 %v704
        %v810 = vunpack.c.h.b16 %v704
        %v811 = vunpack.c.l.b16 %v705
        %v812 = vunpack.c.h.b16 %v705
        %v813 = vpack.c.b16 %v753, %v749
        %v814 = vpack.c.b16 %v754, %v750
        %v815 = vpack.c.b16 %v755, %v751
        %v816 = vpack.c.b16 %v756, %v752
        %v817 = vpack.c.b16 %v761, %v757
        %v818 = vpack.c.b16 %v762, %v758
        %v819 = vpack.c.b16 %v763, %v759
        %v820 = vpack.c.b16 %v764, %v760
        %v821 = vpack.c.b16 %v769, %v765
        %v822 = vpack.c.b16 %v770, %v766
        %v823 = vpack.c.b16 %v771, %v767
        %v824 = vpack.c.b16 %v772, %v768
        %v825 = vpack.c.b16 %v777, %v773
        %v826 = vpack.c.b16 %v778, %v774
        %v827 = vpack.c.b16 %v779, %v775
        %v828 = vpack.c.b16 %v780, %v776
        %v829 = vpack.c.b16 %v785, %v781
        %v830 = vpack.c.b16 %v786, %v782
        %v831 = vpack.c.b16 %v787, %v783
        %v832 = vpack.c.b16 %v788, %v784
        %v833 = vpack.c.b16 %v793, %v789
        %v834 = vpack.c.b16 %v794, %v790
        %v835 = vpack.c.b16 %v795, %v791
        %v836 = vpack.c.b16 %v796, %v792
        %v837 = vpack.c.b16 %v801, %v797
        %v838 = vpack.c.b16 %v802, %v798
        %v839 = vpack.c.b16 %v803, %v799
        %v840 = vpack.c.b16 %v804, %v800
        %v841 = vpack.c.b16 %v809, %v805
        %v842 = vpack.c.b16 %v810, %v806
        %v843 = vpack.c.b16 %v811, %v807
        %v844 = vpack.c.b16 %v812, %v808
        %877 = vmatprep.subr.bf16.mxu0 %v814
        %878 = vmatpush1.bf16.msra.mxu0 %v813
        %879 = vmatprep.subr.bf16.mxu0 %v818
        %880 = vmatpush1.bf16.msra.mxu0 %v817
        %881 = vmatprep.subr.bf16.mxu0 %v822
        %882 = vmatpush1.bf16.msra.mxu0 %v821
        %883 = vmatprep.subr.bf16.mxu0 %v826
        %884 = vmatpush1.bf16.msra.mxu0 %v825
        %885 = vmatprep.subr.bf16.mxu0 %v830
        %886 = vmatpush1.bf16.msra.mxu0 %v829
        %887 = vmatprep.subr.bf16.mxu0 %v834
        %888 = vmatpush1.bf16.msra.mxu0 %v833
        %889 = vmatprep.subr.bf16.mxu0 %v838
        %890 = vmatpush1.bf16.msra.mxu0 %v837
        %891 = vmatprep.subr.bf16.mxu0 %v842
        %892 = vmatpush1.bf16.msra.mxu0 %v841
        %893 = vmatprep.subr.bf16.mxu0 0
        %894 = vmatpush1.bf16.msra.mxu0 0
        %895 = vmatprep.subr.bf16.mxu0 0
        %896 = vmatpush1.bf16.msra.mxu0 0
        %897 = vmatprep.subr.bf16.mxu0 0
        %898 = vmatpush1.bf16.msra.mxu0 0
        %899 = vmatprep.subr.bf16.mxu0 0
        %900 = vmatpush1.bf16.msra.mxu0 0
        %901 = vmatprep.subr.bf16.mxu0 0
        %902 = vmatpush1.bf16.msra.mxu0 0
        %903 = vmatprep.subr.bf16.mxu0 0
        %904 = vmatpush1.bf16.msra.mxu0 0
        %905 = vmatprep.subr.bf16.mxu0 0
        %906 = vmatpush1.bf16.msra.mxu0 0
        %907 = vmatprep.subr.bf16.mxu0 0
        %908 = vmatpush1.bf16.msra.mxu0 0
        %909 = vmatprep.mubr.bf16.mxu0 0
        %910 = vmatmul.mubr.bf16.gmra.mrb[0].mxu0 %v716
        %v911 = vpop.f32.mrb[0].mxu0
        %v912 = vadd.f32 0.0, %v911
        %v913 = vpop.f32.mrb[0].mxu0
        %v914 = vadd.f32 0.0, %v913
        %v915 = vpop.f32.mrb[0].mxu0
        %v916 = vpop.f32.mrb[0].mxu0
        %917 = vdwg.mxu0
        %918 = vmatprep.subr.bf16.mxu0 %v816
        %919 = vmatpush1.bf16.msra.mxu0 %v815
        %920 = vmatprep.subr.bf16.mxu0 %v820
        %921 = vmatpush1.bf16.msra.mxu0 %v819
        %922 = vmatprep.subr.bf16.mxu0 %v824
        %923 = vmatpush1.bf16.msra.mxu0 %v823
        %924 = vmatprep.subr.bf16.mxu0 %v828
        %925 = vmatpush1.bf16.msra.mxu0 %v827
        %926 = vmatprep.subr.bf16.mxu0 %v832
        %927 = vmatpush1.bf16.msra.mxu0 %v831
        %928 = vmatprep.subr.bf16.mxu0 %v836
        %929 = vmatpush1.bf16.msra.mxu0 %v835
        %930 = vmatprep.subr.bf16.mxu0 %v840
        %931 = vmatpush1.bf16.msra.mxu0 %v839
        %932 = vmatprep.subr.bf16.mxu0 %v844
        %933 = vmatpush1.bf16.msra.mxu0 %v843
        %934 = vmatprep.subr.bf16.mxu0 0
        %935 = vmatpush1.bf16.msra.mxu0 0
        %936 = vmatprep.subr.bf16.mxu0 0
        %937 = vmatpush1.bf16.msra.mxu0 0
        %938 = vmatprep.subr.bf16.mxu0 0
        %939 = vmatpush1.bf16.msra.mxu0 0
        %940 = vmatprep.subr.bf16.mxu0 0
        %941 = vmatpush1.bf16.msra.mxu0 0
        %942 = vmatprep.subr.bf16.mxu0 0
        %943 = vmatpush1.bf16.msra.mxu0 0
        %944 = vmatprep.subr.bf16.mxu0 0
        %945 = vmatpush1.bf16.msra.mxu0 0
        %946 = vmatprep.subr.bf16.mxu0 0
        %947 = vmatpush1.bf16.msra.mxu0 0
        %948 = vmatprep.subr.bf16.mxu0 0
        %949 = vmatpush1.bf16.msra.mxu0 0
        %950 = vmatprep.mubr.bf16.mxu0 0
        %951 = vmatmul.mubr.bf16.gmra.mrb[0].mxu0 %v716
        %v952 = vpop.f32.mrb[0].mxu0
        %v953 = vadd.f32 0.0, %v952
        %v954 = vpop.f32.mrb[0].mxu0
        %v955 = vadd.f32 0.0, %v954
        %v956 = vpop.f32.mrb[0].mxu0
        %v957 = vpop.f32.mrb[0].mxu0
        %958 = vdwg.mxu0
        %v959 = vadd.f32 %v712, %v912
        %v960 = vadd.f32 %v713, %v914
        %v961 = vadd.f32 %v714, %v953
        %v962 = vadd.f32 %v715, %v955
        %v963 = vxor.u32 %v959, 2147483648
        %v964 = vxor.u32 %v960, 2147483648
        %v965 = vxor.u32 %v961, 2147483648
        %v966 = vmul.f32 %v963, 1.442695
        %v967 = vpow.pop %v966
        %v968 = vmul.f32 %v964, 1.442695
        %v969 = vpow.pop %v968
        %v970 = vmul.f32 %v965, 1.442695
        %v971 = vpow.pop %v970
        %v972 = vadd.f32 %v967, 1.0
        %v973 = vadd.f32 %v969, 1.0
        %v974 = vadd.f32 %v971, 1.0
        %v975 = vrcp.pop %v972
        %v976 = vmul.f32 1.0, %v975
        %v977 = vrcp.pop %v973
        %v978 = vmul.f32 1.0, %v977
        %v979 = vrcp.pop %v974
        %v980 = vmul.f32 1.0, %v979
        %v981 = vtanh.pop %v962
        %v982 = vmul.f32 %v978, %v707
        %v983 = vmul.f32 %v976, %v981
        %v984 = vadd.f32 %v982, %v983
        %v985 = vtanh.pop %v984
        %v986 = vmul.f32 %v980, %v985
        %v987 = vpack.c.bf16 %v986, %v986
        %s988 = smul.addr %s708, 4
        %s989 = scalar_lea.vmem %s295, %s988 [#allocation10]
        %990 = vst [vmem:[%s989] sm:$0xf] %v987
        %s991 = sadd.s32 %s21, 1
        %s992 = smul.u32 %s991, 4
        %s993 = smul.addr %s992, 8
        %s994 = scalar_lea.vmem [#allocation2], %s993
        %v995 = vld [vmem:[%s994] sm:$0xff]
        %v996 = vld [vmem:[%s994 + $0x8] sm:$0xff]
        %v997 = vld [vmem:[%s994 + $0x10] sm:$0xff]
        %v998 = vld [vmem:[%s994 + $0x18] sm:$0xff]
        %999 = vmatprep.subr.bf16.mxu0 %v814
        %1000 = vmatpush1.bf16.msra.mxu0 %v813
        %1001 = vmatprep.subr.bf16.mxu0 %v818
        %1002 = vmatpush1.bf16.msra.mxu0 %v817
        %1003 = vmatprep.subr.bf16.mxu0 %v822
        %1004 = vmatpush1.bf16.msra.mxu0 %v821
        %1005 = vmatprep.subr.bf16.mxu0 %v826
        %1006 = vmatpush1.bf16.msra.mxu0 %v825
        %1007 = vmatprep.subr.bf16.mxu0 %v830
        %1008 = vmatpush1.bf16.msra.mxu0 %v829
        %1009 = vmatprep.subr.bf16.mxu0 %v834
        %1010 = vmatpush1.bf16.msra.mxu0 %v833
        %1011 = vmatprep.subr.bf16.mxu0 %v838
        %1012 = vmatpush1.bf16.msra.mxu0 %v837
        %1013 = vmatprep.subr.bf16.mxu0 %v842
        %1014 = vmatpush1.bf16.msra.mxu0 %v841
        %1015 = vmatprep.subr.bf16.mxu0 0
        %1016 = vmatpush1.bf16.msra.mxu0 0
        %1017 = vmatprep.subr.bf16.mxu0 0
        %1018 = vmatpush1.bf16.msra.mxu0 0
        %1019 = vmatprep.subr.bf16.mxu0 0
        %1020 = vmatpush1.bf16.msra.mxu0 0
        %1021 = vmatprep.subr.bf16.mxu0 0
        %1022 = vmatpush1.bf16.msra.mxu0 0
        %1023 = vmatprep.subr.bf16.mxu0 0
        %1024 = vmatpush1.bf16.msra.mxu0 0
        %1025 = vmatprep.subr.bf16.mxu0 0
        %1026 = vmatpush1.bf16.msra.mxu0 0
        %1027 = vmatprep.subr.bf16.mxu0 0
        %1028 = vmatpush1.bf16.msra.mxu0 0
        %1029 = vmatprep.subr.bf16.mxu0 0
        %1030 = vmatpush1.bf16.msra.mxu0 0
        %1031 = vmatprep.mubr.bf16.mxu0 0
        %1032 = vmatmul.mubr.bf16.gmra.mrb[0].mxu0 %v987
        %v1033 = vpop.f32.mrb[0].mxu0
        %v1034 = vadd.f32 0.0, %v1033
        %v1035 = vpop.f32.mrb[0].mxu0
        %v1036 = vadd.f32 0.0, %v1035
        %v1037 = vpop.f32.mrb[0].mxu0
        %v1038 = vpop.f32.mrb[0].mxu0
        %1039 = vdwg.mxu0
        %1040 = vmatprep.subr.bf16.mxu0 %v816
        %1041 = vmatpush1.bf16.msra.mxu0 %v815
        %1042 = vmatprep.subr.bf16.mxu0 %v820
        %1043 = vmatpush1.bf16.msra.mxu0 %v819
        %1044 = vmatprep.subr.bf16.mxu0 %v824
        %1045 = vmatpush1.bf16.msra.mxu0 %v823
        %1046 = vmatprep.subr.bf16.mxu0 %v828
        %1047 = vmatpush1.bf16.msra.mxu0 %v827
        %1048 = vmatprep.subr.bf16.mxu0 %v832
        %1049 = vmatpush1.bf16.msra.mxu0 %v831
        %1050 = vmatprep.subr.bf16.mxu0 %v836
        %1051 = vmatpush1.bf16.msra.mxu0 %v835
        %1052 = vmatprep.subr.bf16.mxu0 %v840
        %1053 = vmatpush1.bf16.msra.mxu0 %v839
        %1054 = vmatprep.subr.bf16.mxu0 %v844
        %1055 = vmatpush1.bf16.msra.mxu0 %v843
        %1056 = vmatprep.subr.bf16.mxu0 0
        %1057 = vmatpush1.bf16.msra.mxu0 0
        %1058 = vmatprep.subr.bf16.mxu0 0
        %1059 = vmatpush1.bf16.msra.mxu0 0
        %1060 = vmatprep.subr.bf16.mxu0 0
        %1061 = vmatpush1.bf16.msra.mxu0 0
        %1062 = vmatprep.subr.bf16.mxu0 0
        %1063 = vmatpush1.bf16.msra.mxu0 0
        %1064 = vmatprep.subr.bf16.mxu0 0
        %1065 = vmatpush1.bf16.msra.mxu0 0
        %1066 = vmatprep.subr.bf16.mxu0 0
        %1067 = vmatpush1.bf16.msra.mxu0 0
        %1068 = vmatprep.subr.bf16.mxu0 0
        %1069 = vmatpush1.bf16.msra.mxu0 0
        %1070 = vmatprep.subr.bf16.mxu0 0
        %1071 = vmatpush1.bf16.msra.mxu0 0
        %1072 = vmatprep.mubr.bf16.mxu0 0
        %1073 = vmatmul.mubr.bf16.gmra.mrb[0].mxu0 %v987
        %v1074 = vpop.f32.mrb[0].mxu0
        %v1075 = vadd.f32 0.0, %v1074
        %v1076 = vpop.f32.mrb[0].mxu0
        %v1077 = vadd.f32 0.0, %v1076
        %v1078 = vpop.f32.mrb[0].mxu0
        %v1079 = vpop.f32.mrb[0].mxu0
        %1080 = vdwg.mxu0
        %v1081 = vadd.f32 %v995, %v1034
        %v1082 = vadd.f32 %v996, %v1036
        %v1083 = vadd.f32 %v997, %v1075
        %v1084 = vadd.f32 %v998, %v1077
        %v1085 = vxor.u32 %v1081, 2147483648
        %v1086 = vxor.u32 %v1082, 2147483648
        %v1087 = vxor.u32 %v1083, 2147483648
        %v1088 = vmul.f32 %v1085, 1.442695
        %v1089 = vpow.pop %v1088
        %v1090 = vmul.f32 %v1086, 1.442695
        %v1091 = vpow.pop %v1090
        %v1092 = vmul.f32 %v1087, 1.442695
        %v1093 = vpow.pop %v1092
        %v1094 = vadd.f32 %v1089, 1.0
        %v1095 = vadd.f32 %v1091, 1.0
        %v1096 = vadd.f32 %v1093, 1.0
        %v1097 = vrcp.pop %v1094
        %v1098 = vmul.f32 1.0, %v1097
        %v1099 = vrcp.pop %v1095
        %v1100 = vmul.f32 1.0, %v1099
        %v1101 = vrcp.pop %v1096
        %v1102 = vmul.f32 1.0, %v1101
        %v1103 = vtanh.pop %v1084
        %v1104 = vmul.f32 %v1100, %v984
        %v1105 = vmul.f32 %v1098, %v1103
        %v1106 = vadd.f32 %v1104, %v1105
        %v1107 = vtanh.pop %v1106
        %v1108 = vmul.f32 %v1102, %v1107
        %v1109 = vpack.c.bf16 %v1108, %v1108
        %s1110 = smul.addr %s991, 4
        %s1111 = scalar_lea.vmem %s295, %s1110 [#allocation10]
        %1112 = vst [vmem:[%s1111] sm:$0xf] %v1109
        %s1113 = ssub.s32 2, %s21
        %s1114 = smul.u32 %s1113, 4
        %s1115 = smul.addr %s1114, 8
        %s1116 = scalar_lea.vmem [#allocation2], %s1115
        %v1117 = vld [vmem:[%s1116] sm:$0xff]
        %v1118 = vld [vmem:[%s1116 + $0x8] sm:$0xff]
        %v1119 = vld [vmem:[%s1116 + $0x10] sm:$0xff]
        %v1120 = vld [vmem:[%s1116 + $0x18] sm:$0xff]
        %1121 = vmatprep.subr.bf16.mxu0 %v814
        %1122 = vmatpush1.bf16.msra.mxu0 %v813
        %1123 = vmatprep.subr.bf16.mxu0 %v818
        %1124 = vmatpush1.bf16.msra.mxu0 %v817
        %1125 = vmatprep.subr.bf16.mxu0 %v822
        %1126 = vmatpush1.bf16.msra.mxu0 %v821
        %1127 = vmatprep.subr.bf16.mxu0 %v826
        %1128 = vmatpush1.bf16.msra.mxu0 %v825
        %1129 = vmatprep.subr.bf16.mxu0 %v830
        %1130 = vmatpush1.bf16.msra.mxu0 %v829
        %1131 = vmatprep.subr.bf16.mxu0 %v834
        %1132 = vmatpush1.bf16.msra.mxu0 %v833
        %1133 = vmatprep.subr.bf16.mxu0 %v838
        %1134 = vmatpush1.bf16.msra.mxu0 %v837
        %1135 = vmatprep.subr.bf16.mxu0 %v842
        %1136 = vmatpush1.bf16.msra.mxu0 %v841
        %1137 = vmatprep.subr.bf16.mxu0 0
        %1138 = vmatpush1.bf16.msra.mxu0 0
        %1139 = vmatprep.subr.bf16.mxu0 0
        %1140 = vmatpush1.bf16.msra.mxu0 0
        %1141 = vmatprep.subr.bf16.mxu0 0
        %1142 = vmatpush1.bf16.msra.mxu0 0
        %1143 = vmatprep.subr.bf16.mxu0 0
        %1144 = vmatpush1.bf16.msra.mxu0 0
        %1145 = vmatprep.subr.bf16.mxu0 0
        %1146 = vmatpush1.bf16.msra.mxu0 0
        %1147 = vmatprep.subr.bf16.mxu0 0
        %1148 = vmatpush1.bf16.msra.mxu0 0
        %1149 = vmatprep.subr.bf16.mxu0 0
        %1150 = vmatpush1.bf16.msra.mxu0 0
        %1151 = vmatprep.subr.bf16.mxu0 0
        %1152 = vmatpush1.bf16.msra.mxu0 0
        %1153 = vmatprep.mubr.bf16.mxu0 0
        %1154 = vmatmul.mubr.bf16.gmra.mrb[0].mxu0 %v1109
        %v1155 = vpop.f32.mrb[0].mxu0
        %v1156 = vadd.f32 0.0, %v1155
        %v1157 = vpop.f32.mrb[0].mxu0
        %v1158 = vadd.f32 0.0, %v1157
        %v1159 = vpop.f32.mrb[0].mxu0
        %v1160 = vpop.f32.mrb[0].mxu0
        %1161 = vdwg.mxu0
        %1162 = vmatprep.subr.bf16.mxu0 %v816
        %1163 = vmatpush1.bf16.msra.mxu0 %v815
        %1164 = vmatprep.subr.bf16.mxu0 %v820
        %1165 = vmatpush1.bf16.msra.mxu0 %v819
        %1166 = vmatprep.subr.bf16.mxu0 %v824
        %1167 = vmatpush1.bf16.msra.mxu0 %v823
        %1168 = vmatprep.subr.bf16.mxu0 %v828
        %1169 = vmatpush1.bf16.msra.mxu0 %v827
        %1170 = vmatprep.subr.bf16.mxu0 %v832
        %1171 = vmatpush1.bf16.msra.mxu0 %v831
        %1172 = vmatprep.subr.bf16.mxu0 %v836
        %1173 = vmatpush1.bf16.msra.mxu0 %v835
        %1174 = vmatprep.subr.bf16.mxu0 %v840
        %1175 = vmatpush1.bf16.msra.mxu0 %v839
        %1176 = vmatprep.subr.bf16.mxu0 %v844
        %1177 = vmatpush1.bf16.msra.mxu0 %v843
        %1178 = vmatprep.subr.bf16.mxu0 0
        %1179 = vmatpush1.bf16.msra.mxu0 0
        %1180 = vmatprep.subr.bf16.mxu0 0
        %1181 = vmatpush1.bf16.msra.mxu0 0
        %1182 = vmatprep.subr.bf16.mxu0 0
        %1183 = vmatpush1.bf16.msra.mxu0 0
        %1184 = vmatprep.subr.bf16.mxu0 0
        %1185 = vmatpush1.bf16.msra.mxu0 0
        %1186 = vmatprep.subr.bf16.mxu0 0
        %1187 = vmatpush1.bf16.msra.mxu0 0
        %1188 = vmatprep.subr.bf16.mxu0 0
        %1189 = vmatpush1.bf16.msra.mxu0 0
        %1190 = vmatprep.subr.bf16.mxu0 0
        %1191 = vmatpush1.bf16.msra.mxu0 0
        %1192 = vmatprep.subr.bf16.mxu0 0
        %1193 = vmatpush1.bf16.msra.mxu0 0
        %1194 = vmatprep.mubr.bf16.mxu0 0
        %1195 = vmatmul.mubr.bf16.gmra.mrb[0].mxu0 %v1109
        %v1196 = vpop.f32.mrb[0].mxu0
        %v1197 = vadd.f32 0.0, %v1196
        %v1198 = vpop.f32.mrb[0].mxu0
        %v1199 = vadd.f32 0.0, %v1198
        %v1200 = vpop.f32.mrb[0].mxu0
        %v1201 = vpop.f32.mrb[0].mxu0
        %1202 = vdwg.mxu0
        %v1203 = vadd.f32 %v1117, %v1156
        %v1204 = vadd.f32 %v1118, %v1158
        %v1205 = vadd.f32 %v1119, %v1197
        %v1206 = vadd.f32 %v1120, %v1199
        %v1207 = vxor.u32 %v1203, 2147483648
        %v1208 = vxor.u32 %v1204, 2147483648
        %v1209 = vxor.u32 %v1205, 2147483648
        %v1210 = vmul.f32 %v1207, 1.442695
        %v1211 = vpow.pop %v1210
        %v1212 = vmul.f32 %v1208, 1.442695
        %v1213 = vpow.pop %v1212
        %v1214 = vmul.f32 %v1209, 1.442695
        %v1215 = vpow.pop %v1214
        %v1216 = vadd.f32 %v1211, 1.0
        %v1217 = vadd.f32 %v1213, 1.0
        %v1218 = vadd.f32 %v1215, 1.0
        %v1219 = vrcp.pop %v1216
        %v1220 = vmul.f32 1.0, %v1219
        %v1221 = vrcp.pop %v1217
        %v1222 = vmul.f32 1.0, %v1221
        %v1223 = vrcp.pop %v1218
        %v1224 = vmul.f32 1.0, %v1223
        %v1225 = vtanh.pop %v1206
        %v1226 = vmul.f32 %v1222, %v1106
        %v1227 = vmul.f32 %v1220, %v1225
        %v1228 = vadd.f32 %v1226, %v1227
        %v1229 = vtanh.pop %v1228
        %v1230 = vmul.f32 %v1224, %v1229
        %v1231 = vpack.c.bf16 %v1230, %v1230
        %s1232 = smul.addr %s1113, 4
        %s1233 = scalar_lea.vmem %s295, %s1232 [#allocation10]
        %1234 = vst [vmem:[%s1233] sm:$0xf] %v1231
        %s1235 = smul.u32 %s21, 4294967293
        %s1236 = sadd.s32 %s1235, 3
        %s1237 = smul.u32 %s1236, 4
        %s1238 = smul.addr %s1237, 8
        %s1239 = scalar_lea.vmem [#allocation2], %s1238
        %v1240 = vld [vmem:[%s1239] sm:$0xff]
        %v1241 = vld [vmem:[%s1239 + $0x8] sm:$0xff]
        %v1242 = vld [vmem:[%s1239 + $0x10] sm:$0xff]
        %v1243 = vld [vmem:[%s1239 + $0x18] sm:$0xff]
        %1244 = vmatprep.subr.bf16.mxu0 %v814
        %1245 = vmatpush1.bf16.msra.mxu0 %v813
        %1246 = vmatprep.subr.bf16.mxu0 %v818
        %1247 = vmatpush1.bf16.msra.mxu0 %v817
        %1248 = vmatprep.subr.bf16.mxu0 %v822
        %1249 = vmatpush1.bf16.msra.mxu0 %v821
        %1250 = vmatprep.subr.bf16.mxu0 %v826
        %1251 = vmatpush1.bf16.msra.mxu0 %v825
        %1252 = vmatprep.subr.bf16.mxu0 %v830
        %1253 = vmatpush1.bf16.msra.mxu0 %v829
        %1254 = vmatprep.subr.bf16.mxu0 %v834
        %1255 = vmatpush1.bf16.msra.mxu0 %v833
        %1256 = vmatprep.subr.bf16.mxu0 %v838
        %1257 = vmatpush1.bf16.msra.mxu0 %v837
        %1258 = vmatprep.subr.bf16.mxu0 %v842
        %1259 = vmatpush1.bf16.msra.mxu0 %v841
        %1260 = vmatprep.subr.bf16.mxu0 0
        %1261 = vmatpush1.bf16.msra.mxu0 0
        %1262 = vmatprep.subr.bf16.mxu0 0
        %1263 = vmatpush1.bf16.msra.mxu0 0
        %1264 = vmatprep.subr.bf16.mxu0 0
        %1265 = vmatpush1.bf16.msra.mxu0 0
        %1266 = vmatprep.subr.bf16.mxu0 0
        %1267 = vmatpush1.bf16.msra.mxu0 0
        %1268 = vmatprep.subr.bf16.mxu0 0
        %1269 = vmatpush1.bf16.msra.mxu0 0
        %1270 = vmatprep.subr.bf16.mxu0 0
        %1271 = vmatpush1.bf16.msra.mxu0 0
        %1272 = vmatprep.subr.bf16.mxu0 0
        %1273 = vmatpush1.bf16.msra.mxu0 0
        %1274 = vmatprep.subr.bf16.mxu0 0
        %1275 = vmatpush1.bf16.msra.mxu0 0
        %1276 = vmatprep.mubr.bf16.mxu0 0
        %1277 = vmatmul.mubr.bf16.gmra.mrb[0].mxu0 %v1231
        %v1278 = vpop.f32.mrb[0].mxu0
        %v1279 = vadd.f32 0.0, %v1278
        %v1280 = vpop.f32.mrb[0].mxu0
        %v1281 = vadd.f32 0.0, %v1280
        %v1282 = vpop.f32.mrb[0].mxu0
        %v1283 = vpop.f32.mrb[0].mxu0
        %1284 = vdwg.mxu0
        %1285 = vmatprep.subr.bf16.mxu0 %v816
        %1286 = vmatpush1.bf16.msra.mxu0 %v815
        %1287 = vmatprep.subr.bf16.mxu0 %v820
        %1288 = vmatpush1.bf16.msra.mxu0 %v819
        %1289 = vmatprep.subr.bf16.mxu0 %v824
        %1290 = vmatpush1.bf16.msra.mxu0 %v823
        %1291 = vmatprep.subr.bf16.mxu0 %v828
        %1292 = vmatpush1.bf16.msra.mxu0 %v827
        %1293 = vmatprep.subr.bf16.mxu0 %v832
        %1294 = vmatpush1.bf16.msra.mxu0 %v831
        %1295 = vmatprep.subr.bf16.mxu0 %v836
        %1296 = vmatpush1.bf16.msra.mxu0 %v835
        %1297 = vmatprep.subr.bf16.mxu0 %v840
        %1298 = vmatpush1.bf16.msra.mxu0 %v839
        %1299 = vmatprep.subr.bf16.mxu0 %v844
        %1300 = vmatpush1.bf16.msra.mxu0 %v843
        %1301 = vmatprep.subr.bf16.mxu0 0
        %1302 = vmatpush1.bf16.msra.mxu0 0
        %1303 = vmatprep.subr.bf16.mxu0 0
        %1304 = vmatpush1.bf16.msra.mxu0 0
        %1305 = vmatprep.subr.bf16.mxu0 0
        %1306 = vmatpush1.bf16.msra.mxu0 0
        %1307 = vmatprep.subr.bf16.mxu0 0
        %1308 = vmatpush1.bf16.msra.mxu0 0
        %1309 = vmatprep.subr.bf16.mxu0 0
        %1310 = vmatpush1.bf16.msra.mxu0 0
        %1311 = vmatprep.subr.bf16.mxu0 0
        %1312 = vmatpush1.bf16.msra.mxu0 0
        %1313 = vmatprep.subr.bf16.mxu0 0
        %1314 = vmatpush1.bf16.msra.mxu0 0
        %1315 = vmatprep.subr.bf16.mxu0 0
        %1316 = vmatpush1.bf16.msra.mxu0 0
        %1317 = vmatprep.mubr.bf16.mxu0 0
        %1318 = vmatmul.mubr.bf16.gmra.mrb[0].mxu0 %v1231
        %v1319 = vpop.f32.mrb[0].mxu0
        %v1320 = vadd.f32 0.0, %v1319
        %v1321 = vpop.f32.mrb[0].mxu0
        %v1322 = vadd.f32 0.0, %v1321
        %v1323 = vpop.f32.mrb[0].mxu0
        %v1324 = vpop.f32.mrb[0].mxu0
        %1325 = vdwg.mxu0
        %v1326 = vadd.f32 %v1240, %v1279
        %v1327 = vadd.f32 %v1241, %v1281
        %v1328 = vadd.f32 %v1242, %v1320
        %v1329 = vadd.f32 %v1243, %v1322
        %v1330 = vxor.u32 %v1326, 2147483648
        %v1331 = vxor.u32 %v1327, 2147483648
        %v1332 = vxor.u32 %v1328, 2147483648
        %v1333 = vmul.f32 %v1330, 1.442695
        %v1334 = vpow.pop %v1333
        %v1335 = vmul.f32 %v1331, 1.442695
        %v1336 = vpow.pop %v1335
        %v1337 = vmul.f32 %v1332, 1.442695
        %v1338 = vpow.pop %v1337
        %v1339 = vadd.f32 %v1334, 1.0
        %v1340 = vadd.f32 %v1336, 1.0
        %v1341 = vadd.f32 %v1338, 1.0
        %v1342 = vrcp.pop %v1339
        %v1343 = vmul.f32 1.0, %v1342
        %v1344 = vrcp.pop %v1340
        %v1345 = vmul.f32 1.0, %v1344
        %v1346 = vrcp.pop %v1341
        %v1347 = vmul.f32 1.0, %v1346
        %v1348 = vtanh.pop %v1329
        %v1349 = vmul.f32 %v1345, %v1228
        %v1350 = vmul.f32 %v1343, %v1348
        %v1351 = vadd.f32 %v1349, %v1350
        %v1352 = vtanh.pop %v1351
        %v1353 = vmul.f32 %v1347, %v1352
        %v1354 = vpack.c.bf16 %v1353, %v1353
        %s1355 = smul.addr %s1236, 4
        %s1356 = scalar_lea.vmem %s295, %s1355 [#allocation10]
        %1357 = vst [vmem:[%s1356] sm:$0xf] %v1354
        %1358 = vst [vmem:[#allocation3] sm:$0xff] %v1353
        %1359 = vst [vmem:[#allocation4] sm:$0xff] %v1351
        %s1360 = sand.u32 %s159, 1
        %s1361 = sand.u32 %s159, 1
        %s1362 = smul.addr %s1361, 16
        %s1363 = scalar_lea.vmem [#allocation10], %s1362
        // Predicated region
        $region53: #{lstm_classifier_forward.2} parent=35 // pred_check
          %p1364 = pneg %p169
        $region54: #{lstm_classifier_forward.2} parent=35 // pred_check_branch
          %1366 = sbr.rel (%p1364) target = $region56
        $region55: #{lstm_classifier_forward.2} parent=35 // pred_region
          %s1367 = smul.u32 %s22, 2
          %s1368 = ssub.s32 1, %s1367
          %s1369 = smul.u32 %s21, %s1368
          %s1370 = sadd.s32 %s22, %s1369
          %s1371 = smul.u32 4, %s1370
          %s1372 = smul.addr %s1371, 2
          %s1373 = sadd.s32 %s21, %s1372
          %s1374 = smul.addr %s1373, 4
          %s1375 = scalar_lea.vmem %s4, %s1374
          // Predicated region
          $region57: #{lstm_classifier_forward.2} parent=55 // pred_check
            _
          $region58: #{lstm_classifier_forward.2} parent=55 // pred_check_branch
            %1377 = sbr.rel (0) target = $region60
          $region59: #{lstm_classifier_forward.2} parent=55 // pred_region
            // Predicated region
            $region61: #{lstm_classifier_forward.2} parent=59 // pred_check
              _
            $region62: #{lstm_classifier_forward.2} parent=59 // pred_check_branch
              %1379 = sbr.rel target = $region64
            $region63: #{lstm_classifier_forward.2} parent=59 // pred_region
              // Predicated region
              $region76: #{lstm_classifier_forward.2} parent=63 // pred_check
                _
              $region77: #{lstm_classifier_forward.2} parent=63 // pred_check_branch
                %1400 = sbr.rel (0) target = $region79
              $region78: #{lstm_classifier_forward.2} parent=63 // pred_region
                loop: start=0, step=1, limit=1
                $region80: #{lstm_classifier_forward.2} parent=78 // loop_pre_header
                  _
                $region81: #{lstm_classifier_forward.2} parent=78 // loop_header
                  %s1402 = sphi 0, %s1406
                  %p1403 = scmp.ge.s32.totalorder %s1402, 1
                  %s1407 = sphi %s1363, %s1363
                  %s1408 = sphi %s1375, %s1375
                $region82: #{lstm_classifier_forward.2} parent=78 // loop_header_branch
                  %1405 = sbr.rel (%p1403) target = $region86
                $region83: #{lstm_classifier_forward.2} parent=78 // loop_body
                  _
                $region84: #{lstm_classifier_forward.2} parent=78 // loop_footer
                  %s1406 = sadd.s32 1, %s1402
                $region85: #{lstm_classifier_forward.2} parent=78 // loop_footer_branch
                  %1401 = sbr.rel target = $region81
                $region86: #{lstm_classifier_forward.2} parent=78 // loop_exit
                  _
                loop: start=0, step=1, limit=1
                $region87: #{lstm_classifier_forward.2} parent=78 // loop_pre_header
                  _
                $region88: #{lstm_classifier_forward.2} parent=78 // loop_header
                  %s1411 = sphi 0, %s1415
                  %p1412 = scmp.ge.s32.totalorder %s1411, 1
                  %s1416 = sphi %s1363, %s1363
                  %s1417 = sphi %s1375, %s1375
                $region89: #{lstm_classifier_forward.2} parent=78 // loop_header_branch
                  %1414 = sbr.rel (%p1412) target = $region93
                $region90: #{lstm_classifier_forward.2} parent=78 // loop_body
                  %v1418 = vld [vmem:[%s1416] sm:$0xf]
                  %1419 = vst [vmem:[%s1417] sm:$0xf] %v1418
                  %v1420 = vld [vmem:[%s1416 + $0x4] sm:$0xf]
                  %1421 = vst [vmem:[%s1417 + $0x8] sm:$0xf] %v1420
                  %v1422 = vld [vmem:[%s1416 + $0x8] sm:$0xf]
                  %1423 = vst [vmem:[%s1417 + $0x10] sm:$0xf] %v1422
                  %v1424 = vld [vmem:[%s1416 + $0xc] sm:$0xf]
                  %1425 = vst [vmem:[%s1417 + $0x18] sm:$0xf] %v1424
                $region91: #{lstm_classifier_forward.2} parent=78 // loop_footer
                  %s1415 = sadd.s32 1, %s1411
                $region92: #{lstm_classifier_forward.2} parent=78 // loop_footer_branch
                  %1410 = sbr.rel target = $region88
                $region93: #{lstm_classifier_forward.2} parent=78 // loop_exit
                  _
              $region79: #{lstm_classifier_forward.2} parent=63 // pred_fallthru
                _
            $region64: #{lstm_classifier_forward.2} parent=59 // pred_fallthru
              _
            // Predicated region
            $region65: #{lstm_classifier_forward.2} parent=59 // pred_check
              _
            $region66: #{lstm_classifier_forward.2} parent=59 // pred_check_branch
              %1381 = sbr.rel (0) target = $region68
            $region67: #{lstm_classifier_forward.2} parent=59 // pred_region
              loop: start=0, step=1, limit=1
              $region69: #{lstm_classifier_forward.2} parent=67 // loop_pre_header
                _
              $region70: #{lstm_classifier_forward.2} parent=67 // loop_header
                %s1384 = sphi 0, %s1388
                %p1385 = scmp.ge.s32.totalorder %s1384, 1
                %s1389 = sphi %s1363, %s1363
                %s1390 = sphi %s1375, %s1375
              $region71: #{lstm_classifier_forward.2} parent=67 // loop_header_branch
                %1387 = sbr.rel (%p1385) target = $region75
              $region72: #{lstm_classifier_forward.2} parent=67 // loop_body
                %v1391 = vld [vmem:[%s1389] sm:$0xf]
                %1392 = vst [vmem:[%s1390] sm:$0xf] %v1391
                %v1393 = vld [vmem:[%s1389 + $0x4] sm:$0xf]
                %1394 = vst [vmem:[%s1390 + $0x8] sm:$0xf] %v1393
                %v1395 = vld [vmem:[%s1389 + $0x8] sm:$0xf]
                %1396 = vst [vmem:[%s1390 + $0x10] sm:$0xf] %v1395
                %v1397 = vld [vmem:[%s1389 + $0xc] sm:$0xf]
                %1398 = vst [vmem:[%s1390 + $0x18] sm:$0xf] %v1397
              $region73: #{lstm_classifier_forward.2} parent=67 // loop_footer
                %s1388 = sadd.s32 1, %s1384
              $region74: #{lstm_classifier_forward.2} parent=67 // loop_footer_branch
                %1383 = sbr.rel target = $region70
              $region75: #{lstm_classifier_forward.2} parent=67 // loop_exit
                _
            $region68: #{lstm_classifier_forward.2} parent=59 // pred_fallthru
              _
          $region60: #{lstm_classifier_forward.2} parent=55 // pred_fallthru
            _
          %1426 = vnop
        $region56: #{lstm_classifier_forward.2} parent=35 // pred_fallthru
          _
      $region36: #{lstm_classifier_forward.2} parent=5 // pred_fallthru
        _
      %p1427 = scmp.le.s32.totalorder 2, %s12
      // Predicated region
      $region94: #{lstm_classifier_forward.2} parent=5 // pred_check
        %p1428 = pneg %p1427
      $region95: #{lstm_classifier_forward.2} parent=5 // pred_check_branch
        %1430 = sbr.rel (%p1428) target = $region97
      $region96: #{lstm_classifier_forward.2} parent=5 // pred_region
        %s1431 = ssub.s32 %s12, 2
        // Predicated region
        $region98: #{lstm_classifier_forward.2} parent=96 // pred_check
          %p1432 = pneg %p175
        $region99: #{lstm_classifier_forward.2} parent=96 // pred_check_branch
          %1434 = sbr.rel (%p1432) target = $region101
        $region100: #{lstm_classifier_forward.2} parent=96 // pred_region
          %s1435 = sand.u32 %s160, 1
          %s1436 = sand.u32 %s160, 1
          %s1437 = smul.addr %s1436, 16
          %s1438 = scalar_lea.vmem [#allocation10], %s1437
        $region101: #{lstm_classifier_forward.2} parent=96 // pred_fallthru
          _
      $region97: #{lstm_classifier_forward.2} parent=5 // pred_fallthru
        _
    $region6: #{lstm_classifier_forward.2} parent=1 // loop_footer
      %s16 = sadd.s32 1, %s12
    $region7: #{lstm_classifier_forward.2} parent=1 // loop_footer_branch
      %11 = sbr.rel target = $region3
    $region8: #{lstm_classifier_forward.2} parent=1 // loop_exit
      _
    %1439 = vsyncpa [#allocation6], 1
    %s1440 = scalar_lea.sflag [#allocation6], 1
    %1441 = vsyncpa %s1440, 1
    %1442 = vsyncpa [#allocation8], 1

// kernel: lstm_classifier_forward.3
$region0: #{lstm_classifier_forward.3}
  #allocation0 [shape = 'u32[]', space=smem, size = 0x4, offset = 0x4, fixed_abs, tag = 'smem constant byte address 0x4 - core index']
  #allocation1 [shape = 'u32[144,128]{1,0:T(1,128)}', space=vmem, size = 0x12000, scoped, tag = 'internal scratch']
  #allocation2 [shape = 'f32[4,8,512]{2,1,0:T(8,128)}', space=vmem, size = 0x10000, scoped, tag = 'scratch operand']
  #allocation3 [shape = 'f32[8,128]{1,0:T(8,128)}', space=vmem, size = 0x1000, scoped, tag = 'scratch operand']
  #allocation4 [shape = 'f32[8,128]{1,0:T(8,128)}', space=vmem, size = 0x1000, scoped, tag = 'scratch operand']
  %s0 = inlined_call_operand.vmem [shape: bf16[8,8,256], index: 0, kind: input, shape index: {}]
  %s1 = inlined_call_operand.vmem [shape: bf16[2,256,512], index: 1, kind: input, shape index: {}]
  %s2 = inlined_call_operand.vmem [shape: bf16[2,128,512], index: 2, kind: input, shape index: {}]
  %s3 = inlined_call_operand.vmem [shape: f32[2,1,512], index: 3, kind: input, shape index: {}]
  %s4 = inlined_call_operand.vmem [shape: f32[8,256], index: 4, kind: output, shape index: {}]
  %s5 = sld [smem:[#allocation0]]
  $region57: #{lstm_classifier_forward.3} parent=0
    _
  %s7 = ssub.s32 1, %s5
  %s8 = scalar_select 0, %s7, %s5
  loop: start=0, step=1, limit=6
  $region2: #{lstm_classifier_forward.3} parent=0 // loop_pre_header
    _
  $region3: #{lstm_classifier_forward.3} parent=0 // loop_header
    %s10 = sphi 0, %s14
    %p11 = scmp.ge.s32.totalorder %s10, 6
    %s17 = sphi 0, %s29
    %s18 = sphi 0, %s25
    %s19 = sphi 0, %s17
    %s20 = sphi 0, %s18
    %s21 = sphi 0, %s19
    %s22 = sphi 0, %s20
    %s40 = sphi 0, %s42
    %s43 = sphi 0, %s40
    %s44 = sphi 0, %s43
    %s60 = sphi 0, %s44
    %s66 = sphi 0, %s68
    %s69 = sphi 0, %s66
    %s70 = sphi 0, %s69
    %s86 = sphi 0, %s70
    %s92 = sphi 0, %s94
    %s95 = sphi 0, %s92
    %s96 = sphi 0, %s95
    %s112 = sphi 0, %s96
    %s118 = sphi 0, %s120
    %s121 = sphi 0, %s118
    %s122 = sphi 0, %s121
    %s138 = sphi 0, %s122
    %s144 = sphi 0, %s146
    %s147 = sphi 0, %s144
    %s148 = sphi 0, %s147
    %s164 = sphi 0, %s148
  $region4: #{lstm_classifier_forward.3} parent=0 // loop_header_branch
    %13 = sbr.rel (%p11) target = $region8
  $region5: #{lstm_classifier_forward.3} parent=0 // loop_body
    %s15 = ssub.s32 %s10, 1
    %s16 = ssub.s32 %s10, 2
    %s23 = sadd.s32 1, %s18
    %p24 = scmp.ge.s32.totalorder %s23, 2
    %s25 = scalar_select %p24, 0, %s23
    %s26 = sadd.s32 1, %s17
    %s27 = scalar_select %p24, %s26, %s17
    %p28 = scmp.ge.s32.totalorder %s27, 2
    %s29 = scalar_select %p28, 0, %s27
    %s30 = smul.u32 %s18, 2
    %s31 = ssub.s32 1, %s30
    %s32 = smul.u32 %s17, %s31
    %s33 = sadd.s32 %s18, %s32
    %s34 = smul.u32 %s25, 2
    %s35 = ssub.s32 1, %s34
    %s36 = smul.u32 %s29, %s35
    %s37 = sadd.s32 %s25, %s36
    %s38 = ssub.s32 %s33, %s37
    %p39 = scmp.eq.s32.totalorder %s38, 0
    %s41 = sadd.s32 %s40, 1
    %s42 = scalar_select %p39, %s40, %s41
    %p45 = pneg %p39
    %p46 = scmp.eq.s32.totalorder %s10, 3
    %p47 = por %p45, %p46
    %p48 = scmp.ne.s32.totalorder %s40, %s43
    %p49 = scmp.eq.s32.totalorder %s10, 0
    %p50 = por %p48, %p49
    %p51 = scmp.ne.s32.totalorder %s40, %s43
    %p52 = scmp.eq.s32.totalorder %s15, 3
    %p53 = por %p51, %p52
    %p54 = scmp.ne.s32.totalorder %s43, %s44
    %p55 = scmp.eq.s32.totalorder %s15, 0
    %p56 = por %p54, %p55
    %p57 = scmp.ne.s32.totalorder %s43, %s44
    %p58 = scmp.eq.s32.totalorder %s16, 3
    %p59 = por %p57, %p58
    %p61 = scmp.ne.s32.totalorder %s44, %s60
    %p62 = scmp.eq.s32.totalorder %s16, 0
    %p63 = por %p61, %p62
    %s64 = ssub.s32 %s17, %s29
    %p65 = scmp.eq.s32.totalorder %s64, 0
    %s67 = sadd.s32 %s66, 1
    %s68 = scalar_select %p65, %s66, %s67
    %p71 = pneg %p65
    %p72 = scmp.eq.s32.totalorder %s10, 3
    %p73 = por %p71, %p72
    %p74 = scmp.ne.s32.totalorder %s66, %s69
    %p75 = scmp.eq.s32.totalorder %s10, 0
    %p76 = por %p74, %p75
    %p77 = scmp.ne.s32.totalorder %s66, %s69
    %p78 = scmp.eq.s32.totalorder %s15, 3
    %p79 = por %p77, %p78
    %p80 = scmp.ne.s32.totalorder %s69, %s70
    %p81 = scmp.eq.s32.totalorder %s15, 0
    %p82 = por %p80, %p81
    %p83 = scmp.ne.s32.totalorder %s69, %s70
    %p84 = scmp.eq.s32.totalorder %s16, 3
    %p85 = por %p83, %p84
    %p87 = scmp.ne.s32.totalorder %s70, %s86
    %p88 = scmp.eq.s32.totalorder %s16, 0
    %p89 = por %p87, %p88
    %s90 = ssub.s32 %s17, %s29
    %p91 = scmp.eq.s32.totalorder %s90, 0
    %s93 = sadd.s32 %s92, 1
    %s94 = scalar_select %p91, %s92, %s93
    %p97 = pneg %p91
    %p98 = scmp.eq.s32.totalorder %s10, 3
    %p99 = por %p97, %p98
    %p100 = scmp.ne.s32.totalorder %s92, %s95
    %p101 = scmp.eq.s32.totalorder %s10, 0
    %p102 = por %p100, %p101
    %p103 = scmp.ne.s32.totalorder %s92, %s95
    %p104 = scmp.eq.s32.totalorder %s15, 3
    %p105 = por %p103, %p104
    %p106 = scmp.ne.s32.totalorder %s95, %s96
    %p107 = scmp.eq.s32.totalorder %s15, 0
    %p108 = por %p106, %p107
    %p109 = scmp.ne.s32.totalorder %s95, %s96
    %p110 = scmp.eq.s32.totalorder %s16, 3
    %p111 = por %p109, %p110
    %p113 = scmp.ne.s32.totalorder %s96, %s112
    %p114 = scmp.eq.s32.totalorder %s16, 0
    %p115 = por %p113, %p114
    %s116 = ssub.s32 %s17, %s29
    %p117 = scmp.eq.s32.totalorder %s116, 0
    %s119 = sadd.s32 %s118, 1
    %s120 = scalar_select %p117, %s118, %s119
    %p123 = pneg %p117
    %p124 = scmp.eq.s32.totalorder %s10, 3
    %p125 = por %p123, %p124
    %p126 = scmp.ne.s32.totalorder %s118, %s121
    %p127 = scmp.eq.s32.totalorder %s10, 0
    %p128 = por %p126, %p127
    %p129 = scmp.ne.s32.totalorder %s118, %s121
    %p130 = scmp.eq.s32.totalorder %s15, 3
    %p131 = por %p129, %p130
    %p132 = scmp.ne.s32.totalorder %s121, %s122
    %p133 = scmp.eq.s32.totalorder %s15, 0
    %p134 = por %p132, %p133
    %p135 = scmp.ne.s32.totalorder %s121, %s122
    %p136 = scmp.eq.s32.totalorder %s16, 3
    %p137 = por %p135, %p136
    %p139 = scmp.ne.s32.totalorder %s122, %s138
    %p140 = scmp.eq.s32.totalorder %s16, 0
    %p141 = por %p139, %p140
    %s142 = ssub.s32 %s17, %s29
    %p143 = scmp.eq.s32.totalorder %s142, 0
    %s145 = sadd.s32 %s144, 1
    %s146 = scalar_select %p143, %s144, %s145
    %p149 = pneg %p143
    %p150 = scmp.eq.s32.totalorder %s10, 3
    %p151 = por %p149, %p150
    %p152 = scmp.ne.s32.totalorder %s144, %s147
    %p153 = scmp.eq.s32.totalorder %s10, 0
    %p154 = por %p152, %p153
    %p155 = scmp.ne.s32.totalorder %s144, %s147
    %p156 = scmp.eq.s32.totalorder %s15, 3
    %p157 = por %p155, %p156
    %p158 = scmp.ne.s32.totalorder %s147, %s148
    %p159 = scmp.eq.s32.totalorder %s15, 0
    %p160 = por %p158, %p159
    %p161 = scmp.ne.s32.totalorder %s147, %s148
    %p162 = scmp.eq.s32.totalorder %s16, 3
    %p163 = por %p161, %p162
    %p165 = scmp.ne.s32.totalorder %s148, %s164
    %p166 = scmp.eq.s32.totalorder %s16, 0
    %p167 = por %p165, %p166
    %p168 = scmp.le.s32.totalorder 1, %s10
    %p169 = scmp.lt.s32.totalorder %s10, 5
    %p170 = pnand %p168, %p169
    %p171 = pneg %p170
    // Predicated region
    $region9: #{lstm_classifier_forward.3} parent=5 // pred_check
      _
    $region10: #{lstm_classifier_forward.3} parent=5 // pred_check_branch
      %173 = sbr.rel (%p170) target = $region12
    $region11: #{lstm_classifier_forward.3} parent=5 // pred_region
      %s174 = ssub.s32 %s10, 1
      // Predicated region
      $region13: #{lstm_classifier_forward.3} parent=11 // pred_check
        %p175 = pneg %p82
      $region14: #{lstm_classifier_forward.3} parent=11 // pred_check_branch
        %177 = sbr.rel (%p175) target = $region16
      $region15: #{lstm_classifier_forward.3} parent=11 // pred_region
        %p178 = scmp.lt.s32.totalorder %s19, 1
        %s179 = scalar_select %p178, %s19, 1
        %s180 = smul.addr %s179, 128
        %s181 = smul.addr %s180, 4
        %s182 = scalar_lea.vmem %s1, %s181
      $region16: #{lstm_classifier_forward.3} parent=11 // pred_fallthru
        _
      // Predicated region
      $region17: #{lstm_classifier_forward.3} parent=11 // pred_check
        %p183 = pneg %p108
      $region18: #{lstm_classifier_forward.3} parent=11 // pred_check_branch
        %185 = sbr.rel (%p183) target = $region20
      $region19: #{lstm_classifier_forward.3} parent=11 // pred_region
        %p186 = scmp.lt.s32.totalorder %s19, 1
        %s187 = scalar_select %p186, %s19, 1
        %s188 = smul.addr %s187, 64
        %s189 = smul.addr %s188, 4
        %s190 = scalar_lea.vmem %s2, %s189
      $region20: #{lstm_classifier_forward.3} parent=11 // pred_fallthru
        _
      // Predicated region
      $region21: #{lstm_classifier_forward.3} parent=11 // pred_check
        %p191 = pneg %p134
      $region22: #{lstm_classifier_forward.3} parent=11 // pred_check_branch
        %193 = sbr.rel (%p191) target = $region24
      $region23: #{lstm_classifier_forward.3} parent=11 // pred_region
        %p194 = scmp.lt.s32.totalorder %s19, 1
        %s195 = scalar_select %p194, %s19, 1
        %s196 = smul.addr %s195, 4
        %s197 = scalar_lea.vmem %s3, %s196
      $region24: #{lstm_classifier_forward.3} parent=11 // pred_fallthru
        _
    $region12: #{lstm_classifier_forward.3} parent=5 // pred_fallthru
      _
    %p198 = scmp.lt.s32.totalorder %s10, 4
    // Predicated region
    $region25: #{lstm_classifier_forward.3} parent=5 // pred_check
      %p199 = pneg %p198
    $region26: #{lstm_classifier_forward.3} parent=5 // pred_check_branch
      %201 = sbr.rel (%p199) target = $region28
    $region27: #{lstm_classifier_forward.3} parent=5 // pred_region
      // Predicated region
      $region29: #{lstm_classifier_forward.3} parent=27 // pred_check
        %p202 = pneg %p50
      $region30: #{lstm_classifier_forward.3} parent=27 // pred_check_branch
        %204 = sbr.rel (%p202) target = $region32
      $region31: #{lstm_classifier_forward.3} parent=27 // pred_region
        %s205 = smul.u32 %s18, 2
        %s206 = ssub.s32 1, %s205
        %s207 = smul.u32 %s17, %s206
        %s208 = sadd.s32 %s18, %s207
        %s209 = smul.u32 4, %s208
        %p210 = scmp.lt.s32.totalorder %s209, 7
        %s211 = scalar_select %p210, %s209, 7
        %s212 = smul.addr %s211, 2
        %s213 = smul.addr %s212, 4
        %s214 = scalar_lea.vmem %s0, %s213
        %s215 = smul.u32 %s18, 2
        %s216 = ssub.s32 1, %s215
        %s217 = smul.u32 %s17, %s216
        %s218 = sadd.s32 %s18, %s217
        %s219 = smul.u32 4, %s218
      $region32: #{lstm_classifier_forward.3} parent=27 // pred_fallthru
        _
    $region28: #{lstm_classifier_forward.3} parent=5 // pred_fallthru
      _
    %p220 = scmp.le.s32.totalorder 1, %s10
    %p221 = scmp.lt.s32.totalorder %s10, 5
    %p222 = pnand %p220, %p221
    %p223 = pneg %p222
    // Predicated region
    $region33: #{lstm_classifier_forward.3} parent=5 // pred_check
      _
    $region34: #{lstm_classifier_forward.3} parent=5 // pred_check_branch
      %225 = sbr.rel (%p222) target = $region36
    $region35: #{lstm_classifier_forward.3} parent=5 // pred_region
      %s226 = ssub.s32 %s10, 1
      %s227 = smul.u32 %s20, 2
      %s228 = ssub.s32 1, %s227
      %s229 = smul.u32 %s19, %s228
      %s230 = sadd.s32 %s20, %s229
      %s231 = smul.u32 4, %s230
      %p232 = scmp.lt.s32.totalorder %s231, 7
      %s233 = scalar_select %p232, %s231, 7
      %s234 = smul.addr %s233, 2
      %s235 = smul.addr %s234, 4
      %s236 = scalar_lea.vmem %s0, %s235
      %p237 = pneg %p56
      %p238 = pneg %p53
      %p239 = scmp.lt.s32.totalorder %s19, 1
      %s240 = scalar_select %p239, %s19, 1
      %s241 = smul.addr %s240, 128
      %s242 = smul.addr %s241, 4
      %s243 = scalar_lea.vmem %s1, %s242
      %p244 = pneg %p82
      %p245 = pneg %p79
      %p246 = scmp.lt.s32.totalorder %s19, 1
      %s247 = scalar_select %p246, %s19, 1
      %s248 = smul.addr %s247, 64
      %s249 = smul.addr %s248, 4
      %s250 = scalar_lea.vmem %s2, %s249
      %p251 = pneg %p108
      %p252 = pneg %p105
      %p253 = scmp.lt.s32.totalorder %s19, 1
      %s254 = scalar_select %p253, %s19, 1
      %s255 = smul.addr %s254, 4
      %s256 = scalar_lea.vmem %s3, %s255
      %p257 = pneg %p134
      %p258 = pneg %p131
      %p259 = pneg %p160
      %p260 = pneg %p157
      %p261 = scmp.lt.s32.totalorder %s19, 1
      %s262 = scalar_select %p261, %s19, 1
      %s263 = smul.addr %s262, 8
      %s264 = scalar_lea.vmem %s4, %s263
      %s265 = smul.u32 %s20, 2
      %s266 = ssub.s32 1, %s265
      %s267 = smul.u32 %s19, %s266
      %s268 = sadd.s32 %s20, %s267
      %s269 = smul.u32 4, %s268
      %p270 = scmp.lt.s32.totalorder %s269, 7
      %s271 = scalar_select %p270, %s269, 7
      %s272 = smul.addr %s271, 2
      %s273 = smul.addr %s272, 4
      %s274 = scalar_lea.vmem %s0, %s273
      %s275 = smul.u32 %s20, 2
      %s276 = ssub.s32 1, %s275
      %s277 = smul.u32 %s19, %s276
      %s278 = sadd.s32 %s20, %s277
      %s279 = smul.u32 4, %s278
      %p280 = scmp.lt.s32.totalorder %s19, 1
      %s281 = scalar_select %p280, %s19, 1
      %s282 = smul.addr %s281, 128
      %s283 = smul.addr %s282, 4
      %s284 = scalar_lea.vmem %s1, %s283
      %p285 = scmp.lt.s32.totalorder %s19, 1
      %s286 = scalar_select %p285, %s19, 1
      %s287 = smul.addr %s286, 64
      %s288 = smul.addr %s287, 4
      %s289 = scalar_lea.vmem %s2, %s288
      %p290 = scmp.lt.s32.totalorder %s19, 1
      %s291 = scalar_select %p290, %s19, 1
      %s292 = smul.addr %s291, 4
      %s293 = scalar_lea.vmem %s3, %s292
      %p294 = scmp.lt.s32.totalorder %s19, 1
      %s295 = scalar_select %p294, %s19, 1
      %s296 = smul.addr %s295, 8
      %s297 = scalar_lea.vmem %s4, %s296
      %p299 = scmp.eq.s32.totalorder %s20, 0
      // Predicated region
      $region37: #{lstm_classifier_forward.3} parent=35 // pred_check
        %p300 = pneg %p299
      $region38: #{lstm_classifier_forward.3} parent=35 // pred_check_branch
        %302 = sbr.rel (%p300) target = $region40
      $region39: #{lstm_classifier_forward.3} parent=35 // pred_region
        %303 = vst [vmem:[#allocation3] sm:$0xff] 0.0
        %304 = vst [vmem:[#allocation4] sm:$0xff] 0.0
      $region40: #{lstm_classifier_forward.3} parent=35 // pred_fallthru
        _
      %v305 = vld [vmem:[%s274] sm:$0xff]
      %v306 = vld [vmem:[%s274 + $0x8] sm:$0xff]
      %v307 = vld [vmem:[%s274 + $0x10] sm:$0xff]
      %v308 = vld [vmem:[%s274 + $0x18] sm:$0xff]
      %v309 = vld [vmem:[%s284] sm:$0xff]
      %v310 = vld [vmem:[%s284 + $0x8] sm:$0xff]
      %v311 = vld [vmem:[%s284 + $0x10] sm:$0xff]
      %v312 = vld [vmem:[%s284 + $0x18] sm:$0xff]
      %v313 = vld [vmem:[%s284 + $0x20] sm:$0xff]
      %v314 = vld [vmem:[%s284 + $0x28] sm:$0xff]
      %v315 = vld [vmem:[%s284 + $0x30] sm:$0xff]
      %v316 = vld [vmem:[%s284 + $0x38] sm:$0xff]
      %v317 = vld [vmem:[%s284 + $0x40] sm:$0xff]
      %v318 = vld [vmem:[%s284 + $0x48] sm:$0xff]
      %v319 = vld [vmem:[%s284 + $0x50] sm:$0xff]
      %v320 = vld [vmem:[%s284 + $0x58] sm:$0xff]
      %v321 = vld [vmem:[%s284 + $0x60] sm:$0xff]
      %v322 = vld [vmem:[%s284 + $0x68] sm:$0xff]
      %v323 = vld [vmem:[%s284 + $0x70] sm:$0xff]
      %v324 = vld [vmem:[%s284 + $0x78] sm:$0xff]
      %v325 = vld [vmem:[%s284 + $0x80] sm:$0xff]
      %v326 = vld [vmem:[%s284 + $0x88] sm:$0xff]
      %v327 = vld [vmem:[%s284 + $0x90] sm:$0xff]
      %v328 = vld [vmem:[%s284 + $0x98] sm:$0xff]
      %v329 = vld [vmem:[%s284 + $0xa0] sm:$0xff]
      %v330 = vld [vmem:[%s284 + $0xa8] sm:$0xff]
      %v331 = vld [vmem:[%s284 + $0xb0] sm:$0xff]
      %v332 = vld [vmem:[%s284 + $0xb8] sm:$0xff]
      %v333 = vld [vmem:[%s284 + $0xc0] sm:$0xff]
      %v334 = vld [vmem:[%s284 + $0xc8] sm:$0xff]
      %v335 = vld [vmem:[%s284 + $0xd0] sm:$0xff]
      %v336 = vld [vmem:[%s284 + $0xd8] sm:$0xff]
      %v337 = vld [vmem:[%s284 + $0xe0] sm:$0xff]
      %v338 = vld [vmem:[%s284 + $0xe8] sm:$0xff]
      %v339 = vld [vmem:[%s284 + $0xf0] sm:$0xff]
      %v340 = vld [vmem:[%s284 + $0xf8] sm:$0xff]
      %v341 = vld [vmem:[%s284 + $0x100] sm:$0xff]
      %v342 = vld [vmem:[%s284 + $0x108] sm:$0xff]
      %v343 = vld [vmem:[%s284 + $0x110] sm:$0xff]
      %v344 = vld [vmem:[%s284 + $0x118] sm:$0xff]
      %v345 = vld [vmem:[%s284 + $0x120] sm:$0xff]
      %v346 = vld [vmem:[%s284 + $0x128] sm:$0xff]
      %v347 = vld [vmem:[%s284 + $0x130] sm:$0xff]
      %v348 = vld [vmem:[%s284 + $0x138] sm:$0xff]
      %v349 = vld [vmem:[%s284 + $0x140] sm:$0xff]
      %v350 = vld [vmem:[%s284 + $0x148] sm:$0xff]
      %v351 = vld [vmem:[%s284 + $0x150] sm:$0xff]
      %v352 = vld [vmem:[%s284 + $0x158] sm:$0xff]
      %v353 = vld [vmem:[%s284 + $0x160] sm:$0xff]
      %v354 = vld [vmem:[%s284 + $0x168] sm:$0xff]
      %v355 = vld [vmem:[%s284 + $0x170] sm:$0xff]
      %v356 = vld [vmem:[%s284 + $0x178] sm:$0xff]
      %v357 = vld [vmem:[%s284 + $0x180] sm:$0xff]
      %v358 = vld [vmem:[%s284 + $0x188] sm:$0xff]
      %v359 = vld [vmem:[%s284 + $0x190] sm:$0xff]
      %v360 = vld [vmem:[%s284 + $0x198] sm:$0xff]
      %v361 = vld [vmem:[%s284 + $0x1a0] sm:$0xff]
      %v362 = vld [vmem:[%s284 + $0x1a8] sm:$0xff]
      %v363 = vld [vmem:[%s284 + $0x1b0] sm:$0xff]
      %v364 = vld [vmem:[%s284 + $0x1b8] sm:$0xff]
      %v365 = vld [vmem:[%s284 + $0x1c0] sm:$0xff]
      %v366 = vld [vmem:[%s284 + $0x1c8] sm:$0xff]
      %v367 = vld [vmem:[%s284 + $0x1d0] sm:$0xff]
      %v368 = vld [vmem:[%s284 + $0x1d8] sm:$0xff]
      %v369 = vld [vmem:[%s284 + $0x1e0] sm:$0xff]
      %v370 = vld [vmem:[%s284 + $0x1e8] sm:$0xff]
      %v371 = vld [vmem:[%s284 + $0x1f0] sm:$0xff]
      %v372 = vld [vmem:[%s284 + $0x1f8] sm:$0xff]
      %v373 = vld [vmem:[%s293] sm:$0xf]
      %v375 = vlaneseq
      %v376 = vshrl.u32 %v375, 7
      %v377 = vsub.s32 0, %v376
      %v378 = vrot.slane %v373, %v377
      %v379 = vlaneseq
      %v380 = vshrl.u32 %v379, 7
      %v381 = vsub.s32 1, %v380
      %v382 = vrot.slane %v373, %v381
      %v383 = vlaneseq
      %v384 = vshrl.u32 %v383, 7
      %v385 = vsub.s32 2, %v384
      %v386 = vrot.slane %v373, %v385
      %v387 = vlaneseq
      %v388 = vshrl.u32 %v387, 7
      %v389 = vsub.s32 3, %v388
      %v390 = vrot.slane %v373, %v389
      %v399 = vunpack.c.l.b16 %v305
      %v400 = vunpack.c.h.b16 %v305
      %v401 = vunpack.c.l.b16 %v306
      %v402 = vunpack.c.h.b16 %v306
      %v403 = vunpack.c.l.b16 %v307
      %v404 = vunpack.c.h.b16 %v307
      %v405 = vunpack.c.l.b16 %v308
      %v406 = vunpack.c.h.b16 %v308
      %v407 = vpack.c.b16 %v401, %v399
      %v408 = vpack.c.b16 %v402, %v400
      %v409 = vpack.c.b16 %v405, %v403
      %v410 = vpack.c.b16 %v406, %v404
      %v479 = vunpack.c.l.b16 %v309
      %v480 = vunpack.c.h.b16 %v309
      %v481 = vunpack.c.l.b16 %v310
      %v482 = vunpack.c.h.b16 %v310
      %v483 = vunpack.c.l.b16 %v311
      %v484 = vunpack.c.h.b16 %v311
      %v485 = vunpack.c.l.b16 %v312
      %v486 = vunpack.c.h.b16 %v312
      %v487 = vunpack.c.l.b16 %v313
      %v488 = vunpack.c.h.b16 %v313
      %v489 = vunpack.c.l.b16 %v314
      %v490 = vunpack.c.h.b16 %v314
      %v491 = vunpack.c.l.b16 %v315
      %v492 = vunpack.c.h.b16 %v315
      %v493 = vunpack.c.l.b16 %v316
      %v494 = vunpack.c.h.b16 %v316
      %v495 = vunpack.c.l.b16 %v317
      %v496 = vunpack.c.h.b16 %v317
      %v497 = vunpack.c.l.b16 %v318
      %v498 = vunpack.c.h.b16 %v318
      %v499 = vunpack.c.l.b16 %v319
      %v500 = vunpack.c.h.b16 %v319
      %v501 = vunpack.c.l.b16 %v320
      %v502 = vunpack.c.h.b16 %v320
      %v503 = vunpack.c.l.b16 %v321
      %v504 = vunpack.c.h.b16 %v321
      %v505 = vunpack.c.l.b16 %v322
      %v506 = vunpack.c.h.b16 %v322
      %v507 = vunpack.c.l.b16 %v323
      %v508 = vunpack.c.h.b16 %v323
      %v509 = vunpack.c.l.b16 %v324
      %v510 = vunpack.c.h.b16 %v324
      %v511 = vunpack.c.l.b16 %v325
      %v512 = vunpack.c.h.b16 %v325
      %v513 = vunpack.c.l.b16 %v326
      %v514 = vunpack.c.h.b16 %v326
      %v515 = vunpack.c.l.b16 %v327
      %v516 = vunpack.c.h.b16 %v327
      %v517 = vunpack.c.l.b16 %v328
      %v518 = vunpack.c.h.b16 %v328
      %v519 = vunpack.c.l.b16 %v329
      %v520 = vunpack.c.h.b16 %v329
      %v521 = vunpack.c.l.b16 %v330
      %v522 = vunpack.c.h.b16 %v330
      %v523 = vunpack.c.l.b16 %v331
      %v524 = vunpack.c.h.b16 %v331
      %v525 = vunpack.c.l.b16 %v332
      %v526 = vunpack.c.h.b16 %v332
      %v527 = vunpack.c.l.b16 %v333
      %v528 = vunpack.c.h.b16 %v333
      %v529 = vunpack.c.l.b16 %v334
      %v530 = vunpack.c.h.b16 %v334
      %v531 = vunpack.c.l.b16 %v335
      %v532 = vunpack.c.h.b16 %v335
      %v533 = vunpack.c.l.b16 %v336
      %v534 = vunpack.c.h.b16 %v336
      %v535 = vunpack.c.l.b16 %v337
      %v536 = vunpack.c.h.b16 %v337
      %v537 = vunpack.c.l.b16 %v338
      %v538 = vunpack.c.h.b16 %v338
      %v539 = vunpack.c.l.b16 %v339
      %v540 = vunpack.c.h.b16 %v339
      %v541 = vunpack.c.l.b16 %v340
      %v542 = vunpack.c.h.b16 %v340
      %v543 = vunpack.c.l.b16 %v341
      %v544 = vunpack.c.h.b16 %v341
      %v545 = vunpack.c.l.b16 %v342
      %v546 = vunpack.c.h.b16 %v342
      %v547 = vunpack.c.l.b16 %v343
      %v548 = vunpack.c.h.b16 %v343
      %v549 = vunpack.c.l.b16 %v344
      %v550 = vunpack.c.h.b16 %v344
      %v551 = vunpack.c.l.b16 %v345
      %v552 = vunpack.c.h.b16 %v345
      %v553 = vunpack.c.l.b16 %v346
      %v554 = vunpack.c.h.b16 %v346
      %v555 = vunpack.c.l.b16 %v347
      %v556 = vunpack.c.h.b16 %v347
      %v557 = vunpack.c.l.b16 %v348
      %v558 = vunpack.c.h.b16 %v348
      %v559 = vunpack.c.l.b16 %v349
      %v560 = vunpack.c.h.b16 %v349
      %v561 = vunpack.c.l.b16 %v350
      %v562 = vunpack.c.h.b16 %v350
      %v563 = vunpack.c.l.b16 %v351
      %v564 = vunpack.c.h.b16 %v351
      %v565 = vunpack.c.l.b16 %v352
      %v566 = vunpack.c.h.b16 %v352
      %v567 = vunpack.c.l.b16 %v353
      %v568 = vunpack.c.h.b16 %v353
      %v569 = vunpack.c.l.b16 %v354
      %v570 = vunpack.c.h.b16 %v354
      %v571 = vunpack.c.l.b16 %v355
      %v572 = vunpack.c.h.b16 %v355
      %v573 = vunpack.c.l.b16 %v356
      %v574 = vunpack.c.h.b16 %v356
      %v575 = vunpack.c.l.b16 %v357
      %v576 = vunpack.c.h.b16 %v357
      %v577 = vunpack.c.l.b16 %v358
      %v578 = vunpack.c.h.b16 %v358
      %v579 = vunpack.c.l.b16 %v359
      %v580 = vunpack.c.h.b16 %v359
      %v581 = vunpack.c.l.b16 %v360
      %v582 = vunpack.c.h.b16 %v360
      %v583 = vunpack.c.l.b16 %v361
      %v584 = vunpack.c.h.b16 %v361
      %v585 = vunpack.c.l.b16 %v362
      %v586 = vunpack.c.h.b16 %v362
      %v587 = vunpack.c.l.b16 %v363
      %v588 = vunpack.c.h.b16 %v363
      %v589 = vunpack.c.l.b16 %v364
      %v590 = vunpack.c.h.b16 %v364
      %v591 = vunpack.c.l.b16 %v365
      %v592 = vunpack.c.h.b16 %v365
      %v593 = vunpack.c.l.b16 %v366
      %v594 = vunpack.c.h.b16 %v366
      %v595 = vunpack.c.l.b16 %v367
      %v596 = vunpack.c.h.b16 %v367
      %v597 = vunpack.c.l.b16 %v368
      %v598 = vunpack.c.h.b16 %v368
      %v599 = vunpack.c.l.b16 %v369
      %v600 = vunpack.c.h.b16 %v369
      %v601 = vunpack.c.l.b16 %v370
      %v602 = vunpack.c.h.b16 %v370
      %v603 = vunpack.c.l.b16 %v371
      %v604 = vunpack.c.h.b16 %v371
      %v605 = vunpack.c.l.b16 %v372
      %v606 = vunpack.c.h.b16 %v372
      %v607 = vpack.c.b16 %v483, %v479
      %v608 = vpack.c.b16 %v484, %v480
      %v609 = vpack.c.b16 %v485, %v481
      %v610 = vpack.c.b16 %v486, %v482
      %v611 = vpack.c.b16 %v491, %v487
      %v612 = vpack.c.b16 %v492, %v488
      %v613 = vpack.c.b16 %v493, %v489
      %v614 = vpack.c.b16 %v494, %v490
      %v615 = vpack.c.b16 %v499, %v495
      %v616 = vpack.c.b16 %v500, %v496
      %v617 = vpack.c.b16 %v501, %v497
      %v618 = vpack.c.b16 %v502, %v498
      %v619 = vpack.c.b16 %v507, %v503
      %v620 = vpack.c.b16 %v508, %v504
      %v621 = vpack.c.b16 %v509, %v505
      %v622 = vpack.c.b16 %v510, %v506
      %v623 = vpack.c.b16 %v515, %v511
      %v624 = vpack.c.b16 %v516, %v512
      %v625 = vpack.c.b16 %v517, %v513
      %v626 = vpack.c.b16 %v518, %v514
      %v627 = vpack.c.b16 %v523, %v519
      %v628 = vpack.c.b16 %v524, %v520
      %v629 = vpack.c.b16 %v525, %v521
      %v630 = vpack.c.b16 %v526, %v522
      %v631 = vpack.c.b16 %v531, %v527
      %v632 = vpack.c.b16 %v532, %v528
      %v633 = vpack.c.b16 %v533, %v529
      %v634 = vpack.c.b16 %v534, %v530
      %v635 = vpack.c.b16 %v539, %v535
      %v636 = vpack.c.b16 %v540, %v536
      %v637 = vpack.c.b16 %v541, %v537
      %v638 = vpack.c.b16 %v542, %v538
      %v639 = vpack.c.b16 %v547, %v543
      %v640 = vpack.c.b16 %v548, %v544
      %v641 = vpack.c.b16 %v549, %v545
      %v642 = vpack.c.b16 %v550, %v546
      %v643 = vpack.c.b16 %v555, %v551
      %v644 = vpack.c.b16 %v556, %v552
      %v645 = vpack.c.b16 %v557, %v553
      %v646 = vpack.c.b16 %v558, %v554
      %v647 = vpack.c.b16 %v563, %v559
      %v648 = vpack.c.b16 %v564, %v560
      %v649 = vpack.c.b16 %v565, %v561
      %v650 = vpack.c.b16 %v566, %v562
      %v651 = vpack.c.b16 %v571, %v567
      %v652 = vpack.c.b16 %v572, %v568
      %v653 = vpack.c.b16 %v573, %v569
      %v654 = vpack.c.b16 %v574, %v570
      %v655 = vpack.c.b16 %v579, %v575
      %v656 = vpack.c.b16 %v580, %v576
      %v657 = vpack.c.b16 %v581, %v577
      %v658 = vpack.c.b16 %v582, %v578
      %v659 = vpack.c.b16 %v587, %v583
      %v660 = vpack.c.b16 %v588, %v584
      %v661 = vpack.c.b16 %v589, %v585
      %v662 = vpack.c.b16 %v590, %v586
      %v663 = vpack.c.b16 %v595, %v591
      %v664 = vpack.c.b16 %v596, %v592
      %v665 = vpack.c.b16 %v597, %v593
      %v666 = vpack.c.b16 %v598, %v594
      %v667 = vpack.c.b16 %v603, %v599
      %v668 = vpack.c.b16 %v604, %v600
      %v669 = vpack.c.b16 %v605, %v601
      %v670 = vpack.c.b16 %v606, %v602
      %735 = vmatprep.subr.bf16.mxu0 %v608
      %736 = vmatpush1.bf16.msra.mxu0 %v607
      %737 = vmatprep.subr.bf16.mxu0 %v612
      %738 = vmatpush1.bf16.msra.mxu0 %v611
      %739 = vmatprep.subr.bf16.mxu0 %v616
      %740 = vmatpush1.bf16.msra.mxu0 %v615
      %741 = vmatprep.subr.bf16.mxu0 %v620
      %742 = vmatpush1.bf16.msra.mxu0 %v619
      %743 = vmatprep.subr.bf16.mxu0 %v624
      %744 = vmatpush1.bf16.msra.mxu0 %v623
      %745 = vmatprep.subr.bf16.mxu0 %v628
      %746 = vmatpush1.bf16.msra.mxu0 %v627
      %747 = vmatprep.subr.bf16.mxu0 %v632
      %748 = vmatpush1.bf16.msra.mxu0 %v631
      %749 = vmatprep.subr.bf16.mxu0 %v636
      %750 = vmatpush1.bf16.msra.mxu0 %v635
      %751 = vmatprep.subr.bf16.mxu0 %v640
      %752 = vmatpush1.bf16.msra.mxu0 %v639
      %753 = vmatprep.subr.bf16.mxu0 %v644
      %754 = vmatpush1.bf16.msra.mxu0 %v643
      %755 = vmatprep.subr.bf16.mxu0 %v648
      %756 = vmatpush1.bf16.msra.mxu0 %v647
      %757 = vmatprep.subr.bf16.mxu0 %v652
      %758 = vmatpush1.bf16.msra.mxu0 %v651
      %759 = vmatprep.subr.bf16.mxu0 %v656
      %760 = vmatpush1.bf16.msra.mxu0 %v655
      %761 = vmatprep.subr.bf16.mxu0 %v660
      %762 = vmatpush1.bf16.msra.mxu0 %v659
      %763 = vmatprep.subr.bf16.mxu0 %v664
      %764 = vmatpush1.bf16.msra.mxu0 %v663
      %765 = vmatprep.subr.bf16.mxu0 %v668
      %766 = vmatpush1.bf16.msra.mxu0 %v667
      %767 = vmatprep.mubr.bf16.mxu0 %v408
      %768 = vmatmul.mubr.bf16.gmra.mrb[0].mxu0 %v407
      %v769 = vpop.f32.mrb[0].mxu0
      %v770 = vadd.f32 %v378, %v769
      %v771 = vpop.f32.mrb[0].mxu0
      %v772 = vadd.f32 %v382, %v771
      %v773 = vpop.f32.mrb[0].mxu0
      %v774 = vadd.f32 %v378, %v773
      %v775 = vpop.f32.mrb[0].mxu0
      %v776 = vadd.f32 %v382, %v775
      %777 = vmatprep.mubr.bf16.mxu0 %v410
      %778 = vmatmul.mubr.bf16.gmra.mrb[0].mxu0 %v409
      %v779 = vpop.f32.mrb[0].mxu0
      %v780 = vadd.f32 %v378, %v779
      %v781 = vpop.f32.mrb[0].mxu0
      %v782 = vadd.f32 %v382, %v781
      %v783 = vpop.f32.mrb[0].mxu0
      %v784 = vadd.f32 %v378, %v783
      %v785 = vpop.f32.mrb[0].mxu0
      %v786 = vadd.f32 %v382, %v785
      %787 = vdwg.mxu0
      %788 = vmatprep.subr.bf16.mxu0 %v610
      %789 = vmatpush1.bf16.msra.mxu0 %v609
      %790 = vmatprep.subr.bf16.mxu0 %v614
      %791 = vmatpush1.bf16.msra.mxu0 %v613
      %792 = vmatprep.subr.bf16.mxu0 %v618
      %793 = vmatpush1.bf16.msra.mxu0 %v617
      %794 = vmatprep.subr.bf16.mxu0 %v622
      %795 = vmatpush1.bf16.msra.mxu0 %v621
      %796 = vmatprep.subr.bf16.mxu0 %v626
      %797 = vmatpush1.bf16.msra.mxu0 %v625
      %798 = vmatprep.subr.bf16.mxu0 %v630
      %799 = vmatpush1.bf16.msra.mxu0 %v629
      %800 = vmatprep.subr.bf16.mxu0 %v634
      %801 = vmatpush1.bf16.msra.mxu0 %v633
      %802 = vmatprep.subr.bf16.mxu0 %v638
      %803 = vmatpush1.bf16.msra.mxu0 %v637
      %804 = vmatprep.subr.bf16.mxu0 %v642
      %805 = vmatpush1.bf16.msra.mxu0 %v641
      %806 = vmatprep.subr.bf16.mxu0 %v646
      %807 = vmatpush1.bf16.msra.mxu0 %v645
      %808 = vmatprep.subr.bf16.mxu0 %v650
      %809 = vmatpush1.bf16.msra.mxu0 %v649
      %810 = vmatprep.subr.bf16.mxu0 %v654
      %811 = vmatpush1.bf16.msra.mxu0 %v653
      %812 = vmatprep.subr.bf16.mxu0 %v658
      %813 = vmatpush1.bf16.msra.mxu0 %v657
      %814 = vmatprep.subr.bf16.mxu0 %v662
      %815 = vmatpush1.bf16.msra.mxu0 %v661
      %816 = vmatprep.subr.bf16.mxu0 %v666
      %817 = vmatpush1.bf16.msra.mxu0 %v665
      %818 = vmatprep.subr.bf16.mxu0 %v670
      %819 = vmatpush1.bf16.msra.mxu0 %v669
      %820 = vmatprep.mubr.bf16.mxu0 %v408
      %821 = vmatmul.mubr.bf16.gmra.mrb[0].mxu0 %v407
      %v822 = vpop.f32.mrb[0].mxu0
      %v823 = vadd.f32 %v386, %v822
      %v824 = vpop.f32.mrb[0].mxu0
      %v825 = vadd.f32 %v390, %v824
      %v826 = vpop.f32.mrb[0].mxu0
      %v827 = vadd.f32 %v386, %v826
      %v828 = vpop.f32.mrb[0].mxu0
      %v829 = vadd.f32 %v390, %v828
      %830 = vmatprep.mubr.bf16.mxu0 %v410
      %831 = vmatmul.mubr.bf16.gmra.mrb[0].mxu0 %v409
      %v832 = vpop.f32.mrb[0].mxu0
      %v833 = vadd.f32 %v386, %v832
      %v834 = vpop.f32.mrb[0].mxu0
      %v835 = vadd.f32 %v390, %v834
      %v836 = vpop.f32.mrb[0].mxu0
      %v837 = vadd.f32 %v386, %v836
      %v838 = vpop.f32.mrb[0].mxu0
      %v839 = vadd.f32 %v390, %v838
      %840 = vdwg.mxu0
      %841 = vst [vmem:[#allocation2] sm:$0xff] %v770
      %842 = vst [vmem:[#allocation2 + $0x8] sm:$0xff] %v772
      %843 = vst [vmem:[#allocation2 + $0x10] sm:$0xff] %v823
      %844 = vst [vmem:[#allocation2 + $0x18] sm:$0xff] %v825
      %845 = vst [vmem:[#allocation2 + $0x20] sm:$0xff] %v774
      %846 = vst [vmem:[#allocation2 + $0x28] sm:$0xff] %v776
      %847 = vst [vmem:[#allocation2 + $0x30] sm:$0xff] %v827
      %848 = vst [vmem:[#allocation2 + $0x38] sm:$0xff] %v829
      %849 = vst [vmem:[#allocation2 + $0x40] sm:$0xff] %v780
      %850 = vst [vmem:[#allocation2 + $0x48] sm:$0xff] %v782
      %851 = vst [vmem:[#allocation2 + $0x50] sm:$0xff] %v833
      %852 = vst [vmem:[#allocation2 + $0x58] sm:$0xff] %v835
      %853 = vst [vmem:[#allocation2 + $0x60] sm:$0xff] %v784
      %854 = vst [vmem:[#allocation2 + $0x68] sm:$0xff] %v786
      %855 = vst [vmem:[#allocation2 + $0x70] sm:$0xff] %v837
      %856 = vst [vmem:[#allocation2 + $0x78] sm:$0xff] %v839
      %v857 = vld [vmem:[%s289] sm:$0xff]
      %v858 = vld [vmem:[%s289 + $0x8] sm:$0xff]
      %v859 = vld [vmem:[%s289 + $0x10] sm:$0xff]
      %v860 = vld [vmem:[%s289 + $0x18] sm:$0xff]
      %v861 = vld [vmem:[%s289 + $0x20] sm:$0xff]
      %v862 = vld [vmem:[%s289 + $0x28] sm:$0xff]
      %v863 = vld [vmem:[%s289 + $0x30] sm:$0xff]
      %v864 = vld [vmem:[%s289 + $0x38] sm:$0xff]
      %v865 = vld [vmem:[%s289 + $0x40] sm:$0xff]
      %v866 = vld [vmem:[%s289 + $0x48] sm:$0xff]
      %v867 = vld [vmem:[%s289 + $0x50] sm:$0xff]
      %v868 = vld [vmem:[%s289 + $0x58] sm:$0xff]
      %v869 = vld [vmem:[%s289 + $0x60] sm:$0xff]
      %v870 = vld [vmem:[%s289 + $0x68] sm:$0xff]
      %v871 = vld [vmem:[%s289 + $0x70] sm:$0xff]
      %v872 = vld [vmem:[%s289 + $0x78] sm:$0xff]
      %v873 = vld [vmem:[%s289 + $0x80] sm:$0xff]
      %v874 = vld [vmem:[%s289 + $0x88] sm:$0xff]
      %v875 = vld [vmem:[%s289 + $0x90] sm:$0xff]
      %v876 = vld [vmem:[%s289 + $0x98] sm:$0xff]
      %v877 = vld [vmem:[%s289 + $0xa0] sm:$0xff]
      %v878 = vld [vmem:[%s289 + $0xa8] sm:$0xff]
      %v879 = vld [vmem:[%s289 + $0xb0] sm:$0xff]
      %v880 = vld [vmem:[%s289 + $0xb8] sm:$0xff]
      %v881 = vld [vmem:[%s289 + $0xc0] sm:$0xff]
      %v882 = vld [vmem:[%s289 + $0xc8] sm:$0xff]
      %v883 = vld [vmem:[%s289 + $0xd0] sm:$0xff]
      %v884 = vld [vmem:[%s289 + $0xd8] sm:$0xff]
      %v885 = vld [vmem:[%s289 + $0xe0] sm:$0xff]
      %v886 = vld [vmem:[%s289 + $0xe8] sm:$0xff]
      %v887 = vld [vmem:[%s289 + $0xf0] sm:$0xff]
      %v888 = vld [vmem:[%s289 + $0xf8] sm:$0xff]
      %v889 = vld [vmem:[#allocation3] sm:$0xff]
      %v890 = vld [vmem:[#allocation4] sm:$0xff]
      %s891 = smul.u32 %s19, 3
      %s892 = smul.u32 %s891, 4
      %s893 = smul.addr %s892, 8
      %s894 = scalar_lea.vmem [#allocation2], %s893
      %v895 = vld [vmem:[%s894] sm:$0xff]
      %v896 = vld [vmem:[%s894 + $0x8] sm:$0xff]
      %v897 = vld [vmem:[%s894 + $0x10] sm:$0xff]
      %v898 = vld [vmem:[%s894 + $0x18] sm:$0xff]
      %v899 = vpack.c.bf16 %v889, %v889
      %v932 = vunpack.c.l.b16 %v857
      %v933 = vunpack.c.h.b16 %v857
      %v934 = vunpack.c.l.b16 %v858
      %v935 = vunpack.c.h.b16 %v858
      %v936 = vunpack.c.l.b16 %v859
      %v937 = vunpack.c.h.b16 %v859
      %v938 = vunpack.c.l.b16 %v860
      %v939 = vunpack.c.h.b16 %v860
      %v940 = vunpack.c.l.b16 %v861
      %v941 = vunpack.c.h.b16 %v861
      %v942 = vunpack.c.l.b16 %v862
      %v943 = vunpack.c.h.b16 %v862
      %v944 = vunpack.c.l.b16 %v863
      %v945 = vunpack.c.h.b16 %v863
      %v946 = vunpack.c.l.b16 %v864
      %v947 = vunpack.c.h.b16 %v864
      %v948 = vunpack.c.l.b16 %v865
      %v949 = vunpack.c.h.b16 %v865
      %v950 = vunpack.c.l.b16 %v866
      %v951 = vunpack.c.h.b16 %v866
      %v952 = vunpack.c.l.b16 %v867
      %v953 = vunpack.c.h.b16 %v867
      %v954 = vunpack.c.l.b16 %v868
      %v955 = vunpack.c.h.b16 %v868
      %v956 = vunpack.c.l.b16 %v869
      %v957 = vunpack.c.h.b16 %v869
      %v958 = vunpack.c.l.b16 %v870
      %v959 = vunpack.c.h.b16 %v870
      %v960 = vunpack.c.l.b16 %v871
      %v961 = vunpack.c.h.b16 %v871
      %v962 = vunpack.c.l.b16 %v872
      %v963 = vunpack.c.h.b16 %v872
      %v964 = vunpack.c.l.b16 %v873
      %v965 = vunpack.c.h.b16 %v873
      %v966 = vunpack.c.l.b16 %v874
      %v967 = vunpack.c.h.b16 %v874
      %v968 = vunpack.c.l.b16 %v875
      %v969 = vunpack.c.h.b16 %v875
      %v970 = vunpack.c.l.b16 %v876
      %v971 = vunpack.c.h.b16 %v876
      %v972 = vunpack.c.l.b16 %v877
      %v973 = vunpack.c.h.b16 %v877
      %v974 = vunpack.c.l.b16 %v878
      %v975 = vunpack.c.h.b16 %v878
      %v976 = vunpack.c.l.b16 %v879
      %v977 = vunpack.c.h.b16 %v879
      %v978 = vunpack.c.l.b16 %v880
      %v979 = vunpack.c.h.b16 %v880
      %v980 = vunpack.c.l.b16 %v881
      %v981 = vunpack.c.h.b16 %v881
      %v982 = vunpack.c.l.b16 %v882
      %v983 = vunpack.c.h.b16 %v882
      %v984 = vunpack.c.l.b16 %v883
      %v985 = vunpack.c.h.b16 %v883
      %v986 = vunpack.c.l.b16 %v884
      %v987 = vunpack.c.h.b16 %v884
      %v988 = vunpack.c.l.b16 %v885
      %v989 = vunpack.c.h.b16 %v885
      %v990 = vunpack.c.l.b16 %v886
      %v991 = vunpack.c.h.b16 %v886
      %v992 = vunpack.c.l.b16 %v887
      %v993 = vunpack.c.h.b16 %v887
      %v994 = vunpack.c.l.b16 %v888
      %v995 = vunpack.c.h.b16 %v888
      %v996 = vpack.c.b16 %v936, %v932
      %v997 = vpack.c.b16 %v937, %v933
      %v998 = vpack.c.b16 %v938, %v934
      %v999 = vpack.c.b16 %v939, %v935
      %v1000 = vpack.c.b16 %v944, %v940
      %v1001 = vpack.c.b16 %v945, %v941
      %v1002 = vpack.c.b16 %v946, %v942
      %v1003 = vpack.c.b16 %v947, %v943
      %v1004 = vpack.c.b16 %v952, %v948
      %v1005 = vpack.c.b16 %v953, %v949
      %v1006 = vpack.c.b16 %v954, %v950
      %v1007 = vpack.c.b16 %v955, %v951
      %v1008 = vpack.c.b16 %v960, %v956
      %v1009 = vpack.c.b16 %v961, %v957
      %v1010 = vpack.c.b16 %v962, %v958
      %v1011 = vpack.c.b16 %v963, %v959
      %v1012 = vpack.c.b16 %v968, %v964
      %v1013 = vpack.c.b16 %v969, %v965
      %v1014 = vpack.c.b16 %v970, %v966
      %v1015 = vpack.c.b16 %v971, %v967
      %v1016 = vpack.c.b16 %v976, %v972
      %v1017 = vpack.c.b16 %v977, %v973
      %v1018 = vpack.c.b16 %v978, %v974
      %v1019 = vpack.c.b16 %v979, %v975
      %v1020 = vpack.c.b16 %v984, %v980
      %v1021 = vpack.c.b16 %v985, %v981
      %v1022 = vpack.c.b16 %v986, %v982
      %v1023 = vpack.c.b16 %v987, %v983
      %v1024 = vpack.c.b16 %v992, %v988
      %v1025 = vpack.c.b16 %v993, %v989
      %v1026 = vpack.c.b16 %v994, %v990
      %v1027 = vpack.c.b16 %v995, %v991
      %1060 = vmatprep.subr.bf16.mxu0 %v997
      %1061 = vmatpush1.bf16.msra.mxu0 %v996
      %1062 = vmatprep.subr.bf16.mxu0 %v1001
      %1063 = vmatpush1.bf16.msra.mxu0 %v1000
      %1064 = vmatprep.subr.bf16.mxu0 %v1005
      %1065 = vmatpush1.bf16.msra.mxu0 %v1004
      %1066 = vmatprep.subr.bf16.mxu0 %v1009
      %1067 = vmatpush1.bf16.msra.mxu0 %v1008
      %1068 = vmatprep.subr.bf16.mxu0 %v1013
      %1069 = vmatpush1.bf16.msra.mxu0 %v1012
      %1070 = vmatprep.subr.bf16.mxu0 %v1017
      %1071 = vmatpush1.bf16.msra.mxu0 %v1016
      %1072 = vmatprep.subr.bf16.mxu0 %v1021
      %1073 = vmatpush1.bf16.msra.mxu0 %v1020
      %1074 = vmatprep.subr.bf16.mxu0 %v1025
      %1075 = vmatpush1.bf16.msra.mxu0 %v1024
      %1076 = vmatprep.subr.bf16.mxu0 0
      %1077 = vmatpush1.bf16.msra.mxu0 0
      %1078 = vmatprep.subr.bf16.mxu0 0
      %1079 = vmatpush1.bf16.msra.mxu0 0
      %1080 = vmatprep.subr.bf16.mxu0 0
      %1081 = vmatpush1.bf16.msra.mxu0 0
      %1082 = vmatprep.subr.bf16.mxu0 0
      %1083 = vmatpush1.bf16.msra.mxu0 0
      %1084 = vmatprep.subr.bf16.mxu0 0
      %1085 = vmatpush1.bf16.msra.mxu0 0
      %1086 = vmatprep.subr.bf16.mxu0 0
      %1087 = vmatpush1.bf16.msra.mxu0 0
      %1088 = vmatprep.subr.bf16.mxu0 0
      %1089 = vmatpush1.bf16.msra.mxu0 0
      %1090 = vmatprep.subr.bf16.mxu0 0
      %1091 = vmatpush1.bf16.msra.mxu0 0
      %1092 = vmatprep.mubr.bf16.mxu0 0
      %1093 = vmatmul.mubr.bf16.gmra.mrb[0].mxu0 %v899
      %v1094 = vpop.f32.mrb[0].mxu0
      %v1095 = vadd.f32 0.0, %v1094
      %v1096 = vpop.f32.mrb[0].mxu0
      %v1097 = vadd.f32 0.0, %v1096
      %v1098 = vpop.f32.mrb[0].mxu0
      %v1099 = vpop.f32.mrb[0].mxu0
      %1100 = vdwg.mxu0
      %1101 = vmatprep.subr.bf16.mxu0 %v999
      %1102 = vmatpush1.bf16.msra.mxu0 %v998
      %1103 = vmatprep.subr.bf16.mxu0 %v1003
      %1104 = vmatpush1.bf16.msra.mxu0 %v1002
      %1105 = vmatprep.subr.bf16.mxu0 %v1007
      %1106 = vmatpush1.bf16.msra.mxu0 %v1006
      %1107 = vmatprep.subr.bf16.mxu0 %v1011
      %1108 = vmatpush1.bf16.msra.mxu0 %v1010
      %1109 = vmatprep.subr.bf16.mxu0 %v1015
      %1110 = vmatpush1.bf16.msra.mxu0 %v1014
      %1111 = vmatprep.subr.bf16.mxu0 %v1019
      %1112 = vmatpush1.bf16.msra.mxu0 %v1018
      %1113 = vmatprep.subr.bf16.mxu0 %v1023
      %1114 = vmatpush1.bf16.msra.mxu0 %v1022
      %1115 = vmatprep.subr.bf16.mxu0 %v1027
      %1116 = vmatpush1.bf16.msra.mxu0 %v1026
      %1117 = vmatprep.subr.bf16.mxu0 0
      %1118 = vmatpush1.bf16.msra.mxu0 0
      %1119 = vmatprep.subr.bf16.mxu0 0
      %1120 = vmatpush1.bf16.msra.mxu0 0
      %1121 = vmatprep.subr.bf16.mxu0 0
      %1122 = vmatpush1.bf16.msra.mxu0 0
      %1123 = vmatprep.subr.bf16.mxu0 0
      %1124 = vmatpush1.bf16.msra.mxu0 0
      %1125 = vmatprep.subr.bf16.mxu0 0
      %1126 = vmatpush1.bf16.msra.mxu0 0
      %1127 = vmatprep.subr.bf16.mxu0 0
      %1128 = vmatpush1.bf16.msra.mxu0 0
      %1129 = vmatprep.subr.bf16.mxu0 0
      %1130 = vmatpush1.bf16.msra.mxu0 0
      %1131 = vmatprep.subr.bf16.mxu0 0
      %1132 = vmatpush1.bf16.msra.mxu0 0
      %1133 = vmatprep.mubr.bf16.mxu0 0
      %1134 = vmatmul.mubr.bf16.gmra.mrb[0].mxu0 %v899
      %v1135 = vpop.f32.mrb[0].mxu0
      %v1136 = vadd.f32 0.0, %v1135
      %v1137 = vpop.f32.mrb[0].mxu0
      %v1138 = vadd.f32 0.0, %v1137
      %v1139 = vpop.f32.mrb[0].mxu0
      %v1140 = vpop.f32.mrb[0].mxu0
      %1141 = vdwg.mxu0
      %v1142 = vadd.f32 %v895, %v1095
      %v1143 = vadd.f32 %v896, %v1097
      %v1144 = vadd.f32 %v897, %v1136
      %v1145 = vadd.f32 %v898, %v1138
      %v1146 = vxor.u32 %v1142, 2147483648
      %v1147 = vxor.u32 %v1143, 2147483648
      %v1148 = vxor.u32 %v1144, 2147483648
      %v1149 = vmul.f32 %v1146, 1.442695
      %v1150 = vpow.pop %v1149
      %v1151 = vmul.f32 %v1147, 1.442695
      %v1152 = vpow.pop %v1151
      %v1153 = vmul.f32 %v1148, 1.442695
      %v1154 = vpow.pop %v1153
      %v1155 = vadd.f32 %v1150, 1.0
      %v1156 = vadd.f32 %v1152, 1.0
      %v1157 = vadd.f32 %v1154, 1.0
      %v1158 = vrcp.pop %v1155
      %v1159 = vmul.f32 1.0, %v1158
      %v1160 = vrcp.pop %v1156
      %v1161 = vmul.f32 1.0, %v1160
      %v1162 = vrcp.pop %v1157
      %v1163 = vmul.f32 1.0, %v1162
      %v1164 = vtanh.pop %v1145
      %v1165 = vmul.f32 %v1161, %v890
      %v1166 = vmul.f32 %v1159, %v1164
      %v1167 = vadd.f32 %v1165, %v1166
      %v1168 = vtanh.pop %v1167
      %v1169 = vmul.f32 %v1163, %v1168
      %s1170 = sadd.s32 %s19, 1
      %s1171 = smul.u32 %s1170, 4
      %s1172 = smul.addr %s1171, 8
      %s1173 = scalar_lea.vmem [#allocation2], %s1172
      %v1174 = vld [vmem:[%s1173] sm:$0xff]
      %v1175 = vld [vmem:[%s1173 + $0x8] sm:$0xff]
      %v1176 = vld [vmem:[%s1173 + $0x10] sm:$0xff]
      %v1177 = vld [vmem:[%s1173 + $0x18] sm:$0xff]
      %v1178 = vpack.c.bf16 %v1169, %v1169
      %1179 = vmatprep.subr.bf16.mxu0 %v997
      %1180 = vmatpush1.bf16.msra.mxu0 %v996
      %1181 = vmatprep.subr.bf16.mxu0 %v1001
      %1182 = vmatpush1.bf16.msra.mxu0 %v1000
      %1183 = vmatprep.subr.bf16.mxu0 %v1005
      %1184 = vmatpush1.bf16.msra.mxu0 %v1004
      %1185 = vmatprep.subr.bf16.mxu0 %v1009
      %1186 = vmatpush1.bf16.msra.mxu0 %v1008
      %1187 = vmatprep.subr.bf16.mxu0 %v1013
      %1188 = vmatpush1.bf16.msra.mxu0 %v1012
      %1189 = vmatprep.subr.bf16.mxu0 %v1017
      %1190 = vmatpush1.bf16.msra.mxu0 %v1016
      %1191 = vmatprep.subr.bf16.mxu0 %v1021
      %1192 = vmatpush1.bf16.msra.mxu0 %v1020
      %1193 = vmatprep.subr.bf16.mxu0 %v1025
      %1194 = vmatpush1.bf16.msra.mxu0 %v1024
      %1195 = vmatprep.subr.bf16.mxu0 0
      %1196 = vmatpush1.bf16.msra.mxu0 0
      %1197 = vmatprep.subr.bf16.mxu0 0
      %1198 = vmatpush1.bf16.msra.mxu0 0
      %1199 = vmatprep.subr.bf16.mxu0 0
      %1200 = vmatpush1.bf16.msra.mxu0 0
      %1201 = vmatprep.subr.bf16.mxu0 0
      %1202 = vmatpush1.bf16.msra.mxu0 0
      %1203 = vmatprep.subr.bf16.mxu0 0
      %1204 = vmatpush1.bf16.msra.mxu0 0
      %1205 = vmatprep.subr.bf16.mxu0 0
      %1206 = vmatpush1.bf16.msra.mxu0 0
      %1207 = vmatprep.subr.bf16.mxu0 0
      %1208 = vmatpush1.bf16.msra.mxu0 0
      %1209 = vmatprep.subr.bf16.mxu0 0
      %1210 = vmatpush1.bf16.msra.mxu0 0
      %1211 = vmatprep.mubr.bf16.mxu0 0
      %1212 = vmatmul.mubr.bf16.gmra.mrb[0].mxu0 %v1178
      %v1213 = vpop.f32.mrb[0].mxu0
      %v1214 = vadd.f32 0.0, %v1213
      %v1215 = vpop.f32.mrb[0].mxu0
      %v1216 = vadd.f32 0.0, %v1215
      %v1217 = vpop.f32.mrb[0].mxu0
      %v1218 = vpop.f32.mrb[0].mxu0
      %1219 = vdwg.mxu0
      %1220 = vmatprep.subr.bf16.mxu0 %v999
      %1221 = vmatpush1.bf16.msra.mxu0 %v998
      %1222 = vmatprep.subr.bf16.mxu0 %v1003
      %1223 = vmatpush1.bf16.msra.mxu0 %v1002
      %1224 = vmatprep.subr.bf16.mxu0 %v1007
      %1225 = vmatpush1.bf16.msra.mxu0 %v1006
      %1226 = vmatprep.subr.bf16.mxu0 %v1011
      %1227 = vmatpush1.bf16.msra.mxu0 %v1010
      %1228 = vmatprep.subr.bf16.mxu0 %v1015
      %1229 = vmatpush1.bf16.msra.mxu0 %v1014
      %1230 = vmatprep.subr.bf16.mxu0 %v1019
      %1231 = vmatpush1.bf16.msra.mxu0 %v1018
      %1232 = vmatprep.subr.bf16.mxu0 %v1023
      %1233 = vmatpush1.bf16.msra.mxu0 %v1022
      %1234 = vmatprep.subr.bf16.mxu0 %v1027
      %1235 = vmatpush1.bf16.msra.mxu0 %v1026
      %1236 = vmatprep.subr.bf16.mxu0 0
      %1237 = vmatpush1.bf16.msra.mxu0 0
      %1238 = vmatprep.subr.bf16.mxu0 0
      %1239 = vmatpush1.bf16.msra.mxu0 0
      %1240 = vmatprep.subr.bf16.mxu0 0
      %1241 = vmatpush1.bf16.msra.mxu0 0
      %1242 = vmatprep.subr.bf16.mxu0 0
      %1243 = vmatpush1.bf16.msra.mxu0 0
      %1244 = vmatprep.subr.bf16.mxu0 0
      %1245 = vmatpush1.bf16.msra.mxu0 0
      %1246 = vmatprep.subr.bf16.mxu0 0
      %1247 = vmatpush1.bf16.msra.mxu0 0
      %1248 = vmatprep.subr.bf16.mxu0 0
      %1249 = vmatpush1.bf16.msra.mxu0 0
      %1250 = vmatprep.subr.bf16.mxu0 0
      %1251 = vmatpush1.bf16.msra.mxu0 0
      %1252 = vmatprep.mubr.bf16.mxu0 0
      %1253 = vmatmul.mubr.bf16.gmra.mrb[0].mxu0 %v1178
      %v1254 = vpop.f32.mrb[0].mxu0
      %v1255 = vadd.f32 0.0, %v1254
      %v1256 = vpop.f32.mrb[0].mxu0
      %v1257 = vadd.f32 0.0, %v1256
      %v1258 = vpop.f32.mrb[0].mxu0
      %v1259 = vpop.f32.mrb[0].mxu0
      %1260 = vdwg.mxu0
      %v1261 = vadd.f32 %v1174, %v1214
      %v1262 = vadd.f32 %v1175, %v1216
      %v1263 = vadd.f32 %v1176, %v1255
      %v1264 = vadd.f32 %v1177, %v1257
      %v1265 = vxor.u32 %v1261, 2147483648
      %v1266 = vxor.u32 %v1262, 2147483648
      %v1267 = vxor.u32 %v1263, 2147483648
      %v1268 = vmul.f32 %v1265, 1.442695
      %v1269 = vpow.pop %v1268
      %v1270 = vmul.f32 %v1266, 1.442695
      %v1271 = vpow.pop %v1270
      %v1272 = vmul.f32 %v1267, 1.442695
      %v1273 = vpow.pop %v1272
      %v1274 = vadd.f32 %v1269, 1.0
      %v1275 = vadd.f32 %v1271, 1.0
      %v1276 = vadd.f32 %v1273, 1.0
      %v1277 = vrcp.pop %v1274
      %v1278 = vmul.f32 1.0, %v1277
      %v1279 = vrcp.pop %v1275
      %v1280 = vmul.f32 1.0, %v1279
      %v1281 = vrcp.pop %v1276
      %v1282 = vmul.f32 1.0, %v1281
      %v1283 = vtanh.pop %v1264
      %v1284 = vmul.f32 %v1280, %v1167
      %v1285 = vmul.f32 %v1278, %v1283
      %v1286 = vadd.f32 %v1284, %v1285
      %v1287 = vtanh.pop %v1286
      %v1288 = vmul.f32 %v1282, %v1287
      %s1289 = ssub.s32 2, %s19
      %s1290 = smul.u32 %s1289, 4
      %s1291 = smul.addr %s1290, 8
      %s1292 = scalar_lea.vmem [#allocation2], %s1291
      %v1293 = vld [vmem:[%s1292] sm:$0xff]
      %v1294 = vld [vmem:[%s1292 + $0x8] sm:$0xff]
      %v1295 = vld [vmem:[%s1292 + $0x10] sm:$0xff]
      %v1296 = vld [vmem:[%s1292 + $0x18] sm:$0xff]
      %v1297 = vpack.c.bf16 %v1288, %v1288
      %1298 = vmatprep.subr.bf16.mxu0 %v997
      %1299 = vmatpush1.bf16.msra.mxu0 %v996
      %1300 = vmatprep.subr.bf16.mxu0 %v1001
      %1301 = vmatpush1.bf16.msra.mxu0 %v1000
      %1302 = vmatprep.subr.bf16.mxu0 %v1005
      %1303 = vmatpush1.bf16.msra.mxu0 %v1004
      %1304 = vmatprep.subr.bf16.mxu0 %v1009
      %1305 = vmatpush1.bf16.msra.mxu0 %v1008
      %1306 = vmatprep.subr.bf16.mxu0 %v1013
      %1307 = vmatpush1.bf16.msra.mxu0 %v1012
      %1308 = vmatprep.subr.bf16.mxu0 %v1017
      %1309 = vmatpush1.bf16.msra.mxu0 %v1016
      %1310 = vmatprep.subr.bf16.mxu0 %v1021
      %1311 = vmatpush1.bf16.msra.mxu0 %v1020
      %1312 = vmatprep.subr.bf16.mxu0 %v1025
      %1313 = vmatpush1.bf16.msra.mxu0 %v1024
      %1314 = vmatprep.subr.bf16.mxu0 0
      %1315 = vmatpush1.bf16.msra.mxu0 0
      %1316 = vmatprep.subr.bf16.mxu0 0
      %1317 = vmatpush1.bf16.msra.mxu0 0
      %1318 = vmatprep.subr.bf16.mxu0 0
      %1319 = vmatpush1.bf16.msra.mxu0 0
      %1320 = vmatprep.subr.bf16.mxu0 0
      %1321 = vmatpush1.bf16.msra.mxu0 0
      %1322 = vmatprep.subr.bf16.mxu0 0
      %1323 = vmatpush1.bf16.msra.mxu0 0
      %1324 = vmatprep.subr.bf16.mxu0 0
      %1325 = vmatpush1.bf16.msra.mxu0 0
      %1326 = vmatprep.subr.bf16.mxu0 0
      %1327 = vmatpush1.bf16.msra.mxu0 0
      %1328 = vmatprep.subr.bf16.mxu0 0
      %1329 = vmatpush1.bf16.msra.mxu0 0
      %1330 = vmatprep.mubr.bf16.mxu0 0
      %1331 = vmatmul.mubr.bf16.gmra.mrb[0].mxu0 %v1297
      %v1332 = vpop.f32.mrb[0].mxu0
      %v1333 = vadd.f32 0.0, %v1332
      %v1334 = vpop.f32.mrb[0].mxu0
      %v1335 = vadd.f32 0.0, %v1334
      %v1336 = vpop.f32.mrb[0].mxu0
      %v1337 = vpop.f32.mrb[0].mxu0
      %1338 = vdwg.mxu0
      %1339 = vmatprep.subr.bf16.mxu0 %v999
      %1340 = vmatpush1.bf16.msra.mxu0 %v998
      %1341 = vmatprep.subr.bf16.mxu0 %v1003
      %1342 = vmatpush1.bf16.msra.mxu0 %v1002
      %1343 = vmatprep.subr.bf16.mxu0 %v1007
      %1344 = vmatpush1.bf16.msra.mxu0 %v1006
      %1345 = vmatprep.subr.bf16.mxu0 %v1011
      %1346 = vmatpush1.bf16.msra.mxu0 %v1010
      %1347 = vmatprep.subr.bf16.mxu0 %v1015
      %1348 = vmatpush1.bf16.msra.mxu0 %v1014
      %1349 = vmatprep.subr.bf16.mxu0 %v1019
      %1350 = vmatpush1.bf16.msra.mxu0 %v1018
      %1351 = vmatprep.subr.bf16.mxu0 %v1023
      %1352 = vmatpush1.bf16.msra.mxu0 %v1022
      %1353 = vmatprep.subr.bf16.mxu0 %v1027
      %1354 = vmatpush1.bf16.msra.mxu0 %v1026
      %1355 = vmatprep.subr.bf16.mxu0 0
      %1356 = vmatpush1.bf16.msra.mxu0 0
      %1357 = vmatprep.subr.bf16.mxu0 0
      %1358 = vmatpush1.bf16.msra.mxu0 0
      %1359 = vmatprep.subr.bf16.mxu0 0
      %1360 = vmatpush1.bf16.msra.mxu0 0
      %1361 = vmatprep.subr.bf16.mxu0 0
      %1362 = vmatpush1.bf16.msra.mxu0 0
      %1363 = vmatprep.subr.bf16.mxu0 0
      %1364 = vmatpush1.bf16.msra.mxu0 0
      %1365 = vmatprep.subr.bf16.mxu0 0
      %1366 = vmatpush1.bf16.msra.mxu0 0
      %1367 = vmatprep.subr.bf16.mxu0 0
      %1368 = vmatpush1.bf16.msra.mxu0 0
      %1369 = vmatprep.subr.bf16.mxu0 0
      %1370 = vmatpush1.bf16.msra.mxu0 0
      %1371 = vmatprep.mubr.bf16.mxu0 0
      %1372 = vmatmul.mubr.bf16.gmra.mrb[0].mxu0 %v1297
      %v1373 = vpop.f32.mrb[0].mxu0
      %v1374 = vadd.f32 0.0, %v1373
      %v1375 = vpop.f32.mrb[0].mxu0
      %v1376 = vadd.f32 0.0, %v1375
      %v1377 = vpop.f32.mrb[0].mxu0
      %v1378 = vpop.f32.mrb[0].mxu0
      %1379 = vdwg.mxu0
      %v1380 = vadd.f32 %v1293, %v1333
      %v1381 = vadd.f32 %v1294, %v1335
      %v1382 = vadd.f32 %v1295, %v1374
      %v1383 = vadd.f32 %v1296, %v1376
      %v1384 = vxor.u32 %v1380, 2147483648
      %v1385 = vxor.u32 %v1381, 2147483648
      %v1386 = vxor.u32 %v1382, 2147483648
      %v1387 = vmul.f32 %v1384, 1.442695
      %v1388 = vpow.pop %v1387
      %v1389 = vmul.f32 %v1385, 1.442695
      %v1390 = vpow.pop %v1389
      %v1391 = vmul.f32 %v1386, 1.442695
      %v1392 = vpow.pop %v1391
      %v1393 = vadd.f32 %v1388, 1.0
      %v1394 = vadd.f32 %v1390, 1.0
      %v1395 = vadd.f32 %v1392, 1.0
      %v1396 = vrcp.pop %v1393
      %v1397 = vmul.f32 1.0, %v1396
      %v1398 = vrcp.pop %v1394
      %v1399 = vmul.f32 1.0, %v1398
      %v1400 = vrcp.pop %v1395
      %v1401 = vmul.f32 1.0, %v1400
      %v1402 = vtanh.pop %v1383
      %v1403 = vmul.f32 %v1399, %v1286
      %v1404 = vmul.f32 %v1397, %v1402
      %v1405 = vadd.f32 %v1403, %v1404
      %v1406 = vtanh.pop %v1405
      %v1407 = vmul.f32 %v1401, %v1406
      %s1408 = smul.u32 %s19, 4294967293
      %s1409 = sadd.s32 %s1408, 3
      %s1410 = smul.u32 %s1409, 4
      %s1411 = smul.addr %s1410, 8
      %s1412 = scalar_lea.vmem [#allocation2], %s1411
      %v1413 = vld [vmem:[%s1412] sm:$0xff]
      %v1414 = vld [vmem:[%s1412 + $0x8] sm:$0xff]
      %v1415 = vld [vmem:[%s1412 + $0x10] sm:$0xff]
      %v1416 = vld [vmem:[%s1412 + $0x18] sm:$0xff]
      %v1417 = vpack.c.bf16 %v1407, %v1407
      %1418 = vmatprep.subr.bf16.mxu0 %v997
      %1419 = vmatpush1.bf16.msra.mxu0 %v996
      %1420 = vmatprep.subr.bf16.mxu0 %v1001
      %1421 = vmatpush1.bf16.msra.mxu0 %v1000
      %1422 = vmatprep.subr.bf16.mxu0 %v1005
      %1423 = vmatpush1.bf16.msra.mxu0 %v1004
      %1424 = vmatprep.subr.bf16.mxu0 %v1009
      %1425 = vmatpush1.bf16.msra.mxu0 %v1008
      %1426 = vmatprep.subr.bf16.mxu0 %v1013
      %1427 = vmatpush1.bf16.msra.mxu0 %v1012
      %1428 = vmatprep.subr.bf16.mxu0 %v1017
      %1429 = vmatpush1.bf16.msra.mxu0 %v1016
      %1430 = vmatprep.subr.bf16.mxu0 %v1021
      %1431 = vmatpush1.bf16.msra.mxu0 %v1020
      %1432 = vmatprep.subr.bf16.mxu0 %v1025
      %1433 = vmatpush1.bf16.msra.mxu0 %v1024
      %1434 = vmatprep.subr.bf16.mxu0 0
      %1435 = vmatpush1.bf16.msra.mxu0 0
      %1436 = vmatprep.subr.bf16.mxu0 0
      %1437 = vmatpush1.bf16.msra.mxu0 0
      %1438 = vmatprep.subr.bf16.mxu0 0
      %1439 = vmatpush1.bf16.msra.mxu0 0
      %1440 = vmatprep.subr.bf16.mxu0 0
      %1441 = vmatpush1.bf16.msra.mxu0 0
      %1442 = vmatprep.subr.bf16.mxu0 0
      %1443 = vmatpush1.bf16.msra.mxu0 0
      %1444 = vmatprep.subr.bf16.mxu0 0
      %1445 = vmatpush1.bf16.msra.mxu0 0
      %1446 = vmatprep.subr.bf16.mxu0 0
      %1447 = vmatpush1.bf16.msra.mxu0 0
      %1448 = vmatprep.subr.bf16.mxu0 0
      %1449 = vmatpush1.bf16.msra.mxu0 0
      %1450 = vmatprep.mubr.bf16.mxu0 0
      %1451 = vmatmul.mubr.bf16.gmra.mrb[0].mxu0 %v1417
      %v1452 = vpop.f32.mrb[0].mxu0
      %v1453 = vadd.f32 0.0, %v1452
      %v1454 = vpop.f32.mrb[0].mxu0
      %v1455 = vadd.f32 0.0, %v1454
      %v1456 = vpop.f32.mrb[0].mxu0
      %v1457 = vpop.f32.mrb[0].mxu0
      %1458 = vdwg.mxu0
      %1459 = vmatprep.subr.bf16.mxu0 %v999
      %1460 = vmatpush1.bf16.msra.mxu0 %v998
      %1461 = vmatprep.subr.bf16.mxu0 %v1003
      %1462 = vmatpush1.bf16.msra.mxu0 %v1002
      %1463 = vmatprep.subr.bf16.mxu0 %v1007
      %1464 = vmatpush1.bf16.msra.mxu0 %v1006
      %1465 = vmatprep.subr.bf16.mxu0 %v1011
      %1466 = vmatpush1.bf16.msra.mxu0 %v1010
      %1467 = vmatprep.subr.bf16.mxu0 %v1015
      %1468 = vmatpush1.bf16.msra.mxu0 %v1014
      %1469 = vmatprep.subr.bf16.mxu0 %v1019
      %1470 = vmatpush1.bf16.msra.mxu0 %v1018
      %1471 = vmatprep.subr.bf16.mxu0 %v1023
      %1472 = vmatpush1.bf16.msra.mxu0 %v1022
      %1473 = vmatprep.subr.bf16.mxu0 %v1027
      %1474 = vmatpush1.bf16.msra.mxu0 %v1026
      %1475 = vmatprep.subr.bf16.mxu0 0
      %1476 = vmatpush1.bf16.msra.mxu0 0
      %1477 = vmatprep.subr.bf16.mxu0 0
      %1478 = vmatpush1.bf16.msra.mxu0 0
      %1479 = vmatprep.subr.bf16.mxu0 0
      %1480 = vmatpush1.bf16.msra.mxu0 0
      %1481 = vmatprep.subr.bf16.mxu0 0
      %1482 = vmatpush1.bf16.msra.mxu0 0
      %1483 = vmatprep.subr.bf16.mxu0 0
      %1484 = vmatpush1.bf16.msra.mxu0 0
      %1485 = vmatprep.subr.bf16.mxu0 0
      %1486 = vmatpush1.bf16.msra.mxu0 0
      %1487 = vmatprep.subr.bf16.mxu0 0
      %1488 = vmatpush1.bf16.msra.mxu0 0
      %1489 = vmatprep.subr.bf16.mxu0 0
      %1490 = vmatpush1.bf16.msra.mxu0 0
      %1491 = vmatprep.mubr.bf16.mxu0 0
      %1492 = vmatmul.mubr.bf16.gmra.mrb[0].mxu0 %v1417
      %v1493 = vpop.f32.mrb[0].mxu0
      %v1494 = vadd.f32 0.0, %v1493
      %v1495 = vpop.f32.mrb[0].mxu0
      %v1496 = vadd.f32 0.0, %v1495
      %v1497 = vpop.f32.mrb[0].mxu0
      %v1498 = vpop.f32.mrb[0].mxu0
      %1499 = vdwg.mxu0
      %v1500 = vadd.f32 %v1413, %v1453
      %v1501 = vadd.f32 %v1414, %v1455
      %v1502 = vadd.f32 %v1415, %v1494
      %v1503 = vadd.f32 %v1416, %v1496
      %v1504 = vxor.u32 %v1500, 2147483648
      %v1505 = vxor.u32 %v1501, 2147483648
      %v1506 = vxor.u32 %v1502, 2147483648
      %v1507 = vmul.f32 %v1504, 1.442695
      %v1508 = vpow.pop %v1507
      %v1509 = vmul.f32 %v1505, 1.442695
      %v1510 = vpow.pop %v1509
      %v1511 = vmul.f32 %v1506, 1.442695
      %v1512 = vpow.pop %v1511
      %v1513 = vadd.f32 %v1508, 1.0
      %v1514 = vadd.f32 %v1510, 1.0
      %v1515 = vadd.f32 %v1512, 1.0
      %v1516 = vrcp.pop %v1513
      %v1517 = vmul.f32 1.0, %v1516
      %v1518 = vrcp.pop %v1514
      %v1519 = vmul.f32 1.0, %v1518
      %v1520 = vrcp.pop %v1515
      %v1521 = vmul.f32 1.0, %v1520
      %v1522 = vtanh.pop %v1503
      %v1523 = vmul.f32 %v1519, %v1405
      %v1524 = vmul.f32 %v1517, %v1522
      %v1525 = vadd.f32 %v1523, %v1524
      %v1526 = vtanh.pop %v1525
      %v1527 = vmul.f32 %v1521, %v1526
      %1528 = vst [vmem:[#allocation3] sm:$0xff] %v1527
      %1529 = vst [vmem:[#allocation4] sm:$0xff] %v1525
      %p1530 = scmp.eq.s32.totalorder %s20, 1
      // Predicated region
      $region41: #{lstm_classifier_forward.3} parent=35 // pred_check
        %p1531 = pneg %p1530
      $region42: #{lstm_classifier_forward.3} parent=35 // pred_check_branch
        %1533 = sbr.rel (%p1531) target = $region44
      $region43: #{lstm_classifier_forward.3} parent=35 // pred_region
        %1534 = vst [vmem:[%s297] sm:$0xff] %v1527
      $region44: #{lstm_classifier_forward.3} parent=35 // pred_fallthru
        _
      %p1535 = scmp.lt.s32.totalorder %s19, 1
      %s1536 = scalar_select %p1535, %s19, 1
      %s1537 = smul.addr %s1536, 8
      %s1538 = scalar_lea.vmem %s4, %s1537
      // Predicated region
      $region45: #{lstm_classifier_forward.3} parent=35 // pred_check
        %p1539 = pneg %p157
      $region46: #{lstm_classifier_forward.3} parent=35 // pred_check_branch
        %1541 = sbr.rel (%p1539) target = $region48
      $region47: #{lstm_classifier_forward.3} parent=35 // pred_region
        _
      $region48: #{lstm_classifier_forward.3} parent=35 // pred_fallthru
        _
    $region36: #{lstm_classifier_forward.3} parent=5 // pred_fallthru
      _
    %p1542 = scmp.le.s32.totalorder 2, %s10
    // Predicated region
    $region49: #{lstm_classifier_forward.3} parent=5 // pred_check
      %p1543 = pneg %p1542
    $region50: #{lstm_classifier_forward.3} parent=5 // pred_check_branch
      %1545 = sbr.rel (%p1543) target = $region52
    $region51: #{lstm_classifier_forward.3} parent=5 // pred_region
      %s1546 = ssub.s32 %s10, 2
      // Predicated region
      $region53: #{lstm_classifier_forward.3} parent=51 // pred_check
        %p1547 = pneg %p163
      $region54: #{lstm_classifier_forward.3} parent=51 // pred_check_branch
        %1549 = sbr.rel (%p1547) target = $region56
      $region55: #{lstm_classifier_forward.3} parent=51 // pred_region
        %p1550 = scmp.lt.s32.totalorder %s21, 1
        %s1551 = scalar_select %p1550, %s21, 1
        %s1552 = smul.addr %s1551, 8
        %s1553 = scalar_lea.vmem %s4, %s1552
      $region56: #{lstm_classifier_forward.3} parent=51 // pred_fallthru
        _
    $region52: #{lstm_classifier_forward.3} parent=5 // pred_fallthru
      _
  $region6: #{lstm_classifier_forward.3} parent=0 // loop_footer
    %s14 = sadd.s32 1, %s10
  $region7: #{lstm_classifier_forward.3} parent=0 // loop_footer_branch
    %9 = sbr.rel target = $region3
  $region8: #{lstm_classifier_forward.3} parent=0 // loop_exit
    _

// kernel: lstm_classifier_forward.2
$region0: #{lstm_classifier_forward.2}
  #allocation0 [shape = 'u32[]', space=smem, size = 0x4, offset = 0x4, fixed_abs, tag = 'smem constant byte address 0x4 - core index']
  #allocation1 [shape = 'u32[144,128]{1,0:T(1,128)}', space=vmem, size = 0x12000, scoped, tag = 'internal scratch']
  #allocation2 [shape = 'f32[4,8,512]{2,1,0:T(8,128)}', space=vmem, size = 0x10000, scoped, tag = 'scratch operand']
  #allocation3 [shape = 'f32[8,128]{1,0:T(8,128)}', space=vmem, size = 0x1000, scoped, tag = 'scratch operand']
  #allocation4 [shape = 'f32[8,128]{1,0:T(8,128)}', space=vmem, size = 0x1000, scoped, tag = 'scratch operand']
  %s0 = inlined_call_operand.vmem [shape: bf16[8,8,128], index: 0, kind: input, shape index: {}]
  %s1 = inlined_call_operand.hbm [shape: bf16[2,128,512], index: 1, kind: input, shape index: {}]
  %s2 = inlined_call_operand.hbm [shape: bf16[2,128,512], index: 2, kind: input, shape index: {}]
  %s3 = inlined_call_operand.hbm [shape: f32[2,1,512], index: 3, kind: input, shape index: {}]
  %s4 = inlined_call_operand.vmem [shape: bf16[8,8,256], index: 4, kind: output, shape index: {}]
  %s5 = sld [smem:[#allocation0]]
  $region102: #{lstm_classifier_forward.2} parent=0
    _
  %s7 = ssub.s32 1, %s5
  %s8 = scalar_select 0, %s7, %s5
  $region1: #{lstm_classifier_forward.2} parent=0
    #allocation5 [shape = 'u8[262144]{0}', space=vmem, size = 0x40000, scoped, tag = 'input window, operand 1']
    #allocation6 [shape = 's32[2]{0}', space=sflag, size = 0x8, scoped, tag = 'scoped memory for lstm_classifier_forward.2']
    #allocation7 [shape = 'u8[262144]{0}', space=vmem, size = 0x40000, scoped, tag = 'input window, operand 2']
    #allocation8 [shape = 's32[2]{0}', space=sflag, size = 0x8, scoped, tag = 'scoped memory for lstm_classifier_forward.2']
    #allocation9 [shape = 'u8[4096]{0}', space=vmem, size = 0x1000, scoped, tag = 'input window, operand 3']
    #allocation10 [shape = 'u8[16384]{0}', space=vmem, size = 0x4000, scoped, tag = 'output window, operand 0']
    %9 = vsyncpa [#allocation6], 0
    %s10 = scalar_lea.sflag [#allocation6], 1
    %11 = vsyncpa %s10, 0
    %12 = vsyncpa [#allocation8], 0
    %s13 = scalar_lea.sflag [#allocation8], 1
    %14 = vsyncpa %s13, 0
    loop: start=0, step=1, limit=6
    $region2: #{lstm_classifier_forward.2} parent=1 // loop_pre_header
      _
    $region3: #{lstm_classifier_forward.2} parent=1 // loop_header
      %s16 = sphi 0, %s20
      %p17 = scmp.ge.s32.totalorder %s16, 6
      %s23 = sphi 0, %s35
      %s24 = sphi 0, %s31
      %s25 = sphi 0, %s23
      %s26 = sphi 0, %s24
      %s27 = sphi 0, %s25
      %s28 = sphi 0, %s26
      %s46 = sphi 0, %s48
      %s49 = sphi 0, %s46
      %s50 = sphi 0, %s49
      %s66 = sphi 0, %s50
      %s72 = sphi 0, %s74
      %s75 = sphi 0, %s72
      %s76 = sphi 0, %s75
      %s92 = sphi 0, %s76
      %s98 = sphi 0, %s100
      %s101 = sphi 0, %s98
      %s102 = sphi 0, %s101
      %s118 = sphi 0, %s102
      %s124 = sphi 0, %s126
      %s127 = sphi 0, %s124
      %s128 = sphi 0, %s127
      %s144 = sphi 0, %s128
      %s160 = sphi 0, %s162
      %s163 = sphi 0, %s160
      %s164 = sphi 0, %s163
      %s180 = sphi 0, %s164
    $region4: #{lstm_classifier_forward.2} parent=1 // loop_header_branch
      %19 = sbr.rel (%p17) target = $region8
    $region5: #{lstm_classifier_forward.2} parent=1 // loop_body
      %s21 = ssub.s32 %s16, 1
      %s22 = ssub.s32 %s16, 2
      %s29 = sadd.s32 1, %s24
      %p30 = scmp.ge.s32.totalorder %s29, 2
      %s31 = scalar_select %p30, 0, %s29
      %s32 = sadd.s32 1, %s23
      %s33 = scalar_select %p30, %s32, %s23
      %p34 = scmp.ge.s32.totalorder %s33, 2
      %s35 = scalar_select %p34, 0, %s33
      %s36 = smul.u32 %s24, 2
      %s37 = ssub.s32 1, %s36
      %s38 = smul.u32 %s23, %s37
      %s39 = sadd.s32 %s24, %s38
      %s40 = smul.u32 %s31, 2
      %s41 = ssub.s32 1, %s40
      %s42 = smul.u32 %s35, %s41
      %s43 = sadd.s32 %s31, %s42
      %s44 = ssub.s32 %s39, %s43
      %p45 = scmp.eq.s32.totalorder %s44, 0
      %s47 = sadd.s32 %s46, 1
      %s48 = scalar_select %p45, %s46, %s47
      %p51 = pneg %p45
      %p52 = scmp.eq.s32.totalorder %s16, 3
      %p53 = por %p51, %p52
      %p54 = scmp.ne.s32.totalorder %s46, %s49
      %p55 = scmp.eq.s32.totalorder %s16, 0
      %p56 = por %p54, %p55
      %p57 = scmp.ne.s32.totalorder %s46, %s49
      %p58 = scmp.eq.s32.totalorder %s21, 3
      %p59 = por %p57, %p58
      %p60 = scmp.ne.s32.totalorder %s49, %s50
      %p61 = scmp.eq.s32.totalorder %s21, 0
      %p62 = por %p60, %p61
      %p63 = scmp.ne.s32.totalorder %s49, %s50
      %p64 = scmp.eq.s32.totalorder %s22, 3
      %p65 = por %p63, %p64
      %p67 = scmp.ne.s32.totalorder %s50, %s66
      %p68 = scmp.eq.s32.totalorder %s22, 0
      %p69 = por %p67, %p68
      %s70 = ssub.s32 %s23, %s35
      %p71 = scmp.eq.s32.totalorder %s70, 0
      %s73 = sadd.s32 %s72, 1
      %s74 = scalar_select %p71, %s72, %s73
      %p77 = pneg %p71
      %p78 = scmp.eq.s32.totalorder %s16, 3
      %p79 = por %p77, %p78
      %p80 = scmp.ne.s32.totalorder %s72, %s75
      %p81 = scmp.eq.s32.totalorder %s16, 0
      %p82 = por %p80, %p81
      %p83 = scmp.ne.s32.totalorder %s72, %s75
      %p84 = scmp.eq.s32.totalorder %s21, 3
      %p85 = por %p83, %p84
      %p86 = scmp.ne.s32.totalorder %s75, %s76
      %p87 = scmp.eq.s32.totalorder %s21, 0
      %p88 = por %p86, %p87
      %p89 = scmp.ne.s32.totalorder %s75, %s76
      %p90 = scmp.eq.s32.totalorder %s22, 3
      %p91 = por %p89, %p90
      %p93 = scmp.ne.s32.totalorder %s76, %s92
      %p94 = scmp.eq.s32.totalorder %s22, 0
      %p95 = por %p93, %p94
      %s96 = ssub.s32 %s23, %s35
      %p97 = scmp.eq.s32.totalorder %s96, 0
      %s99 = sadd.s32 %s98, 1
      %s100 = scalar_select %p97, %s98, %s99
      %p103 = pneg %p97
      %p104 = scmp.eq.s32.totalorder %s16, 3
      %p105 = por %p103, %p104
      %p106 = scmp.ne.s32.totalorder %s98, %s101
      %p107 = scmp.eq.s32.totalorder %s16, 0
      %p108 = por %p106, %p107
      %p109 = scmp.ne.s32.totalorder %s98, %s101
      %p110 = scmp.eq.s32.totalorder %s21, 3
      %p111 = por %p109, %p110
      %p112 = scmp.ne.s32.totalorder %s101, %s102
      %p113 = scmp.eq.s32.totalorder %s21, 0
      %p114 = por %p112, %p113
      %p115 = scmp.ne.s32.totalorder %s101, %s102
      %p116 = scmp.eq.s32.totalorder %s22, 3
      %p117 = por %p115, %p116
      %p119 = scmp.ne.s32.totalorder %s102, %s118
      %p120 = scmp.eq.s32.totalorder %s22, 0
      %p121 = por %p119, %p120
      %s122 = ssub.s32 %s23, %s35
      %p123 = scmp.eq.s32.totalorder %s122, 0
      %s125 = sadd.s32 %s124, 1
      %s126 = scalar_select %p123, %s124, %s125
      %p129 = pneg %p123
      %p130 = scmp.eq.s32.totalorder %s16, 3
      %p131 = por %p129, %p130
      %p132 = scmp.ne.s32.totalorder %s124, %s127
      %p133 = scmp.eq.s32.totalorder %s16, 0
      %p134 = por %p132, %p133
      %p135 = scmp.ne.s32.totalorder %s124, %s127
      %p136 = scmp.eq.s32.totalorder %s21, 3
      %p137 = por %p135, %p136
      %p138 = scmp.ne.s32.totalorder %s127, %s128
      %p139 = scmp.eq.s32.totalorder %s21, 0
      %p140 = por %p138, %p139
      %p141 = scmp.ne.s32.totalorder %s127, %s128
      %p142 = scmp.eq.s32.totalorder %s22, 3
      %p143 = por %p141, %p142
      %p145 = scmp.ne.s32.totalorder %s128, %s144
      %p146 = scmp.eq.s32.totalorder %s22, 0
      %p147 = por %p145, %p146
      %s148 = smul.u32 %s24, 2
      %s149 = ssub.s32 1, %s148
      %s150 = smul.u32 %s23, %s149
      %s151 = sadd.s32 %s24, %s150
      %s152 = smul.u32 %s31, 2
      %s153 = ssub.s32 1, %s152
      %s154 = smul.u32 %s35, %s153
      %s155 = sadd.s32 %s31, %s154
      %s156 = ssub.s32 %s151, %s155
      %s157 = ssub.s32 %s23, %s35
      %s158 = sor.u32 %s156, %s157
      %p159 = scmp.eq.s32.totalorder %s158, 0
      %s161 = sadd.s32 %s160, 1
      %s162 = scalar_select %p159, %s160, %s161
      %p165 = pneg %p159
      %p166 = scmp.eq.s32.totalorder %s16, 3
      %p167 = por %p165, %p166
      %p168 = scmp.ne.s32.totalorder %s160, %s163
      %p169 = scmp.eq.s32.totalorder %s16, 0
      %p170 = por %p168, %p169
      %p171 = scmp.ne.s32.totalorder %s160, %s163
      %p172 = scmp.eq.s32.totalorder %s21, 3
      %p173 = por %p171, %p172
      %p174 = scmp.ne.s32.totalorder %s163, %s164
      %p175 = scmp.eq.s32.totalorder %s21, 0
      %p176 = por %p174, %p175
      %p177 = scmp.ne.s32.totalorder %s163, %s164
      %p178 = scmp.eq.s32.totalorder %s22, 3
      %p179 = por %p177, %p178
      %p181 = scmp.ne.s32.totalorder %s164, %s180
      %p182 = scmp.eq.s32.totalorder %s22, 0
      %p183 = por %p181, %p182
      %p184 = scmp.le.s32.totalorder 1, %s16
      %p185 = scmp.lt.s32.totalorder %s16, 5
      %p186 = pnand %p184, %p185
      %p187 = pneg %p186
      // Predicated region
      $region9: #{lstm_classifier_forward.2} parent=5 // pred_check
        _
      $region10: #{lstm_classifier_forward.2} parent=5 // pred_check_branch
        %189 = sbr.rel (%p186) target = $region12
      $region11: #{lstm_classifier_forward.2} parent=5 // pred_region
        %s190 = ssub.s32 %s16, 1
      $region12: #{lstm_classifier_forward.2} parent=5 // pred_fallthru
        _
      %p191 = scmp.lt.s32.totalorder %s16, 4
      // Predicated region
      $region13: #{lstm_classifier_forward.2} parent=5 // pred_check
        %p192 = pneg %p191
      $region14: #{lstm_classifier_forward.2} parent=5 // pred_check_branch
        %194 = sbr.rel (%p192) target = $region16
      $region15: #{lstm_classifier_forward.2} parent=5 // pred_region
        // Predicated region
        $region17: #{lstm_classifier_forward.2} parent=15 // pred_check
          %p195 = pneg %p56
        $region18: #{lstm_classifier_forward.2} parent=15 // pred_check_branch
          %197 = sbr.rel (%p195) target = $region20
        $region19: #{lstm_classifier_forward.2} parent=15 // pred_region
          %s198 = smul.u32 %s24, 2
          %s199 = ssub.s32 1, %s198
          %s200 = smul.u32 %s23, %s199
          %s201 = sadd.s32 %s24, %s200
          %s202 = smul.u32 4, %s201
          %p203 = scmp.lt.s32.totalorder %s202, 7
          %s204 = scalar_select %p203, %s202, 7
          %s205 = smul.addr %s204, 4
          %s206 = scalar_lea.vmem %s0, %s205
          %s207 = smul.u32 %s24, 2
          %s208 = ssub.s32 1, %s207
          %s209 = smul.u32 %s23, %s208
          %s210 = sadd.s32 %s24, %s209
          %s211 = smul.u32 4, %s210
        $region20: #{lstm_classifier_forward.2} parent=15 // pred_fallthru
          _
        // Predicated region
        $region21: #{lstm_classifier_forward.2} parent=15 // pred_check
          %p212 = pneg %p82
        $region22: #{lstm_classifier_forward.2} parent=15 // pred_check_branch
          %214 = sbr.rel (%p212) target = $region24
        $region23: #{lstm_classifier_forward.2} parent=15 // pred_region
          %s215 = sand.u32 %s72, 1
          %s216 = scalar_lea.sflag [#allocation6], %s215
          %s217 = sand.u32 %s72, 1
          %s218 = smul.addr %s217, 256
          %s219 = scalar_lea.vmem [#allocation5], %s218
          %s221 = ssub.s32 4096, 4096
          %222 = vsyncadd %s216, %s221
          %s223 = smul.addr %s23, 64
          %s224 = smul.addr %s223, 64
          %s225 = scalar_lea.hbm %s1, %s224
          %s226 = sshll.u32 %s219, 4
          %s227 = int_to_ptr.vmem [resolvable:$true] %s226
          %232 = dma.hbm_to_vmem [thread:$0]  %s225, 4096, %s227, %s216, 256, 256, 16
        $region24: #{lstm_classifier_forward.2} parent=15 // pred_fallthru
          _
        // Predicated region
        $region25: #{lstm_classifier_forward.2} parent=15 // pred_check
          %p233 = pneg %p108
        $region26: #{lstm_classifier_forward.2} parent=15 // pred_check_branch
          %235 = sbr.rel (%p233) target = $region28
        $region27: #{lstm_classifier_forward.2} parent=15 // pred_region
          %s236 = sand.u32 %s16, 1
          %s237 = scalar_lea.sflag [#allocation8], %s236
          %s238 = sand.u32 %s98, 1
          %s239 = smul.addr %s238, 256
          %s240 = scalar_lea.vmem [#allocation7], %s239
          %s242 = ssub.s32 4096, 4096
          %243 = vsyncadd %s237, %s242
          %s244 = smul.addr %s23, 64
          %s245 = smul.addr %s244, 64
          %s246 = scalar_lea.hbm %s2, %s245
          %s247 = sshll.u32 %s240, 4
          %s248 = int_to_ptr.vmem [resolvable:$true] %s247
          %253 = dma.hbm_to_vmem [thread:$0]  %s246, 4096, %s248, %s237, 256, 256, 16
        $region28: #{lstm_classifier_forward.2} parent=15 // pred_fallthru
          _
        // Predicated region
        $region29: #{lstm_classifier_forward.2} parent=15 // pred_check
          %p254 = pneg %p134
        $region30: #{lstm_classifier_forward.2} parent=15 // pred_check_branch
          %256 = sbr.rel (%p254) target = $region32
        $region31: #{lstm_classifier_forward.2} parent=15 // pred_region
          %s257 = sand.u32 %s16, 1
          %s258 = scalar_lea.sflag [#allocation8], %s257
          %s259 = sand.u32 %s124, 1
          %s260 = smul.addr %s259, 4
          %s261 = scalar_lea.vmem [#allocation9], %s260
          %s263 = ssub.s32 64, 64
          %264 = vsyncadd %s258, %s263
          %s265 = smul.addr %s23, 4
          %s266 = smul.addr %s265, 16
          %s267 = scalar_lea.hbm %s3, %s266
          %s269 = sshll.u32 %s261, 4
          %s270 = int_to_ptr.vmem [resolvable:$true] %s269
          %272 = dma.hbm_to_vmem [thread:$0]  %s267, 64, %s270, %s258
        $region32: #{lstm_classifier_forward.2} parent=15 // pred_fallthru
          _
      $region16: #{lstm_classifier_forward.2} parent=5 // pred_fallthru
        _
      %p273 = scmp.le.s32.totalorder 1, %s16
      %p274 = scmp.lt.s32.totalorder %s16, 5
      %p275 = pnand %p273, %p274
      %p276 = pneg %p275
      // Predicated region
      $region33: #{lstm_classifier_forward.2} parent=5 // pred_check
        _
      $region34: #{lstm_classifier_forward.2} parent=5 // pred_check_branch
        %278 = sbr.rel (%p275) target = $region36
      $region35: #{lstm_classifier_forward.2} parent=5 // pred_region
        %s279 = ssub.s32 %s16, 1
        %s280 = sand.u32 %s75, 1
        %s281 = scalar_lea.sflag [#allocation6], %s280
        %s282 = sand.u32 %s75, 1
        %s283 = smul.addr %s282, 256
        %s284 = scalar_lea.vmem [#allocation5], %s283
        // Predicated region
        $region37: #{lstm_classifier_forward.2} parent=35 // pred_check
          %p285 = pneg %p88
        $region38: #{lstm_classifier_forward.2} parent=35 // pred_check_branch
          %287 = sbr.rel (%p285) target = $region40
        $region39: #{lstm_classifier_forward.2} parent=35 // pred_region
          %288 = dma.done %s281, 4096
        $region40: #{lstm_classifier_forward.2} parent=35 // pred_fallthru
          _
        %s289 = sand.u32 %s21, 1
        %s290 = scalar_lea.sflag [#allocation8], %s289
        %s291 = sand.u32 %s101, 1
        %s292 = smul.addr %s291, 256
        %s293 = scalar_lea.vmem [#allocation7], %s292
        // Predicated region
        $region41: #{lstm_classifier_forward.2} parent=35 // pred_check
          %p294 = pneg %p114
        $region42: #{lstm_classifier_forward.2} parent=35 // pred_check_branch
          %296 = sbr.rel (%p294) target = $region44
        $region43: #{lstm_classifier_forward.2} parent=35 // pred_region
          %297 = dma.done %s290, 4096
        $region44: #{lstm_classifier_forward.2} parent=35 // pred_fallthru
          _
        %s298 = sand.u32 %s21, 1
        %s299 = scalar_lea.sflag [#allocation8], %s298
        %s300 = sand.u32 %s127, 1
        %s301 = smul.addr %s300, 4
        %s302 = scalar_lea.vmem [#allocation9], %s301
        // Predicated region
        $region45: #{lstm_classifier_forward.2} parent=35 // pred_check
          %p303 = pneg %p140
        $region46: #{lstm_classifier_forward.2} parent=35 // pred_check_branch
          %305 = sbr.rel (%p303) target = $region48
        $region47: #{lstm_classifier_forward.2} parent=35 // pred_region
          %306 = dma.done %s299, 64
        $region48: #{lstm_classifier_forward.2} parent=35 // pred_fallthru
          _
        %s307 = smul.u32 %s26, 2
        %s308 = ssub.s32 1, %s307
        %s309 = smul.u32 %s25, %s308
        %s310 = sadd.s32 %s26, %s309
        %s311 = smul.u32 4, %s310
        %p312 = scmp.lt.s32.totalorder %s311, 7
        %s313 = scalar_select %p312, %s311, 7
        %s314 = smul.addr %s313, 4
        %s315 = scalar_lea.vmem %s0, %s314
        %p316 = pneg %p62
        %p317 = pneg %p59
        %s318 = sand.u32 %s75, 1
        %s319 = scalar_lea.sflag [#allocation6], %s318
        %s320 = sand.u32 %s75, 1
        %s321 = smul.addr %s320, 256
        %s322 = scalar_lea.vmem [#allocation5], %s321
        %p323 = pneg %p88
        %p324 = pneg %p85
        %s325 = sand.u32 %s21, 1
        %s326 = scalar_lea.sflag [#allocation8], %s325
        %s327 = sand.u32 %s101, 1
        %s328 = smul.addr %s327, 256
        %s329 = scalar_lea.vmem [#allocation7], %s328
        %p330 = pneg %p114
        %p331 = pneg %p111
        %s332 = sand.u32 %s21, 1
        %s333 = scalar_lea.sflag [#allocation8], %s332
        %s334 = sand.u32 %s127, 1
        %s335 = smul.addr %s334, 4
        %s336 = scalar_lea.vmem [#allocation9], %s335
        %p337 = pneg %p140
        %p338 = pneg %p137
        %p339 = pneg %p176
        %p340 = pneg %p173
        %s341 = sand.u32 %s163, 1
        %s342 = sand.u32 %s163, 1
        %s343 = smul.addr %s342, 16
        %s344 = scalar_lea.vmem [#allocation10], %s343
        %s345 = smul.u32 %s26, 2
        %s346 = ssub.s32 1, %s345
        %s347 = smul.u32 %s25, %s346
        %s348 = sadd.s32 %s26, %s347
        %s349 = smul.u32 4, %s348
        %p350 = scmp.lt.s32.totalorder %s349, 7
        %s351 = scalar_select %p350, %s349, 7
        %s352 = smul.addr %s351, 4
        %s353 = scalar_lea.vmem %s0, %s352
        %s354 = smul.u32 %s26, 2
        %s355 = ssub.s32 1, %s354
        %s356 = smul.u32 %s25, %s355
        %s357 = sadd.s32 %s26, %s356
        %s358 = smul.u32 4, %s357
        %s359 = smul.u32 %s26, 2
        %s360 = ssub.s32 1, %s359
        %s361 = smul.u32 %s25, %s360
        %s362 = sadd.s32 %s26, %s361
        %s363 = smul.u32 4, %s362
        %p365 = scmp.eq.s32.totalorder %s26, 0
        // Predicated region
        $region49: #{lstm_classifier_forward.2} parent=35 // pred_check
          %p366 = pneg %p365
        $region50: #{lstm_classifier_forward.2} parent=35 // pred_check_branch
          %368 = sbr.rel (%p366) target = $region52
        $region51: #{lstm_classifier_forward.2} parent=35 // pred_region
          %369 = vst [vmem:[#allocation3] sm:$0xff] 0.0
          %370 = vst [vmem:[#allocation4] sm:$0xff] 0.0
        $region52: #{lstm_classifier_forward.2} parent=35 // pred_fallthru
          _
        %v371 = vld [vmem:[%s353] sm:$0xf]
        %v372 = vld [vmem:[%s353 + $0x4] sm:$0xf]
        %v373 = vld [vmem:[%s353 + $0x8] sm:$0xf]
        %v374 = vld [vmem:[%s353 + $0xc] sm:$0xf]
        %v375 = vld [vmem:[%s284] sm:$0xff]
        %v376 = vld [vmem:[%s284 + $0x8] sm:$0xff]
        %v377 = vld [vmem:[%s284 + $0x10] sm:$0xff]
        %v378 = vld [vmem:[%s284 + $0x18] sm:$0xff]
        %v379 = vld [vmem:[%s284 + $0x20] sm:$0xff]
        %v380 = vld [vmem:[%s284 + $0x28] sm:$0xff]
        %v381 = vld [vmem:[%s284 + $0x30] sm:$0xff]
        %v382 = vld [vmem:[%s284 + $0x38] sm:$0xff]
        %v383 = vld [vmem:[%s284 + $0x40] sm:$0xff]
        %v384 = vld [vmem:[%s284 + $0x48] sm:$0xff]
        %v385 = vld [vmem:[%s284 + $0x50] sm:$0xff]
        %v386 = vld [vmem:[%s284 + $0x58] sm:$0xff]
        %v387 = vld [vmem:[%s284 + $0x60] sm:$0xff]
        %v388 = vld [vmem:[%s284 + $0x68] sm:$0xff]
        %v389 = vld [vmem:[%s284 + $0x70] sm:$0xff]
        %v390 = vld [vmem:[%s284 + $0x78] sm:$0xff]
        %v391 = vld [vmem:[%s284 + $0x80] sm:$0xff]
        %v392 = vld [vmem:[%s284 + $0x88] sm:$0xff]
        %v393 = vld [vmem:[%s284 + $0x90] sm:$0xff]
        %v394 = vld [vmem:[%s284 + $0x98] sm:$0xff]
        %v395 = vld [vmem:[%s284 + $0xa0] sm:$0xff]
        %v396 = vld [vmem:[%s284 + $0xa8] sm:$0xff]
        %v397 = vld [vmem:[%s284 + $0xb0] sm:$0xff]
        %v398 = vld [vmem:[%s284 + $0xb8] sm:$0xff]
        %v399 = vld [vmem:[%s284 + $0xc0] sm:$0xff]
        %v400 = vld [vmem:[%s284 + $0xc8] sm:$0xff]
        %v401 = vld [vmem:[%s284 + $0xd0] sm:$0xff]
        %v402 = vld [vmem:[%s284 + $0xd8] sm:$0xff]
        %v403 = vld [vmem:[%s284 + $0xe0] sm:$0xff]
        %v404 = vld [vmem:[%s284 + $0xe8] sm:$0xff]
        %v405 = vld [vmem:[%s284 + $0xf0] sm:$0xff]
        %v406 = vld [vmem:[%s284 + $0xf8] sm:$0xff]
        %v407 = vld [vmem:[%s302] sm:$0xf]
        %v409 = vlaneseq
        %v410 = vshrl.u32 %v409, 7
        %v411 = vsub.s32 0, %v410
        %v412 = vrot.slane %v407, %v411
        %v413 = vlaneseq
        %v414 = vshrl.u32 %v413, 7
        %v415 = vsub.s32 1, %v414
        %v416 = vrot.slane %v407, %v415
        %v417 = vlaneseq
        %v418 = vshrl.u32 %v417, 7
        %v419 = vsub.s32 2, %v418
        %v420 = vrot.slane %v407, %v419
        %v421 = vlaneseq
        %v422 = vshrl.u32 %v421, 7
        %v423 = vsub.s32 3, %v422
        %v424 = vrot.slane %v407, %v423
        %v433 = vunpack.c.l.b16 %v371
        %v434 = vunpack.c.l.b16 %v372
        %v435 = vunpack.c.l.b16 %v373
        %v436 = vunpack.c.l.b16 %v374
        %v437 = vpack.c.b16 %v434, %v433
        %v438 = vpack.c.b16 %v436, %v435
        %v473 = vunpack.c.l.b16 %v375
        %v474 = vunpack.c.h.b16 %v375
        %v475 = vunpack.c.l.b16 %v376
        %v476 = vunpack.c.h.b16 %v376
        %v477 = vunpack.c.l.b16 %v377
        %v478 = vunpack.c.h.b16 %v377
        %v479 = vunpack.c.l.b16 %v378
        %v480 = vunpack.c.h.b16 %v378
        %v481 = vunpack.c.l.b16 %v379
        %v482 = vunpack.c.h.b16 %v379
        %v483 = vunpack.c.l.b16 %v380
        %v484 = vunpack.c.h.b16 %v380
        %v485 = vunpack.c.l.b16 %v381
        %v486 = vunpack.c.h.b16 %v381
        %v487 = vunpack.c.l.b16 %v382
        %v488 = vunpack.c.h.b16 %v382
        %v489 = vunpack.c.l.b16 %v383
        %v490 = vunpack.c.h.b16 %v383
        %v491 = vunpack.c.l.b16 %v384
        %v492 = vunpack.c.h.b16 %v384
        %v493 = vunpack.c.l.b16 %v385
        %v494 = vunpack.c.h.b16 %v385
        %v495 = vunpack.c.l.b16 %v386
        %v496 = vunpack.c.h.b16 %v386
        %v497 = vunpack.c.l.b16 %v387
        %v498 = vunpack.c.h.b16 %v387
        %v499 = vunpack.c.l.b16 %v388
        %v500 = vunpack.c.h.b16 %v388
        %v501 = vunpack.c.l.b16 %v389
        %v502 = vunpack.c.h.b16 %v389
        %v503 = vunpack.c.l.b16 %v390
        %v504 = vunpack.c.h.b16 %v390
        %v505 = vunpack.c.l.b16 %v391
        %v506 = vunpack.c.h.b16 %v391
        %v507 = vunpack.c.l.b16 %v392
        %v508 = vunpack.c.h.b16 %v392
        %v509 = vunpack.c.l.b16 %v393
        %v510 = vunpack.c.h.b16 %v393
        %v511 = vunpack.c.l.b16 %v394
        %v512 = vunpack.c.h.b16 %v394
        %v513 = vunpack.c.l.b16 %v395
        %v514 = vunpack.c.h.b16 %v395
        %v515 = vunpack.c.l.b16 %v396
        %v516 = vunpack.c.h.b16 %v396
        %v517 = vunpack.c.l.b16 %v397
        %v518 = vunpack.c.h.b16 %v397
        %v519 = vunpack.c.l.b16 %v398
        %v520 = vunpack.c.h.b16 %v398
        %v521 = vunpack.c.l.b16 %v399
        %v522 = vunpack.c.h.b16 %v399
        %v523 = vunpack.c.l.b16 %v400
        %v524 = vunpack.c.h.b16 %v400
        %v525 = vunpack.c.l.b16 %v401
        %v526 = vunpack.c.h.b16 %v401
        %v527 = vunpack.c.l.b16 %v402
        %v528 = vunpack.c.h.b16 %v402
        %v529 = vunpack.c.l.b16 %v403
        %v530 = vunpack.c.h.b16 %v403
        %v531 = vunpack.c.l.b16 %v404
        %v532 = vunpack.c.h.b16 %v404
        %v533 = vunpack.c.l.b16 %v405
        %v534 = vunpack.c.h.b16 %v405
        %v535 = vunpack.c.l.b16 %v406
        %v536 = vunpack.c.h.b16 %v406
        %v537 = vpack.c.b16 %v477, %v473
        %v538 = vpack.c.b16 %v478, %v474
        %v539 = vpack.c.b16 %v479, %v475
        %v540 = vpack.c.b16 %v480, %v476
        %v541 = vpack.c.b16 %v485, %v481
        %v542 = vpack.c.b16 %v486, %v482
        %v543 = vpack.c.b16 %v487, %v483
        %v544 = vpack.c.b16 %v488, %v484
        %v545 = vpack.c.b16 %v493, %v489
        %v546 = vpack.c.b16 %v494, %v490
        %v547 = vpack.c.b16 %v495, %v491
        %v548 = vpack.c.b16 %v496, %v492
        %v549 = vpack.c.b16 %v501, %v497
        %v550 = vpack.c.b16 %v502, %v498
        %v551 = vpack.c.b16 %v503, %v499
        %v552 = vpack.c.b16 %v504, %v500
        %v553 = vpack.c.b16 %v509, %v505
        %v554 = vpack.c.b16 %v510, %v506
        %v555 = vpack.c.b16 %v511, %v507
        %v556 = vpack.c.b16 %v512, %v508
        %v557 = vpack.c.b16 %v517, %v513
        %v558 = vpack.c.b16 %v518, %v514
        %v559 = vpack.c.b16 %v519, %v515
        %v560 = vpack.c.b16 %v520, %v516
        %v561 = vpack.c.b16 %v525, %v521
        %v562 = vpack.c.b16 %v526, %v522
        %v563 = vpack.c.b16 %v527, %v523
        %v564 = vpack.c.b16 %v528, %v524
        %v565 = vpack.c.b16 %v533, %v529
        %v566 = vpack.c.b16 %v534, %v530
        %v567 = vpack.c.b16 %v535, %v531
        %v568 = vpack.c.b16 %v536, %v532
        %601 = vmatprep.subr.bf16.mxu0 %v538
        %602 = vmatpush1.bf16.msra.mxu0 %v537
        %603 = vmatprep.subr.bf16.mxu0 %v542
        %604 = vmatpush1.bf16.msra.mxu0 %v541
        %605 = vmatprep.subr.bf16.mxu0 %v546
        %606 = vmatpush1.bf16.msra.mxu0 %v545
        %607 = vmatprep.subr.bf16.mxu0 %v550
        %608 = vmatpush1.bf16.msra.mxu0 %v549
        %609 = vmatprep.subr.bf16.mxu0 %v554
        %610 = vmatpush1.bf16.msra.mxu0 %v553
        %611 = vmatprep.subr.bf16.mxu0 %v558
        %612 = vmatpush1.bf16.msra.mxu0 %v557
        %613 = vmatprep.subr.bf16.mxu0 %v562
        %614 = vmatpush1.bf16.msra.mxu0 %v561
        %615 = vmatprep.subr.bf16.mxu0 %v566
        %616 = vmatpush1.bf16.msra.mxu0 %v565
        %617 = vmatprep.subr.bf16.mxu0 0
        %618 = vmatpush1.bf16.msra.mxu0 0
        %619 = vmatprep.subr.bf16.mxu0 0
        %620 = vmatpush1.bf16.msra.mxu0 0
        %621 = vmatprep.subr.bf16.mxu0 0
        %622 = vmatpush1.bf16.msra.mxu0 0
        %623 = vmatprep.subr.bf16.mxu0 0
        %624 = vmatpush1.bf16.msra.mxu0 0
        %625 = vmatprep.subr.bf16.mxu0 0
        %626 = vmatpush1.bf16.msra.mxu0 0
        %627 = vmatprep.subr.bf16.mxu0 0
        %628 = vmatpush1.bf16.msra.mxu0 0
        %629 = vmatprep.subr.bf16.mxu0 0
        %630 = vmatpush1.bf16.msra.mxu0 0
        %631 = vmatprep.subr.bf16.mxu0 0
        %632 = vmatpush1.bf16.msra.mxu0 0
        %633 = vmatprep.mubr.bf16.mxu0 0
        %634 = vmatmul.mubr.bf16.gmra.mrb[0].mxu0 %v437
        %v635 = vpop.f32.mrb[0].mxu0
        %v636 = vadd.f32 %v412, %v635
        %v637 = vpop.f32.mrb[0].mxu0
        %v638 = vadd.f32 %v416, %v637
        %v639 = vpop.f32.mrb[0].mxu0
        %v640 = vadd.f32 %v412, %v639
        %v641 = vpop.f32.mrb[0].mxu0
        %v642 = vadd.f32 %v416, %v641
        %643 = vmatprep.mubr.bf16.mxu0 0
        %644 = vmatmul.mubr.bf16.gmra.mrb[0].mxu0 %v438
        %v645 = vpop.f32.mrb[0].mxu0
        %v646 = vadd.f32 %v412, %v645
        %v647 = vpop.f32.mrb[0].mxu0
        %v648 = vadd.f32 %v416, %v647
        %v649 = vpop.f32.mrb[0].mxu0
        %v650 = vadd.f32 %v412, %v649
        %v651 = vpop.f32.mrb[0].mxu0
        %v652 = vadd.f32 %v416, %v651
        %653 = vdwg.mxu0
        %654 = vmatprep.subr.bf16.mxu0 %v540
        %655 = vmatpush1.bf16.msra.mxu0 %v539
        %656 = vmatprep.subr.bf16.mxu0 %v544
        %657 = vmatpush1.bf16.msra.mxu0 %v543
        %658 = vmatprep.subr.bf16.mxu0 %v548
        %659 = vmatpush1.bf16.msra.mxu0 %v547
        %660 = vmatprep.subr.bf16.mxu0 %v552
        %661 = vmatpush1.bf16.msra.mxu0 %v551
        %662 = vmatprep.subr.bf16.mxu0 %v556
        %663 = vmatpush1.bf16.msra.mxu0 %v555
        %664 = vmatprep.subr.bf16.mxu0 %v560
        %665 = vmatpush1.bf16.msra.mxu0 %v559
        %666 = vmatprep.subr.bf16.mxu0 %v564
        %667 = vmatpush1.bf16.msra.mxu0 %v563
        %668 = vmatprep.subr.bf16.mxu0 %v568
        %669 = vmatpush1.bf16.msra.mxu0 %v567
        %670 = vmatprep.subr.bf16.mxu0 0
        %671 = vmatpush1.bf16.msra.mxu0 0
        %672 = vmatprep.subr.bf16.mxu0 0
        %673 = vmatpush1.bf16.msra.mxu0 0
        %674 = vmatprep.subr.bf16.mxu0 0
        %675 = vmatpush1.bf16.msra.mxu0 0
        %676 = vmatprep.subr.bf16.mxu0 0
        %677 = vmatpush1.bf16.msra.mxu0 0
        %678 = vmatprep.subr.bf16.mxu0 0
        %679 = vmatpush1.bf16.msra.mxu0 0
        %680 = vmatprep.subr.bf16.mxu0 0
        %681 = vmatpush1.bf16.msra.mxu0 0
        %682 = vmatprep.subr.bf16.mxu0 0
        %683 = vmatpush1.bf16.msra.mxu0 0
        %684 = vmatprep.subr.bf16.mxu0 0
        %685 = vmatpush1.bf16.msra.mxu0 0
        %686 = vmatprep.mubr.bf16.mxu0 0
        %687 = vmatmul.mubr.bf16.gmra.mrb[0].mxu0 %v437
        %v688 = vpop.f32.mrb[0].mxu0
        %v689 = vadd.f32 %v420, %v688
        %v690 = vpop.f32.mrb[0].mxu0
        %v691 = vadd.f32 %v424, %v690
        %v692 = vpop.f32.mrb[0].mxu0
        %v693 = vadd.f32 %v420, %v692
        %v694 = vpop.f32.mrb[0].mxu0
        %v695 = vadd.f32 %v424, %v694
        %696 = vmatprep.mubr.bf16.mxu0 0
        %697 = vmatmul.mubr.bf16.gmra.mrb[0].mxu0 %v438
        %v698 = vpop.f32.mrb[0].mxu0
        %v699 = vadd.f32 %v420, %v698
        %v700 = vpop.f32.mrb[0].mxu0
        %v701 = vadd.f32 %v424, %v700
        %v702 = vpop.f32.mrb[0].mxu0
        %v703 = vadd.f32 %v420, %v702
        %v704 = vpop.f32.mrb[0].mxu0
        %v705 = vadd.f32 %v424, %v704
        %706 = vdwg.mxu0
        %707 = vst [vmem:[#allocation2] sm:$0xff] %v636
        %708 = vst [vmem:[#allocation2 + $0x8] sm:$0xff] %v638
        %709 = vst [vmem:[#allocation2 + $0x10] sm:$0xff] %v689
        %710 = vst [vmem:[#allocation2 + $0x18] sm:$0xff] %v691
        %711 = vst [vmem:[#allocation2 + $0x20] sm:$0xff] %v640
        %712 = vst [vmem:[#allocation2 + $0x28] sm:$0xff] %v642
        %713 = vst [vmem:[#allocation2 + $0x30] sm:$0xff] %v693
        %714 = vst [vmem:[#allocation2 + $0x38] sm:$0xff] %v695
        %715 = vst [vmem:[#allocation2 + $0x40] sm:$0xff] %v646
        %716 = vst [vmem:[#allocation2 + $0x48] sm:$0xff] %v648
        %717 = vst [vmem:[#allocation2 + $0x50] sm:$0xff] %v699
        %718 = vst [vmem:[#allocation2 + $0x58] sm:$0xff] %v701
        %719 = vst [vmem:[#allocation2 + $0x60] sm:$0xff] %v650
        %720 = vst [vmem:[#allocation2 + $0x68] sm:$0xff] %v652
        %721 = vst [vmem:[#allocation2 + $0x70] sm:$0xff] %v703
        %722 = vst [vmem:[#allocation2 + $0x78] sm:$0xff] %v705
        %v723 = vld [vmem:[%s293] sm:$0xff]
        %v724 = vld [vmem:[%s293 + $0x8] sm:$0xff]
        %v725 = vld [vmem:[%s293 + $0x10] sm:$0xff]
        %v726 = vld [vmem:[%s293 + $0x18] sm:$0xff]
        %v727 = vld [vmem:[%s293 + $0x20] sm:$0xff]
        %v728 = vld [vmem:[%s293 + $0x28] sm:$0xff]
        %v729 = vld [vmem:[%s293 + $0x30] sm:$0xff]
        %v730 = vld [vmem:[%s293 + $0x38] sm:$0xff]
        %v731 = vld [vmem:[%s293 + $0x40] sm:$0xff]
        %v732 = vld [vmem:[%s293 + $0x48] sm:$0xff]
        %v733 = vld [vmem:[%s293 + $0x50] sm:$0xff]
        %v734 = vld [vmem:[%s293 + $0x58] sm:$0xff]
        %v735 = vld [vmem:[%s293 + $0x60] sm:$0xff]
        %v736 = vld [vmem:[%s293 + $0x68] sm:$0xff]
        %v737 = vld [vmem:[%s293 + $0x70] sm:$0xff]
        %v738 = vld [vmem:[%s293 + $0x78] sm:$0xff]
        %v739 = vld [vmem:[%s293 + $0x80] sm:$0xff]
        %v740 = vld [vmem:[%s293 + $0x88] sm:$0xff]
        %v741 = vld [vmem:[%s293 + $0x90] sm:$0xff]
        %v742 = vld [vmem:[%s293 + $0x98] sm:$0xff]
        %v743 = vld [vmem:[%s293 + $0xa0] sm:$0xff]
        %v744 = vld [vmem:[%s293 + $0xa8] sm:$0xff]
        %v745 = vld [vmem:[%s293 + $0xb0] sm:$0xff]
        %v746 = vld [vmem:[%s293 + $0xb8] sm:$0xff]
        %v747 = vld [vmem:[%s293 + $0xc0] sm:$0xff]
        %v748 = vld [vmem:[%s293 + $0xc8] sm:$0xff]
        %v749 = vld [vmem:[%s293 + $0xd0] sm:$0xff]
        %v750 = vld [vmem:[%s293 + $0xd8] sm:$0xff]
        %v751 = vld [vmem:[%s293 + $0xe0] sm:$0xff]
        %v752 = vld [vmem:[%s293 + $0xe8] sm:$0xff]
        %v753 = vld [vmem:[%s293 + $0xf0] sm:$0xff]
        %v754 = vld [vmem:[%s293 + $0xf8] sm:$0xff]
        %v755 = vld [vmem:[#allocation3] sm:$0xff]
        %v756 = vld [vmem:[#allocation4] sm:$0xff]
        %s757 = smul.u32 %s25, 3
        %s758 = smul.u32 %s757, 4
        %s759 = smul.addr %s758, 8
        %s760 = scalar_lea.vmem [#allocation2], %s759
        %v761 = vld [vmem:[%s760] sm:$0xff]
        %v762 = vld [vmem:[%s760 + $0x8] sm:$0xff]
        %v763 = vld [vmem:[%s760 + $0x10] sm:$0xff]
        %v764 = vld [vmem:[%s760 + $0x18] sm:$0xff]
        %v765 = vpack.c.bf16 %v755, %v755
        %v798 = vunpack.c.l.b16 %v723
        %v799 = vunpack.c.h.b16 %v723
        %v800 = vunpack.c.l.b16 %v724
        %v801 = vunpack.c.h.b16 %v724
        %v802 = vunpack.c.l.b16 %v725
        %v803 = vunpack.c.h.b16 %v725
        %v804 = vunpack.c.l.b16 %v726
        %v805 = vunpack.c.h.b16 %v726
        %v806 = vunpack.c.l.b16 %v727
        %v807 = vunpack.c.h.b16 %v727
        %v808 = vunpack.c.l.b16 %v728
        %v809 = vunpack.c.h.b16 %v728
        %v810 = vunpack.c.l.b16 %v729
        %v811 = vunpack.c.h.b16 %v729
        %v812 = vunpack.c.l.b16 %v730
        %v813 = vunpack.c.h.b16 %v730
        %v814 = vunpack.c.l.b16 %v731
        %v815 = vunpack.c.h.b16 %v731
        %v816 = vunpack.c.l.b16 %v732
        %v817 = vunpack.c.h.b16 %v732
        %v818 = vunpack.c.l.b16 %v733
        %v819 = vunpack.c.h.b16 %v733
        %v820 = vunpack.c.l.b16 %v734
        %v821 = vunpack.c.h.b16 %v734
        %v822 = vunpack.c.l.b16 %v735
        %v823 = vunpack.c.h.b16 %v735
        %v824 = vunpack.c.l.b16 %v736
        %v825 = vunpack.c.h.b16 %v736
        %v826 = vunpack.c.l.b16 %v737
        %v827 = vunpack.c.h.b16 %v737
        %v828 = vunpack.c.l.b16 %v738
        %v829 = vunpack.c.h.b16 %v738
        %v830 = vunpack.c.l.b16 %v739
        %v831 = vunpack.c.h.b16 %v739
        %v832 = vunpack.c.l.b16 %v740
        %v833 = vunpack.c.h.b16 %v740
        %v834 = vunpack.c.l.b16 %v741
        %v835 = vunpack.c.h.b16 %v741
        %v836 = vunpack.c.l.b16 %v742
        %v837 = vunpack.c.h.b16 %v742
        %v838 = vunpack.c.l.b16 %v743
        %v839 = vunpack.c.h.b16 %v743
        %v840 = vunpack.c.l.b16 %v744
        %v841 = vunpack.c.h.b16 %v744
        %v842 = vunpack.c.l.b16 %v745
        %v843 = vunpack.c.h.b16 %v745
        %v844 = vunpack.c.l.b16 %v746
        %v845 = vunpack.c.h.b16 %v746
        %v846 = vunpack.c.l.b16 %v747
        %v847 = vunpack.c.h.b16 %v747
        %v848 = vunpack.c.l.b16 %v748
        %v849 = vunpack.c.h.b16 %v748
        %v850 = vunpack.c.l.b16 %v749
        %v851 = vunpack.c.h.b16 %v749
        %v852 = vunpack.c.l.b16 %v750
        %v853 = vunpack.c.h.b16 %v750
        %v854 = vunpack.c.l.b16 %v751
        %v855 = vunpack.c.h.b16 %v751
        %v856 = vunpack.c.l.b16 %v752
        %v857 = vunpack.c.h.b16 %v752
        %v858 = vunpack.c.l.b16 %v753
        %v859 = vunpack.c.h.b16 %v753
        %v860 = vunpack.c.l.b16 %v754
        %v861 = vunpack.c.h.b16 %v754
        %v862 = vpack.c.b16 %v802, %v798
        %v863 = vpack.c.b16 %v803, %v799
        %v864 = vpack.c.b16 %v804, %v800
        %v865 = vpack.c.b16 %v805, %v801
        %v866 = vpack.c.b16 %v810, %v806
        %v867 = vpack.c.b16 %v811, %v807
        %v868 = vpack.c.b16 %v812, %v808
        %v869 = vpack.c.b16 %v813, %v809
        %v870 = vpack.c.b16 %v818, %v814
        %v871 = vpack.c.b16 %v819, %v815
        %v872 = vpack.c.b16 %v820, %v816
        %v873 = vpack.c.b16 %v821, %v817
        %v874 = vpack.c.b16 %v826, %v822
        %v875 = vpack.c.b16 %v827, %v823
        %v876 = vpack.c.b16 %v828, %v824
        %v877 = vpack.c.b16 %v829, %v825
        %v878 = vpack.c.b16 %v834, %v830
        %v879 = vpack.c.b16 %v835, %v831
        %v880 = vpack.c.b16 %v836, %v832
        %v881 = vpack.c.b16 %v837, %v833
        %v882 = vpack.c.b16 %v842, %v838
        %v883 = vpack.c.b16 %v843, %v839
        %v884 = vpack.c.b16 %v844, %v840
        %v885 = vpack.c.b16 %v845, %v841
        %v886 = vpack.c.b16 %v850, %v846
        %v887 = vpack.c.b16 %v851, %v847
        %v888 = vpack.c.b16 %v852, %v848
        %v889 = vpack.c.b16 %v853, %v849
        %v890 = vpack.c.b16 %v858, %v854
        %v891 = vpack.c.b16 %v859, %v855
        %v892 = vpack.c.b16 %v860, %v856
        %v893 = vpack.c.b16 %v861, %v857
        %926 = vmatprep.subr.bf16.mxu0 %v863
        %927 = vmatpush1.bf16.msra.mxu0 %v862
        %928 = vmatprep.subr.bf16.mxu0 %v867
        %929 = vmatpush1.bf16.msra.mxu0 %v866
        %930 = vmatprep.subr.bf16.mxu0 %v871
        %931 = vmatpush1.bf16.msra.mxu0 %v870
        %932 = vmatprep.subr.bf16.mxu0 %v875
        %933 = vmatpush1.bf16.msra.mxu0 %v874
        %934 = vmatprep.subr.bf16.mxu0 %v879
        %935 = vmatpush1.bf16.msra.mxu0 %v878
        %936 = vmatprep.subr.bf16.mxu0 %v883
        %937 = vmatpush1.bf16.msra.mxu0 %v882
        %938 = vmatprep.subr.bf16.mxu0 %v887
        %939 = vmatpush1.bf16.msra.mxu0 %v886
        %940 = vmatprep.subr.bf16.mxu0 %v891
        %941 = vmatpush1.bf16.msra.mxu0 %v890
        %942 = vmatprep.subr.bf16.mxu0 0
        %943 = vmatpush1.bf16.msra.mxu0 0
        %944 = vmatprep.subr.bf16.mxu0 0
        %945 = vmatpush1.bf16.msra.mxu0 0
        %946 = vmatprep.subr.bf16.mxu0 0
        %947 = vmatpush1.bf16.msra.mxu0 0
        %948 = vmatprep.subr.bf16.mxu0 0
        %949 = vmatpush1.bf16.msra.mxu0 0
        %950 = vmatprep.subr.bf16.mxu0 0
        %951 = vmatpush1.bf16.msra.mxu0 0
        %952 = vmatprep.subr.bf16.mxu0 0
        %953 = vmatpush1.bf16.msra.mxu0 0
        %954 = vmatprep.subr.bf16.mxu0 0
        %955 = vmatpush1.bf16.msra.mxu0 0
        %956 = vmatprep.subr.bf16.mxu0 0
        %957 = vmatpush1.bf16.msra.mxu0 0
        %958 = vmatprep.mubr.bf16.mxu0 0
        %959 = vmatmul.mubr.bf16.gmra.mrb[0].mxu0 %v765
        %v960 = vpop.f32.mrb[0].mxu0
        %v961 = vadd.f32 0.0, %v960
        %v962 = vpop.f32.mrb[0].mxu0
        %v963 = vadd.f32 0.0, %v962
        %v964 = vpop.f32.mrb[0].mxu0
        %v965 = vpop.f32.mrb[0].mxu0
        %966 = vdwg.mxu0
        %967 = vmatprep.subr.bf16.mxu0 %v865
        %968 = vmatpush1.bf16.msra.mxu0 %v864
        %969 = vmatprep.subr.bf16.mxu0 %v869
        %970 = vmatpush1.bf16.msra.mxu0 %v868
        %971 = vmatprep.subr.bf16.mxu0 %v873
        %972 = vmatpush1.bf16.msra.mxu0 %v872
        %973 = vmatprep.subr.bf16.mxu0 %v877
        %974 = vmatpush1.bf16.msra.mxu0 %v876
        %975 = vmatprep.subr.bf16.mxu0 %v881
        %976 = vmatpush1.bf16.msra.mxu0 %v880
        %977 = vmatprep.subr.bf16.mxu0 %v885
        %978 = vmatpush1.bf16.msra.mxu0 %v884
        %979 = vmatprep.subr.bf16.mxu0 %v889
        %980 = vmatpush1.bf16.msra.mxu0 %v888
        %981 = vmatprep.subr.bf16.mxu0 %v893
        %982 = vmatpush1.bf16.msra.mxu0 %v892
        %983 = vmatprep.subr.bf16.mxu0 0
        %984 = vmatpush1.bf16.msra.mxu0 0
        %985 = vmatprep.subr.bf16.mxu0 0
        %986 = vmatpush1.bf16.msra.mxu0 0
        %987 = vmatprep.subr.bf16.mxu0 0
        %988 = vmatpush1.bf16.msra.mxu0 0
        %989 = vmatprep.subr.bf16.mxu0 0
        %990 = vmatpush1.bf16.msra.mxu0 0
        %991 = vmatprep.subr.bf16.mxu0 0
        %992 = vmatpush1.bf16.msra.mxu0 0
        %993 = vmatprep.subr.bf16.mxu0 0
        %994 = vmatpush1.bf16.msra.mxu0 0
        %995 = vmatprep.subr.bf16.mxu0 0
        %996 = vmatpush1.bf16.msra.mxu0 0
        %997 = vmatprep.subr.bf16.mxu0 0
        %998 = vmatpush1.bf16.msra.mxu0 0
        %999 = vmatprep.mubr.bf16.mxu0 0
        %1000 = vmatmul.mubr.bf16.gmra.mrb[0].mxu0 %v765
        %v1001 = vpop.f32.mrb[0].mxu0
        %v1002 = vadd.f32 0.0, %v1001
        %v1003 = vpop.f32.mrb[0].mxu0
        %v1004 = vadd.f32 0.0, %v1003
        %v1005 = vpop.f32.mrb[0].mxu0
        %v1006 = vpop.f32.mrb[0].mxu0
        %1007 = vdwg.mxu0
        %v1008 = vadd.f32 %v761, %v961
        %v1009 = vadd.f32 %v762, %v963
        %v1010 = vadd.f32 %v763, %v1002
        %v1011 = vadd.f32 %v764, %v1004
        %v1012 = vxor.u32 %v1008, 2147483648
        %v1013 = vxor.u32 %v1009, 2147483648
        %v1014 = vxor.u32 %v1010, 2147483648
        %v1015 = vmul.f32 %v1012, 1.442695
        %v1016 = vpow.pop %v1015
        %v1017 = vmul.f32 %v1013, 1.442695
        %v1018 = vpow.pop %v1017
        %v1019 = vmul.f32 %v1014, 1.442695
        %v1020 = vpow.pop %v1019
        %v1021 = vadd.f32 %v1016, 1.0
        %v1022 = vadd.f32 %v1018, 1.0
        %v1023 = vadd.f32 %v1020, 1.0
        %v1024 = vrcp.pop %v1021
        %v1025 = vmul.f32 1.0, %v1024
        %v1026 = vrcp.pop %v1022
        %v1027 = vmul.f32 1.0, %v1026
        %v1028 = vrcp.pop %v1023
        %v1029 = vmul.f32 1.0, %v1028
        %v1030 = vtanh.pop %v1011
        %v1031 = vmul.f32 %v1027, %v756
        %v1032 = vmul.f32 %v1025, %v1030
        %v1033 = vadd.f32 %v1031, %v1032
        %v1034 = vtanh.pop %v1033
        %v1035 = vmul.f32 %v1029, %v1034
        %v1036 = vpack.c.bf16 %v1035, %v1035
        %s1037 = smul.addr %s757, 4
        %s1038 = scalar_lea.vmem %s344, %s1037 [#allocation10]
        %1039 = vst [vmem:[%s1038] sm:$0xf] %v1036
        %s1040 = sadd.s32 %s25, 1
        %s1041 = smul.u32 %s1040, 4
        %s1042 = smul.addr %s1041, 8
        %s1043 = scalar_lea.vmem [#allocation2], %s1042
        %v1044 = vld [vmem:[%s1043] sm:$0xff]
        %v1045 = vld [vmem:[%s1043 + $0x8] sm:$0xff]
        %v1046 = vld [vmem:[%s1043 + $0x10] sm:$0xff]
        %v1047 = vld [vmem:[%s1043 + $0x18] sm:$0xff]
        %1048 = vmatprep.subr.bf16.mxu0 %v863
        %1049 = vmatpush1.bf16.msra.mxu0 %v862
        %1050 = vmatprep.subr.bf16.mxu0 %v867
        %1051 = vmatpush1.bf16.msra.mxu0 %v866
        %1052 = vmatprep.subr.bf16.mxu0 %v871
        %1053 = vmatpush1.bf16.msra.mxu0 %v870
        %1054 = vmatprep.subr.bf16.mxu0 %v875
        %1055 = vmatpush1.bf16.msra.mxu0 %v874
        %1056 = vmatprep.subr.bf16.mxu0 %v879
        %1057 = vmatpush1.bf16.msra.mxu0 %v878
        %1058 = vmatprep.subr.bf16.mxu0 %v883
        %1059 = vmatpush1.bf16.msra.mxu0 %v882
        %1060 = vmatprep.subr.bf16.mxu0 %v887
        %1061 = vmatpush1.bf16.msra.mxu0 %v886
        %1062 = vmatprep.subr.bf16.mxu0 %v891
        %1063 = vmatpush1.bf16.msra.mxu0 %v890
        %1064 = vmatprep.subr.bf16.mxu0 0
        %1065 = vmatpush1.bf16.msra.mxu0 0
        %1066 = vmatprep.subr.bf16.mxu0 0
        %1067 = vmatpush1.bf16.msra.mxu0 0
        %1068 = vmatprep.subr.bf16.mxu0 0
        %1069 = vmatpush1.bf16.msra.mxu0 0
        %1070 = vmatprep.subr.bf16.mxu0 0
        %1071 = vmatpush1.bf16.msra.mxu0 0
        %1072 = vmatprep.subr.bf16.mxu0 0
        %1073 = vmatpush1.bf16.msra.mxu0 0
        %1074 = vmatprep.subr.bf16.mxu0 0
        %1075 = vmatpush1.bf16.msra.mxu0 0
        %1076 = vmatprep.subr.bf16.mxu0 0
        %1077 = vmatpush1.bf16.msra.mxu0 0
        %1078 = vmatprep.subr.bf16.mxu0 0
        %1079 = vmatpush1.bf16.msra.mxu0 0
        %1080 = vmatprep.mubr.bf16.mxu0 0
        %1081 = vmatmul.mubr.bf16.gmra.mrb[0].mxu0 %v1036
        %v1082 = vpop.f32.mrb[0].mxu0
        %v1083 = vadd.f32 0.0, %v1082
        %v1084 = vpop.f32.mrb[0].mxu0
        %v1085 = vadd.f32 0.0, %v1084
        %v1086 = vpop.f32.mrb[0].mxu0
        %v1087 = vpop.f32.mrb[0].mxu0
        %1088 = vdwg.mxu0
        %1089 = vmatprep.subr.bf16.mxu0 %v865
        %1090 = vmatpush1.bf16.msra.mxu0 %v864
        %1091 = vmatprep.subr.bf16.mxu0 %v869
        %1092 = vmatpush1.bf16.msra.mxu0 %v868
        %1093 = vmatprep.subr.bf16.mxu0 %v873
        %1094 = vmatpush1.bf16.msra.mxu0 %v872
        %1095 = vmatprep.subr.bf16.mxu0 %v877
        %1096 = vmatpush1.bf16.msra.mxu0 %v876
        %1097 = vmatprep.subr.bf16.mxu0 %v881
        %1098 = vmatpush1.bf16.msra.mxu0 %v880
        %1099 = vmatprep.subr.bf16.mxu0 %v885
        %1100 = vmatpush1.bf16.msra.mxu0 %v884
        %1101 = vmatprep.subr.bf16.mxu0 %v889
        %1102 = vmatpush1.bf16.msra.mxu0 %v888
        %1103 = vmatprep.subr.bf16.mxu0 %v893
        %1104 = vmatpush1.bf16.msra.mxu0 %v892
        %1105 = vmatprep.subr.bf16.mxu0 0
        %1106 = vmatpush1.bf16.msra.mxu0 0
        %1107 = vmatprep.subr.bf16.mxu0 0
        %1108 = vmatpush1.bf16.msra.mxu0 0
        %1109 = vmatprep.subr.bf16.mxu0 0
        %1110 = vmatpush1.bf16.msra.mxu0 0
        %1111 = vmatprep.subr.bf16.mxu0 0
        %1112 = vmatpush1.bf16.msra.mxu0 0
        %1113 = vmatprep.subr.bf16.mxu0 0
        %1114 = vmatpush1.bf16.msra.mxu0 0
        %1115 = vmatprep.subr.bf16.mxu0 0
        %1116 = vmatpush1.bf16.msra.mxu0 0
        %1117 = vmatprep.subr.bf16.mxu0 0
        %1118 = vmatpush1.bf16.msra.mxu0 0
        %1119 = vmatprep.subr.bf16.mxu0 0
        %1120 = vmatpush1.bf16.msra.mxu0 0
        %1121 = vmatprep.mubr.bf16.mxu0 0
        %1122 = vmatmul.mubr.bf16.gmra.mrb[0].mxu0 %v1036
        %v1123 = vpop.f32.mrb[0].mxu0
        %v1124 = vadd.f32 0.0, %v1123
        %v1125 = vpop.f32.mrb[0].mxu0
        %v1126 = vadd.f32 0.0, %v1125
        %v1127 = vpop.f32.mrb[0].mxu0
        %v1128 = vpop.f32.mrb[0].mxu0
        %1129 = vdwg.mxu0
        %v1130 = vadd.f32 %v1044, %v1083
        %v1131 = vadd.f32 %v1045, %v1085
        %v1132 = vadd.f32 %v1046, %v1124
        %v1133 = vadd.f32 %v1047, %v1126
        %v1134 = vxor.u32 %v1130, 2147483648
        %v1135 = vxor.u32 %v1131, 2147483648
        %v1136 = vxor.u32 %v1132, 2147483648
        %v1137 = vmul.f32 %v1134, 1.442695
        %v1138 = vpow.pop %v1137
        %v1139 = vmul.f32 %v1135, 1.442695
        %v1140 = vpow.pop %v1139
        %v1141 = vmul.f32 %v1136, 1.442695
        %v1142 = vpow.pop %v1141
        %v1143 = vadd.f32 %v1138, 1.0
        %v1144 = vadd.f32 %v1140, 1.0
        %v1145 = vadd.f32 %v1142, 1.0
        %v1146 = vrcp.pop %v1143
        %v1147 = vmul.f32 1.0, %v1146
        %v1148 = vrcp.pop %v1144
        %v1149 = vmul.f32 1.0, %v1148
        %v1150 = vrcp.pop %v1145
        %v1151 = vmul.f32 1.0, %v1150
        %v1152 = vtanh.pop %v1133
        %v1153 = vmul.f32 %v1149, %v1033
        %v1154 = vmul.f32 %v1147, %v1152
        %v1155 = vadd.f32 %v1153, %v1154
        %v1156 = vtanh.pop %v1155
        %v1157 = vmul.f32 %v1151, %v1156
        %v1158 = vpack.c.bf16 %v1157, %v1157
        %s1159 = smul.addr %s1040, 4
        %s1160 = scalar_lea.vmem %s344, %s1159 [#allocation10]
        %1161 = vst [vmem:[%s1160] sm:$0xf] %v1158
        %s1162 = ssub.s32 2, %s25
        %s1163 = smul.u32 %s1162, 4
        %s1164 = smul.addr %s1163, 8
        %s1165 = scalar_lea.vmem [#allocation2], %s1164
        %v1166 = vld [vmem:[%s1165] sm:$0xff]
        %v1167 = vld [vmem:[%s1165 + $0x8] sm:$0xff]
        %v1168 = vld [vmem:[%s1165 + $0x10] sm:$0xff]
        %v1169 = vld [vmem:[%s1165 + $0x18] sm:$0xff]
        %1170 = vmatprep.subr.bf16.mxu0 %v863
        %1171 = vmatpush1.bf16.msra.mxu0 %v862
        %1172 = vmatprep.subr.bf16.mxu0 %v867
        %1173 = vmatpush1.bf16.msra.mxu0 %v866
        %1174 = vmatprep.subr.bf16.mxu0 %v871
        %1175 = vmatpush1.bf16.msra.mxu0 %v870
        %1176 = vmatprep.subr.bf16.mxu0 %v875
        %1177 = vmatpush1.bf16.msra.mxu0 %v874
        %1178 = vmatprep.subr.bf16.mxu0 %v879
        %1179 = vmatpush1.bf16.msra.mxu0 %v878
        %1180 = vmatprep.subr.bf16.mxu0 %v883
        %1181 = vmatpush1.bf16.msra.mxu0 %v882
        %1182 = vmatprep.subr.bf16.mxu0 %v887
        %1183 = vmatpush1.bf16.msra.mxu0 %v886
        %1184 = vmatprep.subr.bf16.mxu0 %v891
        %1185 = vmatpush1.bf16.msra.mxu0 %v890
        %1186 = vmatprep.subr.bf16.mxu0 0
        %1187 = vmatpush1.bf16.msra.mxu0 0
        %1188 = vmatprep.subr.bf16.mxu0 0
        %1189 = vmatpush1.bf16.msra.mxu0 0
        %1190 = vmatprep.subr.bf16.mxu0 0
        %1191 = vmatpush1.bf16.msra.mxu0 0
        %1192 = vmatprep.subr.bf16.mxu0 0
        %1193 = vmatpush1.bf16.msra.mxu0 0
        %1194 = vmatprep.subr.bf16.mxu0 0
        %1195 = vmatpush1.bf16.msra.mxu0 0
        %1196 = vmatprep.subr.bf16.mxu0 0
        %1197 = vmatpush1.bf16.msra.mxu0 0
        %1198 = vmatprep.subr.bf16.mxu0 0
        %1199 = vmatpush1.bf16.msra.mxu0 0
        %1200 = vmatprep.subr.bf16.mxu0 0
        %1201 = vmatpush1.bf16.msra.mxu0 0
        %1202 = vmatprep.mubr.bf16.mxu0 0
        %1203 = vmatmul.mubr.bf16.gmra.mrb[0].mxu0 %v1158
        %v1204 = vpop.f32.mrb[0].mxu0
        %v1205 = vadd.f32 0.0, %v1204
        %v1206 = vpop.f32.mrb[0].mxu0
        %v1207 = vadd.f32 0.0, %v1206
        %v1208 = vpop.f32.mrb[0].mxu0
        %v1209 = vpop.f32.mrb[0].mxu0
        %1210 = vdwg.mxu0
        %1211 = vmatprep.subr.bf16.mxu0 %v865
        %1212 = vmatpush1.bf16.msra.mxu0 %v864
        %1213 = vmatprep.subr.bf16.mxu0 %v869
        %1214 = vmatpush1.bf16.msra.mxu0 %v868
        %1215 = vmatprep.subr.bf16.mxu0 %v873
        %1216 = vmatpush1.bf16.msra.mxu0 %v872
        %1217 = vmatprep.subr.bf16.mxu0 %v877
        %1218 = vmatpush1.bf16.msra.mxu0 %v876
        %1219 = vmatprep.subr.bf16.mxu0 %v881
        %1220 = vmatpush1.bf16.msra.mxu0 %v880
        %1221 = vmatprep.subr.bf16.mxu0 %v885
        %1222 = vmatpush1.bf16.msra.mxu0 %v884
        %1223 = vmatprep.subr.bf16.mxu0 %v889
        %1224 = vmatpush1.bf16.msra.mxu0 %v888
        %1225 = vmatprep.subr.bf16.mxu0 %v893
        %1226 = vmatpush1.bf16.msra.mxu0 %v892
        %1227 = vmatprep.subr.bf16.mxu0 0
        %1228 = vmatpush1.bf16.msra.mxu0 0
        %1229 = vmatprep.subr.bf16.mxu0 0
        %1230 = vmatpush1.bf16.msra.mxu0 0
        %1231 = vmatprep.subr.bf16.mxu0 0
        %1232 = vmatpush1.bf16.msra.mxu0 0
        %1233 = vmatprep.subr.bf16.mxu0 0
        %1234 = vmatpush1.bf16.msra.mxu0 0
        %1235 = vmatprep.subr.bf16.mxu0 0
        %1236 = vmatpush1.bf16.msra.mxu0 0
        %1237 = vmatprep.subr.bf16.mxu0 0
        %1238 = vmatpush1.bf16.msra.mxu0 0
        %1239 = vmatprep.subr.bf16.mxu0 0
        %1240 = vmatpush1.bf16.msra.mxu0 0
        %1241 = vmatprep.subr.bf16.mxu0 0
        %1242 = vmatpush1.bf16.msra.mxu0 0
        %1243 = vmatprep.mubr.bf16.mxu0 0
        %1244 = vmatmul.mubr.bf16.gmra.mrb[0].mxu0 %v1158
        %v1245 = vpop.f32.mrb[0].mxu0
        %v1246 = vadd.f32 0.0, %v1245
        %v1247 = vpop.f32.mrb[0].mxu0
        %v1248 = vadd.f32 0.0, %v1247
        %v1249 = vpop.f32.mrb[0].mxu0
        %v1250 = vpop.f32.mrb[0].mxu0
        %1251 = vdwg.mxu0
        %v1252 = vadd.f32 %v1166, %v1205
        %v1253 = vadd.f32 %v1167, %v1207
        %v1254 = vadd.f32 %v1168, %v1246
        %v1255 = vadd.f32 %v1169, %v1248
        %v1256 = vxor.u32 %v1252, 2147483648
        %v1257 = vxor.u32 %v1253, 2147483648
        %v1258 = vxor.u32 %v1254, 2147483648
        %v1259 = vmul.f32 %v1256, 1.442695
        %v1260 = vpow.pop %v1259
        %v1261 = vmul.f32 %v1257, 1.442695
        %v1262 = vpow.pop %v1261
        %v1263 = vmul.f32 %v1258, 1.442695
        %v1264 = vpow.pop %v1263
        %v1265 = vadd.f32 %v1260, 1.0
        %v1266 = vadd.f32 %v1262, 1.0
        %v1267 = vadd.f32 %v1264, 1.0
        %v1268 = vrcp.pop %v1265
        %v1269 = vmul.f32 1.0, %v1268
        %v1270 = vrcp.pop %v1266
        %v1271 = vmul.f32 1.0, %v1270
        %v1272 = vrcp.pop %v1267
        %v1273 = vmul.f32 1.0, %v1272
        %v1274 = vtanh.pop %v1255
        %v1275 = vmul.f32 %v1271, %v1155
        %v1276 = vmul.f32 %v1269, %v1274
        %v1277 = vadd.f32 %v1275, %v1276
        %v1278 = vtanh.pop %v1277
        %v1279 = vmul.f32 %v1273, %v1278
        %v1280 = vpack.c.bf16 %v1279, %v1279
        %s1281 = smul.addr %s1162, 4
        %s1282 = scalar_lea.vmem %s344, %s1281 [#allocation10]
        %1283 = vst [vmem:[%s1282] sm:$0xf] %v1280
        %s1284 = smul.u32 %s25, 4294967293
        %s1285 = sadd.s32 %s1284, 3
        %s1286 = smul.u32 %s1285, 4
        %s1287 = smul.addr %s1286, 8
        %s1288 = scalar_lea.vmem [#allocation2], %s1287
        %v1289 = vld [vmem:[%s1288] sm:$0xff]
        %v1290 = vld [vmem:[%s1288 + $0x8] sm:$0xff]
        %v1291 = vld [vmem:[%s1288 + $0x10] sm:$0xff]
        %v1292 = vld [vmem:[%s1288 + $0x18] sm:$0xff]
        %1293 = vmatprep.subr.bf16.mxu0 %v863
        %1294 = vmatpush1.bf16.msra.mxu0 %v862
        %1295 = vmatprep.subr.bf16.mxu0 %v867
        %1296 = vmatpush1.bf16.msra.mxu0 %v866
        %1297 = vmatprep.subr.bf16.mxu0 %v871
        %1298 = vmatpush1.bf16.msra.mxu0 %v870
        %1299 = vmatprep.subr.bf16.mxu0 %v875
        %1300 = vmatpush1.bf16.msra.mxu0 %v874
        %1301 = vmatprep.subr.bf16.mxu0 %v879
        %1302 = vmatpush1.bf16.msra.mxu0 %v878
        %1303 = vmatprep.subr.bf16.mxu0 %v883
        %1304 = vmatpush1.bf16.msra.mxu0 %v882
        %1305 = vmatprep.subr.bf16.mxu0 %v887
        %1306 = vmatpush1.bf16.msra.mxu0 %v886
        %1307 = vmatprep.subr.bf16.mxu0 %v891
        %1308 = vmatpush1.bf16.msra.mxu0 %v890
        %1309 = vmatprep.subr.bf16.mxu0 0
        %1310 = vmatpush1.bf16.msra.mxu0 0
        %1311 = vmatprep.subr.bf16.mxu0 0
        %1312 = vmatpush1.bf16.msra.mxu0 0
        %1313 = vmatprep.subr.bf16.mxu0 0
        %1314 = vmatpush1.bf16.msra.mxu0 0
        %1315 = vmatprep.subr.bf16.mxu0 0
        %1316 = vmatpush1.bf16.msra.mxu0 0
        %1317 = vmatprep.subr.bf16.mxu0 0
        %1318 = vmatpush1.bf16.msra.mxu0 0
        %1319 = vmatprep.subr.bf16.mxu0 0
        %1320 = vmatpush1.bf16.msra.mxu0 0
        %1321 = vmatprep.subr.bf16.mxu0 0
        %1322 = vmatpush1.bf16.msra.mxu0 0
        %1323 = vmatprep.subr.bf16.mxu0 0
        %1324 = vmatpush1.bf16.msra.mxu0 0
        %1325 = vmatprep.mubr.bf16.mxu0 0
        %1326 = vmatmul.mubr.bf16.gmra.mrb[0].mxu0 %v1280
        %v1327 = vpop.f32.mrb[0].mxu0
        %v1328 = vadd.f32 0.0, %v1327
        %v1329 = vpop.f32.mrb[0].mxu0
        %v1330 = vadd.f32 0.0, %v1329
        %v1331 = vpop.f32.mrb[0].mxu0
        %v1332 = vpop.f32.mrb[0].mxu0
        %1333 = vdwg.mxu0
        %1334 = vmatprep.subr.bf16.mxu0 %v865
        %1335 = vmatpush1.bf16.msra.mxu0 %v864
        %1336 = vmatprep.subr.bf16.mxu0 %v869
        %1337 = vmatpush1.bf16.msra.mxu0 %v868
        %1338 = vmatprep.subr.bf16.mxu0 %v873
        %1339 = vmatpush1.bf16.msra.mxu0 %v872
        %1340 = vmatprep.subr.bf16.mxu0 %v877
        %1341 = vmatpush1.bf16.msra.mxu0 %v876
        %1342 = vmatprep.subr.bf16.mxu0 %v881
        %1343 = vmatpush1.bf16.msra.mxu0 %v880
        %1344 = vmatprep.subr.bf16.mxu0 %v885
        %1345 = vmatpush1.bf16.msra.mxu0 %v884
        %1346 = vmatprep.subr.bf16.mxu0 %v889
        %1347 = vmatpush1.bf16.msra.mxu0 %v888
        %1348 = vmatprep.subr.bf16.mxu0 %v893
        %1349 = vmatpush1.bf16.msra.mxu0 %v892
        %1350 = vmatprep.subr.bf16.mxu0 0
        %1351 = vmatpush1.bf16.msra.mxu0 0
        %1352 = vmatprep.subr.bf16.mxu0 0
        %1353 = vmatpush1.bf16.msra.mxu0 0
        %1354 = vmatprep.subr.bf16.mxu0 0
        %1355 = vmatpush1.bf16.msra.mxu0 0
        %1356 = vmatprep.subr.bf16.mxu0 0
        %1357 = vmatpush1.bf16.msra.mxu0 0
        %1358 = vmatprep.subr.bf16.mxu0 0
        %1359 = vmatpush1.bf16.msra.mxu0 0
        %1360 = vmatprep.subr.bf16.mxu0 0
        %1361 = vmatpush1.bf16.msra.mxu0 0
        %1362 = vmatprep.subr.bf16.mxu0 0
        %1363 = vmatpush1.bf16.msra.mxu0 0
        %1364 = vmatprep.subr.bf16.mxu0 0
        %1365 = vmatpush1.bf16.msra.mxu0 0
        %1366 = vmatprep.mubr.bf16.mxu0 0
        %1367 = vmatmul.mubr.bf16.gmra.mrb[0].mxu0 %v1280
        %v1368 = vpop.f32.mrb[0].mxu0
        %v1369 = vadd.f32 0.0, %v1368
        %v1370 = vpop.f32.mrb[0].mxu0
        %v1371 = vadd.f32 0.0, %v1370
        %v1372 = vpop.f32.mrb[0].mxu0
        %v1373 = vpop.f32.mrb[0].mxu0
        %1374 = vdwg.mxu0
        %v1375 = vadd.f32 %v1289, %v1328
        %v1376 = vadd.f32 %v1290, %v1330
        %v1377 = vadd.f32 %v1291, %v1369
        %v1378 = vadd.f32 %v1292, %v1371
        %v1379 = vxor.u32 %v1375, 2147483648
        %v1380 = vxor.u32 %v1376, 2147483648
        %v1381 = vxor.u32 %v1377, 2147483648
        %v1382 = vmul.f32 %v1379, 1.442695
        %v1383 = vpow.pop %v1382
        %v1384 = vmul.f32 %v1380, 1.442695
        %v1385 = vpow.pop %v1384
        %v1386 = vmul.f32 %v1381, 1.442695
        %v1387 = vpow.pop %v1386
        %v1388 = vadd.f32 %v1383, 1.0
        %v1389 = vadd.f32 %v1385, 1.0
        %v1390 = vadd.f32 %v1387, 1.0
        %v1391 = vrcp.pop %v1388
        %v1392 = vmul.f32 1.0, %v1391
        %v1393 = vrcp.pop %v1389
        %v1394 = vmul.f32 1.0, %v1393
        %v1395 = vrcp.pop %v1390
        %v1396 = vmul.f32 1.0, %v1395
        %v1397 = vtanh.pop %v1378
        %v1398 = vmul.f32 %v1394, %v1277
        %v1399 = vmul.f32 %v1392, %v1397
        %v1400 = vadd.f32 %v1398, %v1399
        %v1401 = vtanh.pop %v1400
        %v1402 = vmul.f32 %v1396, %v1401
        %v1403 = vpack.c.bf16 %v1402, %v1402
        %s1404 = smul.addr %s1285, 4
        %s1405 = scalar_lea.vmem %s344, %s1404 [#allocation10]
        %1406 = vst [vmem:[%s1405] sm:$0xf] %v1403
        %1407 = vst [vmem:[#allocation3] sm:$0xff] %v1402
        %1408 = vst [vmem:[#allocation4] sm:$0xff] %v1400
        %s1409 = sand.u32 %s163, 1
        %s1410 = sand.u32 %s163, 1
        %s1411 = smul.addr %s1410, 16
        %s1412 = scalar_lea.vmem [#allocation10], %s1411
        // Predicated region
        $region53: #{lstm_classifier_forward.2} parent=35 // pred_check
          %p1413 = pneg %p173
        $region54: #{lstm_classifier_forward.2} parent=35 // pred_check_branch
          %1415 = sbr.rel (%p1413) target = $region56
        $region55: #{lstm_classifier_forward.2} parent=35 // pred_region
          %s1416 = smul.u32 %s26, 2
          %s1417 = ssub.s32 1, %s1416
          %s1418 = smul.u32 %s25, %s1417
          %s1419 = sadd.s32 %s26, %s1418
          %s1420 = smul.u32 4, %s1419
          %s1421 = smul.addr %s1420, 2
          %s1422 = sadd.s32 %s25, %s1421
          %s1423 = smul.addr %s1422, 4
          %s1424 = scalar_lea.vmem %s4, %s1423
          // Predicated region
          $region57: #{lstm_classifier_forward.2} parent=55 // pred_check
            _
          $region58: #{lstm_classifier_forward.2} parent=55 // pred_check_branch
            %1426 = sbr.rel (0) target = $region60
          $region59: #{lstm_classifier_forward.2} parent=55 // pred_region
            // Predicated region
            $region61: #{lstm_classifier_forward.2} parent=59 // pred_check
              _
            $region62: #{lstm_classifier_forward.2} parent=59 // pred_check_branch
              %1428 = sbr.rel target = $region64
            $region63: #{lstm_classifier_forward.2} parent=59 // pred_region
              // Predicated region
              $region76: #{lstm_classifier_forward.2} parent=63 // pred_check
                _
              $region77: #{lstm_classifier_forward.2} parent=63 // pred_check_branch
                %1449 = sbr.rel (0) target = $region79
              $region78: #{lstm_classifier_forward.2} parent=63 // pred_region
                loop: start=0, step=1, limit=1
                $region80: #{lstm_classifier_forward.2} parent=78 // loop_pre_header
                  _
                $region81: #{lstm_classifier_forward.2} parent=78 // loop_header
                  %s1451 = sphi 0, %s1455
                  %p1452 = scmp.ge.s32.totalorder %s1451, 1
                  %s1456 = sphi %s1412, %s1412
                  %s1457 = sphi %s1424, %s1424
                $region82: #{lstm_classifier_forward.2} parent=78 // loop_header_branch
                  %1454 = sbr.rel (%p1452) target = $region86
                $region83: #{lstm_classifier_forward.2} parent=78 // loop_body
                  _
                $region84: #{lstm_classifier_forward.2} parent=78 // loop_footer
                  %s1455 = sadd.s32 1, %s1451
                $region85: #{lstm_classifier_forward.2} parent=78 // loop_footer_branch
                  %1450 = sbr.rel target = $region81
                $region86: #{lstm_classifier_forward.2} parent=78 // loop_exit
                  _
                loop: start=0, step=1, limit=1
                $region87: #{lstm_classifier_forward.2} parent=78 // loop_pre_header
                  _
                $region88: #{lstm_classifier_forward.2} parent=78 // loop_header
                  %s1460 = sphi 0, %s1464
                  %p1461 = scmp.ge.s32.totalorder %s1460, 1
                  %s1465 = sphi %s1412, %s1412
                  %s1466 = sphi %s1424, %s1424
                $region89: #{lstm_classifier_forward.2} parent=78 // loop_header_branch
                  %1463 = sbr.rel (%p1461) target = $region93
                $region90: #{lstm_classifier_forward.2} parent=78 // loop_body
                  %v1467 = vld [vmem:[%s1465] sm:$0xf]
                  %1468 = vst [vmem:[%s1466] sm:$0xf] %v1467
                  %v1469 = vld [vmem:[%s1465 + $0x4] sm:$0xf]
                  %1470 = vst [vmem:[%s1466 + $0x8] sm:$0xf] %v1469
                  %v1471 = vld [vmem:[%s1465 + $0x8] sm:$0xf]
                  %1472 = vst [vmem:[%s1466 + $0x10] sm:$0xf] %v1471
                  %v1473 = vld [vmem:[%s1465 + $0xc] sm:$0xf]
                  %1474 = vst [vmem:[%s1466 + $0x18] sm:$0xf] %v1473
                $region91: #{lstm_classifier_forward.2} parent=78 // loop_footer
                  %s1464 = sadd.s32 1, %s1460
                $region92: #{lstm_classifier_forward.2} parent=78 // loop_footer_branch
                  %1459 = sbr.rel target = $region88
                $region93: #{lstm_classifier_forward.2} parent=78 // loop_exit
                  _
              $region79: #{lstm_classifier_forward.2} parent=63 // pred_fallthru
                _
            $region64: #{lstm_classifier_forward.2} parent=59 // pred_fallthru
              _
            // Predicated region
            $region65: #{lstm_classifier_forward.2} parent=59 // pred_check
              _
            $region66: #{lstm_classifier_forward.2} parent=59 // pred_check_branch
              %1430 = sbr.rel (0) target = $region68
            $region67: #{lstm_classifier_forward.2} parent=59 // pred_region
              loop: start=0, step=1, limit=1
              $region69: #{lstm_classifier_forward.2} parent=67 // loop_pre_header
                _
              $region70: #{lstm_classifier_forward.2} parent=67 // loop_header
                %s1433 = sphi 0, %s1437
                %p1434 = scmp.ge.s32.totalorder %s1433, 1
                %s1438 = sphi %s1412, %s1412
                %s1439 = sphi %s1424, %s1424
              $region71: #{lstm_classifier_forward.2} parent=67 // loop_header_branch
                %1436 = sbr.rel (%p1434) target = $region75
              $region72: #{lstm_classifier_forward.2} parent=67 // loop_body
                %v1440 = vld [vmem:[%s1438] sm:$0xf]
                %1441 = vst [vmem:[%s1439] sm:$0xf] %v1440
                %v1442 = vld [vmem:[%s1438 + $0x4] sm:$0xf]
                %1443 = vst [vmem:[%s1439 + $0x8] sm:$0xf] %v1442
                %v1444 = vld [vmem:[%s1438 + $0x8] sm:$0xf]
                %1445 = vst [vmem:[%s1439 + $0x10] sm:$0xf] %v1444
                %v1446 = vld [vmem:[%s1438 + $0xc] sm:$0xf]
                %1447 = vst [vmem:[%s1439 + $0x18] sm:$0xf] %v1446
              $region73: #{lstm_classifier_forward.2} parent=67 // loop_footer
                %s1437 = sadd.s32 1, %s1433
              $region74: #{lstm_classifier_forward.2} parent=67 // loop_footer_branch
                %1432 = sbr.rel target = $region70
              $region75: #{lstm_classifier_forward.2} parent=67 // loop_exit
                _
            $region68: #{lstm_classifier_forward.2} parent=59 // pred_fallthru
              _
          $region60: #{lstm_classifier_forward.2} parent=55 // pred_fallthru
            _
          %1475 = vnop
        $region56: #{lstm_classifier_forward.2} parent=35 // pred_fallthru
          _
      $region36: #{lstm_classifier_forward.2} parent=5 // pred_fallthru
        _
      %p1476 = scmp.le.s32.totalorder 2, %s16
      // Predicated region
      $region94: #{lstm_classifier_forward.2} parent=5 // pred_check
        %p1477 = pneg %p1476
      $region95: #{lstm_classifier_forward.2} parent=5 // pred_check_branch
        %1479 = sbr.rel (%p1477) target = $region97
      $region96: #{lstm_classifier_forward.2} parent=5 // pred_region
        %s1480 = ssub.s32 %s16, 2
        // Predicated region
        $region98: #{lstm_classifier_forward.2} parent=96 // pred_check
          %p1481 = pneg %p179
        $region99: #{lstm_classifier_forward.2} parent=96 // pred_check_branch
          %1483 = sbr.rel (%p1481) target = $region101
        $region100: #{lstm_classifier_forward.2} parent=96 // pred_region
          %s1484 = sand.u32 %s164, 1
          %s1485 = sand.u32 %s164, 1
          %s1486 = smul.addr %s1485, 16
          %s1487 = scalar_lea.vmem [#allocation10], %s1486
        $region101: #{lstm_classifier_forward.2} parent=96 // pred_fallthru
          _
      $region97: #{lstm_classifier_forward.2} parent=5 // pred_fallthru
        _
    $region6: #{lstm_classifier_forward.2} parent=1 // loop_footer
      %s20 = sadd.s32 1, %s16
    $region7: #{lstm_classifier_forward.2} parent=1 // loop_footer_branch
      %15 = sbr.rel target = $region3
    $region8: #{lstm_classifier_forward.2} parent=1 // loop_exit
      _
    %1488 = vsyncpa [#allocation6], 1
    %s1489 = scalar_lea.sflag [#allocation6], 1
    %1490 = vsyncpa %s1489, 1
    %1491 = vsyncpa [#allocation8], 1
    %s1492 = scalar_lea.sflag [#allocation8], 1
    %1493 = vsyncpa %s1492, 1

// kernel: lstm_classifier_forward.3
$region0: #{lstm_classifier_forward.3}
  #allocation0 [shape = 'u32[]', space=smem, size = 0x4, offset = 0x4, fixed_abs, tag = 'smem constant byte address 0x4 - core index']
  #allocation1 [shape = 'u32[144,128]{1,0:T(1,128)}', space=vmem, size = 0x12000, scoped, tag = 'internal scratch']
  #allocation2 [shape = 'f32[4,8,512]{2,1,0:T(8,128)}', space=vmem, size = 0x10000, scoped, tag = 'scratch operand']
  #allocation3 [shape = 'f32[8,128]{1,0:T(8,128)}', space=vmem, size = 0x1000, scoped, tag = 'scratch operand']
  #allocation4 [shape = 'f32[8,128]{1,0:T(8,128)}', space=vmem, size = 0x1000, scoped, tag = 'scratch operand']
  %s0 = inlined_call_operand.vmem [shape: bf16[8,8,256], index: 0, kind: input, shape index: {}]
  %s1 = inlined_call_operand.vmem [shape: bf16[2,256,512], index: 1, kind: input, shape index: {}]
  %s2 = inlined_call_operand.vmem [shape: bf16[2,128,512], index: 2, kind: input, shape index: {}]
  %s3 = inlined_call_operand.vmem [shape: f32[2,1,512], index: 3, kind: input, shape index: {}]
  %s4 = inlined_call_operand.vmem [shape: f32[8,256], index: 4, kind: output, shape index: {}]
  %s5 = sld [smem:[#allocation0]]
  $region57: #{lstm_classifier_forward.3} parent=0
    _
  %s7 = ssub.s32 1, %s5
  %s8 = scalar_select 0, %s7, %s5
  loop: start=0, step=1, limit=6
  $region2: #{lstm_classifier_forward.3} parent=0 // loop_pre_header
    _
  $region3: #{lstm_classifier_forward.3} parent=0 // loop_header
    %s10 = sphi 0, %s14
    %p11 = scmp.ge.s32.totalorder %s10, 6
    %s17 = sphi 0, %s29
    %s18 = sphi 0, %s25
    %s19 = sphi 0, %s17
    %s20 = sphi 0, %s18
    %s21 = sphi 0, %s19
    %s22 = sphi 0, %s20
    %s40 = sphi 0, %s42
    %s43 = sphi 0, %s40
    %s44 = sphi 0, %s43
    %s60 = sphi 0, %s44
    %s66 = sphi 0, %s68
    %s69 = sphi 0, %s66
    %s70 = sphi 0, %s69
    %s86 = sphi 0, %s70
    %s92 = sphi 0, %s94
    %s95 = sphi 0, %s92
    %s96 = sphi 0, %s95
    %s112 = sphi 0, %s96
    %s118 = sphi 0, %s120
    %s121 = sphi 0, %s118
    %s122 = sphi 0, %s121
    %s138 = sphi 0, %s122
    %s144 = sphi 0, %s146
    %s147 = sphi 0, %s144
    %s148 = sphi 0, %s147
    %s164 = sphi 0, %s148
  $region4: #{lstm_classifier_forward.3} parent=0 // loop_header_branch
    %13 = sbr.rel (%p11) target = $region8
  $region5: #{lstm_classifier_forward.3} parent=0 // loop_body
    %s15 = ssub.s32 %s10, 1
    %s16 = ssub.s32 %s10, 2
    %s23 = sadd.s32 1, %s18
    %p24 = scmp.ge.s32.totalorder %s23, 2
    %s25 = scalar_select %p24, 0, %s23
    %s26 = sadd.s32 1, %s17
    %s27 = scalar_select %p24, %s26, %s17
    %p28 = scmp.ge.s32.totalorder %s27, 2
    %s29 = scalar_select %p28, 0, %s27
    %s30 = smul.u32 %s18, 2
    %s31 = ssub.s32 1, %s30
    %s32 = smul.u32 %s17, %s31
    %s33 = sadd.s32 %s18, %s32
    %s34 = smul.u32 %s25, 2
    %s35 = ssub.s32 1, %s34
    %s36 = smul.u32 %s29, %s35
    %s37 = sadd.s32 %s25, %s36
    %s38 = ssub.s32 %s33, %s37
    %p39 = scmp.eq.s32.totalorder %s38, 0
    %s41 = sadd.s32 %s40, 1
    %s42 = scalar_select %p39, %s40, %s41
    %p45 = pneg %p39
    %p46 = scmp.eq.s32.totalorder %s10, 3
    %p47 = por %p45, %p46
    %p48 = scmp.ne.s32.totalorder %s40, %s43
    %p49 = scmp.eq.s32.totalorder %s10, 0
    %p50 = por %p48, %p49
    %p51 = scmp.ne.s32.totalorder %s40, %s43
    %p52 = scmp.eq.s32.totalorder %s15, 3
    %p53 = por %p51, %p52
    %p54 = scmp.ne.s32.totalorder %s43, %s44
    %p55 = scmp.eq.s32.totalorder %s15, 0
    %p56 = por %p54, %p55
    %p57 = scmp.ne.s32.totalorder %s43, %s44
    %p58 = scmp.eq.s32.totalorder %s16, 3
    %p59 = por %p57, %p58
    %p61 = scmp.ne.s32.totalorder %s44, %s60
    %p62 = scmp.eq.s32.totalorder %s16, 0
    %p63 = por %p61, %p62
    %s64 = ssub.s32 %s17, %s29
    %p65 = scmp.eq.s32.totalorder %s64, 0
    %s67 = sadd.s32 %s66, 1
    %s68 = scalar_select %p65, %s66, %s67
    %p71 = pneg %p65
    %p72 = scmp.eq.s32.totalorder %s10, 3
    %p73 = por %p71, %p72
    %p74 = scmp.ne.s32.totalorder %s66, %s69
    %p75 = scmp.eq.s32.totalorder %s10, 0
    %p76 = por %p74, %p75
    %p77 = scmp.ne.s32.totalorder %s66, %s69
    %p78 = scmp.eq.s32.totalorder %s15, 3
    %p79 = por %p77, %p78
    %p80 = scmp.ne.s32.totalorder %s69, %s70
    %p81 = scmp.eq.s32.totalorder %s15, 0
    %p82 = por %p80, %p81
    %p83 = scmp.ne.s32.totalorder %s69, %s70
    %p84 = scmp.eq.s32.totalorder %s16, 3
    %p85 = por %p83, %p84
    %p87 = scmp.ne.s32.totalorder %s70, %s86
    %p88 = scmp.eq.s32.totalorder %s16, 0
    %p89 = por %p87, %p88
    %s90 = ssub.s32 %s17, %s29
    %p91 = scmp.eq.s32.totalorder %s90, 0
    %s93 = sadd.s32 %s92, 1
    %s94 = scalar_select %p91, %s92, %s93
    %p97 = pneg %p91
    %p98 = scmp.eq.s32.totalorder %s10, 3
    %p99 = por %p97, %p98
    %p100 = scmp.ne.s32.totalorder %s92, %s95
    %p101 = scmp.eq.s32.totalorder %s10, 0
    %p102 = por %p100, %p101
    %p103 = scmp.ne.s32.totalorder %s92, %s95
    %p104 = scmp.eq.s32.totalorder %s15, 3
    %p105 = por %p103, %p104
    %p106 = scmp.ne.s32.totalorder %s95, %s96
    %p107 = scmp.eq.s32.totalorder %s15, 0
    %p108 = por %p106, %p107
    %p109 = scmp.ne.s32.totalorder %s95, %s96
    %p110 = scmp.eq.s32.totalorder %s16, 3
    %p111 = por %p109, %p110
    %p113 = scmp.ne.s32.totalorder %s96, %s112
    %p114 = scmp.eq.s32.totalorder %s16, 0
    %p115 = por %p113, %p114
    %s116 = ssub.s32 %s17, %s29
    %p117 = scmp.eq.s32.totalorder %s116, 0
    %s119 = sadd.s32 %s118, 1
    %s120 = scalar_select %p117, %s118, %s119
    %p123 = pneg %p117
    %p124 = scmp.eq.s32.totalorder %s10, 3
    %p125 = por %p123, %p124
    %p126 = scmp.ne.s32.totalorder %s118, %s121
    %p127 = scmp.eq.s32.totalorder %s10, 0
    %p128 = por %p126, %p127
    %p129 = scmp.ne.s32.totalorder %s118, %s121
    %p130 = scmp.eq.s32.totalorder %s15, 3
    %p131 = por %p129, %p130
    %p132 = scmp.ne.s32.totalorder %s121, %s122
    %p133 = scmp.eq.s32.totalorder %s15, 0
    %p134 = por %p132, %p133
    %p135 = scmp.ne.s32.totalorder %s121, %s122
    %p136 = scmp.eq.s32.totalorder %s16, 3
    %p137 = por %p135, %p136
    %p139 = scmp.ne.s32.totalorder %s122, %s138
    %p140 = scmp.eq.s32.totalorder %s16, 0
    %p141 = por %p139, %p140
    %s142 = ssub.s32 %s17, %s29
    %p143 = scmp.eq.s32.totalorder %s142, 0
    %s145 = sadd.s32 %s144, 1
    %s146 = scalar_select %p143, %s144, %s145
    %p149 = pneg %p143
    %p150 = scmp.eq.s32.totalorder %s10, 3
    %p151 = por %p149, %p150
    %p152 = scmp.ne.s32.totalorder %s144, %s147
    %p153 = scmp.eq.s32.totalorder %s10, 0
    %p154 = por %p152, %p153
    %p155 = scmp.ne.s32.totalorder %s144, %s147
    %p156 = scmp.eq.s32.totalorder %s15, 3
    %p157 = por %p155, %p156
    %p158 = scmp.ne.s32.totalorder %s147, %s148
    %p159 = scmp.eq.s32.totalorder %s15, 0
    %p160 = por %p158, %p159
    %p161 = scmp.ne.s32.totalorder %s147, %s148
    %p162 = scmp.eq.s32.totalorder %s16, 3
    %p163 = por %p161, %p162
    %p165 = scmp.ne.s32.totalorder %s148, %s164
    %p166 = scmp.eq.s32.totalorder %s16, 0
    %p167 = por %p165, %p166
    %p168 = scmp.le.s32.totalorder 1, %s10
    %p169 = scmp.lt.s32.totalorder %s10, 5
    %p170 = pnand %p168, %p169
    %p171 = pneg %p170
    // Predicated region
    $region9: #{lstm_classifier_forward.3} parent=5 // pred_check
      _
    $region10: #{lstm_classifier_forward.3} parent=5 // pred_check_branch
      %173 = sbr.rel (%p170) target = $region12
    $region11: #{lstm_classifier_forward.3} parent=5 // pred_region
      %s174 = ssub.s32 %s10, 1
    $region12: #{lstm_classifier_forward.3} parent=5 // pred_fallthru
      _
    %p175 = scmp.lt.s32.totalorder %s10, 4
    // Predicated region
    $region13: #{lstm_classifier_forward.3} parent=5 // pred_check
      %p176 = pneg %p175
    $region14: #{lstm_classifier_forward.3} parent=5 // pred_check_branch
      %178 = sbr.rel (%p176) target = $region16
    $region15: #{lstm_classifier_forward.3} parent=5 // pred_region
      // Predicated region
      $region17: #{lstm_classifier_forward.3} parent=15 // pred_check
        %p179 = pneg %p50
      $region18: #{lstm_classifier_forward.3} parent=15 // pred_check_branch
        %181 = sbr.rel (%p179) target = $region20
      $region19: #{lstm_classifier_forward.3} parent=15 // pred_region
        %s182 = smul.u32 %s18, 2
        %s183 = ssub.s32 1, %s182
        %s184 = smul.u32 %s17, %s183
        %s185 = sadd.s32 %s18, %s184
        %s186 = smul.u32 4, %s185
        %p187 = scmp.lt.s32.totalorder %s186, 7
        %s188 = scalar_select %p187, %s186, 7
        %s189 = smul.addr %s188, 2
        %s190 = smul.addr %s189, 4
        %s191 = scalar_lea.vmem %s0, %s190
        %s192 = smul.u32 %s18, 2
        %s193 = ssub.s32 1, %s192
        %s194 = smul.u32 %s17, %s193
        %s195 = sadd.s32 %s18, %s194
        %s196 = smul.u32 4, %s195
      $region20: #{lstm_classifier_forward.3} parent=15 // pred_fallthru
        _
      // Predicated region
      $region21: #{lstm_classifier_forward.3} parent=15 // pred_check
        %p197 = pneg %p76
      $region22: #{lstm_classifier_forward.3} parent=15 // pred_check_branch
        %199 = sbr.rel (%p197) target = $region24
      $region23: #{lstm_classifier_forward.3} parent=15 // pred_region
        %p200 = scmp.lt.s32.totalorder %s17, 1
        %s201 = scalar_select %p200, %s17, 1
        %s202 = smul.addr %s201, 128
        %s203 = smul.addr %s202, 4
        %s204 = scalar_lea.vmem %s1, %s203
      $region24: #{lstm_classifier_forward.3} parent=15 // pred_fallthru
        _
      // Predicated region
      $region25: #{lstm_classifier_forward.3} parent=15 // pred_check
        %p205 = pneg %p102
      $region26: #{lstm_classifier_forward.3} parent=15 // pred_check_branch
        %207 = sbr.rel (%p205) target = $region28
      $region27: #{lstm_classifier_forward.3} parent=15 // pred_region
        %p208 = scmp.lt.s32.totalorder %s17, 1
        %s209 = scalar_select %p208, %s17, 1
        %s210 = smul.addr %s209, 64
        %s211 = smul.addr %s210, 4
        %s212 = scalar_lea.vmem %s2, %s211
      $region28: #{lstm_classifier_forward.3} parent=15 // pred_fallthru
        _
      // Predicated region
      $region29: #{lstm_classifier_forward.3} parent=15 // pred_check
        %p213 = pneg %p128
      $region30: #{lstm_classifier_forward.3} parent=15 // pred_check_branch
        %215 = sbr.rel (%p213) target = $region32
      $region31: #{lstm_classifier_forward.3} parent=15 // pred_region
        %p216 = scmp.lt.s32.totalorder %s17, 1
        %s217 = scalar_select %p216, %s17, 1
        %s218 = smul.addr %s217, 4
        %s219 = scalar_lea.vmem %s3, %s218
      $region32: #{lstm_classifier_forward.3} parent=15 // pred_fallthru
        _
    $region16: #{lstm_classifier_forward.3} parent=5 // pred_fallthru
      _
    %p220 = scmp.le.s32.totalorder 1, %s10
    %p221 = scmp.lt.s32.totalorder %s10, 5
    %p222 = pnand %p220, %p221
    %p223 = pneg %p222
    // Predicated region
    $region33: #{lstm_classifier_forward.3} parent=5 // pred_check
      _
    $region34: #{lstm_classifier_forward.3} parent=5 // pred_check_branch
      %225 = sbr.rel (%p222) target = $region36
    $region35: #{lstm_classifier_forward.3} parent=5 // pred_region
      %s226 = ssub.s32 %s10, 1
      %s227 = smul.u32 %s20, 2
      %s228 = ssub.s32 1, %s227
      %s229 = smul.u32 %s19, %s228
      %s230 = sadd.s32 %s20, %s229
      %s231 = smul.u32 4, %s230
      %p232 = scmp.lt.s32.totalorder %s231, 7
      %s233 = scalar_select %p232, %s231, 7
      %s234 = smul.addr %s233, 2
      %s235 = smul.addr %s234, 4
      %s236 = scalar_lea.vmem %s0, %s235
      %p237 = pneg %p56
      %p238 = pneg %p53
      %p239 = scmp.lt.s32.totalorder %s19, 1
      %s240 = scalar_select %p239, %s19, 1
      %s241 = smul.addr %s240, 128
      %s242 = smul.addr %s241, 4
      %s243 = scalar_lea.vmem %s1, %s242
      %p244 = pneg %p82
      %p245 = pneg %p79
      %p246 = scmp.lt.s32.totalorder %s19, 1
      %s247 = scalar_select %p246, %s19, 1
      %s248 = smul.addr %s247, 64
      %s249 = smul.addr %s248, 4
      %s250 = scalar_lea.vmem %s2, %s249
      %p251 = pneg %p108
      %p252 = pneg %p105
      %p253 = scmp.lt.s32.totalorder %s19, 1
      %s254 = scalar_select %p253, %s19, 1
      %s255 = smul.addr %s254, 4
      %s256 = scalar_lea.vmem %s3, %s255
      %p257 = pneg %p134
      %p258 = pneg %p131
      %p259 = pneg %p160
      %p260 = pneg %p157
      %p261 = scmp.lt.s32.totalorder %s19, 1
      %s262 = scalar_select %p261, %s19, 1
      %s263 = smul.addr %s262, 8
      %s264 = scalar_lea.vmem %s4, %s263
      %s265 = smul.u32 %s20, 2
      %s266 = ssub.s32 1, %s265
      %s267 = smul.u32 %s19, %s266
      %s268 = sadd.s32 %s20, %s267
      %s269 = smul.u32 4, %s268
      %p270 = scmp.lt.s32.totalorder %s269, 7
      %s271 = scalar_select %p270, %s269, 7
      %s272 = smul.addr %s271, 2
      %s273 = smul.addr %s272, 4
      %s274 = scalar_lea.vmem %s0, %s273
      %s275 = smul.u32 %s20, 2
      %s276 = ssub.s32 1, %s275
      %s277 = smul.u32 %s19, %s276
      %s278 = sadd.s32 %s20, %s277
      %s279 = smul.u32 4, %s278
      %p280 = scmp.lt.s32.totalorder %s19, 1
      %s281 = scalar_select %p280, %s19, 1
      %s282 = smul.addr %s281, 128
      %s283 = smul.addr %s282, 4
      %s284 = scalar_lea.vmem %s1, %s283
      %p285 = scmp.lt.s32.totalorder %s19, 1
      %s286 = scalar_select %p285, %s19, 1
      %s287 = smul.addr %s286, 64
      %s288 = smul.addr %s287, 4
      %s289 = scalar_lea.vmem %s2, %s288
      %p290 = scmp.lt.s32.totalorder %s19, 1
      %s291 = scalar_select %p290, %s19, 1
      %s292 = smul.addr %s291, 4
      %s293 = scalar_lea.vmem %s3, %s292
      %p294 = scmp.lt.s32.totalorder %s19, 1
      %s295 = scalar_select %p294, %s19, 1
      %s296 = smul.addr %s295, 8
      %s297 = scalar_lea.vmem %s4, %s296
      %p299 = scmp.eq.s32.totalorder %s20, 0
      // Predicated region
      $region37: #{lstm_classifier_forward.3} parent=35 // pred_check
        %p300 = pneg %p299
      $region38: #{lstm_classifier_forward.3} parent=35 // pred_check_branch
        %302 = sbr.rel (%p300) target = $region40
      $region39: #{lstm_classifier_forward.3} parent=35 // pred_region
        %303 = vst [vmem:[#allocation3] sm:$0xff] 0.0
        %304 = vst [vmem:[#allocation4] sm:$0xff] 0.0
      $region40: #{lstm_classifier_forward.3} parent=35 // pred_fallthru
        _
      %v305 = vld [vmem:[%s274] sm:$0xff]
      %v306 = vld [vmem:[%s274 + $0x8] sm:$0xff]
      %v307 = vld [vmem:[%s274 + $0x10] sm:$0xff]
      %v308 = vld [vmem:[%s274 + $0x18] sm:$0xff]
      %v309 = vld [vmem:[%s284] sm:$0xff]
      %v310 = vld [vmem:[%s284 + $0x8] sm:$0xff]
      %v311 = vld [vmem:[%s284 + $0x10] sm:$0xff]
      %v312 = vld [vmem:[%s284 + $0x18] sm:$0xff]
      %v313 = vld [vmem:[%s284 + $0x20] sm:$0xff]
      %v314 = vld [vmem:[%s284 + $0x28] sm:$0xff]
      %v315 = vld [vmem:[%s284 + $0x30] sm:$0xff]
      %v316 = vld [vmem:[%s284 + $0x38] sm:$0xff]
      %v317 = vld [vmem:[%s284 + $0x40] sm:$0xff]
      %v318 = vld [vmem:[%s284 + $0x48] sm:$0xff]
      %v319 = vld [vmem:[%s284 + $0x50] sm:$0xff]
      %v320 = vld [vmem:[%s284 + $0x58] sm:$0xff]
      %v321 = vld [vmem:[%s284 + $0x60] sm:$0xff]
      %v322 = vld [vmem:[%s284 + $0x68] sm:$0xff]
      %v323 = vld [vmem:[%s284 + $0x70] sm:$0xff]
      %v324 = vld [vmem:[%s284 + $0x78] sm:$0xff]
      %v325 = vld [vmem:[%s284 + $0x80] sm:$0xff]
      %v326 = vld [vmem:[%s284 + $0x88] sm:$0xff]
      %v327 = vld [vmem:[%s284 + $0x90] sm:$0xff]
      %v328 = vld [vmem:[%s284 + $0x98] sm:$0xff]
      %v329 = vld [vmem:[%s284 + $0xa0] sm:$0xff]
      %v330 = vld [vmem:[%s284 + $0xa8] sm:$0xff]
      %v331 = vld [vmem:[%s284 + $0xb0] sm:$0xff]
      %v332 = vld [vmem:[%s284 + $0xb8] sm:$0xff]
      %v333 = vld [vmem:[%s284 + $0xc0] sm:$0xff]
      %v334 = vld [vmem:[%s284 + $0xc8] sm:$0xff]
      %v335 = vld [vmem:[%s284 + $0xd0] sm:$0xff]
      %v336 = vld [vmem:[%s284 + $0xd8] sm:$0xff]
      %v337 = vld [vmem:[%s284 + $0xe0] sm:$0xff]
      %v338 = vld [vmem:[%s284 + $0xe8] sm:$0xff]
      %v339 = vld [vmem:[%s284 + $0xf0] sm:$0xff]
      %v340 = vld [vmem:[%s284 + $0xf8] sm:$0xff]
      %v341 = vld [vmem:[%s284 + $0x100] sm:$0xff]
      %v342 = vld [vmem:[%s284 + $0x108] sm:$0xff]
      %v343 = vld [vmem:[%s284 + $0x110] sm:$0xff]
      %v344 = vld [vmem:[%s284 + $0x118] sm:$0xff]
      %v345 = vld [vmem:[%s284 + $0x120] sm:$0xff]
      %v346 = vld [vmem:[%s284 + $0x128] sm:$0xff]
      %v347 = vld [vmem:[%s284 + $0x130] sm:$0xff]
      %v348 = vld [vmem:[%s284 + $0x138] sm:$0xff]
      %v349 = vld [vmem:[%s284 + $0x140] sm:$0xff]
      %v350 = vld [vmem:[%s284 + $0x148] sm:$0xff]
      %v351 = vld [vmem:[%s284 + $0x150] sm:$0xff]
      %v352 = vld [vmem:[%s284 + $0x158] sm:$0xff]
      %v353 = vld [vmem:[%s284 + $0x160] sm:$0xff]
      %v354 = vld [vmem:[%s284 + $0x168] sm:$0xff]
      %v355 = vld [vmem:[%s284 + $0x170] sm:$0xff]
      %v356 = vld [vmem:[%s284 + $0x178] sm:$0xff]
      %v357 = vld [vmem:[%s284 + $0x180] sm:$0xff]
      %v358 = vld [vmem:[%s284 + $0x188] sm:$0xff]
      %v359 = vld [vmem:[%s284 + $0x190] sm:$0xff]
      %v360 = vld [vmem:[%s284 + $0x198] sm:$0xff]
      %v361 = vld [vmem:[%s284 + $0x1a0] sm:$0xff]
      %v362 = vld [vmem:[%s284 + $0x1a8] sm:$0xff]
      %v363 = vld [vmem:[%s284 + $0x1b0] sm:$0xff]
      %v364 = vld [vmem:[%s284 + $0x1b8] sm:$0xff]
      %v365 = vld [vmem:[%s284 + $0x1c0] sm:$0xff]
      %v366 = vld [vmem:[%s284 + $0x1c8] sm:$0xff]
      %v367 = vld [vmem:[%s284 + $0x1d0] sm:$0xff]
      %v368 = vld [vmem:[%s284 + $0x1d8] sm:$0xff]
      %v369 = vld [vmem:[%s284 + $0x1e0] sm:$0xff]
      %v370 = vld [vmem:[%s284 + $0x1e8] sm:$0xff]
      %v371 = vld [vmem:[%s284 + $0x1f0] sm:$0xff]
      %v372 = vld [vmem:[%s284 + $0x1f8] sm:$0xff]
      %v373 = vld [vmem:[%s293] sm:$0xf]
      %v375 = vlaneseq
      %v376 = vshrl.u32 %v375, 7
      %v377 = vsub.s32 0, %v376
      %v378 = vrot.slane %v373, %v377
      %v379 = vlaneseq
      %v380 = vshrl.u32 %v379, 7
      %v381 = vsub.s32 1, %v380
      %v382 = vrot.slane %v373, %v381
      %v383 = vlaneseq
      %v384 = vshrl.u32 %v383, 7
      %v385 = vsub.s32 2, %v384
      %v386 = vrot.slane %v373, %v385
      %v387 = vlaneseq
      %v388 = vshrl.u32 %v387, 7
      %v389 = vsub.s32 3, %v388
      %v390 = vrot.slane %v373, %v389
      %v399 = vunpack.c.l.b16 %v305
      %v400 = vunpack.c.h.b16 %v305
      %v401 = vunpack.c.l.b16 %v306
      %v402 = vunpack.c.h.b16 %v306
      %v403 = vunpack.c.l.b16 %v307
      %v404 = vunpack.c.h.b16 %v307
      %v405 = vunpack.c.l.b16 %v308
      %v406 = vunpack.c.h.b16 %v308
      %v407 = vpack.c.b16 %v401, %v399
      %v408 = vpack.c.b16 %v402, %v400
      %v409 = vpack.c.b16 %v405, %v403
      %v410 = vpack.c.b16 %v406, %v404
      %v479 = vunpack.c.l.b16 %v309
      %v480 = vunpack.c.h.b16 %v309
      %v481 = vunpack.c.l.b16 %v310
      %v482 = vunpack.c.h.b16 %v310
      %v483 = vunpack.c.l.b16 %v311
      %v484 = vunpack.c.h.b16 %v311
      %v485 = vunpack.c.l.b16 %v312
      %v486 = vunpack.c.h.b16 %v312
      %v487 = vunpack.c.l.b16 %v313
      %v488 = vunpack.c.h.b16 %v313
      %v489 = vunpack.c.l.b16 %v314
      %v490 = vunpack.c.h.b16 %v314
      %v491 = vunpack.c.l.b16 %v315
      %v492 = vunpack.c.h.b16 %v315
      %v493 = vunpack.c.l.b16 %v316
      %v494 = vunpack.c.h.b16 %v316
      %v495 = vunpack.c.l.b16 %v317
      %v496 = vunpack.c.h.b16 %v317
      %v497 = vunpack.c.l.b16 %v318
      %v498 = vunpack.c.h.b16 %v318
      %v499 = vunpack.c.l.b16 %v319
      %v500 = vunpack.c.h.b16 %v319
      %v501 = vunpack.c.l.b16 %v320
      %v502 = vunpack.c.h.b16 %v320
      %v503 = vunpack.c.l.b16 %v321
      %v504 = vunpack.c.h.b16 %v321
      %v505 = vunpack.c.l.b16 %v322
      %v506 = vunpack.c.h.b16 %v322
      %v507 = vunpack.c.l.b16 %v323
      %v508 = vunpack.c.h.b16 %v323
      %v509 = vunpack.c.l.b16 %v324
      %v510 = vunpack.c.h.b16 %v324
      %v511 = vunpack.c.l.b16 %v325
      %v512 = vunpack.c.h.b16 %v325
      %v513 = vunpack.c.l.b16 %v326
      %v514 = vunpack.c.h.b16 %v326
      %v515 = vunpack.c.l.b16 %v327
      %v516 = vunpack.c.h.b16 %v327
      %v517 = vunpack.c.l.b16 %v328
      %v518 = vunpack.c.h.b16 %v328
      %v519 = vunpack.c.l.b16 %v329
      %v520 = vunpack.c.h.b16 %v329
      %v521 = vunpack.c.l.b16 %v330
      %v522 = vunpack.c.h.b16 %v330
      %v523 = vunpack.c.l.b16 %v331
      %v524 = vunpack.c.h.b16 %v331
      %v525 = vunpack.c.l.b16 %v332
      %v526 = vunpack.c.h.b16 %v332
      %v527 = vunpack.c.l.b16 %v333
      %v528 = vunpack.c.h.b16 %v333
      %v529 = vunpack.c.l.b16 %v334
      %v530 = vunpack.c.h.b16 %v334
      %v531 = vunpack.c.l.b16 %v335
      %v532 = vunpack.c.h.b16 %v335
      %v533 = vunpack.c.l.b16 %v336
      %v534 = vunpack.c.h.b16 %v336
      %v535 = vunpack.c.l.b16 %v337
      %v536 = vunpack.c.h.b16 %v337
      %v537 = vunpack.c.l.b16 %v338
      %v538 = vunpack.c.h.b16 %v338
      %v539 = vunpack.c.l.b16 %v339
      %v540 = vunpack.c.h.b16 %v339
      %v541 = vunpack.c.l.b16 %v340
      %v542 = vunpack.c.h.b16 %v340
      %v543 = vunpack.c.l.b16 %v341
      %v544 = vunpack.c.h.b16 %v341
      %v545 = vunpack.c.l.b16 %v342
      %v546 = vunpack.c.h.b16 %v342
      %v547 = vunpack.c.l.b16 %v343
      %v548 = vunpack.c.h.b16 %v343
      %v549 = vunpack.c.l.b16 %v344
      %v550 = vunpack.c.h.b16 %v344
      %v551 = vunpack.c.l.b16 %v345
      %v552 = vunpack.c.h.b16 %v345
      %v553 = vunpack.c.l.b16 %v346
      %v554 = vunpack.c.h.b16 %v346
      %v555 = vunpack.c.l.b16 %v347
      %v556 = vunpack.c.h.b16 %v347
      %v557 = vunpack.c.l.b16 %v348
      %v558 = vunpack.c.h.b16 %v348
      %v559 = vunpack.c.l.b16 %v349
      %v560 = vunpack.c.h.b16 %v349
      %v561 = vunpack.c.l.b16 %v350
      %v562 = vunpack.c.h.b16 %v350
      %v563 = vunpack.c.l.b16 %v351
      %v564 = vunpack.c.h.b16 %v351
      %v565 = vunpack.c.l.b16 %v352
      %v566 = vunpack.c.h.b16 %v352
      %v567 = vunpack.c.l.b16 %v353
      %v568 = vunpack.c.h.b16 %v353
      %v569 = vunpack.c.l.b16 %v354
      %v570 = vunpack.c.h.b16 %v354
      %v571 = vunpack.c.l.b16 %v355
      %v572 = vunpack.c.h.b16 %v355
      %v573 = vunpack.c.l.b16 %v356
      %v574 = vunpack.c.h.b16 %v356
      %v575 = vunpack.c.l.b16 %v357
      %v576 = vunpack.c.h.b16 %v357
      %v577 = vunpack.c.l.b16 %v358
      %v578 = vunpack.c.h.b16 %v358
      %v579 = vunpack.c.l.b16 %v359
      %v580 = vunpack.c.h.b16 %v359
      %v581 = vunpack.c.l.b16 %v360
      %v582 = vunpack.c.h.b16 %v360
      %v583 = vunpack.c.l.b16 %v361
      %v584 = vunpack.c.h.b16 %v361
      %v585 = vunpack.c.l.b16 %v362
      %v586 = vunpack.c.h.b16 %v362
      %v587 = vunpack.c.l.b16 %v363
      %v588 = vunpack.c.h.b16 %v363
      %v589 = vunpack.c.l.b16 %v364
      %v590 = vunpack.c.h.b16 %v364
      %v591 = vunpack.c.l.b16 %v365
      %v592 = vunpack.c.h.b16 %v365
      %v593 = vunpack.c.l.b16 %v366
      %v594 = vunpack.c.h.b16 %v366
      %v595 = vunpack.c.l.b16 %v367
      %v596 = vunpack.c.h.b16 %v367
      %v597 = vunpack.c.l.b16 %v368
      %v598 = vunpack.c.h.b16 %v368
      %v599 = vunpack.c.l.b16 %v369
      %v600 = vunpack.c.h.b16 %v369
      %v601 = vunpack.c.l.b16 %v370
      %v602 = vunpack.c.h.b16 %v370
      %v603 = vunpack.c.l.b16 %v371
      %v604 = vunpack.c.h.b16 %v371
      %v605 = vunpack.c.l.b16 %v372
      %v606 = vunpack.c.h.b16 %v372
      %v607 = vpack.c.b16 %v483, %v479
      %v608 = vpack.c.b16 %v484, %v480
      %v609 = vpack.c.b16 %v485, %v481
      %v610 = vpack.c.b16 %v486, %v482
      %v611 = vpack.c.b16 %v491, %v487
      %v612 = vpack.c.b16 %v492, %v488
      %v613 = vpack.c.b16 %v493, %v489
      %v614 = vpack.c.b16 %v494, %v490
      %v615 = vpack.c.b16 %v499, %v495
      %v616 = vpack.c.b16 %v500, %v496
      %v617 = vpack.c.b16 %v501, %v497
      %v618 = vpack.c.b16 %v502, %v498
      %v619 = vpack.c.b16 %v507, %v503
      %v620 = vpack.c.b16 %v508, %v504
      %v621 = vpack.c.b16 %v509, %v505
      %v622 = vpack.c.b16 %v510, %v506
      %v623 = vpack.c.b16 %v515, %v511
      %v624 = vpack.c.b16 %v516, %v512
      %v625 = vpack.c.b16 %v517, %v513
      %v626 = vpack.c.b16 %v518, %v514
      %v627 = vpack.c.b16 %v523, %v519
      %v628 = vpack.c.b16 %v524, %v520
      %v629 = vpack.c.b16 %v525, %v521
      %v630 = vpack.c.b16 %v526, %v522
      %v631 = vpack.c.b16 %v531, %v527
      %v632 = vpack.c.b16 %v532, %v528
      %v633 = vpack.c.b16 %v533, %v529
      %v634 = vpack.c.b16 %v534, %v530
      %v635 = vpack.c.b16 %v539, %v535
      %v636 = vpack.c.b16 %v540, %v536
      %v637 = vpack.c.b16 %v541, %v537
      %v638 = vpack.c.b16 %v542, %v538
      %v639 = vpack.c.b16 %v547, %v543
      %v640 = vpack.c.b16 %v548, %v544
      %v641 = vpack.c.b16 %v549, %v545
      %v642 = vpack.c.b16 %v550, %v546
      %v643 = vpack.c.b16 %v555, %v551
      %v644 = vpack.c.b16 %v556, %v552
      %v645 = vpack.c.b16 %v557, %v553
      %v646 = vpack.c.b16 %v558, %v554
      %v647 = vpack.c.b16 %v563, %v559
      %v648 = vpack.c.b16 %v564, %v560
      %v649 = vpack.c.b16 %v565, %v561
      %v650 = vpack.c.b16 %v566, %v562
      %v651 = vpack.c.b16 %v571, %v567
      %v652 = vpack.c.b16 %v572, %v568
      %v653 = vpack.c.b16 %v573, %v569
      %v654 = vpack.c.b16 %v574, %v570
      %v655 = vpack.c.b16 %v579, %v575
      %v656 = vpack.c.b16 %v580, %v576
      %v657 = vpack.c.b16 %v581, %v577
      %v658 = vpack.c.b16 %v582, %v578
      %v659 = vpack.c.b16 %v587, %v583
      %v660 = vpack.c.b16 %v588, %v584
      %v661 = vpack.c.b16 %v589, %v585
      %v662 = vpack.c.b16 %v590, %v586
      %v663 = vpack.c.b16 %v595, %v591
      %v664 = vpack.c.b16 %v596, %v592
      %v665 = vpack.c.b16 %v597, %v593
      %v666 = vpack.c.b16 %v598, %v594
      %v667 = vpack.c.b16 %v603, %v599
      %v668 = vpack.c.b16 %v604, %v600
      %v669 = vpack.c.b16 %v605, %v601
      %v670 = vpack.c.b16 %v606, %v602
      %735 = vmatprep.subr.bf16.mxu0 %v608
      %736 = vmatpush1.bf16.msra.mxu0 %v607
      %737 = vmatprep.subr.bf16.mxu0 %v612
      %738 = vmatpush1.bf16.msra.mxu0 %v611
      %739 = vmatprep.subr.bf16.mxu0 %v616
      %740 = vmatpush1.bf16.msra.mxu0 %v615
      %741 = vmatprep.subr.bf16.mxu0 %v620
      %742 = vmatpush1.bf16.msra.mxu0 %v619
      %743 = vmatprep.subr.bf16.mxu0 %v624
      %744 = vmatpush1.bf16.msra.mxu0 %v623
      %745 = vmatprep.subr.bf16.mxu0 %v628
      %746 = vmatpush1.bf16.msra.mxu0 %v627
      %747 = vmatprep.subr.bf16.mxu0 %v632
      %748 = vmatpush1.bf16.msra.mxu0 %v631
      %749 = vmatprep.subr.bf16.mxu0 %v636
      %750 = vmatpush1.bf16.msra.mxu0 %v635
      %751 = vmatprep.subr.bf16.mxu0 %v640
      %752 = vmatpush1.bf16.msra.mxu0 %v639
      %753 = vmatprep.subr.bf16.mxu0 %v644
      %754 = vmatpush1.bf16.msra.mxu0 %v643
      %755 = vmatprep.subr.bf16.mxu0 %v648
      %756 = vmatpush1.bf16.msra.mxu0 %v647
      %757 = vmatprep.subr.bf16.mxu0 %v652
      %758 = vmatpush1.bf16.msra.mxu0 %v651
      %759 = vmatprep.subr.bf16.mxu0 %v656
      %760 = vmatpush1.bf16.msra.mxu0 %v655
      %761 = vmatprep.subr.bf16.mxu0 %v660
      %762 = vmatpush1.bf16.msra.mxu0 %v659
      %763 = vmatprep.subr.bf16.mxu0 %v664
      %764 = vmatpush1.bf16.msra.mxu0 %v663
      %765 = vmatprep.subr.bf16.mxu0 %v668
      %766 = vmatpush1.bf16.msra.mxu0 %v667
      %767 = vmatprep.mubr.bf16.mxu0 %v408
      %768 = vmatmul.mubr.bf16.gmra.mrb[0].mxu0 %v407
      %v769 = vpop.f32.mrb[0].mxu0
      %v770 = vadd.f32 %v378, %v769
      %v771 = vpop.f32.mrb[0].mxu0
      %v772 = vadd.f32 %v382, %v771
      %v773 = vpop.f32.mrb[0].mxu0
      %v774 = vadd.f32 %v378, %v773
      %v775 = vpop.f32.mrb[0].mxu0
      %v776 = vadd.f32 %v382, %v775
      %777 = vmatprep.mubr.bf16.mxu0 %v410
      %778 = vmatmul.mubr.bf16.gmra.mrb[0].mxu0 %v409
      %v779 = vpop.f32.mrb[0].mxu0
      %v780 = vadd.f32 %v378, %v779
      %v781 = vpop.f32.mrb[0].mxu0
      %v782 = vadd.f32 %v382, %v781
      %v783 = vpop.f32.mrb[0].mxu0
      %v784 = vadd.f32 %v378, %v783
      %v785 = vpop.f32.mrb[0].mxu0
      %v786 = vadd.f32 %v382, %v785
      %787 = vdwg.mxu0
      %788 = vmatprep.subr.bf16.mxu0 %v610
      %789 = vmatpush1.bf16.msra.mxu0 %v609
      %790 = vmatprep.subr.bf16.mxu0 %v614
      %791 = vmatpush1.bf16.msra.mxu0 %v613
      %792 = vmatprep.subr.bf16.mxu0 %v618
      %793 = vmatpush1.bf16.msra.mxu0 %v617
      %794 = vmatprep.subr.bf16.mxu0 %v622
      %795 = vmatpush1.bf16.msra.mxu0 %v621
      %796 = vmatprep.subr.bf16.mxu0 %v626
      %797 = vmatpush1.bf16.msra.mxu0 %v625
      %798 = vmatprep.subr.bf16.mxu0 %v630
      %799 = vmatpush1.bf16.msra.mxu0 %v629
      %800 = vmatprep.subr.bf16.mxu0 %v634
      %801 = vmatpush1.bf16.msra.mxu0 %v633
      %802 = vmatprep.subr.bf16.mxu0 %v638
      %803 = vmatpush1.bf16.msra.mxu0 %v637
      %804 = vmatprep.subr.bf16.mxu0 %v642
      %805 = vmatpush1.bf16.msra.mxu0 %v641
      %806 = vmatprep.subr.bf16.mxu0 %v646
      %807 = vmatpush1.bf16.msra.mxu0 %v645
      %808 = vmatprep.subr.bf16.mxu0 %v650
      %809 = vmatpush1.bf16.msra.mxu0 %v649
      %810 = vmatprep.subr.bf16.mxu0 %v654
      %811 = vmatpush1.bf16.msra.mxu0 %v653
      %812 = vmatprep.subr.bf16.mxu0 %v658
      %813 = vmatpush1.bf16.msra.mxu0 %v657
      %814 = vmatprep.subr.bf16.mxu0 %v662
      %815 = vmatpush1.bf16.msra.mxu0 %v661
      %816 = vmatprep.subr.bf16.mxu0 %v666
      %817 = vmatpush1.bf16.msra.mxu0 %v665
      %818 = vmatprep.subr.bf16.mxu0 %v670
      %819 = vmatpush1.bf16.msra.mxu0 %v669
      %820 = vmatprep.mubr.bf16.mxu0 %v408
      %821 = vmatmul.mubr.bf16.gmra.mrb[0].mxu0 %v407
      %v822 = vpop.f32.mrb[0].mxu0
      %v823 = vadd.f32 %v386, %v822
      %v824 = vpop.f32.mrb[0].mxu0
      %v825 = vadd.f32 %v390, %v824
      %v826 = vpop.f32.mrb[0].mxu0
      %v827 = vadd.f32 %v386, %v826
      %v828 = vpop.f32.mrb[0].mxu0
      %v829 = vadd.f32 %v390, %v828
      %830 = vmatprep.mubr.bf16.mxu0 %v410
      %831 = vmatmul.mubr.bf16.gmra.mrb[0].mxu0 %v409
      %v832 = vpop.f32.mrb[0].mxu0
      %v833 = vadd.f32 %v386, %v832
      %v834 = vpop.f32.mrb[0].mxu0
      %v835 = vadd.f32 %v390, %v834
      %v836 = vpop.f32.mrb[0].mxu0
      %v837 = vadd.f32 %v386, %v836
      %v838 = vpop.f32.mrb[0].mxu0
      %v839 = vadd.f32 %v390, %v838
      %840 = vdwg.mxu0
      %841 = vst [vmem:[#allocation2] sm:$0xff] %v770
      %842 = vst [vmem:[#allocation2 + $0x8] sm:$0xff] %v772
      %843 = vst [vmem:[#allocation2 + $0x10] sm:$0xff] %v823
      %844 = vst [vmem:[#allocation2 + $0x18] sm:$0xff] %v825
      %845 = vst [vmem:[#allocation2 + $0x20] sm:$0xff] %v774
      %846 = vst [vmem:[#allocation2 + $0x28] sm:$0xff] %v776
      %847 = vst [vmem:[#allocation2 + $0x30] sm:$0xff] %v827
      %848 = vst [vmem:[#allocation2 + $0x38] sm:$0xff] %v829
      %849 = vst [vmem:[#allocation2 + $0x40] sm:$0xff] %v780
      %850 = vst [vmem:[#allocation2 + $0x48] sm:$0xff] %v782
      %851 = vst [vmem:[#allocation2 + $0x50] sm:$0xff] %v833
      %852 = vst [vmem:[#allocation2 + $0x58] sm:$0xff] %v835
      %853 = vst [vmem:[#allocation2 + $0x60] sm:$0xff] %v784
      %854 = vst [vmem:[#allocation2 + $0x68] sm:$0xff] %v786
      %855 = vst [vmem:[#allocation2 + $0x70] sm:$0xff] %v837
      %856 = vst [vmem:[#allocation2 + $0x78] sm:$0xff] %v839
      %v857 = vld [vmem:[%s289] sm:$0xff]
      %v858 = vld [vmem:[%s289 + $0x8] sm:$0xff]
      %v859 = vld [vmem:[%s289 + $0x10] sm:$0xff]
      %v860 = vld [vmem:[%s289 + $0x18] sm:$0xff]
      %v861 = vld [vmem:[%s289 + $0x20] sm:$0xff]
      %v862 = vld [vmem:[%s289 + $0x28] sm:$0xff]
      %v863 = vld [vmem:[%s289 + $0x30] sm:$0xff]
      %v864 = vld [vmem:[%s289 + $0x38] sm:$0xff]
      %v865 = vld [vmem:[%s289 + $0x40] sm:$0xff]
      %v866 = vld [vmem:[%s289 + $0x48] sm:$0xff]
      %v867 = vld [vmem:[%s289 + $0x50] sm:$0xff]
      %v868 = vld [vmem:[%s289 + $0x58] sm:$0xff]
      %v869 = vld [vmem:[%s289 + $0x60] sm:$0xff]
      %v870 = vld [vmem:[%s289 + $0x68] sm:$0xff]
      %v871 = vld [vmem:[%s289 + $0x70] sm:$0xff]
      %v872 = vld [vmem:[%s289 + $0x78] sm:$0xff]
      %v873 = vld [vmem:[%s289 + $0x80] sm:$0xff]
      %v874 = vld [vmem:[%s289 + $0x88] sm:$0xff]
      %v875 = vld [vmem:[%s289 + $0x90] sm:$0xff]
      %v876 = vld [vmem:[%s289 + $0x98] sm:$0xff]
      %v877 = vld [vmem:[%s289 + $0xa0] sm:$0xff]
      %v878 = vld [vmem:[%s289 + $0xa8] sm:$0xff]
      %v879 = vld [vmem:[%s289 + $0xb0] sm:$0xff]
      %v880 = vld [vmem:[%s289 + $0xb8] sm:$0xff]
      %v881 = vld [vmem:[%s289 + $0xc0] sm:$0xff]
      %v882 = vld [vmem:[%s289 + $0xc8] sm:$0xff]
      %v883 = vld [vmem:[%s289 + $0xd0] sm:$0xff]
      %v884 = vld [vmem:[%s289 + $0xd8] sm:$0xff]
      %v885 = vld [vmem:[%s289 + $0xe0] sm:$0xff]
      %v886 = vld [vmem:[%s289 + $0xe8] sm:$0xff]
      %v887 = vld [vmem:[%s289 + $0xf0] sm:$0xff]
      %v888 = vld [vmem:[%s289 + $0xf8] sm:$0xff]
      %v889 = vld [vmem:[#allocation3] sm:$0xff]
      %v890 = vld [vmem:[#allocation4] sm:$0xff]
      %s891 = smul.u32 %s19, 3
      %s892 = smul.u32 %s891, 4
      %s893 = smul.addr %s892, 8
      %s894 = scalar_lea.vmem [#allocation2], %s893
      %v895 = vld [vmem:[%s894] sm:$0xff]
      %v896 = vld [vmem:[%s894 + $0x8] sm:$0xff]
      %v897 = vld [vmem:[%s894 + $0x10] sm:$0xff]
      %v898 = vld [vmem:[%s894 + $0x18] sm:$0xff]
      %v899 = vpack.c.bf16 %v889, %v889
      %v932 = vunpack.c.l.b16 %v857
      %v933 = vunpack.c.h.b16 %v857
      %v934 = vunpack.c.l.b16 %v858
      %v935 = vunpack.c.h.b16 %v858
      %v936 = vunpack.c.l.b16 %v859
      %v937 = vunpack.c.h.b16 %v859
      %v938 = vunpack.c.l.b16 %v860
      %v939 = vunpack.c.h.b16 %v860
      %v940 = vunpack.c.l.b16 %v861
      %v941 = vunpack.c.h.b16 %v861
      %v942 = vunpack.c.l.b16 %v862
      %v943 = vunpack.c.h.b16 %v862
      %v944 = vunpack.c.l.b16 %v863
      %v945 = vunpack.c.h.b16 %v863
      %v946 = vunpack.c.l.b16 %v864
      %v947 = vunpack.c.h.b16 %v864
      %v948 = vunpack.c.l.b16 %v865
      %v949 = vunpack.c.h.b16 %v865
      %v950 = vunpack.c.l.b16 %v866
      %v951 = vunpack.c.h.b16 %v866
      %v952 = vunpack.c.l.b16 %v867
      %v953 = vunpack.c.h.b16 %v867
      %v954 = vunpack.c.l.b16 %v868
      %v955 = vunpack.c.h.b16 %v868
      %v956 = vunpack.c.l.b16 %v869
      %v957 = vunpack.c.h.b16 %v869
      %v958 = vunpack.c.l.b16 %v870
      %v959 = vunpack.c.h.b16 %v870
      %v960 = vunpack.c.l.b16 %v871
      %v961 = vunpack.c.h.b16 %v871
      %v962 = vunpack.c.l.b16 %v872
      %v963 = vunpack.c.h.b16 %v872
      %v964 = vunpack.c.l.b16 %v873
      %v965 = vunpack.c.h.b16 %v873
      %v966 = vunpack.c.l.b16 %v874
      %v967 = vunpack.c.h.b16 %v874
      %v968 = vunpack.c.l.b16 %v875
      %v969 = vunpack.c.h.b16 %v875
      %v970 = vunpack.c.l.b16 %v876
      %v971 = vunpack.c.h.b16 %v876
      %v972 = vunpack.c.l.b16 %v877
      %v973 = vunpack.c.h.b16 %v877
      %v974 = vunpack.c.l.b16 %v878
      %v975 = vunpack.c.h.b16 %v878
      %v976 = vunpack.c.l.b16 %v879
      %v977 = vunpack.c.h.b16 %v879
      %v978 = vunpack.c.l.b16 %v880
      %v979 = vunpack.c.h.b16 %v880
      %v980 = vunpack.c.l.b16 %v881
      %v981 = vunpack.c.h.b16 %v881
      %v982 = vunpack.c.l.b16 %v882
      %v983 = vunpack.c.h.b16 %v882
      %v984 = vunpack.c.l.b16 %v883
      %v985 = vunpack.c.h.b16 %v883
      %v986 = vunpack.c.l.b16 %v884
      %v987 = vunpack.c.h.b16 %v884
      %v988 = vunpack.c.l.b16 %v885
      %v989 = vunpack.c.h.b16 %v885
      %v990 = vunpack.c.l.b16 %v886
      %v991 = vunpack.c.h.b16 %v886
      %v992 = vunpack.c.l.b16 %v887
      %v993 = vunpack.c.h.b16 %v887
      %v994 = vunpack.c.l.b16 %v888
      %v995 = vunpack.c.h.b16 %v888
      %v996 = vpack.c.b16 %v936, %v932
      %v997 = vpack.c.b16 %v937, %v933
      %v998 = vpack.c.b16 %v938, %v934
      %v999 = vpack.c.b16 %v939, %v935
      %v1000 = vpack.c.b16 %v944, %v940
      %v1001 = vpack.c.b16 %v945, %v941
      %v1002 = vpack.c.b16 %v946, %v942
      %v1003 = vpack.c.b16 %v947, %v943
      %v1004 = vpack.c.b16 %v952, %v948
      %v1005 = vpack.c.b16 %v953, %v949
      %v1006 = vpack.c.b16 %v954, %v950
      %v1007 = vpack.c.b16 %v955, %v951
      %v1008 = vpack.c.b16 %v960, %v956
      %v1009 = vpack.c.b16 %v961, %v957
      %v1010 = vpack.c.b16 %v962, %v958
      %v1011 = vpack.c.b16 %v963, %v959
      %v1012 = vpack.c.b16 %v968, %v964
      %v1013 = vpack.c.b16 %v969, %v965
      %v1014 = vpack.c.b16 %v970, %v966
      %v1015 = vpack.c.b16 %v971, %v967
      %v1016 = vpack.c.b16 %v976, %v972
      %v1017 = vpack.c.b16 %v977, %v973
      %v1018 = vpack.c.b16 %v978, %v974
      %v1019 = vpack.c.b16 %v979, %v975
      %v1020 = vpack.c.b16 %v984, %v980
      %v1021 = vpack.c.b16 %v985, %v981
      %v1022 = vpack.c.b16 %v986, %v982
      %v1023 = vpack.c.b16 %v987, %v983
      %v1024 = vpack.c.b16 %v992, %v988
      %v1025 = vpack.c.b16 %v993, %v989
      %v1026 = vpack.c.b16 %v994, %v990
      %v1027 = vpack.c.b16 %v995, %v991
      %1060 = vmatprep.subr.bf16.mxu0 %v997
      %1061 = vmatpush1.bf16.msra.mxu0 %v996
      %1062 = vmatprep.subr.bf16.mxu0 %v1001
      %1063 = vmatpush1.bf16.msra.mxu0 %v1000
      %1064 = vmatprep.subr.bf16.mxu0 %v1005
      %1065 = vmatpush1.bf16.msra.mxu0 %v1004
      %1066 = vmatprep.subr.bf16.mxu0 %v1009
      %1067 = vmatpush1.bf16.msra.mxu0 %v1008
      %1068 = vmatprep.subr.bf16.mxu0 %v1013
      %1069 = vmatpush1.bf16.msra.mxu0 %v1012
      %1070 = vmatprep.subr.bf16.mxu0 %v1017
      %1071 = vmatpush1.bf16.msra.mxu0 %v1016
      %1072 = vmatprep.subr.bf16.mxu0 %v1021
      %1073 = vmatpush1.bf16.msra.mxu0 %v1020
      %1074 = vmatprep.subr.bf16.mxu0 %v1025
      %1075 = vmatpush1.bf16.msra.mxu0 %v1024
      %1076 = vmatprep.subr.bf16.mxu0 0
      %1077 = vmatpush1.bf16.msra.mxu0 0
      %1078 = vmatprep.subr.bf16.mxu0 0
      %1079 = vmatpush1.bf16.msra.mxu0 0
      %1080 = vmatprep.subr.bf16.mxu0 0
      %1081 = vmatpush1.bf16.msra.mxu0 0
      %1082 = vmatprep.subr.bf16.mxu0 0
      %1083 = vmatpush1.bf16.msra.mxu0 0
      %1084 = vmatprep.subr.bf16.mxu0 0
      %1085 = vmatpush1.bf16.msra.mxu0 0
      %1086 = vmatprep.subr.bf16.mxu0 0
      %1087 = vmatpush1.bf16.msra.mxu0 0
      %1088 = vmatprep.subr.bf16.mxu0 0
      %1089 = vmatpush1.bf16.msra.mxu0 0
      %1090 = vmatprep.subr.bf16.mxu0 0
      %1091 = vmatpush1.bf16.msra.mxu0 0
      %1092 = vmatprep.mubr.bf16.mxu0 0
      %1093 = vmatmul.mubr.bf16.gmra.mrb[0].mxu0 %v899
      %v1094 = vpop.f32.mrb[0].mxu0
      %v1095 = vadd.f32 0.0, %v1094
      %v1096 = vpop.f32.mrb[0].mxu0
      %v1097 = vadd.f32 0.0, %v1096
      %v1098 = vpop.f32.mrb[0].mxu0
      %v1099 = vpop.f32.mrb[0].mxu0
      %1100 = vdwg.mxu0
      %1101 = vmatprep.subr.bf16.mxu0 %v999
      %1102 = vmatpush1.bf16.msra.mxu0 %v998
      %1103 = vmatprep.subr.bf16.mxu0 %v1003
      %1104 = vmatpush1.bf16.msra.mxu0 %v1002
      %1105 = vmatprep.subr.bf16.mxu0 %v1007
      %1106 = vmatpush1.bf16.msra.mxu0 %v1006
      %1107 = vmatprep.subr.bf16.mxu0 %v1011
      %1108 = vmatpush1.bf16.msra.mxu0 %v1010
      %1109 = vmatprep.subr.bf16.mxu0 %v1015
      %1110 = vmatpush1.bf16.msra.mxu0 %v1014
      %1111 = vmatprep.subr.bf16.mxu0 %v1019
      %1112 = vmatpush1.bf16.msra.mxu0 %v1018
      %1113 = vmatprep.subr.bf16.mxu0 %v1023
      %1114 = vmatpush1.bf16.msra.mxu0 %v1022
      %1115 = vmatprep.subr.bf16.mxu0 %v1027
      %1116 = vmatpush1.bf16.msra.mxu0 %v1026
      %1117 = vmatprep.subr.bf16.mxu0 0
      %1118 = vmatpush1.bf16.msra.mxu0 0
      %1119 = vmatprep.subr.bf16.mxu0 0
      %1120 = vmatpush1.bf16.msra.mxu0 0
      %1121 = vmatprep.subr.bf16.mxu0 0
      %1122 = vmatpush1.bf16.msra.mxu0 0
      %1123 = vmatprep.subr.bf16.mxu0 0
      %1124 = vmatpush1.bf16.msra.mxu0 0
      %1125 = vmatprep.subr.bf16.mxu0 0
      %1126 = vmatpush1.bf16.msra.mxu0 0
      %1127 = vmatprep.subr.bf16.mxu0 0
      %1128 = vmatpush1.bf16.msra.mxu0 0
      %1129 = vmatprep.subr.bf16.mxu0 0
      %1130 = vmatpush1.bf16.msra.mxu0 0
      %1131 = vmatprep.subr.bf16.mxu0 0
      %1132 = vmatpush1.bf16.msra.mxu0 0
      %1133 = vmatprep.mubr.bf16.mxu0 0
      %1134 = vmatmul.mubr.bf16.gmra.mrb[0].mxu0 %v899
      %v1135 = vpop.f32.mrb[0].mxu0
      %v1136 = vadd.f32 0.0, %v1135
      %v1137 = vpop.f32.mrb[0].mxu0
      %v1138 = vadd.f32 0.0, %v1137
      %v1139 = vpop.f32.mrb[0].mxu0
      %v1140 = vpop.f32.mrb[0].mxu0
      %1141 = vdwg.mxu0
      %v1142 = vadd.f32 %v895, %v1095
      %v1143 = vadd.f32 %v896, %v1097
      %v1144 = vadd.f32 %v897, %v1136
      %v1145 = vadd.f32 %v898, %v1138
      %v1146 = vxor.u32 %v1142, 2147483648
      %v1147 = vxor.u32 %v1143, 2147483648
      %v1148 = vxor.u32 %v1144, 2147483648
      %v1149 = vmul.f32 %v1146, 1.442695
      %v1150 = vpow.pop %v1149
      %v1151 = vmul.f32 %v1147, 1.442695
      %v1152 = vpow.pop %v1151
      %v1153 = vmul.f32 %v1148, 1.442695
      %v1154 = vpow.pop %v1153
      %v1155 = vadd.f32 %v1150, 1.0
      %v1156 = vadd.f32 %v1152, 1.0
      %v1157 = vadd.f32 %v1154, 1.0
      %v1158 = vrcp.pop %v1155
      %v1159 = vmul.f32 1.0, %v1158
      %v1160 = vrcp.pop %v1156
      %v1161 = vmul.f32 1.0, %v1160
      %v1162 = vrcp.pop %v1157
      %v1163 = vmul.f32 1.0, %v1162
      %v1164 = vtanh.pop %v1145
      %v1165 = vmul.f32 %v1161, %v890
      %v1166 = vmul.f32 %v1159, %v1164
      %v1167 = vadd.f32 %v1165, %v1166
      %v1168 = vtanh.pop %v1167
      %v1169 = vmul.f32 %v1163, %v1168
      %s1170 = sadd.s32 %s19, 1
      %s1171 = smul.u32 %s1170, 4
      %s1172 = smul.addr %s1171, 8
      %s1173 = scalar_lea.vmem [#allocation2], %s1172
      %v1174 = vld [vmem:[%s1173] sm:$0xff]
      %v1175 = vld [vmem:[%s1173 + $0x8] sm:$0xff]
      %v1176 = vld [vmem:[%s1173 + $0x10] sm:$0xff]
      %v1177 = vld [vmem:[%s1173 + $0x18] sm:$0xff]
      %v1178 = vpack.c.bf16 %v1169, %v1169
      %1179 = vmatprep.subr.bf16.mxu0 %v997
      %1180 = vmatpush1.bf16.msra.mxu0 %v996
      %1181 = vmatprep.subr.bf16.mxu0 %v1001
      %1182 = vmatpush1.bf16.msra.mxu0 %v1000
      %1183 = vmatprep.subr.bf16.mxu0 %v1005
      %1184 = vmatpush1.bf16.msra.mxu0 %v1004
      %1185 = vmatprep.subr.bf16.mxu0 %v1009
      %1186 = vmatpush1.bf16.msra.mxu0 %v1008
      %1187 = vmatprep.subr.bf16.mxu0 %v1013
      %1188 = vmatpush1.bf16.msra.mxu0 %v1012
      %1189 = vmatprep.subr.bf16.mxu0 %v1017
      %1190 = vmatpush1.bf16.msra.mxu0 %v1016
      %1191 = vmatprep.subr.bf16.mxu0 %v1021
      %1192 = vmatpush1.bf16.msra.mxu0 %v1020
      %1193 = vmatprep.subr.bf16.mxu0 %v1025
      %1194 = vmatpush1.bf16.msra.mxu0 %v1024
      %1195 = vmatprep.subr.bf16.mxu0 0
      %1196 = vmatpush1.bf16.msra.mxu0 0
      %1197 = vmatprep.subr.bf16.mxu0 0
      %1198 = vmatpush1.bf16.msra.mxu0 0
      %1199 = vmatprep.subr.bf16.mxu0 0
      %1200 = vmatpush1.bf16.msra.mxu0 0
      %1201 = vmatprep.subr.bf16.mxu0 0
      %1202 = vmatpush1.bf16.msra.mxu0 0
      %1203 = vmatprep.subr.bf16.mxu0 0
      %1204 = vmatpush1.bf16.msra.mxu0 0
      %1205 = vmatprep.subr.bf16.mxu0 0
      %1206 = vmatpush1.bf16.msra.mxu0 0
      %1207 = vmatprep.subr.bf16.mxu0 0
      %1208 = vmatpush1.bf16.msra.mxu0 0
      %1209 = vmatprep.subr.bf16.mxu0 0
      %1210 = vmatpush1.bf16.msra.mxu0 0
      %1211 = vmatprep.mubr.bf16.mxu0 0
      %1212 = vmatmul.mubr.bf16.gmra.mrb[0].mxu0 %v1178
      %v1213 = vpop.f32.mrb[0].mxu0
      %v1214 = vadd.f32 0.0, %v1213
      %v1215 = vpop.f32.mrb[0].mxu0
      %v1216 = vadd.f32 0.0, %v1215
      %v1217 = vpop.f32.mrb[0].mxu0
      %v1218 = vpop.f32.mrb[0].mxu0
      %1219 = vdwg.mxu0
      %1220 = vmatprep.subr.bf16.mxu0 %v999
      %1221 = vmatpush1.bf16.msra.mxu0 %v998
      %1222 = vmatprep.subr.bf16.mxu0 %v1003
      %1223 = vmatpush1.bf16.msra.mxu0 %v1002
      %1224 = vmatprep.subr.bf16.mxu0 %v1007
      %1225 = vmatpush1.bf16.msra.mxu0 %v1006
      %1226 = vmatprep.subr.bf16.mxu0 %v1011
      %1227 = vmatpush1.bf16.msra.mxu0 %v1010
      %1228 = vmatprep.subr.bf16.mxu0 %v1015
      %1229 = vmatpush1.bf16.msra.mxu0 %v1014
      %1230 = vmatprep.subr.bf16.mxu0 %v1019
      %1231 = vmatpush1.bf16.msra.mxu0 %v1018
      %1232 = vmatprep.subr.bf16.mxu0 %v1023
      %1233 = vmatpush1.bf16.msra.mxu0 %v1022
      %1234 = vmatprep.subr.bf16.mxu0 %v1027
      %1235 = vmatpush1.bf16.msra.mxu0 %v1026
      %1236 = vmatprep.subr.bf16.mxu0 0
      %1237 = vmatpush1.bf16.msra.mxu0 0
      %1238 = vmatprep.subr.bf16.mxu0 0
      %1239 = vmatpush1.bf16.msra.mxu0 0
      %1240 = vmatprep.subr.bf16.mxu0 0
      %1241 = vmatpush1.bf16.msra.mxu0 0
      %1242 = vmatprep.subr.bf16.mxu0 0
      %1243 = vmatpush1.bf16.msra.mxu0 0
      %1244 = vmatprep.subr.bf16.mxu0 0
      %1245 = vmatpush1.bf16.msra.mxu0 0
      %1246 = vmatprep.subr.bf16.mxu0 0
      %1247 = vmatpush1.bf16.msra.mxu0 0
      %1248 = vmatprep.subr.bf16.mxu0 0
      %1249 = vmatpush1.bf16.msra.mxu0 0
      %1250 = vmatprep.subr.bf16.mxu0 0
      %1251 = vmatpush1.bf16.msra.mxu0 0
      %1252 = vmatprep.mubr.bf16.mxu0 0
      %1253 = vmatmul.mubr.bf16.gmra.mrb[0].mxu0 %v1178
      %v1254 = vpop.f32.mrb[0].mxu0
      %v1255 = vadd.f32 0.0, %v1254
      %v1256 = vpop.f32.mrb[0].mxu0
      %v1257 = vadd.f32 0.0, %v1256
      %v1258 = vpop.f32.mrb[0].mxu0
      %v1259 = vpop.f32.mrb[0].mxu0
      %1260 = vdwg.mxu0
      %v1261 = vadd.f32 %v1174, %v1214
      %v1262 = vadd.f32 %v1175, %v1216
      %v1263 = vadd.f32 %v1176, %v1255
      %v1264 = vadd.f32 %v1177, %v1257
      %v1265 = vxor.u32 %v1261, 2147483648
      %v1266 = vxor.u32 %v1262, 2147483648
      %v1267 = vxor.u32 %v1263, 2147483648
      %v1268 = vmul.f32 %v1265, 1.442695
      %v1269 = vpow.pop %v1268
      %v1270 = vmul.f32 %v1266, 1.442695
      %v1271 = vpow.pop %v1270
      %v1272 = vmul.f32 %v1267, 1.442695
      %v1273 = vpow.pop %v1272
      %v1274 = vadd.f32 %v1269, 1.0
      %v1275 = vadd.f32 %v1271, 1.0
      %v1276 = vadd.f32 %v1273, 1.0
      %v1277 = vrcp.pop %v1274
      %v1278 = vmul.f32 1.0, %v1277
      %v1279 = vrcp.pop %v1275
      %v1280 = vmul.f32 1.0, %v1279
      %v1281 = vrcp.pop %v1276
      %v1282 = vmul.f32 1.0, %v1281
      %v1283 = vtanh.pop %v1264
      %v1284 = vmul.f32 %v1280, %v1167
      %v1285 = vmul.f32 %v1278, %v1283
      %v1286 = vadd.f32 %v1284, %v1285
      %v1287 = vtanh.pop %v1286
      %v1288 = vmul.f32 %v1282, %v1287
      %s1289 = ssub.s32 2, %s19
      %s1290 = smul.u32 %s1289, 4
      %s1291 = smul.addr %s1290, 8
      %s1292 = scalar_lea.vmem [#allocation2], %s1291
      %v1293 = vld [vmem:[%s1292] sm:$0xff]
      %v1294 = vld [vmem:[%s1292 + $0x8] sm:$0xff]
      %v1295 = vld [vmem:[%s1292 + $0x10] sm:$0xff]
      %v1296 = vld [vmem:[%s1292 + $0x18] sm:$0xff]
      %v1297 = vpack.c.bf16 %v1288, %v1288
      %1298 = vmatprep.subr.bf16.mxu0 %v997
      %1299 = vmatpush1.bf16.msra.mxu0 %v996
      %1300 = vmatprep.subr.bf16.mxu0 %v1001
      %1301 = vmatpush1.bf16.msra.mxu0 %v1000
      %1302 = vmatprep.subr.bf16.mxu0 %v1005
      %1303 = vmatpush1.bf16.msra.mxu0 %v1004
      %1304 = vmatprep.subr.bf16.mxu0 %v1009
      %1305 = vmatpush1.bf16.msra.mxu0 %v1008
      %1306 = vmatprep.subr.bf16.mxu0 %v1013
      %1307 = vmatpush1.bf16.msra.mxu0 %v1012
      %1308 = vmatprep.subr.bf16.mxu0 %v1017
      %1309 = vmatpush1.bf16.msra.mxu0 %v1016
      %1310 = vmatprep.subr.bf16.mxu0 %v1021
      %1311 = vmatpush1.bf16.msra.mxu0 %v1020
      %1312 = vmatprep.subr.bf16.mxu0 %v1025
      %1313 = vmatpush1.bf16.msra.mxu0 %v1024
      %1314 = vmatprep.subr.bf16.mxu0 0
      %1315 = vmatpush1.bf16.msra.mxu0 0
      %1316 = vmatprep.subr.bf16.mxu0 0
      %1317 = vmatpush1.bf16.msra.mxu0 0
      %1318 = vmatprep.subr.bf16.mxu0 0
      %1319 = vmatpush1.bf16.msra.mxu0 0
      %1320 = vmatprep.subr.bf16.mxu0 0
      %1321 = vmatpush1.bf16.msra.mxu0 0
      %1322 = vmatprep.subr.bf16.mxu0 0
      %1323 = vmatpush1.bf16.msra.mxu0 0
      %1324 = vmatprep.subr.bf16.mxu0 0
      %1325 = vmatpush1.bf16.msra.mxu0 0
      %1326 = vmatprep.subr.bf16.mxu0 0
      %1327 = vmatpush1.bf16.msra.mxu0 0
      %1328 = vmatprep.subr.bf16.mxu0 0
      %1329 = vmatpush1.bf16.msra.mxu0 0
      %1330 = vmatprep.mubr.bf16.mxu0 0
      %1331 = vmatmul.mubr.bf16.gmra.mrb[0].mxu0 %v1297
      %v1332 = vpop.f32.mrb[0].mxu0
      %v1333 = vadd.f32 0.0, %v1332
      %v1334 = vpop.f32.mrb[0].mxu0
      %v1335 = vadd.f32 0.0, %v1334
      %v1336 = vpop.f32.mrb[0].mxu0
      %v1337 = vpop.f32.mrb[0].mxu0
      %1338 = vdwg.mxu0
      %1339 = vmatprep.subr.bf16.mxu0 %v999
      %1340 = vmatpush1.bf16.msra.mxu0 %v998
      %1341 = vmatprep.subr.bf16.mxu0 %v1003
      %1342 = vmatpush1.bf16.msra.mxu0 %v1002
      %1343 = vmatprep.subr.bf16.mxu0 %v1007
      %1344 = vmatpush1.bf16.msra.mxu0 %v1006
      %1345 = vmatprep.subr.bf16.mxu0 %v1011
      %1346 = vmatpush1.bf16.msra.mxu0 %v1010
      %1347 = vmatprep.subr.bf16.mxu0 %v1015
      %1348 = vmatpush1.bf16.msra.mxu0 %v1014
      %1349 = vmatprep.subr.bf16.mxu0 %v1019
      %1350 = vmatpush1.bf16.msra.mxu0 %v1018
      %1351 = vmatprep.subr.bf16.mxu0 %v1023
      %1352 = vmatpush1.bf16.msra.mxu0 %v1022
      %1353 = vmatprep.subr.bf16.mxu0 %v1027
      %1354 = vmatpush1.bf16.msra.mxu0 %v1026
      %1355 = vmatprep.subr.bf16.mxu0 0
      %1356 = vmatpush1.bf16.msra.mxu0 0
      %1357 = vmatprep.subr.bf16.mxu0 0
      %1358 = vmatpush1.bf16.msra.mxu0 0
      %1359 = vmatprep.subr.bf16.mxu0 0
      %1360 = vmatpush1.bf16.msra.mxu0 0
      %1361 = vmatprep.subr.bf16.mxu0 0
      %1362 = vmatpush1.bf16.msra.mxu0 0
      %1363 = vmatprep.subr.bf16.mxu0 0
      %1364 = vmatpush1.bf16.msra.mxu0 0
      %1365 = vmatprep.subr.bf16.mxu0 0
      %1366 = vmatpush1.bf16.msra.mxu0 0
      %1367 = vmatprep.subr.bf16.mxu0 0
      %1368 = vmatpush1.bf16.msra.mxu0 0
      %1369 = vmatprep.subr.bf16.mxu0 0
      %1370 = vmatpush1.bf16.msra.mxu0 0
      %1371 = vmatprep.mubr.bf16.mxu0 0
      %1372 = vmatmul.mubr.bf16.gmra.mrb[0].mxu0 %v1297
      %v1373 = vpop.f32.mrb[0].mxu0
      %v1374 = vadd.f32 0.0, %v1373
      %v1375 = vpop.f32.mrb[0].mxu0
      %v1376 = vadd.f32 0.0, %v1375
      %v1377 = vpop.f32.mrb[0].mxu0
      %v1378 = vpop.f32.mrb[0].mxu0
      %1379 = vdwg.mxu0
      %v1380 = vadd.f32 %v1293, %v1333
      %v1381 = vadd.f32 %v1294, %v1335
      %v1382 = vadd.f32 %v1295, %v1374
      %v1383 = vadd.f32 %v1296, %v1376
      %v1384 = vxor.u32 %v1380, 2147483648
      %v1385 = vxor.u32 %v1381, 2147483648
      %v1386 = vxor.u32 %v1382, 2147483648
      %v1387 = vmul.f32 %v1384, 1.442695
      %v1388 = vpow.pop %v1387
      %v1389 = vmul.f32 %v1385, 1.442695
      %v1390 = vpow.pop %v1389
      %v1391 = vmul.f32 %v1386, 1.442695
      %v1392 = vpow.pop %v1391
      %v1393 = vadd.f32 %v1388, 1.0
      %v1394 = vadd.f32 %v1390, 1.0
      %v1395 = vadd.f32 %v1392, 1.0
      %v1396 = vrcp.pop %v1393
      %v1397 = vmul.f32 1.0, %v1396
      %v1398 = vrcp.pop %v1394
      %v1399 = vmul.f32 1.0, %v1398
      %v1400 = vrcp.pop %v1395
      %v1401 = vmul.f32 1.0, %v1400
      %v1402 = vtanh.pop %v1383
      %v1403 = vmul.f32 %v1399, %v1286
      %v1404 = vmul.f32 %v1397, %v1402
      %v1405 = vadd.f32 %v1403, %v1404
      %v1406 = vtanh.pop %v1405
      %v1407 = vmul.f32 %v1401, %v1406
      %s1408 = smul.u32 %s19, 4294967293
      %s1409 = sadd.s32 %s1408, 3
      %s1410 = smul.u32 %s1409, 4
      %s1411 = smul.addr %s1410, 8
      %s1412 = scalar_lea.vmem [#allocation2], %s1411
      %v1413 = vld [vmem:[%s1412] sm:$0xff]
      %v1414 = vld [vmem:[%s1412 + $0x8] sm:$0xff]
      %v1415 = vld [vmem:[%s1412 + $0x10] sm:$0xff]
      %v1416 = vld [vmem:[%s1412 + $0x18] sm:$0xff]
      %v1417 = vpack.c.bf16 %v1407, %v1407
      %1418 = vmatprep.subr.bf16.mxu0 %v997
      %1419 = vmatpush1.bf16.msra.mxu0 %v996
      %1420 = vmatprep.subr.bf16.mxu0 %v1001
      %1421 = vmatpush1.bf16.msra.mxu0 %v1000
      %1422 = vmatprep.subr.bf16.mxu0 %v1005
      %1423 = vmatpush1.bf16.msra.mxu0 %v1004
      %1424 = vmatprep.subr.bf16.mxu0 %v1009
      %1425 = vmatpush1.bf16.msra.mxu0 %v1008
      %1426 = vmatprep.subr.bf16.mxu0 %v1013
      %1427 = vmatpush1.bf16.msra.mxu0 %v1012
      %1428 = vmatprep.subr.bf16.mxu0 %v1017
      %1429 = vmatpush1.bf16.msra.mxu0 %v1016
      %1430 = vmatprep.subr.bf16.mxu0 %v1021
      %1431 = vmatpush1.bf16.msra.mxu0 %v1020
      %1432 = vmatprep.subr.bf16.mxu0 %v1025
      %1433 = vmatpush1.bf16.msra.mxu0 %v1024
      %1434 = vmatprep.subr.bf16.mxu0 0
      %1435 = vmatpush1.bf16.msra.mxu0 0
      %1436 = vmatprep.subr.bf16.mxu0 0
      %1437 = vmatpush1.bf16.msra.mxu0 0
      %1438 = vmatprep.subr.bf16.mxu0 0
      %1439 = vmatpush1.bf16.msra.mxu0 0
      %1440 = vmatprep.subr.bf16.mxu0 0
      %1441 = vmatpush1.bf16.msra.mxu0 0
      %1442 = vmatprep.subr.bf16.mxu0 0
      %1443 = vmatpush1.bf16.msra.mxu0 0
      %1444 = vmatprep.subr.bf16.mxu0 0
      %1445 = vmatpush1.bf16.msra.mxu0 0
      %1446 = vmatprep.subr.bf16.mxu0 0
      %1447 = vmatpush1.bf16.msra.mxu0 0
      %1448 = vmatprep.subr.bf16.mxu0 0
      %1449 = vmatpush1.bf16.msra.mxu0 0
      %1450 = vmatprep.mubr.bf16.mxu0 0
      %1451 = vmatmul.mubr.bf16.gmra.mrb[0].mxu0 %v1417
      %v1452 = vpop.f32.mrb[0].mxu0
      %v1453 = vadd.f32 0.0, %v1452
      %v1454 = vpop.f32.mrb[0].mxu0
      %v1455 = vadd.f32 0.0, %v1454
      %v1456 = vpop.f32.mrb[0].mxu0
      %v1457 = vpop.f32.mrb[0].mxu0
      %1458 = vdwg.mxu0
      %1459 = vmatprep.subr.bf16.mxu0 %v999
      %1460 = vmatpush1.bf16.msra.mxu0 %v998
      %1461 = vmatprep.subr.bf16.mxu0 %v1003
      %1462 = vmatpush1.bf16.msra.mxu0 %v1002
      %1463 = vmatprep.subr.bf16.mxu0 %v1007
      %1464 = vmatpush1.bf16.msra.mxu0 %v1006
      %1465 = vmatprep.subr.bf16.mxu0 %v1011
      %1466 = vmatpush1.bf16.msra.mxu0 %v1010
      %1467 = vmatprep.subr.bf16.mxu0 %v1015
      %1468 = vmatpush1.bf16.msra.mxu0 %v1014
      %1469 = vmatprep.subr.bf16.mxu0 %v1019
      %1470 = vmatpush1.bf16.msra.mxu0 %v1018
      %1471 = vmatprep.subr.bf16.mxu0 %v1023
      %1472 = vmatpush1.bf16.msra.mxu0 %v1022
      %1473 = vmatprep.subr.bf16.mxu0 %v1027
      %1474 = vmatpush1.bf16.msra.mxu0 %v1026
      %1475 = vmatprep.subr.bf16.mxu0 0
      %1476 = vmatpush1.bf16.msra.mxu0 0
      %1477 = vmatprep.subr.bf16.mxu0 0
      %1478 = vmatpush1.bf16.msra.mxu0 0
      %1479 = vmatprep.subr.bf16.mxu0 0
      %1480 = vmatpush1.bf16.msra.mxu0 0
      %1481 = vmatprep.subr.bf16.mxu0 0
      %1482 = vmatpush1.bf16.msra.mxu0 0
      %1483 = vmatprep.subr.bf16.mxu0 0
      %1484 = vmatpush1.bf16.msra.mxu0 0
      %1485 = vmatprep.subr.bf16.mxu0 0
      %1486 = vmatpush1.bf16.msra.mxu0 0
      %1487 = vmatprep.subr.bf16.mxu0 0
      %1488 = vmatpush1.bf16.msra.mxu0 0
      %1489 = vmatprep.subr.bf16.mxu0 0
      %1490 = vmatpush1.bf16.msra.mxu0 0
      %1491 = vmatprep.mubr.bf16.mxu0 0
      %1492 = vmatmul.mubr.bf16.gmra.mrb[0].mxu0 %v1417
      %v1493 = vpop.f32.mrb[0].mxu0
      %v1494 = vadd.f32 0.0, %v1493
      %v1495 = vpop.f32.mrb[0].mxu0
      %v1496 = vadd.f32 0.0, %v1495
      %v1497 = vpop.f32.mrb[0].mxu0
      %v1498 = vpop.f32.mrb[0].mxu0
      %1499 = vdwg.mxu0
      %v1500 = vadd.f32 %v1413, %v1453
      %v1501 = vadd.f32 %v1414, %v1455
      %v1502 = vadd.f32 %v1415, %v1494
      %v1503 = vadd.f32 %v1416, %v1496
      %v1504 = vxor.u32 %v1500, 2147483648
      %v1505 = vxor.u32 %v1501, 2147483648
      %v1506 = vxor.u32 %v1502, 2147483648
      %v1507 = vmul.f32 %v1504, 1.442695
      %v1508 = vpow.pop %v1507
      %v1509 = vmul.f32 %v1505, 1.442695
      %v1510 = vpow.pop %v1509
      %v1511 = vmul.f32 %v1506, 1.442695
      %v1512 = vpow.pop %v1511
      %v1513 = vadd.f32 %v1508, 1.0
      %v1514 = vadd.f32 %v1510, 1.0
      %v1515 = vadd.f32 %v1512, 1.0
      %v1516 = vrcp.pop %v1513
      %v1517 = vmul.f32 1.0, %v1516
      %v1518 = vrcp.pop %v1514
      %v1519 = vmul.f32 1.0, %v1518
      %v1520 = vrcp.pop %v1515
      %v1521 = vmul.f32 1.0, %v1520
      %v1522 = vtanh.pop %v1503
      %v1523 = vmul.f32 %v1519, %v1405
      %v1524 = vmul.f32 %v1517, %v1522
      %v1525 = vadd.f32 %v1523, %v1524
      %v1526 = vtanh.pop %v1525
      %v1527 = vmul.f32 %v1521, %v1526
      %1528 = vst [vmem:[#allocation3] sm:$0xff] %v1527
      %1529 = vst [vmem:[#allocation4] sm:$0xff] %v1525
      %p1530 = scmp.eq.s32.totalorder %s20, 1
      // Predicated region
      $region41: #{lstm_classifier_forward.3} parent=35 // pred_check
        %p1531 = pneg %p1530
      $region42: #{lstm_classifier_forward.3} parent=35 // pred_check_branch
        %1533 = sbr.rel (%p1531) target = $region44
      $region43: #{lstm_classifier_forward.3} parent=35 // pred_region
        %1534 = vst [vmem:[%s297] sm:$0xff] %v1527
      $region44: #{lstm_classifier_forward.3} parent=35 // pred_fallthru
        _
      %p1535 = scmp.lt.s32.totalorder %s19, 1
      %s1536 = scalar_select %p1535, %s19, 1
      %s1537 = smul.addr %s1536, 8
      %s1538 = scalar_lea.vmem %s4, %s1537
      // Predicated region
      $region45: #{lstm_classifier_forward.3} parent=35 // pred_check
        %p1539 = pneg %p157
      $region46: #{lstm_classifier_forward.3} parent=35 // pred_check_branch
        %1541 = sbr.rel (%p1539) target = $region48
      $region47: #{lstm_classifier_forward.3} parent=35 // pred_region
        _
      $region48: #{lstm_classifier_forward.3} parent=35 // pred_fallthru
        _
    $region36: #{lstm_classifier_forward.3} parent=5 // pred_fallthru
      _
    %p1542 = scmp.le.s32.totalorder 2, %s10
    // Predicated region
    $region49: #{lstm_classifier_forward.3} parent=5 // pred_check
      %p1543 = pneg %p1542
    $region50: #{lstm_classifier_forward.3} parent=5 // pred_check_branch
      %1545 = sbr.rel (%p1543) target = $region52
    $region51: #{lstm_classifier_forward.3} parent=5 // pred_region
      %s1546 = ssub.s32 %s10, 2
      // Predicated region
      $region53: #{lstm_classifier_forward.3} parent=51 // pred_check
        %p1547 = pneg %p163
      $region54: #{lstm_classifier_forward.3} parent=51 // pred_check_branch
        %1549 = sbr.rel (%p1547) target = $region56
      $region55: #{lstm_classifier_forward.3} parent=51 // pred_region
        %p1550 = scmp.lt.s32.totalorder %s21, 1
        %s1551 = scalar_select %p1550, %s21, 1
        %s1552 = smul.addr %s1551, 8
        %s1553 = scalar_lea.vmem %s4, %s1552
      $region56: #{lstm_classifier_forward.3} parent=51 // pred_fallthru
        _
    $region52: #{lstm_classifier_forward.3} parent=5 // pred_fallthru
      _
  $region6: #{lstm_classifier_forward.3} parent=0 // loop_footer
    %s14 = sadd.s32 1, %s10
  $region7: #{lstm_classifier_forward.3} parent=0 // loop_footer_branch
    %9 = sbr.rel target = $region3
  $region8: #{lstm_classifier_forward.3} parent=0 // loop_exit
    _

</llo_original>
